<compile_context>
chip_gen: v5e
topology: v5e:2x2
jax: 0.10.0
libtpu: 0.0.40
codegen_flags: <defaults>
</compile_context>

<pallas_src>
import numpy as np

import jax
import jax.numpy as jnp
from jax import lax
from jax.experimental import pallas as pl
from jax.experimental.pallas import tpu as pltpu

C_IN = 32          # convm1 in/out channels (module is hard-wired to 32)
SCALE2 = (35, 11)  # scale2_size
SCALE3 = (18, 7)   # scale3_size


# ----------------------- host-side (trace-time) constants ------------------- #

def _bilinear_matrix(out_size, in_size):
    """1-D interpolation matrix matching torch interpolate(mode='bilinear',
    align_corners=True): out = M @ in."""
    m = np.zeros((out_size, in_size), np.float32)
    if out_size == 1:
        pos = np.zeros((1,), np.float64)
    else:
        pos = np.arange(out_size, dtype=np.float64) * (in_size - 1) / (out_size - 1)
    i0 = np.clip(np.floor(pos).astype(np.int64), 0, in_size - 1)
    i1 = np.minimum(i0 + 1, in_size - 1)
    w = (pos - i0).astype(np.float32)
    rows = np.arange(out_size)
    np.add.at(m, (rows, i0), 1.0 - w)
    np.add.at(m, (rows, i1), w)
    return m


def _bilinear_pad_kron(h_in, w_in, h_out, w_out):
    """(h_in*w_in, (h_out+2)*(w_out+2)) matrix: bilinear(align_corners=True)
    resize followed by zero padding of 1 on each side, acting on the row-major
    flattened spatial axis (channel-major layout)."""
    ah = _bilinear_matrix(h_out, h_in)                       # (h_out, h_in)
    aw = _bilinear_matrix(w_out, w_in)                       # (w_out, w_in)
    core = np.einsum('oh,pw->hwop', ah, aw).reshape(h_in * w_in, h_out, w_out)
    k = np.zeros((h_in * w_in, h_out + 2, w_out + 2), np.float32)
    k[:, 1:h_out + 1, 1:w_out + 1] = core
    return k.reshape(h_in * w_in, (h_out + 2) * (w_out + 2))


def _nearest_idx(tgt_hw, tgt_stride, tgt_len, src_hw, src_stride):
    """torch interpolate(mode='nearest') source indices, expressed in the
    *stored* (possibly junk-padded-stride) flat layouts used in the kernel."""
    ht_sz, wt_sz = tgt_hw
    hs_sz, ws_sz = src_hw
    q = np.arange(tgt_len)
    ht, wt = q // tgt_stride, q % tgt_stride
    hs = (ht * hs_sz) // ht_sz
    ws = (wt * ws_sz) // wt_sz           # junk target columns may go out of
    return (hs * src_stride + ws).astype(np.int32)  # range -> all-zero one-hot


# ------------------------------- MFF forward -------------------------------- #

def mff_forward(x, params):
    """x: (N, 32, H0, W0) float32, PyTorch NCHW convention. Returns NCHW."""
    n, c, h0, w0 = x.shape
    assert c == C_IN, "MFF is hard-wired to 32 input channels"
    h1, wd1 = SCALE2
    h2, wd2 = SCALE3

    p0 = h0 * w0                     # level-0 stored length (stride = w0)
    st1, st2 = wd1 + 2, wd2 + 2      # stored strides of level-1/2 maps
    p1 = (h1 + 2) * st1              # padded scale-2 flat length (481)
    p2 = (h2 + 2) * st2              # padded scale-3 flat length (180)
    m1 = (h1 - 1) * st1 + wd1        # level-1 stored length (453, junk cols kept)
    m2 = (h2 - 1) * st2 + wd2        # level-2 stored length (160)
    c3 = params["conv3_w"].shape[0]  # 40 output channels

    # --- trace-time constants: fused bilinear+pad matrices, nearest indices --
    kb1 = jnp.asarray(_bilinear_pad_kron(h0, w0, h1, wd1))      # (p0, p1)
    kb2 = jnp.asarray(_bilinear_pad_kron(h0, w0, h2, wd2))      # (p0, p2)

    idx_to0 = jnp.asarray(np.stack([
        _nearest_idx((h0, w0), w0, p0, (h1, wd1), st1),
        _nearest_idx((h0, w0), w0, p0, (h2, wd2), st2)]))       # (2, p0)
    idx_to1 = jnp.asarray(np.stack([
        _nearest_idx((h1, wd1), st1, m1, (h0, w0), w0),
        _nearest_idx((h1, wd1), st1, m1, (h2, wd2), st2)]))     # (2, m1)
    idx_to2 = jnp.asarray(np.stack([
        _nearest_idx((h2, wd2), st2, m2, (h0, w0), w0),
        _nearest_idx((h2, wd2), st2, m2, (h1, wd1), st1)]))     # (2, m2)

    # --- weights in channel-major (Cout, Cin) form ---------------------------
    w1t = jnp.transpose(params["conv1_w"], (2, 3, 0, 1)).reshape(9, C_IN, C_IN)
    b1 = params["conv1_b"].reshape(C_IN, 1).astype(jnp.float32)
    w2t = params["conv2_w"].astype(jnp.float32)                 # (32, 96)
    b2 = params["conv2_b"].reshape(C_IN, 1).astype(jnp.float32)
    w3t = params["conv3_w"].astype(jnp.float32)                 # (40, 96)
    b3 = params["conv3_b"].reshape(c3, 1).astype(jnp.float32)

    x_flat = x.reshape(n, C_IN, p0).astype(jnp.float32)         # free reshape

    # ------------------------------ the kernel ------------------------------ #
    def kernel(x_ref, kb1_ref, kb2_ref, w1_ref, b1_ref, w2_ref, b2_ref,
               w3_ref, b3_ref, i0_ref, i1_ref, i2_ref, o_ref):
        f32 = jnp.float32
        x0 = x_ref[0]                                           # (32, p0)

        # bilinear(align_corners) resize + zero pad, one matmul per scale.
        s2p = jnp.dot(x0, kb1_ref[...], preferred_element_type=f32)  # (32, p1)
        s3p = jnp.dot(x0, kb2_ref[...], preferred_element_type=f32)  # (32, p2)

        b1v = b1_ref[...]

        # convm1 (3x3, pad=1): nine lane-shifted partial dots over the padded,
        # row-major flattened maps (in-kernel im2col).  Output keeps the padded
        # stride so junk columns exist but are never consumed downstream.
        def conv3x3(src, stride, out_len):
            acc = jnp.zeros((C_IN, out_len), f32)
            for dh in range(3):
                for dw in range(3):
                    off = dh * stride + dw
                    acc = acc + jnp.dot(w1_ref[dh * 3 + dw],
                                        src[:, off:off + out_len],
                                        preferred_element_type=f32)
            return acc + b1v

        l1 = conv3x3(s2p, st1, m1)                              # (32, m1)
        l2 = conv3x3(s3p, st2, m2)                              # (32, m2)
        l0 = x0                                                 # (32, p0)

        # nearest-neighbour resize as a one-hot selection matmul (MXU gather):
        # sel[j, i] = 1 iff stored source index of target column i equals j.
        def resize(src, src_len, idx_row):
            tgt_len = idx_row.shape[1]
            rows = lax.broadcasted_iota(jnp.int32, (src_len, tgt_len), 0)
            sel = (rows == idx_row).astype(f32)
            return jnp.dot(src, sel, preferred_element_type=f32)

        i_1to0 = i0_ref[0:1, :]
        i_2to0 = i0_ref[1:2, :]
        i_0to1 = i1_ref[0:1, :]
        i_2to1 = i1_ref[1:2, :]
        i_0to2 = i2_ref[0:1, :]
        i_1to2 = i2_ref[1:2, :]

        l1_0 = resize(l1, m1, i_1to0)
        l2_0 = resize(l2, m2, i_2to0)
        l0_1 = resize(l0, p0, i_0to1)
        l2_1 = resize(l2, m2, i_2to1)
        l0_2 = resize(l0, p0, i_0to2)
        l1_2 = resize(l1, m1, i_1to2)

        w2v = w2_ref[...]
        b2v = b2_ref[...]

        # convm2 (1x1, 96->32): one K=96 dot per pyramid level.
        f0 = jnp.dot(w2v, jnp.concatenate([l0, l1_0, l2_0], axis=0),
                     preferred_element_type=f32) + b2v
        f1 = jnp.dot(w2v, jnp.concatenate([l1, l0_1, l2_1], axis=0),
                     preferred_element_type=f32) + b2v
        f2 = jnp.dot(w2v, jnp.concatenate([l2, l1_2, l0_2], axis=0),
                     preferred_element_type=f32) + b2v

        f1_0 = resize(f1, m1, i_1to0)
        f2_0 = resize(f2, m2, i_2to0)

        # convm3 (1x1, 96->40); channel-major output => lane-dense (40, p0) store
        # and the NCHW result needs no transpose in the wrapper.
        o_ref[0] = jnp.dot(w3_ref[...],
                           jnp.concatenate([f0, f1_0, f2_0], axis=0),
                           preferred_element_type=f32) + b3_ref[...]

    grid_spec = pltpu.PrefetchScalarGridSpec(
        num_scalar_prefetch=0,
        grid=(n,),                                   # one image per grid step
        in_specs=[
            pl.BlockSpec((1, C_IN, p0), lambda i: (i, 0, 0)),     # x
            pl.BlockSpec((p0, p1), lambda i: (0, 0)),             # kb1
            pl.BlockSpec((p0, p2), lambda i: (0, 0)),             # kb2
            pl.BlockSpec((9, C_IN, C_IN), lambda i: (0, 0, 0)),   # w1 taps
            pl.BlockSpec((C_IN, 1), lambda i: (0, 0)),            # b1
            pl.BlockSpec((C_IN, 3 * C_IN), lambda i: (0, 0)),     # w2
            pl.BlockSpec((C_IN, 1), lambda i: (0, 0)),            # b2
            pl.BlockSpec((c3, 3 * C_IN), lambda i: (0, 0)),       # w3
            pl.BlockSpec((c3, 1), lambda i: (0, 0)),              # b3
            pl.BlockSpec((2, p0), lambda i: (0, 0)),              # idx -> lvl0
            pl.BlockSpec((2, m1), lambda i: (0, 0)),              # idx -> lvl1
            pl.BlockSpec((2, m2), lambda i: (0, 0)),              # idx -> lvl2
        ],
        out_specs=pl.BlockSpec((1, c3, p0), lambda i: (i, 0, 0)),
    )

    out = pl.pallas_call(
        kernel,
        out_shape=jax.ShapeDtypeStruct((n, c3, p0), jnp.float32),
        grid_spec=grid_spec,
        compiler_params=pltpu.CompilerParams(
            dimension_semantics=("parallel",)),
    )(x_flat, kb1, kb2, w1t, b1, w2t, b2, w3t, b3, idx_to0, idx_to1, idx_to2)

    return out.reshape(n, c3, h0, w0)                # already NCHW


# ------------------------- plain-JAX f32 reference -------------------------- #

def mff_reference(x, params):
    n, c, h0, w0 = x.shape
    h1, wd1 = SCALE2
    h2, wd2 = SCALE3
    ah1 = jnp.asarray(_bilinear_matrix(h1, h0))
    aw1 = jnp.asarray(_bilinear_matrix(wd1, w0))
    ah2 = jnp.asarray(_bilinear_matrix(h2, h0))
    aw2 = jnp.asarray(_bilinear_matrix(wd2, w0))

    def bilinear(z, ah, aw):
        z = jnp.einsum('oh,nchw->ncow', ah, z)
        return jnp.einsum('pw,ncow->ncop', aw, z)

    def conv3x3(z):
        y = lax.conv_general_dilated(
            z, params["conv1_w"], (1, 1), ((1, 1), (1, 1)),
            dimension_numbers=("NCHW", "OIHW", "NCHW"))
        return y + params["conv1_b"][None, :, None, None]

    def conv1x1(z, w, b):
        return jnp.einsum('oc,nchw->nohw', w, z) + b[None, :, None, None]

    def nearest(z, oh, ow):
        hh, ww = z.shape[2], z.shape[3]
        ys = (np.arange(oh) * hh) // oh
        xs = (np.arange(ow) * ww) // ow
        return z[:, :, ys, :][:, :, :, xs]

    l0 = x
    l1 = conv3x3(bilinear(x, ah1, aw1))
    l2 = conv3x3(bilinear(x, ah2, aw2))
    l1_0, l2_0 = nearest(l1, h0, w0), nearest(l2, h0, w0)
    l0_1, l2_1 = nearest(l0, h1, wd1), nearest(l2, h1, wd1)
    l0_2, l1_2 = nearest(l0, h2, wd2), nearest(l1, h2, wd2)
    f0 = conv1x1(jnp.concatenate([l0, l1_0, l2_0], 1), params["conv2_w"], params["conv2_b"])
    f1 = conv1x1(jnp.concatenate([l1, l0_1, l2_1], 1), params["conv2_w"], params["conv2_b"])
    f2 = conv1x1(jnp.concatenate([l2, l1_2, l0_2], 1), params["conv2_w"], params["conv2_b"])
    f1_0, f2_0 = nearest(f1, h0, w0), nearest(f2, h0, w0)
    return conv1x1(jnp.concatenate([f0, f1_0, f2_0], 1), params["conv3_w"], params["conv3_b"])


# ---------------------------------- main ------------------------------------ #

if __name__ == "__main__":
    key = jax.random.PRNGKey(0)
    kx, k1, k2, k3, k4, k5, k6 = jax.random.split(key, 7)
    # Synthetic parameters in the natural PyTorch layouts:
    #   convm1: Conv2d(32,32,3,pad=1) -> weight (32,32,3,3) OIHW, bias (32,)
    #   convm2: Conv2d(96,32,1)       -> weight[:, :, 0, 0] = (32, 96), bias (32,)
    #   convm3: Conv2d(96,40,1)       -> weight[:, :, 0, 0] = (40, 96), bias (40,)
    params = {
        "conv1_w": jax.random.normal(k1, (32, 32, 3, 3), jnp.float32) * 0.05,
        "conv1_b": jax.random.normal(k2, (32,), jnp.float32) * 0.05,
        "conv2_w": jax.random.normal(k3, (32, 96), jnp.float32) * 0.05,
        "conv2_b": jax.random.normal(k4, (32,), jnp.float32) * 0.05,
        "conv3_w": jax.random.normal(k5, (40, 96), jnp.float32) * 0.05,
        "conv3_b": jax.random.normal(k6, (40,), jnp.float32) * 0.05,
    }

    x = jax.random.normal(kx, (2, 32, 16, 16), jnp.float32)   # NCHW; C must be 32

    out = jax.block_until_ready(jax.jit(mff_forward)(x, params))
    assert out.shape == (2, 40, 16, 16), out.shape
    assert bool(jnp.all(jnp.isfinite(out)))

    # Tolerance check against an independent plain-JAX f32 reference
    # (loose bound: both paths may use MXU/bf16-pass rounding for f32 dots).
    ref = jax.block_until_ready(jax.jit(mff_reference)(x, params))
    err = float(jnp.max(jnp.abs(out - ref)))
    assert err < 2e-1, f"kernel diverges from f32 reference: max abs err = {err}"

    print("KERNEL_OK")
</pallas_src>

<mosaic_0001>
module attributes {stable_mosaic.version = 11 : i64} {
  func.func @kernel(%arg0: i32, %arg1: memref<1x32x256xf32, #tpu.memory_space<vmem>>, %arg2: memref<256x481xf32, #tpu.memory_space<vmem>>, %arg3: memref<256x180xf32, #tpu.memory_space<vmem>>, %arg4: memref<9x32x32xf32, #tpu.memory_space<vmem>>, %arg5: memref<32x1xf32, #tpu.memory_space<vmem>>, %arg6: memref<32x96xf32, #tpu.memory_space<vmem>>, %arg7: memref<32x1xf32, #tpu.memory_space<vmem>>, %arg8: memref<40x96xf32, #tpu.memory_space<vmem>>, %arg9: memref<40x1xf32, #tpu.memory_space<vmem>>, %arg10: memref<2x256xi32, #tpu.memory_space<vmem>>, %arg11: memref<2x453xi32, #tpu.memory_space<vmem>>, %arg12: memref<2x160xi32, #tpu.memory_space<vmem>>, %arg13: memref<1x40x256xf32, #tpu.memory_space<vmem>>) attributes {dimension_semantics = [#tpu.dimension_semantics<parallel>], iteration_bounds = array<i64: 2>, scalar_prefetch = 0 : i64, scratch_operands = 0 : i64, tpu.core_type = #tpu.core_type<tc>, window_params = [{transform_indices = @transform_0, window_bounds = array<i64: 1, 32, 256>}, {pipeline_mode = #tpu.pipeline_mode<synchronous>, transform_indices = @transform_1, window_bounds = array<i64: 256, 481>}, {pipeline_mode = #tpu.pipeline_mode<synchronous>, transform_indices = @transform_2, window_bounds = array<i64: 256, 180>}, {pipeline_mode = #tpu.pipeline_mode<synchronous>, transform_indices = @transform_3, window_bounds = array<i64: 9, 32, 32>}, {pipeline_mode = #tpu.pipeline_mode<synchronous>, transform_indices = @transform_4, window_bounds = array<i64: 32, 1>}, {pipeline_mode = #tpu.pipeline_mode<synchronous>, transform_indices = @transform_5, window_bounds = array<i64: 32, 96>}, {pipeline_mode = #tpu.pipeline_mode<synchronous>, transform_indices = @transform_6, window_bounds = array<i64: 32, 1>}, {pipeline_mode = #tpu.pipeline_mode<synchronous>, transform_indices = @transform_7, window_bounds = array<i64: 40, 96>}, {pipeline_mode = #tpu.pipeline_mode<synchronous>, transform_indices = @transform_8, window_bounds = array<i64: 40, 1>}, {pipeline_mode = #tpu.pipeline_mode<synchronous>, transform_indices = @transform_9, window_bounds = array<i64: 2, 256>}, {pipeline_mode = #tpu.pipeline_mode<synchronous>, transform_indices = @transform_10, window_bounds = array<i64: 2, 453>}, {pipeline_mode = #tpu.pipeline_mode<synchronous>, transform_indices = @transform_11, window_bounds = array<i64: 2, 160>}, {transform_indices = @transform_12, window_bounds = array<i64: 1, 40, 256>}]} {
    %c0 = arith.constant 0 : index
    %c0_0 = arith.constant 0 : index
    %c0_1 = arith.constant 0 : index
    %0 = vector.load %arg1[%c0, %c0_0, %c0_1] : memref<1x32x256xf32, #tpu.memory_space<vmem>>, vector<1x32x256xf32>
    %1 = vector.shape_cast %0 : vector<1x32x256xf32> to vector<32x256xf32>
    %c0_2 = arith.constant 0 : index
    %c0_3 = arith.constant 0 : index
    %2 = vector.load %arg2[%c0_2, %c0_3] : memref<256x481xf32, #tpu.memory_space<vmem>>, vector<256x481xf32>
    %cst = arith.constant dense<0.000000e+00> : vector<32x481xf32>
    %3 = tpu.matmul %1, %2, %cst {dimension_numbers = #tpu.dot_dimension_numbers<[1], [0], [0], [1], [0, 0, 1, 1], [], []>} : vector<32x256xf32>, vector<256x481xf32>, vector<32x481xf32> -> vector<32x481xf32>
    %c0_4 = arith.constant 0 : index
    %c0_5 = arith.constant 0 : index
    %4 = vector.load %arg3[%c0_4, %c0_5] : memref<256x180xf32, #tpu.memory_space<vmem>>, vector<256x180xf32>
    %cst_6 = arith.constant dense<0.000000e+00> : vector<32x180xf32>
    %5 = tpu.matmul %1, %4, %cst_6 {dimension_numbers = #tpu.dot_dimension_numbers<[1], [0], [0], [1], [0, 0, 1, 1], [], []>} : vector<32x256xf32>, vector<256x180xf32>, vector<32x180xf32> -> vector<32x180xf32>
    %c0_7 = arith.constant 0 : index
    %c0_8 = arith.constant 0 : index
    %6 = vector.load %arg5[%c0_7, %c0_8] : memref<32x1xf32, #tpu.memory_space<vmem>>, vector<32x1xf32>
    %cst_9 = arith.constant 0.000000e+00 : f32
    %7 = vector.broadcast %cst_9 : f32 to vector<32x453xf32>
    %c0_10 = arith.constant 0 : index
    %c0_11 = arith.constant 0 : index
    %c0_12 = arith.constant 0 : index
    %8 = vector.load %arg4[%c0_10, %c0_11, %c0_12] : memref<9x32x32xf32, #tpu.memory_space<vmem>>, vector<1x32x32xf32>
    %9 = vector.shape_cast %8 : vector<1x32x32xf32> to vector<32x32xf32>
    %10 = vector.extract_strided_slice %3 {offsets = [0, 0], sizes = [32, 453], strides = [1, 1]} : vector<32x481xf32> to vector<32x453xf32>
    %cst_13 = arith.constant dense<0.000000e+00> : vector<32x453xf32>
    %11 = tpu.matmul %9, %10, %cst_13 {dimension_numbers = #tpu.dot_dimension_numbers<[1], [0], [0], [1], [0, 0, 1, 1], [], []>} : vector<32x32xf32>, vector<32x453xf32>, vector<32x453xf32> -> vector<32x453xf32>
    %12 = arith.addf %7, %11 : vector<32x453xf32>
    %c1 = arith.constant 1 : index
    %c0_14 = arith.constant 0 : index
    %c0_15 = arith.constant 0 : index
    %13 = vector.load %arg4[%c1, %c0_14, %c0_15] : memref<9x32x32xf32, #tpu.memory_space<vmem>>, vector<1x32x32xf32>
    %14 = vector.shape_cast %13 : vector<1x32x32xf32> to vector<32x32xf32>
    %15 = vector.extract_strided_slice %3 {offsets = [0, 1], sizes = [32, 453], strides = [1, 1]} : vector<32x481xf32> to vector<32x453xf32>
    %cst_16 = arith.constant dense<0.000000e+00> : vector<32x453xf32>
    %16 = tpu.matmul %14, %15, %cst_16 {dimension_numbers = #tpu.dot_dimension_numbers<[1], [0], [0], [1], [0, 0, 1, 1], [], []>} : vector<32x32xf32>, vector<32x453xf32>, vector<32x453xf32> -> vector<32x453xf32>
    %17 = arith.addf %12, %16 : vector<32x453xf32>
    %c2 = arith.constant 2 : index
    %c0_17 = arith.constant 0 : index
    %c0_18 = arith.constant 0 : index
    %18 = vector.load %arg4[%c2, %c0_17, %c0_18] : memref<9x32x32xf32, #tpu.memory_space<vmem>>, vector<1x32x32xf32>
    %19 = vector.shape_cast %18 : vector<1x32x32xf32> to vector<32x32xf32>
    %20 = vector.extract_strided_slice %3 {offsets = [0, 2], sizes = [32, 453], strides = [1, 1]} : vector<32x481xf32> to vector<32x453xf32>
    %cst_19 = arith.constant dense<0.000000e+00> : vector<32x453xf32>
    %21 = tpu.matmul %19, %20, %cst_19 {dimension_numbers = #tpu.dot_dimension_numbers<[1], [0], [0], [1], [0, 0, 1, 1], [], []>} : vector<32x32xf32>, vector<32x453xf32>, vector<32x453xf32> -> vector<32x453xf32>
    %22 = arith.addf %17, %21 : vector<32x453xf32>
    %c3 = arith.constant 3 : index
    %c0_20 = arith.constant 0 : index
    %c0_21 = arith.constant 0 : index
    %23 = vector.load %arg4[%c3, %c0_20, %c0_21] : memref<9x32x32xf32, #tpu.memory_space<vmem>>, vector<1x32x32xf32>
    %24 = vector.shape_cast %23 : vector<1x32x32xf32> to vector<32x32xf32>
    %25 = vector.extract_strided_slice %3 {offsets = [0, 13], sizes = [32, 453], strides = [1, 1]} : vector<32x481xf32> to vector<32x453xf32>
    %cst_22 = arith.constant dense<0.000000e+00> : vector<32x453xf32>
    %26 = tpu.matmul %24, %25, %cst_22 {dimension_numbers = #tpu.dot_dimension_numbers<[1], [0], [0], [1], [0, 0, 1, 1], [], []>} : vector<32x32xf32>, vector<32x453xf32>, vector<32x453xf32> -> vector<32x453xf32>
    %27 = arith.addf %22, %26 : vector<32x453xf32>
    %c4 = arith.constant 4 : index
    %c0_23 = arith.constant 0 : index
    %c0_24 = arith.constant 0 : index
    %28 = vector.load %arg4[%c4, %c0_23, %c0_24] : memref<9x32x32xf32, #tpu.memory_space<vmem>>, vector<1x32x32xf32>
    %29 = vector.shape_cast %28 : vector<1x32x32xf32> to vector<32x32xf32>
    %30 = vector.extract_strided_slice %3 {offsets = [0, 14], sizes = [32, 453], strides = [1, 1]} : vector<32x481xf32> to vector<32x453xf32>
    %cst_25 = arith.constant dense<0.000000e+00> : vector<32x453xf32>
    %31 = tpu.matmul %29, %30, %cst_25 {dimension_numbers = #tpu.dot_dimension_numbers<[1], [0], [0], [1], [0, 0, 1, 1], [], []>} : vector<32x32xf32>, vector<32x453xf32>, vector<32x453xf32> -> vector<32x453xf32>
    %32 = arith.addf %27, %31 : vector<32x453xf32>
    %c5 = arith.constant 5 : index
    %c0_26 = arith.constant 0 : index
    %c0_27 = arith.constant 0 : index
    %33 = vector.load %arg4[%c5, %c0_26, %c0_27] : memref<9x32x32xf32, #tpu.memory_space<vmem>>, vector<1x32x32xf32>
    %34 = vector.shape_cast %33 : vector<1x32x32xf32> to vector<32x32xf32>
    %35 = vector.extract_strided_slice %3 {offsets = [0, 15], sizes = [32, 453], strides = [1, 1]} : vector<32x481xf32> to vector<32x453xf32>
    %cst_28 = arith.constant dense<0.000000e+00> : vector<32x453xf32>
    %36 = tpu.matmul %34, %35, %cst_28 {dimension_numbers = #tpu.dot_dimension_numbers<[1], [0], [0], [1], [0, 0, 1, 1], [], []>} : vector<32x32xf32>, vector<32x453xf32>, vector<32x453xf32> -> vector<32x453xf32>
    %37 = arith.addf %32, %36 : vector<32x453xf32>
    %c6 = arith.constant 6 : index
    %c0_29 = arith.constant 0 : index
    %c0_30 = arith.constant 0 : index
    %38 = vector.load %arg4[%c6, %c0_29, %c0_30] : memref<9x32x32xf32, #tpu.memory_space<vmem>>, vector<1x32x32xf32>
    %39 = vector.shape_cast %38 : vector<1x32x32xf32> to vector<32x32xf32>
    %40 = vector.extract_strided_slice %3 {offsets = [0, 26], sizes = [32, 453], strides = [1, 1]} : vector<32x481xf32> to vector<32x453xf32>
    %cst_31 = arith.constant dense<0.000000e+00> : vector<32x453xf32>
    %41 = tpu.matmul %39, %40, %cst_31 {dimension_numbers = #tpu.dot_dimension_numbers<[1], [0], [0], [1], [0, 0, 1, 1], [], []>} : vector<32x32xf32>, vector<32x453xf32>, vector<32x453xf32> -> vector<32x453xf32>
    %42 = arith.addf %37, %41 : vector<32x453xf32>
    %c7 = arith.constant 7 : index
    %c0_32 = arith.constant 0 : index
    %c0_33 = arith.constant 0 : index
    %43 = vector.load %arg4[%c7, %c0_32, %c0_33] : memref<9x32x32xf32, #tpu.memory_space<vmem>>, vector<1x32x32xf32>
    %44 = vector.shape_cast %43 : vector<1x32x32xf32> to vector<32x32xf32>
    %45 = vector.extract_strided_slice %3 {offsets = [0, 27], sizes = [32, 453], strides = [1, 1]} : vector<32x481xf32> to vector<32x453xf32>
    %cst_34 = arith.constant dense<0.000000e+00> : vector<32x453xf32>
    %46 = tpu.matmul %44, %45, %cst_34 {dimension_numbers = #tpu.dot_dimension_numbers<[1], [0], [0], [1], [0, 0, 1, 1], [], []>} : vector<32x32xf32>, vector<32x453xf32>, vector<32x453xf32> -> vector<32x453xf32>
    %47 = arith.addf %42, %46 : vector<32x453xf32>
    %c8 = arith.constant 8 : index
    %c0_35 = arith.constant 0 : index
    %c0_36 = arith.constant 0 : index
    %48 = vector.load %arg4[%c8, %c0_35, %c0_36] : memref<9x32x32xf32, #tpu.memory_space<vmem>>, vector<1x32x32xf32>
    %49 = vector.shape_cast %48 : vector<1x32x32xf32> to vector<32x32xf32>
    %50 = vector.extract_strided_slice %3 {offsets = [0, 28], sizes = [32, 453], strides = [1, 1]} : vector<32x481xf32> to vector<32x453xf32>
    %cst_37 = arith.constant dense<0.000000e+00> : vector<32x453xf32>
    %51 = tpu.matmul %49, %50, %cst_37 {dimension_numbers = #tpu.dot_dimension_numbers<[1], [0], [0], [1], [0, 0, 1, 1], [], []>} : vector<32x32xf32>, vector<32x453xf32>, vector<32x453xf32> -> vector<32x453xf32>
    %52 = arith.addf %47, %51 : vector<32x453xf32>
    %53 = vector.broadcast %6 : vector<32x1xf32> to vector<32x453xf32>
    %54 = arith.addf %52, %53 : vector<32x453xf32>
    %cst_38 = arith.constant 0.000000e+00 : f32
    %55 = vector.broadcast %cst_38 : f32 to vector<32x160xf32>
    %c0_39 = arith.constant 0 : index
    %c0_40 = arith.constant 0 : index
    %c0_41 = arith.constant 0 : index
    %56 = vector.load %arg4[%c0_39, %c0_40, %c0_41] : memref<9x32x32xf32, #tpu.memory_space<vmem>>, vector<1x32x32xf32>
    %57 = vector.shape_cast %56 : vector<1x32x32xf32> to vector<32x32xf32>
    %58 = vector.extract_strided_slice %5 {offsets = [0, 0], sizes = [32, 160], strides = [1, 1]} : vector<32x180xf32> to vector<32x160xf32>
    %cst_42 = arith.constant dense<0.000000e+00> : vector<32x160xf32>
    %59 = tpu.matmul %57, %58, %cst_42 {dimension_numbers = #tpu.dot_dimension_numbers<[1], [0], [0], [1], [0, 0, 1, 1], [], []>} : vector<32x32xf32>, vector<32x160xf32>, vector<32x160xf32> -> vector<32x160xf32>
    %60 = arith.addf %55, %59 : vector<32x160xf32>
    %c1_43 = arith.constant 1 : index
    %c0_44 = arith.constant 0 : index
    %c0_45 = arith.constant 0 : index
    %61 = vector.load %arg4[%c1_43, %c0_44, %c0_45] : memref<9x32x32xf32, #tpu.memory_space<vmem>>, vector<1x32x32xf32>
    %62 = vector.shape_cast %61 : vector<1x32x32xf32> to vector<32x32xf32>
    %63 = vector.extract_strided_slice %5 {offsets = [0, 1], sizes = [32, 160], strides = [1, 1]} : vector<32x180xf32> to vector<32x160xf32>
    %cst_46 = arith.constant dense<0.000000e+00> : vector<32x160xf32>
    %64 = tpu.matmul %62, %63, %cst_46 {dimension_numbers = #tpu.dot_dimension_numbers<[1], [0], [0], [1], [0, 0, 1, 1], [], []>} : vector<32x32xf32>, vector<32x160xf32>, vector<32x160xf32> -> vector<32x160xf32>
    %65 = arith.addf %60, %64 : vector<32x160xf32>
    %c2_47 = arith.constant 2 : index
    %c0_48 = arith.constant 0 : index
    %c0_49 = arith.constant 0 : index
    %66 = vector.load %arg4[%c2_47, %c0_48, %c0_49] : memref<9x32x32xf32, #tpu.memory_space<vmem>>, vector<1x32x32xf32>
    %67 = vector.shape_cast %66 : vector<1x32x32xf32> to vector<32x32xf32>
    %68 = vector.extract_strided_slice %5 {offsets = [0, 2], sizes = [32, 160], strides = [1, 1]} : vector<32x180xf32> to vector<32x160xf32>
    %cst_50 = arith.constant dense<0.000000e+00> : vector<32x160xf32>
    %69 = tpu.matmul %67, %68, %cst_50 {dimension_numbers = #tpu.dot_dimension_numbers<[1], [0], [0], [1], [0, 0, 1, 1], [], []>} : vector<32x32xf32>, vector<32x160xf32>, vector<32x160xf32> -> vector<32x160xf32>
    %70 = arith.addf %65, %69 : vector<32x160xf32>
    %c3_51 = arith.constant 3 : index
    %c0_52 = arith.constant 0 : index
    %c0_53 = arith.constant 0 : index
    %71 = vector.load %arg4[%c3_51, %c0_52, %c0_53] : memref<9x32x32xf32, #tpu.memory_space<vmem>>, vector<1x32x32xf32>
    %72 = vector.shape_cast %71 : vector<1x32x32xf32> to vector<32x32xf32>
    %73 = vector.extract_strided_slice %5 {offsets = [0, 9], sizes = [32, 160], strides = [1, 1]} : vector<32x180xf32> to vector<32x160xf32>
    %cst_54 = arith.constant dense<0.000000e+00> : vector<32x160xf32>
    %74 = tpu.matmul %72, %73, %cst_54 {dimension_numbers = #tpu.dot_dimension_numbers<[1], [0], [0], [1], [0, 0, 1, 1], [], []>} : vector<32x32xf32>, vector<32x160xf32>, vector<32x160xf32> -> vector<32x160xf32>
    %75 = arith.addf %70, %74 : vector<32x160xf32>
    %c4_55 = arith.constant 4 : index
    %c0_56 = arith.constant 0 : index
    %c0_57 = arith.constant 0 : index
    %76 = vector.load %arg4[%c4_55, %c0_56, %c0_57] : memref<9x32x32xf32, #tpu.memory_space<vmem>>, vector<1x32x32xf32>
    %77 = vector.shape_cast %76 : vector<1x32x32xf32> to vector<32x32xf32>
    %78 = vector.extract_strided_slice %5 {offsets = [0, 10], sizes = [32, 160], strides = [1, 1]} : vector<32x180xf32> to vector<32x160xf32>
    %cst_58 = arith.constant dense<0.000000e+00> : vector<32x160xf32>
    %79 = tpu.matmul %77, %78, %cst_58 {dimension_numbers = #tpu.dot_dimension_numbers<[1], [0], [0], [1], [0, 0, 1, 1], [], []>} : vector<32x32xf32>, vector<32x160xf32>, vector<32x160xf32> -> vector<32x160xf32>
    %80 = arith.addf %75, %79 : vector<32x160xf32>
    %c5_59 = arith.constant 5 : index
    %c0_60 = arith.constant 0 : index
    %c0_61 = arith.constant 0 : index
    %81 = vector.load %arg4[%c5_59, %c0_60, %c0_61] : memref<9x32x32xf32, #tpu.memory_space<vmem>>, vector<1x32x32xf32>
    %82 = vector.shape_cast %81 : vector<1x32x32xf32> to vector<32x32xf32>
    %83 = vector.extract_strided_slice %5 {offsets = [0, 11], sizes = [32, 160], strides = [1, 1]} : vector<32x180xf32> to vector<32x160xf32>
    %cst_62 = arith.constant dense<0.000000e+00> : vector<32x160xf32>
    %84 = tpu.matmul %82, %83, %cst_62 {dimension_numbers = #tpu.dot_dimension_numbers<[1], [0], [0], [1], [0, 0, 1, 1], [], []>} : vector<32x32xf32>, vector<32x160xf32>, vector<32x160xf32> -> vector<32x160xf32>
    %85 = arith.addf %80, %84 : vector<32x160xf32>
    %c6_63 = arith.constant 6 : index
    %c0_64 = arith.constant 0 : index
    %c0_65 = arith.constant 0 : index
    %86 = vector.load %arg4[%c6_63, %c0_64, %c0_65] : memref<9x32x32xf32, #tpu.memory_space<vmem>>, vector<1x32x32xf32>
    %87 = vector.shape_cast %86 : vector<1x32x32xf32> to vector<32x32xf32>
    %88 = vector.extract_strided_slice %5 {offsets = [0, 18], sizes = [32, 160], strides = [1, 1]} : vector<32x180xf32> to vector<32x160xf32>
    %cst_66 = arith.constant dense<0.000000e+00> : vector<32x160xf32>
    %89 = tpu.matmul %87, %88, %cst_66 {dimension_numbers = #tpu.dot_dimension_numbers<[1], [0], [0], [1], [0, 0, 1, 1], [], []>} : vector<32x32xf32>, vector<32x160xf32>, vector<32x160xf32> -> vector<32x160xf32>
    %90 = arith.addf %85, %89 : vector<32x160xf32>
    %c7_67 = arith.constant 7 : index
    %c0_68 = arith.constant 0 : index
    %c0_69 = arith.constant 0 : index
    %91 = vector.load %arg4[%c7_67, %c0_68, %c0_69] : memref<9x32x32xf32, #tpu.memory_space<vmem>>, vector<1x32x32xf32>
    %92 = vector.shape_cast %91 : vector<1x32x32xf32> to vector<32x32xf32>
    %93 = vector.extract_strided_slice %5 {offsets = [0, 19], sizes = [32, 160], strides = [1, 1]} : vector<32x180xf32> to vector<32x160xf32>
    %cst_70 = arith.constant dense<0.000000e+00> : vector<32x160xf32>
    %94 = tpu.matmul %92, %93, %cst_70 {dimension_numbers = #tpu.dot_dimension_numbers<[1], [0], [0], [1], [0, 0, 1, 1], [], []>} : vector<32x32xf32>, vector<32x160xf32>, vector<32x160xf32> -> vector<32x160xf32>
    %95 = arith.addf %90, %94 : vector<32x160xf32>
    %c8_71 = arith.constant 8 : index
    %c0_72 = arith.constant 0 : index
    %c0_73 = arith.constant 0 : index
    %96 = vector.load %arg4[%c8_71, %c0_72, %c0_73] : memref<9x32x32xf32, #tpu.memory_space<vmem>>, vector<1x32x32xf32>
    %97 = vector.shape_cast %96 : vector<1x32x32xf32> to vector<32x32xf32>
    %98 = vector.extract_strided_slice %5 {offsets = [0, 20], sizes = [32, 160], strides = [1, 1]} : vector<32x180xf32> to vector<32x160xf32>
    %cst_74 = arith.constant dense<0.000000e+00> : vector<32x160xf32>
    %99 = tpu.matmul %97, %98, %cst_74 {dimension_numbers = #tpu.dot_dimension_numbers<[1], [0], [0], [1], [0, 0, 1, 1], [], []>} : vector<32x32xf32>, vector<32x160xf32>, vector<32x160xf32> -> vector<32x160xf32>
    %100 = arith.addf %95, %99 : vector<32x160xf32>
    %101 = vector.broadcast %6 : vector<32x1xf32> to vector<32x160xf32>
    %102 = arith.addf %100, %101 : vector<32x160xf32>
    %c0_75 = arith.constant 0 : index
    %c0_76 = arith.constant 0 : index
    %103 = vector.load %arg10[%c0_75, %c0_76] : memref<2x256xi32, #tpu.memory_space<vmem>>, vector<1x256xi32>
    %c1_77 = arith.constant 1 : index
    %c0_78 = arith.constant 0 : index
    %104 = vector.load %arg10[%c1_77, %c0_78] : memref<2x256xi32, #tpu.memory_space<vmem>>, vector<1x256xi32>
    %c0_79 = arith.constant 0 : index
    %c0_80 = arith.constant 0 : index
    %105 = vector.load %arg11[%c0_79, %c0_80] : memref<2x453xi32, #tpu.memory_space<vmem>>, vector<1x453xi32>
    %c1_81 = arith.constant 1 : index
    %c0_82 = arith.constant 0 : index
    %106 = vector.load %arg11[%c1_81, %c0_82] : memref<2x453xi32, #tpu.memory_space<vmem>>, vector<1x453xi32>
    %c0_83 = arith.constant 0 : index
    %c0_84 = arith.constant 0 : index
    %107 = vector.load %arg12[%c0_83, %c0_84] : memref<2x160xi32, #tpu.memory_space<vmem>>, vector<1x160xi32>
    %c1_85 = arith.constant 1 : index
    %c0_86 = arith.constant 0 : index
    %108 = vector.load %arg12[%c1_85, %c0_86] : memref<2x160xi32, #tpu.memory_space<vmem>>, vector<1x160xi32>
    %109 = tpu.iota {dimensions = array<i32: 0>} : vector<453x256xi32>
    %110 = vector.broadcast %103 : vector<1x256xi32> to vector<453x256xi32>
    %111 = arith.cmpi eq, %109, %110 : vector<453x256xi32>
    %112 = arith.extui %111 : vector<453x256xi1> to vector<453x256xi32>
    %113 = arith.sitofp %112 : vector<453x256xi32> to vector<453x256xf32>
    %cst_87 = arith.constant dense<0.000000e+00> : vector<32x256xf32>
    %114 = tpu.matmul %54, %113, %cst_87 {dimension_numbers = #tpu.dot_dimension_numbers<[1], [0], [0], [1], [0, 0, 1, 1], [], []>} : vector<32x453xf32>, vector<453x256xf32>, vector<32x256xf32> -> vector<32x256xf32>
    %115 = tpu.iota {dimensions = array<i32: 0>} : vector<160x256xi32>
    %116 = vector.broadcast %104 : vector<1x256xi32> to vector<160x256xi32>
    %117 = arith.cmpi eq, %115, %116 : vector<160x256xi32>
    %118 = arith.extui %117 : vector<160x256xi1> to vector<160x256xi32>
    %119 = arith.sitofp %118 : vector<160x256xi32> to vector<160x256xf32>
    %cst_88 = arith.constant dense<0.000000e+00> : vector<32x256xf32>
    %120 = tpu.matmul %102, %119, %cst_88 {dimension_numbers = #tpu.dot_dimension_numbers<[1], [0], [0], [1], [0, 0, 1, 1], [], []>} : vector<32x160xf32>, vector<160x256xf32>, vector<32x256xf32> -> vector<32x256xf32>
    %121 = tpu.iota {dimensions = array<i32: 0>} : vector<256x453xi32>
    %122 = vector.broadcast %105 : vector<1x453xi32> to vector<256x453xi32>
    %123 = arith.cmpi eq, %121, %122 : vector<256x453xi32>
    %124 = arith.extui %123 : vector<256x453xi1> to vector<256x453xi32>
    %125 = arith.sitofp %124 : vector<256x453xi32> to vector<256x453xf32>
    %cst_89 = arith.constant dense<0.000000e+00> : vector<32x453xf32>
    %126 = tpu.matmul %1, %125, %cst_89 {dimension_numbers = #tpu.dot_dimension_numbers<[1], [0], [0], [1], [0, 0, 1, 1], [], []>} : vector<32x256xf32>, vector<256x453xf32>, vector<32x453xf32> -> vector<32x453xf32>
    %127 = tpu.iota {dimensions = array<i32: 0>} : vector<160x453xi32>
    %128 = vector.broadcast %106 : vector<1x453xi32> to vector<160x453xi32>
    %129 = arith.cmpi eq, %127, %128 : vector<160x453xi32>
    %130 = arith.extui %129 : vector<160x453xi1> to vector<160x453xi32>
    %131 = arith.sitofp %130 : vector<160x453xi32> to vector<160x453xf32>
    %cst_90 = arith.constant dense<0.000000e+00> : vector<32x453xf32>
    %132 = tpu.matmul %102, %131, %cst_90 {dimension_numbers = #tpu.dot_dimension_numbers<[1], [0], [0], [1], [0, 0, 1, 1], [], []>} : vector<32x160xf32>, vector<160x453xf32>, vector<32x453xf32> -> vector<32x453xf32>
    %133 = tpu.iota {dimensions = array<i32: 0>} : vector<256x160xi32>
    %134 = vector.broadcast %107 : vector<1x160xi32> to vector<256x160xi32>
    %135 = arith.cmpi eq, %133, %134 : vector<256x160xi32>
    %136 = arith.extui %135 : vector<256x160xi1> to vector<256x160xi32>
    %137 = arith.sitofp %136 : vector<256x160xi32> to vector<256x160xf32>
    %cst_91 = arith.constant dense<0.000000e+00> : vector<32x160xf32>
    %138 = tpu.matmul %1, %137, %cst_91 {dimension_numbers = #tpu.dot_dimension_numbers<[1], [0], [0], [1], [0, 0, 1, 1], [], []>} : vector<32x256xf32>, vector<256x160xf32>, vector<32x160xf32> -> vector<32x160xf32>
    %139 = tpu.iota {dimensions = array<i32: 0>} : vector<453x160xi32>
    %140 = vector.broadcast %108 : vector<1x160xi32> to vector<453x160xi32>
    %141 = arith.cmpi eq, %139, %140 : vector<453x160xi32>
    %142 = arith.extui %141 : vector<453x160xi1> to vector<453x160xi32>
    %143 = arith.sitofp %142 : vector<453x160xi32> to vector<453x160xf32>
    %cst_92 = arith.constant dense<0.000000e+00> : vector<32x160xf32>
    %144 = tpu.matmul %54, %143, %cst_92 {dimension_numbers = #tpu.dot_dimension_numbers<[1], [0], [0], [1], [0, 0, 1, 1], [], []>} : vector<32x453xf32>, vector<453x160xf32>, vector<32x160xf32> -> vector<32x160xf32>
    %c0_93 = arith.constant 0 : index
    %c0_94 = arith.constant 0 : index
    %145 = vector.load %arg6[%c0_93, %c0_94] : memref<32x96xf32, #tpu.memory_space<vmem>>, vector<32x96xf32>
    %c0_95 = arith.constant 0 : index
    %c0_96 = arith.constant 0 : index
    %146 = vector.load %arg7[%c0_95, %c0_96] : memref<32x1xf32, #tpu.memory_space<vmem>>, vector<32x1xf32>
    %147 = tpu.concatenate %1, %114, %120 in 0 : vector<32x256xf32>, vector<32x256xf32>, vector<32x256xf32> -> vector<96x256xf32>
    %cst_97 = arith.constant dense<0.000000e+00> : vector<32x256xf32>
    %148 = tpu.matmul %145, %147, %cst_97 {dimension_numbers = #tpu.dot_dimension_numbers<[1], [0], [0], [1], [0, 0, 1, 1], [], []>} : vector<32x96xf32>, vector<96x256xf32>, vector<32x256xf32> -> vector<32x256xf32>
    %149 = vector.broadcast %146 : vector<32x1xf32> to vector<32x256xf32>
    %150 = arith.addf %148, %149 : vector<32x256xf32>
    %151 = tpu.concatenate %54, %126, %132 in 0 : vector<32x453xf32>, vector<32x453xf32>, vector<32x453xf32> -> vector<96x453xf32>
    %cst_98 = arith.constant dense<0.000000e+00> : vector<32x453xf32>
    %152 = tpu.matmul %145, %151, %cst_98 {dimension_numbers = #tpu.dot_dimension_numbers<[1], [0], [0], [1], [0, 0, 1, 1], [], []>} : vector<32x96xf32>, vector<96x453xf32>, vector<32x453xf32> -> vector<32x453xf32>
    %153 = vector.broadcast %146 : vector<32x1xf32> to vector<32x453xf32>
    %154 = arith.addf %152, %153 : vector<32x453xf32>
    %155 = tpu.concatenate %102, %144, %138 in 0 : vector<32x160xf32>, vector<32x160xf32>, vector<32x160xf32> -> vector<96x160xf32>
    %cst_99 = arith.constant dense<0.000000e+00> : vector<32x160xf32>
    %156 = tpu.matmul %145, %155, %cst_99 {dimension_numbers = #tpu.dot_dimension_numbers<[1], [0], [0], [1], [0, 0, 1, 1], [], []>} : vector<32x96xf32>, vector<96x160xf32>, vector<32x160xf32> -> vector<32x160xf32>
    %157 = vector.broadcast %146 : vector<32x1xf32> to vector<32x160xf32>
    %158 = arith.addf %156, %157 : vector<32x160xf32>
    %159 = tpu.iota {dimensions = array<i32: 0>} : vector<453x256xi32>
    %160 = vector.broadcast %103 : vector<1x256xi32> to vector<453x256xi32>
    %161 = arith.cmpi eq, %159, %160 : vector<453x256xi32>
    %162 = arith.extui %161 : vector<453x256xi1> to vector<453x256xi32>
    %163 = arith.sitofp %162 : vector<453x256xi32> to vector<453x256xf32>
    %cst_100 = arith.constant dense<0.000000e+00> : vector<32x256xf32>
    %164 = tpu.matmul %154, %163, %cst_100 {dimension_numbers = #tpu.dot_dimension_numbers<[1], [0], [0], [1], [0, 0, 1, 1], [], []>} : vector<32x453xf32>, vector<453x256xf32>, vector<32x256xf32> -> vector<32x256xf32>
    %165 = tpu.iota {dimensions = array<i32: 0>} : vector<160x256xi32>
    %166 = vector.broadcast %104 : vector<1x256xi32> to vector<160x256xi32>
    %167 = arith.cmpi eq, %165, %166 : vector<160x256xi32>
    %168 = arith.extui %167 : vector<160x256xi1> to vector<160x256xi32>
    %169 = arith.sitofp %168 : vector<160x256xi32> to vector<160x256xf32>
    %cst_101 = arith.constant dense<0.000000e+00> : vector<32x256xf32>
    %170 = tpu.matmul %158, %169, %cst_101 {dimension_numbers = #tpu.dot_dimension_numbers<[1], [0], [0], [1], [0, 0, 1, 1], [], []>} : vector<32x160xf32>, vector<160x256xf32>, vector<32x256xf32> -> vector<32x256xf32>
    %c0_102 = arith.constant 0 : index
    %c0_103 = arith.constant 0 : index
    %171 = vector.load %arg8[%c0_102, %c0_103] : memref<40x96xf32, #tpu.memory_space<vmem>>, vector<40x96xf32>
    %172 = tpu.concatenate %150, %164, %170 in 0 : vector<32x256xf32>, vector<32x256xf32>, vector<32x256xf32> -> vector<96x256xf32>
    %cst_104 = arith.constant dense<0.000000e+00> : vector<40x256xf32>
    %173 = tpu.matmul %171, %172, %cst_104 {dimension_numbers = #tpu.dot_dimension_numbers<[1], [0], [0], [1], [0, 0, 1, 1], [], []>} : vector<40x96xf32>, vector<96x256xf32>, vector<40x256xf32> -> vector<40x256xf32>
    %c0_105 = arith.constant 0 : index
    %c0_106 = arith.constant 0 : index
    %174 = vector.load %arg9[%c0_105, %c0_106] : memref<40x1xf32, #tpu.memory_space<vmem>>, vector<40x1xf32>
    %175 = vector.broadcast %174 : vector<40x1xf32> to vector<40x256xf32>
    %176 = arith.addf %173, %175 : vector<40x256xf32>
    %c0_107 = arith.constant 0 : index
    %c0_108 = arith.constant 0 : index
    %c0_109 = arith.constant 0 : index
    %177 = vector.load %arg13[%c0_107, %c0_108, %c0_109] : memref<1x40x256xf32, #tpu.memory_space<vmem>>, vector<1x40x256xf32>
    %178 = vector.shape_cast %177 : vector<1x40x256xf32> to vector<40x256xf32>
    %179 = vector.shape_cast %176 : vector<40x256xf32> to vector<1x40x256xf32>
    tpu.vector_store %arg13[%c0_107, %c0_108, %c0_109], %179 {strides = array<i32>} : memref<1x40x256xf32, #tpu.memory_space<vmem>>, vector<1x40x256xf32>,
    return
  }
  func.func @transform_0(%arg0: i32) -> (i32, i32, i32) {
    %c0_i32 = arith.constant 0 : i32
    %c0_i32_0 = arith.constant 0 : i32
    %c0_i32_1 = arith.constant 0 : i32
    return %arg0, %c0_i32, %c0_i32_0 : i32, i32, i32
  }
  func.func @transform_1(%arg0: i32) -> (i32, i32) {
    %c0_i32 = arith.constant 0 : i32
    %c0_i32_0 = arith.constant 0 : i32
    %c0_i32_1 = arith.constant 0 : i32
    return %c0_i32, %c0_i32_0 : i32, i32
  }
  func.func @transform_2(%arg0: i32) -> (i32, i32) {
    %c0_i32 = arith.constant 0 : i32
    %c0_i32_0 = arith.constant 0 : i32
    %c0_i32_1 = arith.constant 0 : i32
    return %c0_i32, %c0_i32_0 : i32, i32
  }
  func.func @transform_3(%arg0: i32) -> (i32, i32, i32) {
    %c0_i32 = arith.constant 0 : i32
    %c0_i32_0 = arith.constant 0 : i32
    %c0_i32_1 = arith.constant 0 : i32
    %c0_i32_2 = arith.constant 0 : i32
    return %c0_i32, %c0_i32_0, %c0_i32_1 : i32, i32, i32
  }
  func.func @transform_4(%arg0: i32) -> (i32, i32) {
    %c0_i32 = arith.constant 0 : i32
    %c0_i32_0 = arith.constant 0 : i32
    %c0_i32_1 = arith.constant 0 : i32
    return %c0_i32, %c0_i32_0 : i32, i32
  }
  func.func @transform_5(%arg0: i32) -> (i32, i32) {
    %c0_i32 = arith.constant 0 : i32
    %c0_i32_0 = arith.constant 0 : i32
    %c0_i32_1 = arith.constant 0 : i32
    return %c0_i32, %c0_i32_0 : i32, i32
  }
  func.func @transform_6(%arg0: i32) -> (i32, i32) {
    %c0_i32 = arith.constant 0 : i32
    %c0_i32_0 = arith.constant 0 : i32
    %c0_i32_1 = arith.constant 0 : i32
    return %c0_i32, %c0_i32_0 : i32, i32
  }
  func.func @transform_7(%arg0: i32) -> (i32, i32) {
    %c0_i32 = arith.constant 0 : i32
    %c0_i32_0 = arith.constant 0 : i32
    %c0_i32_1 = arith.constant 0 : i32
    return %c0_i32, %c0_i32_0 : i32, i32
  }
  func.func @transform_8(%arg0: i32) -> (i32, i32) {
    %c0_i32 = arith.constant 0 : i32
    %c0_i32_0 = arith.constant 0 : i32
    %c0_i32_1 = arith.constant 0 : i32
    return %c0_i32, %c0_i32_0 : i32, i32
  }
  func.func @transform_9(%arg0: i32) -> (i32, i32) {
    %c0_i32 = arith.constant 0 : i32
    %c0_i32_0 = arith.constant 0 : i32
    %c0_i32_1 = arith.constant 0 : i32
    return %c0_i32, %c0_i32_0 : i32, i32
  }
  func.func @transform_10(%arg0: i32) -> (i32, i32) {
    %c0_i32 = arith.constant 0 : i32
    %c0_i32_0 = arith.constant 0 : i32
    %c0_i32_1 = arith.constant 0 : i32
    return %c0_i32, %c0_i32_0 : i32, i32
  }
  func.func @transform_11(%arg0: i32) -> (i32, i32) {
    %c0_i32 = arith.constant 0 : i32
    %c0_i32_0 = arith.constant 0 : i32
    %c0_i32_1 = arith.constant 0 : i32
    return %c0_i32, %c0_i32_0 : i32, i32
  }
  func.func @transform_12(%arg0: i32) -> (i32, i32, i32) {
    %c0_i32 = arith.constant 0 : i32
    %c0_i32_0 = arith.constant 0 : i32
    %c0_i32_1 = arith.constant 0 : i32
    return %arg0, %c0_i32, %c0_i32_0 : i32, i32, i32
  }
}

</mosaic_0001>

<llo_original>
// kernel: mff_forward.1
$region0: #{mff_forward.1}
  #allocation0 [shape = 'u32[]', space=smem, size = 0x4, offset = 0x4, fixed_abs, tag = 'smem constant byte address 0x4 - core index']
  #allocation1 [shape = 'u32[72,128]{1,0:T(1,128)}', space=vmem, size = 0x9000, scoped, tag = 'internal scratch']
  %s0 = inlined_call_operand.vmem [shape: f32[2,32,256], index: 0, kind: input, shape index: {}]
  %s1 = inlined_call_operand.hbm [shape: f32[256,481], index: 1, kind: input, shape index: {}]
  %s2 = inlined_call_operand.vmem [shape: f32[256,180], index: 2, kind: input, shape index: {}]
  %s3 = inlined_call_operand.hbm [shape: f32[9,32,32], index: 3, kind: input, shape index: {}]
  %s4 = inlined_call_operand.vmem [shape: f32[32,1], index: 4, kind: input, shape index: {}]
  %s5 = inlined_call_operand.vmem [shape: f32[32,96], index: 5, kind: input, shape index: {}]
  %s6 = inlined_call_operand.vmem [shape: f32[32,1], index: 6, kind: input, shape index: {}]
  %s7 = inlined_call_operand.vmem [shape: f32[40,96], index: 7, kind: input, shape index: {}]
  %s8 = inlined_call_operand.vmem [shape: f32[40,1], index: 8, kind: input, shape index: {}]
  %s9 = inlined_call_operand.vmem [shape: s32[2,256], index: 9, kind: input, shape index: {}]
  %s10 = inlined_call_operand.vmem [shape: s32[2,453], index: 10, kind: input, shape index: {}]
  %s11 = inlined_call_operand.vmem [shape: s32[2,160], index: 11, kind: input, shape index: {}]
  %s12 = inlined_call_operand.vmem [shape: f32[2,40,256], index: 12, kind: output, shape index: {}]
  %s13 = sld [smem:[#allocation0]]
  $region89: #{mff_forward.1} parent=0
    _
  %s15 = ssub.s32 1, %s13
  %s16 = scalar_select 0, %s15, %s13
  $region1: #{mff_forward.1} parent=0
    #allocation2 [shape = 'u8[524288]{0}', space=vmem, size = 0x80000, scoped, tag = 'input window, operand 1, single buffered']
    #allocation3 [shape = 's32[2]{0}', space=sflag, size = 0x8, scoped, tag = 'scoped memory for mff_forward.1']
    #allocation4 [shape = 'u8[147456]{0}', space=vmem, size = 0x24000, scoped, tag = 'input window, operand 3, single buffered']
    #allocation5 [shape = 's32[1]{0}', space=sflag, size = 0x4, scoped, tag = 'scoped memory for mff_forward.1']
    %17 = vsyncpa [#allocation3], 0
    %18 = vsyncpa [#allocation5], 0
    loop: start=0, step=1, limit=4
    $region2: #{mff_forward.1} parent=1 // loop_pre_header
      _
    $region3: #{mff_forward.1} parent=1 // loop_header
      %s20 = sphi 0, %s24
      %p21 = scmp.ge.s32.totalorder %s20, 4
      %s30 = sphi 0, %s32
      %s33 = sphi 0, %s30
      %s34 = sphi 0, %s33
      %s50 = sphi 0, %s34
      %s54 = sphi 0, %s54
      %s56 = sphi 0, %s54
      %s57 = sphi 0, %s56
      %s71 = sphi 0, %s57
      %s75 = sphi 0, %s75
      %s77 = sphi 0, %s75
      %s78 = sphi 0, %s77
      %s92 = sphi 0, %s78
      %s96 = sphi 0, %s96
      %s98 = sphi 0, %s96
      %s99 = sphi 0, %s98
      %s113 = sphi 0, %s99
      %s117 = sphi 0, %s117
      %s119 = sphi 0, %s117
      %s120 = sphi 0, %s119
      %s134 = sphi 0, %s120
      %s138 = sphi 0, %s138
      %s140 = sphi 0, %s138
      %s141 = sphi 0, %s140
      %s155 = sphi 0, %s141
      %s159 = sphi 0, %s159
      %s161 = sphi 0, %s159
      %s162 = sphi 0, %s161
      %s176 = sphi 0, %s162
      %s180 = sphi 0, %s180
      %s182 = sphi 0, %s180
      %s183 = sphi 0, %s182
      %s197 = sphi 0, %s183
      %s201 = sphi 0, %s201
      %s203 = sphi 0, %s201
      %s204 = sphi 0, %s203
      %s218 = sphi 0, %s204
      %s222 = sphi 0, %s222
      %s224 = sphi 0, %s222
      %s225 = sphi 0, %s224
      %s239 = sphi 0, %s225
      %s243 = sphi 0, %s243
      %s245 = sphi 0, %s243
      %s246 = sphi 0, %s245
      %s260 = sphi 0, %s246
      %s264 = sphi 0, %s264
      %s266 = sphi 0, %s264
      %s267 = sphi 0, %s266
      %s281 = sphi 0, %s267
      %s287 = sphi 0, %s289
      %s290 = sphi 0, %s287
      %s291 = sphi 0, %s290
      %s307 = sphi 0, %s291
    $region4: #{mff_forward.1} parent=1 // loop_header_branch
      %23 = sbr.rel (%p21) target = $region8
    $region5: #{mff_forward.1} parent=1 // loop_body
      %s25 = ssub.s32 %s20, 1
      %s26 = ssub.s32 %s20, 2
      %s27 = sadd.s32 %s20, 1
      %s28 = ssub.s32 %s20, %s27
      %p29 = scmp.eq.s32.totalorder %s28, 0
      %s31 = sadd.s32 %s30, 1
      %s32 = scalar_select %p29, %s30, %s31
      %p35 = pneg %p29
      %p36 = scmp.eq.s32.totalorder %s20, 1
      %p37 = por %p35, %p36
      %p38 = scmp.ne.s32.totalorder %s30, %s33
      %p39 = scmp.eq.s32.totalorder %s20, 0
      %p40 = por %p38, %p39
      %p41 = scmp.ne.s32.totalorder %s30, %s33
      %p42 = scmp.eq.s32.totalorder %s25, 1
      %p43 = por %p41, %p42
      %p44 = scmp.ne.s32.totalorder %s33, %s34
      %p45 = scmp.eq.s32.totalorder %s25, 0
      %p46 = por %p44, %p45
      %p47 = scmp.ne.s32.totalorder %s33, %s34
      %p48 = scmp.eq.s32.totalorder %s26, 1
      %p49 = por %p47, %p48
      %p51 = scmp.ne.s32.totalorder %s34, %s50
      %p52 = scmp.eq.s32.totalorder %s26, 0
      %p53 = por %p51, %p52
      %s55 = sadd.s32 %s54, 1
      %p58 = scmp.eq.s32.totalorder %s20, 1
      %p59 = scmp.ne.s32.totalorder %s54, %s56
      %p60 = scmp.eq.s32.totalorder %s20, 0
      %p61 = por %p59, %p60
      %p62 = scmp.ne.s32.totalorder %s54, %s56
      %p63 = scmp.eq.s32.totalorder %s25, 1
      %p64 = por %p62, %p63
      %p65 = scmp.ne.s32.totalorder %s56, %s57
      %p66 = scmp.eq.s32.totalorder %s25, 0
      %p67 = por %p65, %p66
      %p68 = scmp.ne.s32.totalorder %s56, %s57
      %p69 = scmp.eq.s32.totalorder %s26, 1
      %p70 = por %p68, %p69
      %p72 = scmp.ne.s32.totalorder %s57, %s71
      %p73 = scmp.eq.s32.totalorder %s26, 0
      %p74 = por %p72, %p73
      %s76 = sadd.s32 %s75, 1
      %p79 = scmp.eq.s32.totalorder %s20, 1
      %p80 = scmp.ne.s32.totalorder %s75, %s77
      %p81 = scmp.eq.s32.totalorder %s20, 0
      %p82 = por %p80, %p81
      %p83 = scmp.ne.s32.totalorder %s75, %s77
      %p84 = scmp.eq.s32.totalorder %s25, 1
      %p85 = por %p83, %p84
      %p86 = scmp.ne.s32.totalorder %s77, %s78
      %p87 = scmp.eq.s32.totalorder %s25, 0
      %p88 = por %p86, %p87
      %p89 = scmp.ne.s32.totalorder %s77, %s78
      %p90 = scmp.eq.s32.totalorder %s26, 1
      %p91 = por %p89, %p90
      %p93 = scmp.ne.s32.totalorder %s78, %s92
      %p94 = scmp.eq.s32.totalorder %s26, 0
      %p95 = por %p93, %p94
      %s97 = sadd.s32 %s96, 1
      %p100 = scmp.eq.s32.totalorder %s20, 1
      %p101 = scmp.ne.s32.totalorder %s96, %s98
      %p102 = scmp.eq.s32.totalorder %s20, 0
      %p103 = por %p101, %p102
      %p104 = scmp.ne.s32.totalorder %s96, %s98
      %p105 = scmp.eq.s32.totalorder %s25, 1
      %p106 = por %p104, %p105
      %p107 = scmp.ne.s32.totalorder %s98, %s99
      %p108 = scmp.eq.s32.totalorder %s25, 0
      %p109 = por %p107, %p108
      %p110 = scmp.ne.s32.totalorder %s98, %s99
      %p111 = scmp.eq.s32.totalorder %s26, 1
      %p112 = por %p110, %p111
      %p114 = scmp.ne.s32.totalorder %s99, %s113
      %p115 = scmp.eq.s32.totalorder %s26, 0
      %p116 = por %p114, %p115
      %s118 = sadd.s32 %s117, 1
      %p121 = scmp.eq.s32.totalorder %s20, 1
      %p122 = scmp.ne.s32.totalorder %s117, %s119
      %p123 = scmp.eq.s32.totalorder %s20, 0
      %p124 = por %p122, %p123
      %p125 = scmp.ne.s32.totalorder %s117, %s119
      %p126 = scmp.eq.s32.totalorder %s25, 1
      %p127 = por %p125, %p126
      %p128 = scmp.ne.s32.totalorder %s119, %s120
      %p129 = scmp.eq.s32.totalorder %s25, 0
      %p130 = por %p128, %p129
      %p131 = scmp.ne.s32.totalorder %s119, %s120
      %p132 = scmp.eq.s32.totalorder %s26, 1
      %p133 = por %p131, %p132
      %p135 = scmp.ne.s32.totalorder %s120, %s134
      %p136 = scmp.eq.s32.totalorder %s26, 0
      %p137 = por %p135, %p136
      %s139 = sadd.s32 %s138, 1
      %p142 = scmp.eq.s32.totalorder %s20, 1
      %p143 = scmp.ne.s32.totalorder %s138, %s140
      %p144 = scmp.eq.s32.totalorder %s20, 0
      %p145 = por %p143, %p144
      %p146 = scmp.ne.s32.totalorder %s138, %s140
      %p147 = scmp.eq.s32.totalorder %s25, 1
      %p148 = por %p146, %p147
      %p149 = scmp.ne.s32.totalorder %s140, %s141
      %p150 = scmp.eq.s32.totalorder %s25, 0
      %p151 = por %p149, %p150
      %p152 = scmp.ne.s32.totalorder %s140, %s141
      %p153 = scmp.eq.s32.totalorder %s26, 1
      %p154 = por %p152, %p153
      %p156 = scmp.ne.s32.totalorder %s141, %s155
      %p157 = scmp.eq.s32.totalorder %s26, 0
      %p158 = por %p156, %p157
      %s160 = sadd.s32 %s159, 1
      %p163 = scmp.eq.s32.totalorder %s20, 1
      %p164 = scmp.ne.s32.totalorder %s159, %s161
      %p165 = scmp.eq.s32.totalorder %s20, 0
      %p166 = por %p164, %p165
      %p167 = scmp.ne.s32.totalorder %s159, %s161
      %p168 = scmp.eq.s32.totalorder %s25, 1
      %p169 = por %p167, %p168
      %p170 = scmp.ne.s32.totalorder %s161, %s162
      %p171 = scmp.eq.s32.totalorder %s25, 0
      %p172 = por %p170, %p171
      %p173 = scmp.ne.s32.totalorder %s161, %s162
      %p174 = scmp.eq.s32.totalorder %s26, 1
      %p175 = por %p173, %p174
      %p177 = scmp.ne.s32.totalorder %s162, %s176
      %p178 = scmp.eq.s32.totalorder %s26, 0
      %p179 = por %p177, %p178
      %s181 = sadd.s32 %s180, 1
      %p184 = scmp.eq.s32.totalorder %s20, 1
      %p185 = scmp.ne.s32.totalorder %s180, %s182
      %p186 = scmp.eq.s32.totalorder %s20, 0
      %p187 = por %p185, %p186
      %p188 = scmp.ne.s32.totalorder %s180, %s182
      %p189 = scmp.eq.s32.totalorder %s25, 1
      %p190 = por %p188, %p189
      %p191 = scmp.ne.s32.totalorder %s182, %s183
      %p192 = scmp.eq.s32.totalorder %s25, 0
      %p193 = por %p191, %p192
      %p194 = scmp.ne.s32.totalorder %s182, %s183
      %p195 = scmp.eq.s32.totalorder %s26, 1
      %p196 = por %p194, %p195
      %p198 = scmp.ne.s32.totalorder %s183, %s197
      %p199 = scmp.eq.s32.totalorder %s26, 0
      %p200 = por %p198, %p199
      %s202 = sadd.s32 %s201, 1
      %p205 = scmp.eq.s32.totalorder %s20, 1
      %p206 = scmp.ne.s32.totalorder %s201, %s203
      %p207 = scmp.eq.s32.totalorder %s20, 0
      %p208 = por %p206, %p207
      %p209 = scmp.ne.s32.totalorder %s201, %s203
      %p210 = scmp.eq.s32.totalorder %s25, 1
      %p211 = por %p209, %p210
      %p212 = scmp.ne.s32.totalorder %s203, %s204
      %p213 = scmp.eq.s32.totalorder %s25, 0
      %p214 = por %p212, %p213
      %p215 = scmp.ne.s32.totalorder %s203, %s204
      %p216 = scmp.eq.s32.totalorder %s26, 1
      %p217 = por %p215, %p216
      %p219 = scmp.ne.s32.totalorder %s204, %s218
      %p220 = scmp.eq.s32.totalorder %s26, 0
      %p221 = por %p219, %p220
      %s223 = sadd.s32 %s222, 1
      %p226 = scmp.eq.s32.totalorder %s20, 1
      %p227 = scmp.ne.s32.totalorder %s222, %s224
      %p228 = scmp.eq.s32.totalorder %s20, 0
      %p229 = por %p227, %p228
      %p230 = scmp.ne.s32.totalorder %s222, %s224
      %p231 = scmp.eq.s32.totalorder %s25, 1
      %p232 = por %p230, %p231
      %p233 = scmp.ne.s32.totalorder %s224, %s225
      %p234 = scmp.eq.s32.totalorder %s25, 0
      %p235 = por %p233, %p234
      %p236 = scmp.ne.s32.totalorder %s224, %s225
      %p237 = scmp.eq.s32.totalorder %s26, 1
      %p238 = por %p236, %p237
      %p240 = scmp.ne.s32.totalorder %s225, %s239
      %p241 = scmp.eq.s32.totalorder %s26, 0
      %p242 = por %p240, %p241
      %s244 = sadd.s32 %s243, 1
      %p247 = scmp.eq.s32.totalorder %s20, 1
      %p248 = scmp.ne.s32.totalorder %s243, %s245
      %p249 = scmp.eq.s32.totalorder %s20, 0
      %p250 = por %p248, %p249
      %p251 = scmp.ne.s32.totalorder %s243, %s245
      %p252 = scmp.eq.s32.totalorder %s25, 1
      %p253 = por %p251, %p252
      %p254 = scmp.ne.s32.totalorder %s245, %s246
      %p255 = scmp.eq.s32.totalorder %s25, 0
      %p256 = por %p254, %p255
      %p257 = scmp.ne.s32.totalorder %s245, %s246
      %p258 = scmp.eq.s32.totalorder %s26, 1
      %p259 = por %p257, %p258
      %p261 = scmp.ne.s32.totalorder %s246, %s260
      %p262 = scmp.eq.s32.totalorder %s26, 0
      %p263 = por %p261, %p262
      %s265 = sadd.s32 %s264, 1
      %p268 = scmp.eq.s32.totalorder %s20, 1
      %p269 = scmp.ne.s32.totalorder %s264, %s266
      %p270 = scmp.eq.s32.totalorder %s20, 0
      %p271 = por %p269, %p270
      %p272 = scmp.ne.s32.totalorder %s264, %s266
      %p273 = scmp.eq.s32.totalorder %s25, 1
      %p274 = por %p272, %p273
      %p275 = scmp.ne.s32.totalorder %s266, %s267
      %p276 = scmp.eq.s32.totalorder %s25, 0
      %p277 = por %p275, %p276
      %p278 = scmp.ne.s32.totalorder %s266, %s267
      %p279 = scmp.eq.s32.totalorder %s26, 1
      %p280 = por %p278, %p279
      %p282 = scmp.ne.s32.totalorder %s267, %s281
      %p283 = scmp.eq.s32.totalorder %s26, 0
      %p284 = por %p282, %p283
      %s285 = ssub.s32 %s20, %s27
      %p286 = scmp.eq.s32.totalorder %s285, 0
      %s288 = sadd.s32 %s287, 1
      %s289 = scalar_select %p286, %s287, %s288
      %p292 = pneg %p286
      %p293 = scmp.eq.s32.totalorder %s20, 1
      %p294 = por %p292, %p293
      %p295 = scmp.ne.s32.totalorder %s287, %s290
      %p296 = scmp.eq.s32.totalorder %s20, 0
      %p297 = por %p295, %p296
      %p298 = scmp.ne.s32.totalorder %s287, %s290
      %p299 = scmp.eq.s32.totalorder %s25, 1
      %p300 = por %p298, %p299
      %p301 = scmp.ne.s32.totalorder %s290, %s291
      %p302 = scmp.eq.s32.totalorder %s25, 0
      %p303 = por %p301, %p302
      %p304 = scmp.ne.s32.totalorder %s290, %s291
      %p305 = scmp.eq.s32.totalorder %s26, 1
      %p306 = por %p304, %p305
      %p308 = scmp.ne.s32.totalorder %s291, %s307
      %p309 = scmp.eq.s32.totalorder %s26, 0
      %p310 = por %p308, %p309
      %p311 = scmp.le.s32.totalorder 1, %s20
      %p312 = scmp.lt.s32.totalorder %s20, 3
      %p313 = pnand %p311, %p312
      %p314 = pneg %p313
      // Predicated region
      $region9: #{mff_forward.1} parent=5 // pred_check
        _
      $region10: #{mff_forward.1} parent=5 // pred_check_branch
        %316 = sbr.rel (%p313) target = $region12
      $region11: #{mff_forward.1} parent=5 // pred_region
        %s317 = ssub.s32 %s20, 1
        // Predicated region
        $region13: #{mff_forward.1} parent=11 // pred_check
          %p318 = pneg %p67
        $region14: #{mff_forward.1} parent=11 // pred_check_branch
          %320 = sbr.rel (%p318) target = $region16
        $region15: #{mff_forward.1} parent=11 // pred_region
          %322 = vsyncadd [#allocation3], 0
          %s323 = sshll.u32 %s1, 4
          %s324 = int_to_ptr.hbm [resolvable:$true] %s323
          %s325 = sshll.u32 [#allocation2], 4
          %s326 = int_to_ptr.vmem [resolvable:$true] %s325
          %331 = dma.hbm_to_vmem [thread:$0]  %s324, 16384, %s326, [#allocation3], 512, 512, 32
        $region16: #{mff_forward.1} parent=11 // pred_fallthru
          _
        // Predicated region
        $region17: #{mff_forward.1} parent=11 // pred_check
          %p332 = pneg %p88
        $region18: #{mff_forward.1} parent=11 // pred_check_branch
          %334 = sbr.rel (%p332) target = $region20
        $region19: #{mff_forward.1} parent=11 // pred_region
          _
        $region20: #{mff_forward.1} parent=11 // pred_fallthru
          _
        // Predicated region
        $region21: #{mff_forward.1} parent=11 // pred_check
          %p335 = pneg %p109
        $region22: #{mff_forward.1} parent=11 // pred_check_branch
          %337 = sbr.rel (%p335) target = $region24
        $region23: #{mff_forward.1} parent=11 // pred_region
          %339 = vsyncadd [#allocation5], 0
          %s340 = sshll.u32 %s3, 4
          %s341 = int_to_ptr.hbm [resolvable:$true] %s340
          %s342 = sshll.u32 [#allocation4], 4
          %s343 = int_to_ptr.vmem [resolvable:$true] %s342
          %348 = dma.hbm_to_vmem [thread:$0]  %s341, 4608, %s343, [#allocation5], 128, 128, 8
        $region24: #{mff_forward.1} parent=11 // pred_fallthru
          _
        // Predicated region
        $region25: #{mff_forward.1} parent=11 // pred_check
          %p349 = pneg %p130
        $region26: #{mff_forward.1} parent=11 // pred_check_branch
          %351 = sbr.rel (%p349) target = $region28
        $region27: #{mff_forward.1} parent=11 // pred_region
          _
        $region28: #{mff_forward.1} parent=11 // pred_fallthru
          _
        // Predicated region
        $region29: #{mff_forward.1} parent=11 // pred_check
          %p352 = pneg %p151
        $region30: #{mff_forward.1} parent=11 // pred_check_branch
          %354 = sbr.rel (%p352) target = $region32
        $region31: #{mff_forward.1} parent=11 // pred_region
          _
        $region32: #{mff_forward.1} parent=11 // pred_fallthru
          _
        // Predicated region
        $region33: #{mff_forward.1} parent=11 // pred_check
          %p355 = pneg %p172
        $region34: #{mff_forward.1} parent=11 // pred_check_branch
          %357 = sbr.rel (%p355) target = $region36
        $region35: #{mff_forward.1} parent=11 // pred_region
          _
        $region36: #{mff_forward.1} parent=11 // pred_fallthru
          _
        // Predicated region
        $region37: #{mff_forward.1} parent=11 // pred_check
          %p358 = pneg %p193
        $region38: #{mff_forward.1} parent=11 // pred_check_branch
          %360 = sbr.rel (%p358) target = $region40
        $region39: #{mff_forward.1} parent=11 // pred_region
          _
        $region40: #{mff_forward.1} parent=11 // pred_fallthru
          _
        // Predicated region
        $region41: #{mff_forward.1} parent=11 // pred_check
          %p361 = pneg %p214
        $region42: #{mff_forward.1} parent=11 // pred_check_branch
          %363 = sbr.rel (%p361) target = $region44
        $region43: #{mff_forward.1} parent=11 // pred_region
          _
        $region44: #{mff_forward.1} parent=11 // pred_fallthru
          _
        // Predicated region
        $region45: #{mff_forward.1} parent=11 // pred_check
          %p364 = pneg %p235
        $region46: #{mff_forward.1} parent=11 // pred_check_branch
          %366 = sbr.rel (%p364) target = $region48
        $region47: #{mff_forward.1} parent=11 // pred_region
          _
        $region48: #{mff_forward.1} parent=11 // pred_fallthru
          _
        // Predicated region
        $region49: #{mff_forward.1} parent=11 // pred_check
          %p367 = pneg %p256
        $region50: #{mff_forward.1} parent=11 // pred_check_branch
          %369 = sbr.rel (%p367) target = $region52
        $region51: #{mff_forward.1} parent=11 // pred_region
          _
        $region52: #{mff_forward.1} parent=11 // pred_fallthru
          _
        // Predicated region
        $region53: #{mff_forward.1} parent=11 // pred_check
          %p370 = pneg %p277
        $region54: #{mff_forward.1} parent=11 // pred_check_branch
          %372 = sbr.rel (%p370) target = $region56
        $region55: #{mff_forward.1} parent=11 // pred_region
          _
        $region56: #{mff_forward.1} parent=11 // pred_fallthru
          _
      $region12: #{mff_forward.1} parent=5 // pred_fallthru
        _
      %p373 = scmp.lt.s32.totalorder %s20, 2
      // Predicated region
      $region57: #{mff_forward.1} parent=5 // pred_check
        %p374 = pneg %p373
      $region58: #{mff_forward.1} parent=5 // pred_check_branch
        %376 = sbr.rel (%p374) target = $region60
      $region59: #{mff_forward.1} parent=5 // pred_region
        // Predicated region
        $region61: #{mff_forward.1} parent=59 // pred_check
          %p377 = pneg %p40
        $region62: #{mff_forward.1} parent=59 // pred_check_branch
          %379 = sbr.rel (%p377) target = $region64
        $region63: #{mff_forward.1} parent=59 // pred_region
          %p380 = scmp.lt.s32.totalorder %s20, 1
          %s381 = scalar_select %p380, %s20, 1
          %s382 = smul.addr %s381, 8
          %s383 = smul.addr %s382, 8
          %s384 = scalar_lea.vmem %s0, %s383
        $region64: #{mff_forward.1} parent=59 // pred_fallthru
          _
      $region60: #{mff_forward.1} parent=5 // pred_fallthru
        _
      %p385 = scmp.le.s32.totalorder 1, %s20
      %p386 = scmp.lt.s32.totalorder %s20, 3
      %p387 = pnand %p385, %p386
      %p388 = pneg %p387
      // Predicated region
      $region65: #{mff_forward.1} parent=5 // pred_check
        _
      $region66: #{mff_forward.1} parent=5 // pred_check_branch
        %390 = sbr.rel (%p387) target = $region68
      $region67: #{mff_forward.1} parent=5 // pred_region
        %s391 = ssub.s32 %s20, 1
        // Predicated region
        $region69: #{mff_forward.1} parent=67 // pred_check
          %p392 = pneg %p67
        $region70: #{mff_forward.1} parent=67 // pred_check_branch
          %394 = sbr.rel (%p392) target = $region72
        $region71: #{mff_forward.1} parent=67 // pred_region
          %396 = dma.done [#allocation3], 16384
        $region72: #{mff_forward.1} parent=67 // pred_fallthru
          _
        // Predicated region
        $region73: #{mff_forward.1} parent=67 // pred_check
          %p397 = pneg %p109
        $region74: #{mff_forward.1} parent=67 // pred_check_branch
          %399 = sbr.rel (%p397) target = $region76
        $region75: #{mff_forward.1} parent=67 // pred_region
          %401 = dma.done [#allocation5], 4608
        $region76: #{mff_forward.1} parent=67 // pred_fallthru
          _
        %p402 = scmp.lt.s32.totalorder %s25, 1
        %s403 = scalar_select %p402, %s25, 1
        %s404 = smul.addr %s403, 8
        %s405 = smul.addr %s404, 8
        %s406 = scalar_lea.vmem %s0, %s405
        %p407 = pneg %p46
        %p408 = pneg %p43
        %p409 = pneg %p67
        %p410 = pneg %p64
        %p411 = pneg %p88
        %p412 = pneg %p85
        %p413 = pneg %p109
        %p414 = pneg %p106
        %p415 = pneg %p130
        %p416 = pneg %p127
        %p417 = pneg %p151
        %p418 = pneg %p148
        %p419 = pneg %p172
        %p420 = pneg %p169
        %p421 = pneg %p193
        %p422 = pneg %p190
        %p423 = pneg %p214
        %p424 = pneg %p211
        %p425 = pneg %p235
        %p426 = pneg %p232
        %p427 = pneg %p256
        %p428 = pneg %p253
        %p429 = pneg %p277
        %p430 = pneg %p274
        %p431 = pneg %p303
        %p432 = pneg %p300
        %p433 = scmp.lt.s32.totalorder %s25, 1
        %s434 = scalar_select %p433, %s25, 1
        %s435 = smul.addr %s434, 10
        %s436 = smul.addr %s435, 8
        %s437 = scalar_lea.vmem %s12, %s436
        %p438 = scmp.lt.s32.totalorder %s25, 1
        %s439 = scalar_select %p438, %s25, 1
        %s440 = smul.addr %s439, 8
        %s441 = smul.addr %s440, 8
        %s442 = scalar_lea.vmem %s0, %s441
        %p443 = scmp.lt.s32.totalorder %s25, 1
        %s444 = scalar_select %p443, %s25, 1
        %s445 = smul.addr %s444, 10
        %s446 = smul.addr %s445, 8
        %s447 = scalar_lea.vmem %s12, %s446
        %v448 = vld [vmem:[%s442] sm:$0xff]
        %v449 = vld [vmem:[%s442 + $0x8] sm:$0xff]
        %v450 = vld [vmem:[%s442 + $0x10] sm:$0xff]
        %v451 = vld [vmem:[%s442 + $0x18] sm:$0xff]
        %v452 = vld [vmem:[%s442 + $0x20] sm:$0xff]
        %v453 = vld [vmem:[%s442 + $0x28] sm:$0xff]
        %v454 = vld [vmem:[%s442 + $0x30] sm:$0xff]
        %v455 = vld [vmem:[%s442 + $0x38] sm:$0xff]
        %v456 = vld [vmem:[#allocation2] sm:$0xff]
        %v457 = vld [vmem:[#allocation2 + $0x8] sm:$0xff]
        %v458 = vld [vmem:[#allocation2 + $0x10] sm:$0xff]
        %v459 = vld [vmem:[#allocation2 + $0x18] sm:$0xff]
        %v460 = vld [vmem:[#allocation2 + $0x20] sm:$0xff]
        %v461 = vld [vmem:[#allocation2 + $0x28] sm:$0xff]
        %v462 = vld [vmem:[#allocation2 + $0x30] sm:$0xff]
        %v463 = vld [vmem:[#allocation2 + $0x38] sm:$0xff]
        %v464 = vld [vmem:[#allocation2 + $0x40] sm:$0xff]
        %v465 = vld [vmem:[#allocation2 + $0x48] sm:$0xff]
        %v466 = vld [vmem:[#allocation2 + $0x50] sm:$0xff]
        %v467 = vld [vmem:[#allocation2 + $0x58] sm:$0xff]
        %v468 = vld [vmem:[#allocation2 + $0x60] sm:$0xff]
        %v469 = vld [vmem:[#allocation2 + $0x68] sm:$0xff]
        %v470 = vld [vmem:[#allocation2 + $0x70] sm:$0xff]
        %v471 = vld [vmem:[#allocation2 + $0x78] sm:$0xff]
        %v472 = vld [vmem:[#allocation2 + $0x80] sm:$0xff]
        %v473 = vld [vmem:[#allocation2 + $0x88] sm:$0xff]
        %v474 = vld [vmem:[#allocation2 + $0x90] sm:$0xff]
        %v475 = vld [vmem:[#allocation2 + $0x98] sm:$0xff]
        %v476 = vld [vmem:[#allocation2 + $0xa0] sm:$0xff]
        %v477 = vld [vmem:[#allocation2 + $0xa8] sm:$0xff]
        %v478 = vld [vmem:[#allocation2 + $0xb0] sm:$0xff]
        %v479 = vld [vmem:[#allocation2 + $0xb8] sm:$0xff]
        %v480 = vld [vmem:[#allocation2 + $0xc0] sm:$0xff]
        %v481 = vld [vmem:[#allocation2 + $0xc8] sm:$0xff]
        %v482 = vld [vmem:[#allocation2 + $0xd0] sm:$0xff]
        %v483 = vld [vmem:[#allocation2 + $0xd8] sm:$0xff]
        %v484 = vld [vmem:[#allocation2 + $0xe0] sm:$0xff]
        %v485 = vld [vmem:[#allocation2 + $0xe8] sm:$0xff]
        %v486 = vld [vmem:[#allocation2 + $0xf0] sm:$0xff]
        %v487 = vld [vmem:[#allocation2 + $0xf8] sm:$0xff]
        %v488 = vld [vmem:[#allocation2 + $0x100] sm:$0xff]
        %v489 = vld [vmem:[#allocation2 + $0x108] sm:$0xff]
        %v490 = vld [vmem:[#allocation2 + $0x110] sm:$0xff]
        %v491 = vld [vmem:[#allocation2 + $0x118] sm:$0xff]
        %v492 = vld [vmem:[#allocation2 + $0x120] sm:$0xff]
        %v493 = vld [vmem:[#allocation2 + $0x128] sm:$0xff]
        %v494 = vld [vmem:[#allocation2 + $0x130] sm:$0xff]
        %v495 = vld [vmem:[#allocation2 + $0x138] sm:$0xff]
        %v496 = vld [vmem:[#allocation2 + $0x140] sm:$0xff]
        %v497 = vld [vmem:[#allocation2 + $0x148] sm:$0xff]
        %v498 = vld [vmem:[#allocation2 + $0x150] sm:$0xff]
        %v499 = vld [vmem:[#allocation2 + $0x158] sm:$0xff]
        %v500 = vld [vmem:[#allocation2 + $0x160] sm:$0xff]
        %v501 = vld [vmem:[#allocation2 + $0x168] sm:$0xff]
        %v502 = vld [vmem:[#allocation2 + $0x170] sm:$0xff]
        %v503 = vld [vmem:[#allocation2 + $0x178] sm:$0xff]
        %v504 = vld [vmem:[#allocation2 + $0x180] sm:$0xff]
        %v505 = vld [vmem:[#allocation2 + $0x188] sm:$0xff]
        %v506 = vld [vmem:[#allocation2 + $0x190] sm:$0xff]
        %v507 = vld [vmem:[#allocation2 + $0x198] sm:$0xff]
        %v508 = vld [vmem:[#allocation2 + $0x1a0] sm:$0xff]
        %v509 = vld [vmem:[#allocation2 + $0x1a8] sm:$0xff]
        %v510 = vld [vmem:[#allocation2 + $0x1b0] sm:$0xff]
        %v511 = vld [vmem:[#allocation2 + $0x1b8] sm:$0xff]
        %v512 = vld [vmem:[#allocation2 + $0x1c0] sm:$0xff]
        %v513 = vld [vmem:[#allocation2 + $0x1c8] sm:$0xff]
        %v514 = vld [vmem:[#allocation2 + $0x1d0] sm:$0xff]
        %v515 = vld [vmem:[#allocation2 + $0x1d8] sm:$0xff]
        %v516 = vld [vmem:[#allocation2 + $0x1e0] sm:$0xff]
        %v517 = vld [vmem:[#allocation2 + $0x1e8] sm:$0xff]
        %v518 = vld [vmem:[#allocation2 + $0x1f0] sm:$0xff]
        %v519 = vld [vmem:[#allocation2 + $0x1f8] sm:$0xff]
        %v520 = vld [vmem:[#allocation2 + $0x200] sm:$0xff]
        %v521 = vld [vmem:[#allocation2 + $0x208] sm:$0xff]
        %v522 = vld [vmem:[#allocation2 + $0x210] sm:$0xff]
        %v523 = vld [vmem:[#allocation2 + $0x218] sm:$0xff]
        %v524 = vld [vmem:[#allocation2 + $0x220] sm:$0xff]
        %v525 = vld [vmem:[#allocation2 + $0x228] sm:$0xff]
        %v526 = vld [vmem:[#allocation2 + $0x230] sm:$0xff]
        %v527 = vld [vmem:[#allocation2 + $0x238] sm:$0xff]
        %v528 = vld [vmem:[#allocation2 + $0x240] sm:$0xff]
        %v529 = vld [vmem:[#allocation2 + $0x248] sm:$0xff]
        %v530 = vld [vmem:[#allocation2 + $0x250] sm:$0xff]
        %v531 = vld [vmem:[#allocation2 + $0x258] sm:$0xff]
        %v532 = vld [vmem:[#allocation2 + $0x260] sm:$0xff]
        %v533 = vld [vmem:[#allocation2 + $0x268] sm:$0xff]
        %v534 = vld [vmem:[#allocation2 + $0x270] sm:$0xff]
        %v535 = vld [vmem:[#allocation2 + $0x278] sm:$0xff]
        %v536 = vld [vmem:[#allocation2 + $0x280] sm:$0xff]
        %v537 = vld [vmem:[#allocation2 + $0x288] sm:$0xff]
        %v538 = vld [vmem:[#allocation2 + $0x290] sm:$0xff]
        %v539 = vld [vmem:[#allocation2 + $0x298] sm:$0xff]
        %v540 = vld [vmem:[#allocation2 + $0x2a0] sm:$0xff]
        %v541 = vld [vmem:[#allocation2 + $0x2a8] sm:$0xff]
        %v542 = vld [vmem:[#allocation2 + $0x2b0] sm:$0xff]
        %v543 = vld [vmem:[#allocation2 + $0x2b8] sm:$0xff]
        %v544 = vld [vmem:[#allocation2 + $0x2c0] sm:$0xff]
        %v545 = vld [vmem:[#allocation2 + $0x2c8] sm:$0xff]
        %v546 = vld [vmem:[#allocation2 + $0x2d0] sm:$0xff]
        %v547 = vld [vmem:[#allocation2 + $0x2d8] sm:$0xff]
        %v548 = vld [vmem:[#allocation2 + $0x2e0] sm:$0xff]
        %v549 = vld [vmem:[#allocation2 + $0x2e8] sm:$0xff]
        %v550 = vld [vmem:[#allocation2 + $0x2f0] sm:$0xff]
        %v551 = vld [vmem:[#allocation2 + $0x2f8] sm:$0xff]
        %v552 = vld [vmem:[#allocation2 + $0x300] sm:$0xff]
        %v553 = vld [vmem:[#allocation2 + $0x308] sm:$0xff]
        %v554 = vld [vmem:[#allocation2 + $0x310] sm:$0xff]
        %v555 = vld [vmem:[#allocation2 + $0x318] sm:$0xff]
        %v556 = vld [vmem:[#allocation2 + $0x320] sm:$0xff]
        %v557 = vld [vmem:[#allocation2 + $0x328] sm:$0xff]
        %v558 = vld [vmem:[#allocation2 + $0x330] sm:$0xff]
        %v559 = vld [vmem:[#allocation2 + $0x338] sm:$0xff]
        %v560 = vld [vmem:[#allocation2 + $0x340] sm:$0xff]
        %v561 = vld [vmem:[#allocation2 + $0x348] sm:$0xff]
        %v562 = vld [vmem:[#allocation2 + $0x350] sm:$0xff]
        %v563 = vld [vmem:[#allocation2 + $0x358] sm:$0xff]
        %v564 = vld [vmem:[#allocation2 + $0x360] sm:$0xff]
        %v565 = vld [vmem:[#allocation2 + $0x368] sm:$0xff]
        %v566 = vld [vmem:[#allocation2 + $0x370] sm:$0xff]
        %v567 = vld [vmem:[#allocation2 + $0x378] sm:$0xff]
        %v568 = vld [vmem:[#allocation2 + $0x380] sm:$0xff]
        %v569 = vld [vmem:[#allocation2 + $0x388] sm:$0xff]
        %v570 = vld [vmem:[#allocation2 + $0x390] sm:$0xff]
        %v571 = vld [vmem:[#allocation2 + $0x398] sm:$0xff]
        %v572 = vld [vmem:[#allocation2 + $0x3a0] sm:$0xff]
        %v573 = vld [vmem:[#allocation2 + $0x3a8] sm:$0xff]
        %v574 = vld [vmem:[#allocation2 + $0x3b0] sm:$0xff]
        %v575 = vld [vmem:[#allocation2 + $0x3b8] sm:$0xff]
        %v576 = vld [vmem:[#allocation2 + $0x3c0] sm:$0xff]
        %v577 = vld [vmem:[#allocation2 + $0x3c8] sm:$0xff]
        %v578 = vld [vmem:[#allocation2 + $0x3d0] sm:$0xff]
        %v579 = vld [vmem:[#allocation2 + $0x3d8] sm:$0xff]
        %v580 = vld [vmem:[#allocation2 + $0x3e0] sm:$0xff]
        %v581 = vld [vmem:[#allocation2 + $0x3e8] sm:$0xff]
        %v582 = vld [vmem:[#allocation2 + $0x3f0] sm:$0xff]
        %v583 = vld [vmem:[#allocation2 + $0x3f8] sm:$0xff]
        %584 = vmatpush.msra.mxu0 %v516
        %585 = vmatpush.msra.mxu0 %v512
        %586 = vmatpush.msra.mxu0 %v508
        %587 = vmatpush.msra.mxu0 %v504
        %588 = vmatpush.msra.mxu0 %v500
        %589 = vmatpush.msra.mxu0 %v496
        %590 = vmatpush.msra.mxu0 %v492
        %591 = vmatpush.msra.mxu0 %v488
        %592 = vmatpush.msra.mxu0 %v484
        %593 = vmatpush.msra.mxu0 %v480
        %594 = vmatpush.msra.mxu0 %v476
        %595 = vmatpush.msra.mxu0 %v472
        %596 = vmatpush.msra.mxu0 %v468
        %597 = vmatpush.msra.mxu0 %v464
        %598 = vmatpush.msra.mxu0 %v460
        %599 = vmatpush.msra.mxu0 %v456
        %600 = vmatmul.f32.gmra.mxu0 %v448
        %v601 = vpop.f32.mrf.mxu0
        %v602 = vadd.f32 0.0, %v601
        %603 = vmatmul.f32.gmra.mxu0 %v450
        %v604 = vpop.f32.mrf.mxu0
        %v605 = vadd.f32 0.0, %v604
        %606 = vmatmul.f32.gmra.mxu0 %v452
        %v607 = vpop.f32.mrf.mxu0
        %v608 = vadd.f32 0.0, %v607
        %609 = vmatmul.f32.gmra.mxu0 %v454
        %v610 = vpop.f32.mrf.mxu0
        %v611 = vadd.f32 0.0, %v610
        %612 = vdwg.mxu0
        %613 = vmatpush.msra.mxu0 %v580
        %614 = vmatpush.msra.mxu0 %v576
        %615 = vmatpush.msra.mxu0 %v572
        %616 = vmatpush.msra.mxu0 %v568
        %617 = vmatpush.msra.mxu0 %v564
        %618 = vmatpush.msra.mxu0 %v560
        %619 = vmatpush.msra.mxu0 %v556
        %620 = vmatpush.msra.mxu0 %v552
        %621 = vmatpush.msra.mxu0 %v548
        %622 = vmatpush.msra.mxu0 %v544
        %623 = vmatpush.msra.mxu0 %v540
        %624 = vmatpush.msra.mxu0 %v536
        %625 = vmatpush.msra.mxu0 %v532
        %626 = vmatpush.msra.mxu0 %v528
        %627 = vmatpush.msra.mxu0 %v524
        %628 = vmatpush.msra.mxu0 %v520
        %629 = vmatmul.f32.gmra.mxu0 %v449
        %v630 = vpop.f32.mrf.mxu0
        %v631 = vadd.f32 %v602, %v630
        %632 = vmatmul.f32.gmra.mxu0 %v451
        %v633 = vpop.f32.mrf.mxu0
        %v634 = vadd.f32 %v605, %v633
        %635 = vmatmul.f32.gmra.mxu0 %v453
        %v636 = vpop.f32.mrf.mxu0
        %v637 = vadd.f32 %v608, %v636
        %638 = vmatmul.f32.gmra.mxu0 %v455
        %v639 = vpop.f32.mrf.mxu0
        %v640 = vadd.f32 %v611, %v639
        %641 = vdwg.mxu0
        %642 = vmatpush.msra.mxu0 %v517
        %643 = vmatpush.msra.mxu0 %v513
        %644 = vmatpush.msra.mxu0 %v509
        %645 = vmatpush.msra.mxu0 %v505
        %646 = vmatpush.msra.mxu0 %v501
        %647 = vmatpush.msra.mxu0 %v497
        %648 = vmatpush.msra.mxu0 %v493
        %649 = vmatpush.msra.mxu0 %v489
        %650 = vmatpush.msra.mxu0 %v485
        %651 = vmatpush.msra.mxu0 %v481
        %652 = vmatpush.msra.mxu0 %v477
        %653 = vmatpush.msra.mxu0 %v473
        %654 = vmatpush.msra.mxu0 %v469
        %655 = vmatpush.msra.mxu0 %v465
        %656 = vmatpush.msra.mxu0 %v461
        %657 = vmatpush.msra.mxu0 %v457
        %658 = vmatmul.f32.gmra.mxu0 %v448
        %v659 = vpop.f32.mrf.mxu0
        %v660 = vadd.f32 0.0, %v659
        %661 = vmatmul.f32.gmra.mxu0 %v450
        %v662 = vpop.f32.mrf.mxu0
        %v663 = vadd.f32 0.0, %v662
        %664 = vmatmul.f32.gmra.mxu0 %v452
        %v665 = vpop.f32.mrf.mxu0
        %v666 = vadd.f32 0.0, %v665
        %667 = vmatmul.f32.gmra.mxu0 %v454
        %v668 = vpop.f32.mrf.mxu0
        %v669 = vadd.f32 0.0, %v668
        %670 = vdwg.mxu0
        %671 = vmatpush.msra.mxu0 %v581
        %672 = vmatpush.msra.mxu0 %v577
        %673 = vmatpush.msra.mxu0 %v573
        %674 = vmatpush.msra.mxu0 %v569
        %675 = vmatpush.msra.mxu0 %v565
        %676 = vmatpush.msra.mxu0 %v561
        %677 = vmatpush.msra.mxu0 %v557
        %678 = vmatpush.msra.mxu0 %v553
        %679 = vmatpush.msra.mxu0 %v549
        %680 = vmatpush.msra.mxu0 %v545
        %681 = vmatpush.msra.mxu0 %v541
        %682 = vmatpush.msra.mxu0 %v537
        %683 = vmatpush.msra.mxu0 %v533
        %684 = vmatpush.msra.mxu0 %v529
        %685 = vmatpush.msra.mxu0 %v525
        %686 = vmatpush.msra.mxu0 %v521
        %687 = vmatmul.f32.gmra.mxu0 %v449
        %v688 = vpop.f32.mrf.mxu0
        %v689 = vadd.f32 %v660, %v688
        %690 = vmatmul.f32.gmra.mxu0 %v451
        %v691 = vpop.f32.mrf.mxu0
        %v692 = vadd.f32 %v663, %v691
        %693 = vmatmul.f32.gmra.mxu0 %v453
        %v694 = vpop.f32.mrf.mxu0
        %v695 = vadd.f32 %v666, %v694
        %696 = vmatmul.f32.gmra.mxu0 %v455
        %v697 = vpop.f32.mrf.mxu0
        %v698 = vadd.f32 %v669, %v697
        %699 = vdwg.mxu0
        %700 = vmatpush.msra.mxu0 %v518
        %701 = vmatpush.msra.mxu0 %v514
        %702 = vmatpush.msra.mxu0 %v510
        %703 = vmatpush.msra.mxu0 %v506
        %704 = vmatpush.msra.mxu0 %v502
        %705 = vmatpush.msra.mxu0 %v498
        %706 = vmatpush.msra.mxu0 %v494
        %707 = vmatpush.msra.mxu0 %v490
        %708 = vmatpush.msra.mxu0 %v486
        %709 = vmatpush.msra.mxu0 %v482
        %710 = vmatpush.msra.mxu0 %v478
        %711 = vmatpush.msra.mxu0 %v474
        %712 = vmatpush.msra.mxu0 %v470
        %713 = vmatpush.msra.mxu0 %v466
        %714 = vmatpush.msra.mxu0 %v462
        %715 = vmatpush.msra.mxu0 %v458
        %716 = vmatmul.f32.gmra.mxu0 %v448
        %v717 = vpop.f32.mrf.mxu0
        %v718 = vadd.f32 0.0, %v717
        %719 = vmatmul.f32.gmra.mxu0 %v450
        %v720 = vpop.f32.mrf.mxu0
        %v721 = vadd.f32 0.0, %v720
        %722 = vmatmul.f32.gmra.mxu0 %v452
        %v723 = vpop.f32.mrf.mxu0
        %v724 = vadd.f32 0.0, %v723
        %725 = vmatmul.f32.gmra.mxu0 %v454
        %v726 = vpop.f32.mrf.mxu0
        %v727 = vadd.f32 0.0, %v726
        %728 = vdwg.mxu0
        %729 = vmatpush.msra.mxu0 %v582
        %730 = vmatpush.msra.mxu0 %v578
        %731 = vmatpush.msra.mxu0 %v574
        %732 = vmatpush.msra.mxu0 %v570
        %733 = vmatpush.msra.mxu0 %v566
        %734 = vmatpush.msra.mxu0 %v562
        %735 = vmatpush.msra.mxu0 %v558
        %736 = vmatpush.msra.mxu0 %v554
        %737 = vmatpush.msra.mxu0 %v550
        %738 = vmatpush.msra.mxu0 %v546
        %739 = vmatpush.msra.mxu0 %v542
        %740 = vmatpush.msra.mxu0 %v538
        %741 = vmatpush.msra.mxu0 %v534
        %742 = vmatpush.msra.mxu0 %v530
        %743 = vmatpush.msra.mxu0 %v526
        %744 = vmatpush.msra.mxu0 %v522
        %745 = vmatmul.f32.gmra.mxu0 %v449
        %v746 = vpop.f32.mrf.mxu0
        %v747 = vadd.f32 %v718, %v746
        %748 = vmatmul.f32.gmra.mxu0 %v451
        %v749 = vpop.f32.mrf.mxu0
        %v750 = vadd.f32 %v721, %v749
        %751 = vmatmul.f32.gmra.mxu0 %v453
        %v752 = vpop.f32.mrf.mxu0
        %v753 = vadd.f32 %v724, %v752
        %754 = vmatmul.f32.gmra.mxu0 %v455
        %v755 = vpop.f32.mrf.mxu0
        %v756 = vadd.f32 %v727, %v755
        %757 = vdwg.mxu0
        %758 = vmatpush.msra.mxu0 %v519
        %759 = vmatpush.msra.mxu0 %v515
        %760 = vmatpush.msra.mxu0 %v511
        %761 = vmatpush.msra.mxu0 %v507
        %762 = vmatpush.msra.mxu0 %v503
        %763 = vmatpush.msra.mxu0 %v499
        %764 = vmatpush.msra.mxu0 %v495
        %765 = vmatpush.msra.mxu0 %v491
        %766 = vmatpush.msra.mxu0 %v487
        %767 = vmatpush.msra.mxu0 %v483
        %768 = vmatpush.msra.mxu0 %v479
        %769 = vmatpush.msra.mxu0 %v475
        %770 = vmatpush.msra.mxu0 %v471
        %771 = vmatpush.msra.mxu0 %v467
        %772 = vmatpush.msra.mxu0 %v463
        %773 = vmatpush.msra.mxu0 %v459
        %774 = vmatmul.f32.gmra.mxu0 %v448
        %v775 = vpop.f32.mrf.mxu0
        %v776 = vadd.f32 0.0, %v775
        %777 = vmatmul.f32.gmra.mxu0 %v450
        %v778 = vpop.f32.mrf.mxu0
        %v779 = vadd.f32 0.0, %v778
        %780 = vmatmul.f32.gmra.mxu0 %v452
        %v781 = vpop.f32.mrf.mxu0
        %v782 = vadd.f32 0.0, %v781
        %783 = vmatmul.f32.gmra.mxu0 %v454
        %v784 = vpop.f32.mrf.mxu0
        %v785 = vadd.f32 0.0, %v784
        %786 = vdwg.mxu0
        %787 = vmatpush.msra.mxu0 %v583
        %788 = vmatpush.msra.mxu0 %v579
        %789 = vmatpush.msra.mxu0 %v575
        %790 = vmatpush.msra.mxu0 %v571
        %791 = vmatpush.msra.mxu0 %v567
        %792 = vmatpush.msra.mxu0 %v563
        %793 = vmatpush.msra.mxu0 %v559
        %794 = vmatpush.msra.mxu0 %v555
        %795 = vmatpush.msra.mxu0 %v551
        %796 = vmatpush.msra.mxu0 %v547
        %797 = vmatpush.msra.mxu0 %v543
        %798 = vmatpush.msra.mxu0 %v539
        %799 = vmatpush.msra.mxu0 %v535
        %800 = vmatpush.msra.mxu0 %v531
        %801 = vmatpush.msra.mxu0 %v527
        %802 = vmatpush.msra.mxu0 %v523
        %803 = vmatmul.f32.gmra.mxu0 %v449
        %v804 = vpop.f32.mrf.mxu0
        %v805 = vadd.f32 %v776, %v804
        %806 = vmatmul.f32.gmra.mxu0 %v451
        %v807 = vpop.f32.mrf.mxu0
        %v808 = vadd.f32 %v779, %v807
        %809 = vmatmul.f32.gmra.mxu0 %v453
        %v810 = vpop.f32.mrf.mxu0
        %v811 = vadd.f32 %v782, %v810
        %812 = vmatmul.f32.gmra.mxu0 %v455
        %v813 = vpop.f32.mrf.mxu0
        %v814 = vadd.f32 %v785, %v813
        %815 = vdwg.mxu0
        %v816 = vld [vmem:[%s2] sm:$0xff]
        %v817 = vld [vmem:[%s2 + $0x8] sm:$0xff]
        %v818 = vld [vmem:[%s2 + $0x10] sm:$0xff]
        %v819 = vld [vmem:[%s2 + $0x18] sm:$0xff]
        %v820 = vld [vmem:[%s2 + $0x20] sm:$0xff]
        %v821 = vld [vmem:[%s2 + $0x28] sm:$0xff]
        %v822 = vld [vmem:[%s2 + $0x30] sm:$0xff]
        %v823 = vld [vmem:[%s2 + $0x38] sm:$0xff]
        %v824 = vld [vmem:[%s2 + $0x40] sm:$0xff]
        %v825 = vld [vmem:[%s2 + $0x48] sm:$0xff]
        %v826 = vld [vmem:[%s2 + $0x50] sm:$0xff]
        %v827 = vld [vmem:[%s2 + $0x58] sm:$0xff]
        %v828 = vld [vmem:[%s2 + $0x60] sm:$0xff]
        %v829 = vld [vmem:[%s2 + $0x68] sm:$0xff]
        %v830 = vld [vmem:[%s2 + $0x70] sm:$0xff]
        %v831 = vld [vmem:[%s2 + $0x78] sm:$0xff]
        %v832 = vld [vmem:[%s2 + $0x80] sm:$0xff]
        %v833 = vld [vmem:[%s2 + $0x88] sm:$0xff]
        %v834 = vld [vmem:[%s2 + $0x90] sm:$0xff]
        %v835 = vld [vmem:[%s2 + $0x98] sm:$0xff]
        %v836 = vld [vmem:[%s2 + $0xa0] sm:$0xff]
        %v837 = vld [vmem:[%s2 + $0xa8] sm:$0xff]
        %v838 = vld [vmem:[%s2 + $0xb0] sm:$0xff]
        %v839 = vld [vmem:[%s2 + $0xb8] sm:$0xff]
        %v840 = vld [vmem:[%s2 + $0xc0] sm:$0xff]
        %v841 = vld [vmem:[%s2 + $0xc8] sm:$0xff]
        %v842 = vld [vmem:[%s2 + $0xd0] sm:$0xff]
        %v843 = vld [vmem:[%s2 + $0xd8] sm:$0xff]
        %v844 = vld [vmem:[%s2 + $0xe0] sm:$0xff]
        %v845 = vld [vmem:[%s2 + $0xe8] sm:$0xff]
        %v846 = vld [vmem:[%s2 + $0xf0] sm:$0xff]
        %v847 = vld [vmem:[%s2 + $0xf8] sm:$0xff]
        %v848 = vld [vmem:[%s2 + $0x100] sm:$0xff]
        %v849 = vld [vmem:[%s2 + $0x108] sm:$0xff]
        %v850 = vld [vmem:[%s2 + $0x110] sm:$0xff]
        %v851 = vld [vmem:[%s2 + $0x118] sm:$0xff]
        %v852 = vld [vmem:[%s2 + $0x120] sm:$0xff]
        %v853 = vld [vmem:[%s2 + $0x128] sm:$0xff]
        %v854 = vld [vmem:[%s2 + $0x130] sm:$0xff]
        %v855 = vld [vmem:[%s2 + $0x138] sm:$0xff]
        %v856 = vld [vmem:[%s2 + $0x140] sm:$0xff]
        %v857 = vld [vmem:[%s2 + $0x148] sm:$0xff]
        %v858 = vld [vmem:[%s2 + $0x150] sm:$0xff]
        %v859 = vld [vmem:[%s2 + $0x158] sm:$0xff]
        %v860 = vld [vmem:[%s2 + $0x160] sm:$0xff]
        %v861 = vld [vmem:[%s2 + $0x168] sm:$0xff]
        %v862 = vld [vmem:[%s2 + $0x170] sm:$0xff]
        %v863 = vld [vmem:[%s2 + $0x178] sm:$0xff]
        %v864 = vld [vmem:[%s2 + $0x180] sm:$0xff]
        %v865 = vld [vmem:[%s2 + $0x188] sm:$0xff]
        %v866 = vld [vmem:[%s2 + $0x190] sm:$0xff]
        %v867 = vld [vmem:[%s2 + $0x198] sm:$0xff]
        %v868 = vld [vmem:[%s2 + $0x1a0] sm:$0xff]
        %v869 = vld [vmem:[%s2 + $0x1a8] sm:$0xff]
        %v870 = vld [vmem:[%s2 + $0x1b0] sm:$0xff]
        %v871 = vld [vmem:[%s2 + $0x1b8] sm:$0xff]
        %v872 = vld [vmem:[%s2 + $0x1c0] sm:$0xff]
        %v873 = vld [vmem:[%s2 + $0x1c8] sm:$0xff]
        %v874 = vld [vmem:[%s2 + $0x1d0] sm:$0xff]
        %v875 = vld [vmem:[%s2 + $0x1d8] sm:$0xff]
        %v876 = vld [vmem:[%s2 + $0x1e0] sm:$0xff]
        %v877 = vld [vmem:[%s2 + $0x1e8] sm:$0xff]
        %v878 = vld [vmem:[%s2 + $0x1f0] sm:$0xff]
        %v879 = vld [vmem:[%s2 + $0x1f8] sm:$0xff]
        %880 = vmatpush.msra.mxu0 %v846
        %881 = vmatpush.msra.mxu0 %v844
        %882 = vmatpush.msra.mxu0 %v842
        %883 = vmatpush.msra.mxu0 %v840
        %884 = vmatpush.msra.mxu0 %v838
        %885 = vmatpush.msra.mxu0 %v836
        %886 = vmatpush.msra.mxu0 %v834
        %887 = vmatpush.msra.mxu0 %v832
        %888 = vmatpush.msra.mxu0 %v830
        %889 = vmatpush.msra.mxu0 %v828
        %890 = vmatpush.msra.mxu0 %v826
        %891 = vmatpush.msra.mxu0 %v824
        %892 = vmatpush.msra.mxu0 %v822
        %893 = vmatpush.msra.mxu0 %v820
        %894 = vmatpush.msra.mxu0 %v818
        %895 = vmatpush.msra.mxu0 %v816
        %896 = vmatmul.f32.gmra.mxu0 %v448
        %v897 = vpop.f32.mrf.mxu0
        %v898 = vadd.f32 0.0, %v897
        %899 = vmatmul.f32.gmra.mxu0 %v450
        %v900 = vpop.f32.mrf.mxu0
        %v901 = vadd.f32 0.0, %v900
        %902 = vmatmul.f32.gmra.mxu0 %v452
        %v903 = vpop.f32.mrf.mxu0
        %v904 = vadd.f32 0.0, %v903
        %905 = vmatmul.f32.gmra.mxu0 %v454
        %v906 = vpop.f32.mrf.mxu0
        %v907 = vadd.f32 0.0, %v906
        %908 = vdwg.mxu0
        %909 = vmatpush.msra.mxu0 %v878
        %910 = vmatpush.msra.mxu0 %v876
        %911 = vmatpush.msra.mxu0 %v874
        %912 = vmatpush.msra.mxu0 %v872
        %913 = vmatpush.msra.mxu0 %v870
        %914 = vmatpush.msra.mxu0 %v868
        %915 = vmatpush.msra.mxu0 %v866
        %916 = vmatpush.msra.mxu0 %v864
        %917 = vmatpush.msra.mxu0 %v862
        %918 = vmatpush.msra.mxu0 %v860
        %919 = vmatpush.msra.mxu0 %v858
        %920 = vmatpush.msra.mxu0 %v856
        %921 = vmatpush.msra.mxu0 %v854
        %922 = vmatpush.msra.mxu0 %v852
        %923 = vmatpush.msra.mxu0 %v850
        %924 = vmatpush.msra.mxu0 %v848
        %925 = vmatmul.f32.gmra.mxu0 %v449
        %v926 = vpop.f32.mrf.mxu0
        %v927 = vadd.f32 %v898, %v926
        %928 = vmatmul.f32.gmra.mxu0 %v451
        %v929 = vpop.f32.mrf.mxu0
        %v930 = vadd.f32 %v901, %v929
        %931 = vmatmul.f32.gmra.mxu0 %v453
        %v932 = vpop.f32.mrf.mxu0
        %v933 = vadd.f32 %v904, %v932
        %934 = vmatmul.f32.gmra.mxu0 %v455
        %v935 = vpop.f32.mrf.mxu0
        %v936 = vadd.f32 %v907, %v935
        %937 = vdwg.mxu0
        %938 = vmatpush.msra.mxu0 %v847
        %939 = vmatpush.msra.mxu0 %v845
        %940 = vmatpush.msra.mxu0 %v843
        %941 = vmatpush.msra.mxu0 %v841
        %942 = vmatpush.msra.mxu0 %v839
        %943 = vmatpush.msra.mxu0 %v837
        %944 = vmatpush.msra.mxu0 %v835
        %945 = vmatpush.msra.mxu0 %v833
        %946 = vmatpush.msra.mxu0 %v831
        %947 = vmatpush.msra.mxu0 %v829
        %948 = vmatpush.msra.mxu0 %v827
        %949 = vmatpush.msra.mxu0 %v825
        %950 = vmatpush.msra.mxu0 %v823
        %951 = vmatpush.msra.mxu0 %v821
        %952 = vmatpush.msra.mxu0 %v819
        %953 = vmatpush.msra.mxu0 %v817
        %954 = vmatmul.f32.gmra.mxu0 %v448
        %v955 = vpop.f32.mrf.mxu0
        %v956 = vadd.f32 0.0, %v955
        %957 = vmatmul.f32.gmra.mxu0 %v450
        %v958 = vpop.f32.mrf.mxu0
        %v959 = vadd.f32 0.0, %v958
        %960 = vmatmul.f32.gmra.mxu0 %v452
        %v961 = vpop.f32.mrf.mxu0
        %v962 = vadd.f32 0.0, %v961
        %963 = vmatmul.f32.gmra.mxu0 %v454
        %v964 = vpop.f32.mrf.mxu0
        %v965 = vadd.f32 0.0, %v964
        %966 = vdwg.mxu0
        %967 = vmatpush.msra.mxu0 %v879
        %968 = vmatpush.msra.mxu0 %v877
        %969 = vmatpush.msra.mxu0 %v875
        %970 = vmatpush.msra.mxu0 %v873
        %971 = vmatpush.msra.mxu0 %v871
        %972 = vmatpush.msra.mxu0 %v869
        %973 = vmatpush.msra.mxu0 %v867
        %974 = vmatpush.msra.mxu0 %v865
        %975 = vmatpush.msra.mxu0 %v863
        %976 = vmatpush.msra.mxu0 %v861
        %977 = vmatpush.msra.mxu0 %v859
        %978 = vmatpush.msra.mxu0 %v857
        %979 = vmatpush.msra.mxu0 %v855
        %980 = vmatpush.msra.mxu0 %v853
        %981 = vmatpush.msra.mxu0 %v851
        %982 = vmatpush.msra.mxu0 %v849
        %983 = vmatmul.f32.gmra.mxu0 %v449
        %v984 = vpop.f32.mrf.mxu0
        %v985 = vadd.f32 %v956, %v984
        %986 = vmatmul.f32.gmra.mxu0 %v451
        %v987 = vpop.f32.mrf.mxu0
        %v988 = vadd.f32 %v959, %v987
        %989 = vmatmul.f32.gmra.mxu0 %v453
        %v990 = vpop.f32.mrf.mxu0
        %v991 = vadd.f32 %v962, %v990
        %992 = vmatmul.f32.gmra.mxu0 %v455
        %v993 = vpop.f32.mrf.mxu0
        %v994 = vadd.f32 %v965, %v993
        %995 = vdwg.mxu0
        %v996 = vld [vmem:[%s4] sm:$0xff]
        %v997 = vld [vmem:[%s4 + $0x8] sm:$0xff]
        %v998 = vld [vmem:[%s4 + $0x10] sm:$0xff]
        %v999 = vld [vmem:[%s4 + $0x18] sm:$0xff]
        %v1000 = vld [vmem:[#allocation4] sm:$0xff]
        %v1001 = vld [vmem:[#allocation4 + $0x8] sm:$0xff]
        %v1002 = vld [vmem:[#allocation4 + $0x10] sm:$0xff]
        %v1003 = vld [vmem:[#allocation4 + $0x18] sm:$0xff]
        %s1004 = scalar_lea.vmem [#allocation4], 32
        %v1005 = vld [vmem:[%s1004] sm:$0xff]
        %v1006 = vld [vmem:[%s1004 + $0x8] sm:$0xff]
        %v1007 = vld [vmem:[%s1004 + $0x10] sm:$0xff]
        %v1008 = vld [vmem:[%s1004 + $0x18] sm:$0xff]
        %1025 = vrot.lane.b32.xlu0 %v631, 127
        %v1026 = vpop.permute.xlu0 %1025
        %1027 = vrot.lane.b32.xlu0 %v689, 127
        %v1028 = vpop.permute.xlu0 %1027
        %1029 = vrot.lane.b32.xlu0 %v747, 127
        %v1030 = vpop.permute.xlu0 %1029
        %1031 = vrot.lane.b32.xlu0 %v805, 127
        %v1032 = vpop.permute.xlu0 %1031
        %1033 = vrot.lane.b32.xlu0 %v634, 127
        %v1034 = vpop.permute.xlu0 %1033
        %1035 = vrot.lane.b32.xlu0 %v692, 127
        %v1036 = vpop.permute.xlu0 %1035
        %1037 = vrot.lane.b32.xlu0 %v750, 127
        %v1038 = vpop.permute.xlu0 %1037
        %1039 = vrot.lane.b32.xlu0 %v808, 127
        %v1040 = vpop.permute.xlu0 %1039
        %1041 = vrot.lane.b32.xlu0 %v637, 127
        %v1042 = vpop.permute.xlu0 %1041
        %1043 = vrot.lane.b32.xlu0 %v695, 127
        %v1044 = vpop.permute.xlu0 %1043
        %1045 = vrot.lane.b32.xlu0 %v753, 127
        %v1046 = vpop.permute.xlu0 %1045
        %1047 = vrot.lane.b32.xlu0 %v811, 127
        %v1048 = vpop.permute.xlu0 %1047
        %1049 = vrot.lane.b32.xlu0 %v640, 127
        %v1050 = vpop.permute.xlu0 %1049
        %1051 = vrot.lane.b32.xlu0 %v698, 127
        %v1052 = vpop.permute.xlu0 %1051
        %1053 = vrot.lane.b32.xlu0 %v756, 127
        %v1054 = vpop.permute.xlu0 %1053
        %1055 = vrot.lane.b32.xlu0 %v814, 127
        %v1056 = vpop.permute.xlu0 %1055
        %vm1057 = vcmask 1039360
        %v1058 = vsel %vm1057, %v1026, %v1028
        %v1059 = vsel %vm1057, %v1028, %v1030
        %v1060 = vsel %vm1057, %v1030, %v1032
        %v1061 = vsel %vm1057, %v1034, %v1036
        %v1062 = vsel %vm1057, %v1036, %v1038
        %v1063 = vsel %vm1057, %v1038, %v1040
        %v1064 = vsel %vm1057, %v1042, %v1044
        %v1065 = vsel %vm1057, %v1044, %v1046
        %v1066 = vsel %vm1057, %v1046, %v1048
        %v1067 = vsel %vm1057, %v1050, %v1052
        %v1068 = vsel %vm1057, %v1052, %v1054
        %v1069 = vsel %vm1057, %v1054, %v1056
        %vm1086 = vcmask 261120
        %v1088 = vsel %vm1086, %v1005, 0
        %v1091 = vsel %vm1086, %v1006, 0
        %v1094 = vsel %vm1086, %v1007, 0
        %v1097 = vsel %vm1086, %v1008, 0
        %1099 = vmatpush.msra.mxu0 0.0
        %1100 = vmatpush.msra.mxu0 0.0
        %1101 = vmatpush.msra.mxu0 0.0
        %1102 = vmatpush.msra.mxu0 0.0
        %1103 = vmatpush.msra.mxu0 0.0
        %1104 = vmatpush.msra.mxu0 0.0
        %1105 = vmatpush.msra.mxu0 0.0
        %1106 = vmatpush.msra.mxu0 0.0
        %1107 = vmatpush.msra.mxu0 0.0
        %1108 = vmatpush.msra.mxu0 0.0
        %1109 = vmatpush.msra.mxu0 0.0
        %1110 = vmatpush.msra.mxu0 0.0
        %1111 = vmatpush.msra.mxu0 %v1067
        %1112 = vmatpush.msra.mxu0 %v1064
        %1113 = vmatpush.msra.mxu0 %v1061
        %1114 = vmatpush.msra.mxu0 %v1058
        %1115 = vmatmul.f32.gmra.mxu0 %v1088
        %v1116 = vpop.f32.mrf.mxu0
        %v1117 = vadd.f32 0.0, %v1116
        %1118 = vmatmul.f32.gmra.mxu0 %v1091
        %v1119 = vpop.f32.mrf.mxu0
        %v1120 = vadd.f32 0.0, %v1119
        %1121 = vmatmul.f32.gmra.mxu0 %v1094
        %v1122 = vpop.f32.mrf.mxu0
        %v1123 = vadd.f32 0.0, %v1122
        %1124 = vmatmul.f32.gmra.mxu0 %v1097
        %v1125 = vpop.f32.mrf.mxu0
        %v1126 = vadd.f32 0.0, %v1125
        %1127 = vdwg.mxu0
        %1128 = vmatpush.msra.mxu0 0.0
        %1129 = vmatpush.msra.mxu0 0.0
        %1130 = vmatpush.msra.mxu0 0.0
        %1131 = vmatpush.msra.mxu0 0.0
        %1132 = vmatpush.msra.mxu0 0.0
        %1133 = vmatpush.msra.mxu0 0.0
        %1134 = vmatpush.msra.mxu0 0.0
        %1135 = vmatpush.msra.mxu0 0.0
        %1136 = vmatpush.msra.mxu0 0.0
        %1137 = vmatpush.msra.mxu0 0.0
        %1138 = vmatpush.msra.mxu0 0.0
        %1139 = vmatpush.msra.mxu0 0.0
        %1140 = vmatpush.msra.mxu0 %v1068
        %1141 = vmatpush.msra.mxu0 %v1065
        %1142 = vmatpush.msra.mxu0 %v1062
        %1143 = vmatpush.msra.mxu0 %v1059
        %1144 = vmatmul.f32.gmra.mxu0 %v1088
        %v1145 = vpop.f32.mrf.mxu0
        %v1146 = vadd.f32 0.0, %v1145
        %1147 = vmatmul.f32.gmra.mxu0 %v1091
        %v1148 = vpop.f32.mrf.mxu0
        %v1149 = vadd.f32 0.0, %v1148
        %1150 = vmatmul.f32.gmra.mxu0 %v1094
        %v1151 = vpop.f32.mrf.mxu0
        %v1152 = vadd.f32 0.0, %v1151
        %1153 = vmatmul.f32.gmra.mxu0 %v1097
        %v1154 = vpop.f32.mrf.mxu0
        %v1155 = vadd.f32 0.0, %v1154
        %1156 = vdwg.mxu0
        %1157 = vmatpush.msra.mxu0 0.0
        %1158 = vmatpush.msra.mxu0 0.0
        %1159 = vmatpush.msra.mxu0 0.0
        %1160 = vmatpush.msra.mxu0 0.0
        %1161 = vmatpush.msra.mxu0 0.0
        %1162 = vmatpush.msra.mxu0 0.0
        %1163 = vmatpush.msra.mxu0 0.0
        %1164 = vmatpush.msra.mxu0 0.0
        %1165 = vmatpush.msra.mxu0 0.0
        %1166 = vmatpush.msra.mxu0 0.0
        %1167 = vmatpush.msra.mxu0 0.0
        %1168 = vmatpush.msra.mxu0 0.0
        %1169 = vmatpush.msra.mxu0 %v1069
        %1170 = vmatpush.msra.mxu0 %v1066
        %1171 = vmatpush.msra.mxu0 %v1063
        %1172 = vmatpush.msra.mxu0 %v1060
        %1173 = vmatmul.f32.gmra.mxu0 %v1088
        %v1174 = vpop.f32.mrf.mxu0
        %v1175 = vadd.f32 0.0, %v1174
        %1176 = vmatmul.f32.gmra.mxu0 %v1091
        %v1177 = vpop.f32.mrf.mxu0
        %v1178 = vadd.f32 0.0, %v1177
        %1179 = vmatmul.f32.gmra.mxu0 %v1094
        %v1180 = vpop.f32.mrf.mxu0
        %v1181 = vadd.f32 0.0, %v1180
        %1182 = vmatmul.f32.gmra.mxu0 %v1097
        %v1183 = vpop.f32.mrf.mxu0
        %v1184 = vadd.f32 0.0, %v1183
        %1185 = vdwg.mxu0
        %1186 = vmatpush.msra.mxu0 0.0
        %1187 = vmatpush.msra.mxu0 0.0
        %1188 = vmatpush.msra.mxu0 0.0
        %1189 = vmatpush.msra.mxu0 0.0
        %1190 = vmatpush.msra.mxu0 0.0
        %1191 = vmatpush.msra.mxu0 0.0
        %1192 = vmatpush.msra.mxu0 0.0
        %1193 = vmatpush.msra.mxu0 0.0
        %1194 = vmatpush.msra.mxu0 0.0
        %1195 = vmatpush.msra.mxu0 0.0
        %1196 = vmatpush.msra.mxu0 0.0
        %1197 = vmatpush.msra.mxu0 0.0
        %1198 = vmatpush.msra.mxu0 %v1056
        %1199 = vmatpush.msra.mxu0 %v1048
        %1200 = vmatpush.msra.mxu0 %v1040
        %1201 = vmatpush.msra.mxu0 %v1032
        %1202 = vmatmul.f32.gmra.mxu0 %v1088
        %v1203 = vpop.f32.mrf.mxu0
        %v1204 = vadd.f32 0.0, %v1203
        %1205 = vmatmul.f32.gmra.mxu0 %v1091
        %v1206 = vpop.f32.mrf.mxu0
        %v1207 = vadd.f32 0.0, %v1206
        %1208 = vmatmul.f32.gmra.mxu0 %v1094
        %v1209 = vpop.f32.mrf.mxu0
        %v1210 = vadd.f32 0.0, %v1209
        %1211 = vmatmul.f32.gmra.mxu0 %v1097
        %v1212 = vpop.f32.mrf.mxu0
        %v1213 = vadd.f32 0.0, %v1212
        %1214 = vdwg.mxu0
        %v1216 = vsel %vm1086, %v1000, 0
        %v1219 = vsel %vm1086, %v1001, 0
        %v1222 = vsel %vm1086, %v1002, 0
        %v1225 = vsel %vm1086, %v1003, 0
        %1227 = vmatpush.msra.mxu0 0.0
        %1228 = vmatpush.msra.mxu0 0.0
        %1229 = vmatpush.msra.mxu0 0.0
        %1230 = vmatpush.msra.mxu0 0.0
        %1231 = vmatpush.msra.mxu0 0.0
        %1232 = vmatpush.msra.mxu0 0.0
        %1233 = vmatpush.msra.mxu0 0.0
        %1234 = vmatpush.msra.mxu0 0.0
        %1235 = vmatpush.msra.mxu0 0.0
        %1236 = vmatpush.msra.mxu0 0.0
        %1237 = vmatpush.msra.mxu0 0.0
        %1238 = vmatpush.msra.mxu0 0.0
        %1239 = vmatpush.msra.mxu0 %v640
        %1240 = vmatpush.msra.mxu0 %v637
        %1241 = vmatpush.msra.mxu0 %v634
        %1242 = vmatpush.msra.mxu0 %v631
        %1243 = vmatmul.f32.gmra.mxu0 %v1216
        %v1244 = vpop.f32.mrf.mxu0
        %v1245 = vadd.f32 %v1117, %v1244
        %1246 = vmatmul.f32.gmra.mxu0 %v1219
        %v1247 = vpop.f32.mrf.mxu0
        %v1248 = vadd.f32 %v1120, %v1247
        %1249 = vmatmul.f32.gmra.mxu0 %v1222
        %v1250 = vpop.f32.mrf.mxu0
        %v1251 = vadd.f32 %v1123, %v1250
        %1252 = vmatmul.f32.gmra.mxu0 %v1225
        %v1253 = vpop.f32.mrf.mxu0
        %v1254 = vadd.f32 %v1126, %v1253
        %1255 = vdwg.mxu0
        %1256 = vmatpush.msra.mxu0 0.0
        %1257 = vmatpush.msra.mxu0 0.0
        %1258 = vmatpush.msra.mxu0 0.0
        %1259 = vmatpush.msra.mxu0 0.0
        %1260 = vmatpush.msra.mxu0 0.0
        %1261 = vmatpush.msra.mxu0 0.0
        %1262 = vmatpush.msra.mxu0 0.0
        %1263 = vmatpush.msra.mxu0 0.0
        %1264 = vmatpush.msra.mxu0 0.0
        %1265 = vmatpush.msra.mxu0 0.0
        %1266 = vmatpush.msra.mxu0 0.0
        %1267 = vmatpush.msra.mxu0 0.0
        %1268 = vmatpush.msra.mxu0 %v698
        %1269 = vmatpush.msra.mxu0 %v695
        %1270 = vmatpush.msra.mxu0 %v692
        %1271 = vmatpush.msra.mxu0 %v689
        %1272 = vmatmul.f32.gmra.mxu0 %v1216
        %v1273 = vpop.f32.mrf.mxu0
        %v1274 = vadd.f32 %v1146, %v1273
        %1275 = vmatmul.f32.gmra.mxu0 %v1219
        %v1276 = vpop.f32.mrf.mxu0
        %v1277 = vadd.f32 %v1149, %v1276
        %1278 = vmatmul.f32.gmra.mxu0 %v1222
        %v1279 = vpop.f32.mrf.mxu0
        %v1280 = vadd.f32 %v1152, %v1279
        %1281 = vmatmul.f32.gmra.mxu0 %v1225
        %v1282 = vpop.f32.mrf.mxu0
        %v1283 = vadd.f32 %v1155, %v1282
        %1284 = vdwg.mxu0
        %1285 = vmatpush.msra.mxu0 0.0
        %1286 = vmatpush.msra.mxu0 0.0
        %1287 = vmatpush.msra.mxu0 0.0
        %1288 = vmatpush.msra.mxu0 0.0
        %1289 = vmatpush.msra.mxu0 0.0
        %1290 = vmatpush.msra.mxu0 0.0
        %1291 = vmatpush.msra.mxu0 0.0
        %1292 = vmatpush.msra.mxu0 0.0
        %1293 = vmatpush.msra.mxu0 0.0
        %1294 = vmatpush.msra.mxu0 0.0
        %1295 = vmatpush.msra.mxu0 0.0
        %1296 = vmatpush.msra.mxu0 0.0
        %1297 = vmatpush.msra.mxu0 %v756
        %1298 = vmatpush.msra.mxu0 %v753
        %1299 = vmatpush.msra.mxu0 %v750
        %1300 = vmatpush.msra.mxu0 %v747
        %1301 = vmatmul.f32.gmra.mxu0 %v1216
        %v1302 = vpop.f32.mrf.mxu0
        %v1303 = vadd.f32 %v1175, %v1302
        %1304 = vmatmul.f32.gmra.mxu0 %v1219
        %v1305 = vpop.f32.mrf.mxu0
        %v1306 = vadd.f32 %v1178, %v1305
        %1307 = vmatmul.f32.gmra.mxu0 %v1222
        %v1308 = vpop.f32.mrf.mxu0
        %v1309 = vadd.f32 %v1181, %v1308
        %1310 = vmatmul.f32.gmra.mxu0 %v1225
        %v1311 = vpop.f32.mrf.mxu0
        %v1312 = vadd.f32 %v1184, %v1311
        %1313 = vdwg.mxu0
        %1314 = vmatpush.msra.mxu0 0.0
        %1315 = vmatpush.msra.mxu0 0.0
        %1316 = vmatpush.msra.mxu0 0.0
        %1317 = vmatpush.msra.mxu0 0.0
        %1318 = vmatpush.msra.mxu0 0.0
        %1319 = vmatpush.msra.mxu0 0.0
        %1320 = vmatpush.msra.mxu0 0.0
        %1321 = vmatpush.msra.mxu0 0.0
        %1322 = vmatpush.msra.mxu0 0.0
        %1323 = vmatpush.msra.mxu0 0.0
        %1324 = vmatpush.msra.mxu0 0.0
        %1325 = vmatpush.msra.mxu0 0.0
        %1326 = vmatpush.msra.mxu0 %v814
        %1327 = vmatpush.msra.mxu0 %v811
        %1328 = vmatpush.msra.mxu0 %v808
        %1329 = vmatpush.msra.mxu0 %v805
        %1330 = vmatmul.f32.gmra.mxu0 %v1216
        %v1331 = vpop.f32.mrf.mxu0
        %v1332 = vadd.f32 %v1204, %v1331
        %1333 = vmatmul.f32.gmra.mxu0 %v1219
        %v1334 = vpop.f32.mrf.mxu0
        %v1335 = vadd.f32 %v1207, %v1334
        %1336 = vmatmul.f32.gmra.mxu0 %v1222
        %v1337 = vpop.f32.mrf.mxu0
        %v1338 = vadd.f32 %v1210, %v1337
        %1339 = vmatmul.f32.gmra.mxu0 %v1225
        %v1340 = vpop.f32.mrf.mxu0
        %v1341 = vadd.f32 %v1213, %v1340
        %1342 = vdwg.mxu0
        %s1343 = scalar_lea.vmem [#allocation4], 64
        %v1344 = vld [vmem:[%s1343] sm:$0xff]
        %v1345 = vld [vmem:[%s1343 + $0x8] sm:$0xff]
        %v1346 = vld [vmem:[%s1343 + $0x10] sm:$0xff]
        %v1347 = vld [vmem:[%s1343 + $0x18] sm:$0xff]
        %1348 = vrot.lane.b32.xlu0 %v631, 126
        %v1349 = vpop.permute.xlu0 %1348
        %1350 = vrot.lane.b32.xlu0 %v689, 126
        %v1351 = vpop.permute.xlu0 %1350
        %1352 = vrot.lane.b32.xlu0 %v747, 126
        %v1353 = vpop.permute.xlu0 %1352
        %1354 = vrot.lane.b32.xlu0 %v805, 126
        %v1355 = vpop.permute.xlu0 %1354
        %1356 = vrot.lane.b32.xlu0 %v634, 126
        %v1357 = vpop.permute.xlu0 %1356
        %1358 = vrot.lane.b32.xlu0 %v692, 126
        %v1359 = vpop.permute.xlu0 %1358
        %1360 = vrot.lane.b32.xlu0 %v750, 126
        %v1361 = vpop.permute.xlu0 %1360
        %1362 = vrot.lane.b32.xlu0 %v808, 126
        %v1363 = vpop.permute.xlu0 %1362
        %1364 = vrot.lane.b32.xlu0 %v637, 126
        %v1365 = vpop.permute.xlu0 %1364
        %1366 = vrot.lane.b32.xlu0 %v695, 126
        %v1367 = vpop.permute.xlu0 %1366
        %1368 = vrot.lane.b32.xlu0 %v753, 126
        %v1369 = vpop.permute.xlu0 %1368
        %1370 = vrot.lane.b32.xlu0 %v811, 126
        %v1371 = vpop.permute.xlu0 %1370
        %1372 = vrot.lane.b32.xlu0 %v640, 126
        %v1373 = vpop.permute.xlu0 %1372
        %1374 = vrot.lane.b32.xlu0 %v698, 126
        %v1375 = vpop.permute.xlu0 %1374
        %1376 = vrot.lane.b32.xlu0 %v756, 126
        %v1377 = vpop.permute.xlu0 %1376
        %1378 = vrot.lane.b32.xlu0 %v814, 126
        %v1379 = vpop.permute.xlu0 %1378
        %vm1380 = vcmask 1031168
        %v1381 = vsel %vm1380, %v1349, %v1351
        %v1382 = vsel %vm1380, %v1351, %v1353
        %v1383 = vsel %vm1380, %v1353, %v1355
        %v1384 = vsel %vm1380, %v1357, %v1359
        %v1385 = vsel %vm1380, %v1359, %v1361
        %v1386 = vsel %vm1380, %v1361, %v1363
        %v1387 = vsel %vm1380, %v1365, %v1367
        %v1388 = vsel %vm1380, %v1367, %v1369
        %v1389 = vsel %vm1380, %v1369, %v1371
        %v1390 = vsel %vm1380, %v1373, %v1375
        %v1391 = vsel %vm1380, %v1375, %v1377
        %v1392 = vsel %vm1380, %v1377, %v1379
        %v1410 = vsel %vm1086, %v1344, 0
        %v1413 = vsel %vm1086, %v1345, 0
        %v1416 = vsel %vm1086, %v1346, 0
        %v1419 = vsel %vm1086, %v1347, 0
        %1421 = vmatpush.msra.mxu0 0.0
        %1422 = vmatpush.msra.mxu0 0.0
        %1423 = vmatpush.msra.mxu0 0.0
        %1424 = vmatpush.msra.mxu0 0.0
        %1425 = vmatpush.msra.mxu0 0.0
        %1426 = vmatpush.msra.mxu0 0.0
        %1427 = vmatpush.msra.mxu0 0.0
        %1428 = vmatpush.msra.mxu0 0.0
        %1429 = vmatpush.msra.mxu0 0.0
        %1430 = vmatpush.msra.mxu0 0.0
        %1431 = vmatpush.msra.mxu0 0.0
        %1432 = vmatpush.msra.mxu0 0.0
        %1433 = vmatpush.msra.mxu0 %v1390
        %1434 = vmatpush.msra.mxu0 %v1387
        %1435 = vmatpush.msra.mxu0 %v1384
        %1436 = vmatpush.msra.mxu0 %v1381
        %1437 = vmatmul.f32.gmra.mxu0 %v1410
        %v1438 = vpop.f32.mrf.mxu0
        %v1439 = vadd.f32 0.0, %v1438
        %1440 = vmatmul.f32.gmra.mxu0 %v1413
        %v1441 = vpop.f32.mrf.mxu0
        %v1442 = vadd.f32 0.0, %v1441
        %1443 = vmatmul.f32.gmra.mxu0 %v1416
        %v1444 = vpop.f32.mrf.mxu0
        %v1445 = vadd.f32 0.0, %v1444
        %1446 = vmatmul.f32.gmra.mxu0 %v1419
        %v1447 = vpop.f32.mrf.mxu0
        %v1448 = vadd.f32 0.0, %v1447
        %1449 = vdwg.mxu0
        %1450 = vmatpush.msra.mxu0 0.0
        %1451 = vmatpush.msra.mxu0 0.0
        %1452 = vmatpush.msra.mxu0 0.0
        %1453 = vmatpush.msra.mxu0 0.0
        %1454 = vmatpush.msra.mxu0 0.0
        %1455 = vmatpush.msra.mxu0 0.0
        %1456 = vmatpush.msra.mxu0 0.0
        %1457 = vmatpush.msra.mxu0 0.0
        %1458 = vmatpush.msra.mxu0 0.0
        %1459 = vmatpush.msra.mxu0 0.0
        %1460 = vmatpush.msra.mxu0 0.0
        %1461 = vmatpush.msra.mxu0 0.0
        %1462 = vmatpush.msra.mxu0 %v1391
        %1463 = vmatpush.msra.mxu0 %v1388
        %1464 = vmatpush.msra.mxu0 %v1385
        %1465 = vmatpush.msra.mxu0 %v1382
        %1466 = vmatmul.f32.gmra.mxu0 %v1410
        %v1467 = vpop.f32.mrf.mxu0
        %v1468 = vadd.f32 0.0, %v1467
        %1469 = vmatmul.f32.gmra.mxu0 %v1413
        %v1470 = vpop.f32.mrf.mxu0
        %v1471 = vadd.f32 0.0, %v1470
        %1472 = vmatmul.f32.gmra.mxu0 %v1416
        %v1473 = vpop.f32.mrf.mxu0
        %v1474 = vadd.f32 0.0, %v1473
        %1475 = vmatmul.f32.gmra.mxu0 %v1419
        %v1476 = vpop.f32.mrf.mxu0
        %v1477 = vadd.f32 0.0, %v1476
        %1478 = vdwg.mxu0
        %1479 = vmatpush.msra.mxu0 0.0
        %1480 = vmatpush.msra.mxu0 0.0
        %1481 = vmatpush.msra.mxu0 0.0
        %1482 = vmatpush.msra.mxu0 0.0
        %1483 = vmatpush.msra.mxu0 0.0
        %1484 = vmatpush.msra.mxu0 0.0
        %1485 = vmatpush.msra.mxu0 0.0
        %1486 = vmatpush.msra.mxu0 0.0
        %1487 = vmatpush.msra.mxu0 0.0
        %1488 = vmatpush.msra.mxu0 0.0
        %1489 = vmatpush.msra.mxu0 0.0
        %1490 = vmatpush.msra.mxu0 0.0
        %1491 = vmatpush.msra.mxu0 %v1392
        %1492 = vmatpush.msra.mxu0 %v1389
        %1493 = vmatpush.msra.mxu0 %v1386
        %1494 = vmatpush.msra.mxu0 %v1383
        %1495 = vmatmul.f32.gmra.mxu0 %v1410
        %v1496 = vpop.f32.mrf.mxu0
        %v1497 = vadd.f32 0.0, %v1496
        %1498 = vmatmul.f32.gmra.mxu0 %v1413
        %v1499 = vpop.f32.mrf.mxu0
        %v1500 = vadd.f32 0.0, %v1499
        %1501 = vmatmul.f32.gmra.mxu0 %v1416
        %v1502 = vpop.f32.mrf.mxu0
        %v1503 = vadd.f32 0.0, %v1502
        %1504 = vmatmul.f32.gmra.mxu0 %v1419
        %v1505 = vpop.f32.mrf.mxu0
        %v1506 = vadd.f32 0.0, %v1505
        %1507 = vdwg.mxu0
        %1508 = vmatpush.msra.mxu0 0.0
        %1509 = vmatpush.msra.mxu0 0.0
        %1510 = vmatpush.msra.mxu0 0.0
        %1511 = vmatpush.msra.mxu0 0.0
        %1512 = vmatpush.msra.mxu0 0.0
        %1513 = vmatpush.msra.mxu0 0.0
        %1514 = vmatpush.msra.mxu0 0.0
        %1515 = vmatpush.msra.mxu0 0.0
        %1516 = vmatpush.msra.mxu0 0.0
        %1517 = vmatpush.msra.mxu0 0.0
        %1518 = vmatpush.msra.mxu0 0.0
        %1519 = vmatpush.msra.mxu0 0.0
        %1520 = vmatpush.msra.mxu0 %v1379
        %1521 = vmatpush.msra.mxu0 %v1371
        %1522 = vmatpush.msra.mxu0 %v1363
        %1523 = vmatpush.msra.mxu0 %v1355
        %1524 = vmatmul.f32.gmra.mxu0 %v1410
        %v1525 = vpop.f32.mrf.mxu0
        %v1526 = vadd.f32 0.0, %v1525
        %1527 = vmatmul.f32.gmra.mxu0 %v1413
        %v1528 = vpop.f32.mrf.mxu0
        %v1529 = vadd.f32 0.0, %v1528
        %1530 = vmatmul.f32.gmra.mxu0 %v1416
        %v1531 = vpop.f32.mrf.mxu0
        %v1532 = vadd.f32 0.0, %v1531
        %1533 = vmatmul.f32.gmra.mxu0 %v1419
        %v1534 = vpop.f32.mrf.mxu0
        %v1535 = vadd.f32 0.0, %v1534
        %1536 = vdwg.mxu0
        %v1537 = vadd.f32 %v1245, %v1439
        %v1538 = vadd.f32 %v1274, %v1468
        %v1539 = vadd.f32 %v1303, %v1497
        %v1540 = vadd.f32 %v1332, %v1526
        %v1541 = vadd.f32 %v1248, %v1442
        %v1542 = vadd.f32 %v1277, %v1471
        %v1543 = vadd.f32 %v1306, %v1500
        %v1544 = vadd.f32 %v1335, %v1529
        %v1545 = vadd.f32 %v1251, %v1445
        %v1546 = vadd.f32 %v1280, %v1474
        %v1547 = vadd.f32 %v1309, %v1503
        %v1548 = vadd.f32 %v1338, %v1532
        %v1549 = vadd.f32 %v1254, %v1448
        %v1550 = vadd.f32 %v1283, %v1477
        %v1551 = vadd.f32 %v1312, %v1506
        %v1552 = vadd.f32 %v1341, %v1535
        %s1553 = scalar_lea.vmem [#allocation4], 96
        %v1554 = vld [vmem:[%s1553] sm:$0xff]
        %v1555 = vld [vmem:[%s1553 + $0x8] sm:$0xff]
        %v1556 = vld [vmem:[%s1553 + $0x10] sm:$0xff]
        %v1557 = vld [vmem:[%s1553 + $0x18] sm:$0xff]
        %1558 = vrot.lane.b32.xlu0 %v631, 115
        %v1559 = vpop.permute.xlu0 %1558
        %1560 = vrot.lane.b32.xlu0 %v689, 115
        %v1561 = vpop.permute.xlu0 %1560
        %1562 = vrot.lane.b32.xlu0 %v747, 115
        %v1563 = vpop.permute.xlu0 %1562
        %1564 = vrot.lane.b32.xlu0 %v805, 115
        %v1565 = vpop.permute.xlu0 %1564
        %1566 = vrot.lane.b32.xlu0 %v634, 115
        %v1567 = vpop.permute.xlu0 %1566
        %1568 = vrot.lane.b32.xlu0 %v692, 115
        %v1569 = vpop.permute.xlu0 %1568
        %1570 = vrot.lane.b32.xlu0 %v750, 115
        %v1571 = vpop.permute.xlu0 %1570
        %1572 = vrot.lane.b32.xlu0 %v808, 115
        %v1573 = vpop.permute.xlu0 %1572
        %1574 = vrot.lane.b32.xlu0 %v637, 115
        %v1575 = vpop.permute.xlu0 %1574
        %1576 = vrot.lane.b32.xlu0 %v695, 115
        %v1577 = vpop.permute.xlu0 %1576
        %1578 = vrot.lane.b32.xlu0 %v753, 115
        %v1579 = vpop.permute.xlu0 %1578
        %1580 = vrot.lane.b32.xlu0 %v811, 115
        %v1581 = vpop.permute.xlu0 %1580
        %1582 = vrot.lane.b32.xlu0 %v640, 115
        %v1583 = vpop.permute.xlu0 %1582
        %1584 = vrot.lane.b32.xlu0 %v698, 115
        %v1585 = vpop.permute.xlu0 %1584
        %1586 = vrot.lane.b32.xlu0 %v756, 115
        %v1587 = vpop.permute.xlu0 %1586
        %1588 = vrot.lane.b32.xlu0 %v814, 115
        %v1589 = vpop.permute.xlu0 %1588
        %vm1590 = vcmask 941056
        %v1591 = vsel %vm1590, %v1559, %v1561
        %v1592 = vsel %vm1590, %v1561, %v1563
        %v1593 = vsel %vm1590, %v1563, %v1565
        %v1594 = vsel %vm1590, %v1567, %v1569
        %v1595 = vsel %vm1590, %v1569, %v1571
        %v1596 = vsel %vm1590, %v1571, %v1573
        %v1597 = vsel %vm1590, %v1575, %v1577
        %v1598 = vsel %vm1590, %v1577, %v1579
        %v1599 = vsel %vm1590, %v1579, %v1581
        %v1600 = vsel %vm1590, %v1583, %v1585
        %v1601 = vsel %vm1590, %v1585, %v1587
        %v1602 = vsel %vm1590, %v1587, %v1589
        %v1620 = vsel %vm1086, %v1554, 0
        %v1623 = vsel %vm1086, %v1555, 0
        %v1626 = vsel %vm1086, %v1556, 0
        %v1629 = vsel %vm1086, %v1557, 0
        %1631 = vmatpush.msra.mxu0 0.0
        %1632 = vmatpush.msra.mxu0 0.0
        %1633 = vmatpush.msra.mxu0 0.0
        %1634 = vmatpush.msra.mxu0 0.0
        %1635 = vmatpush.msra.mxu0 0.0
        %1636 = vmatpush.msra.mxu0 0.0
        %1637 = vmatpush.msra.mxu0 0.0
        %1638 = vmatpush.msra.mxu0 0.0
        %1639 = vmatpush.msra.mxu0 0.0
        %1640 = vmatpush.msra.mxu0 0.0
        %1641 = vmatpush.msra.mxu0 0.0
        %1642 = vmatpush.msra.mxu0 0.0
        %1643 = vmatpush.msra.mxu0 %v1600
        %1644 = vmatpush.msra.mxu0 %v1597
        %1645 = vmatpush.msra.mxu0 %v1594
        %1646 = vmatpush.msra.mxu0 %v1591
        %1647 = vmatmul.f32.gmra.mxu0 %v1620
        %v1648 = vpop.f32.mrf.mxu0
        %v1649 = vadd.f32 0.0, %v1648
        %1650 = vmatmul.f32.gmra.mxu0 %v1623
        %v1651 = vpop.f32.mrf.mxu0
        %v1652 = vadd.f32 0.0, %v1651
        %1653 = vmatmul.f32.gmra.mxu0 %v1626
        %v1654 = vpop.f32.mrf.mxu0
        %v1655 = vadd.f32 0.0, %v1654
        %1656 = vmatmul.f32.gmra.mxu0 %v1629
        %v1657 = vpop.f32.mrf.mxu0
        %v1658 = vadd.f32 0.0, %v1657
        %1659 = vdwg.mxu0
        %1660 = vmatpush.msra.mxu0 0.0
        %1661 = vmatpush.msra.mxu0 0.0
        %1662 = vmatpush.msra.mxu0 0.0
        %1663 = vmatpush.msra.mxu0 0.0
        %1664 = vmatpush.msra.mxu0 0.0
        %1665 = vmatpush.msra.mxu0 0.0
        %1666 = vmatpush.msra.mxu0 0.0
        %1667 = vmatpush.msra.mxu0 0.0
        %1668 = vmatpush.msra.mxu0 0.0
        %1669 = vmatpush.msra.mxu0 0.0
        %1670 = vmatpush.msra.mxu0 0.0
        %1671 = vmatpush.msra.mxu0 0.0
        %1672 = vmatpush.msra.mxu0 %v1601
        %1673 = vmatpush.msra.mxu0 %v1598
        %1674 = vmatpush.msra.mxu0 %v1595
        %1675 = vmatpush.msra.mxu0 %v1592
        %1676 = vmatmul.f32.gmra.mxu0 %v1620
        %v1677 = vpop.f32.mrf.mxu0
        %v1678 = vadd.f32 0.0, %v1677
        %1679 = vmatmul.f32.gmra.mxu0 %v1623
        %v1680 = vpop.f32.mrf.mxu0
        %v1681 = vadd.f32 0.0, %v1680
        %1682 = vmatmul.f32.gmra.mxu0 %v1626
        %v1683 = vpop.f32.mrf.mxu0
        %v1684 = vadd.f32 0.0, %v1683
        %1685 = vmatmul.f32.gmra.mxu0 %v1629
        %v1686 = vpop.f32.mrf.mxu0
        %v1687 = vadd.f32 0.0, %v1686
        %1688 = vdwg.mxu0
        %1689 = vmatpush.msra.mxu0 0.0
        %1690 = vmatpush.msra.mxu0 0.0
        %1691 = vmatpush.msra.mxu0 0.0
        %1692 = vmatpush.msra.mxu0 0.0
        %1693 = vmatpush.msra.mxu0 0.0
        %1694 = vmatpush.msra.mxu0 0.0
        %1695 = vmatpush.msra.mxu0 0.0
        %1696 = vmatpush.msra.mxu0 0.0
        %1697 = vmatpush.msra.mxu0 0.0
        %1698 = vmatpush.msra.mxu0 0.0
        %1699 = vmatpush.msra.mxu0 0.0
        %1700 = vmatpush.msra.mxu0 0.0
        %1701 = vmatpush.msra.mxu0 %v1602
        %1702 = vmatpush.msra.mxu0 %v1599
        %1703 = vmatpush.msra.mxu0 %v1596
        %1704 = vmatpush.msra.mxu0 %v1593
        %1705 = vmatmul.f32.gmra.mxu0 %v1620
        %v1706 = vpop.f32.mrf.mxu0
        %v1707 = vadd.f32 0.0, %v1706
        %1708 = vmatmul.f32.gmra.mxu0 %v1623
        %v1709 = vpop.f32.mrf.mxu0
        %v1710 = vadd.f32 0.0, %v1709
        %1711 = vmatmul.f32.gmra.mxu0 %v1626
        %v1712 = vpop.f32.mrf.mxu0
        %v1713 = vadd.f32 0.0, %v1712
        %1714 = vmatmul.f32.gmra.mxu0 %v1629
        %v1715 = vpop.f32.mrf.mxu0
        %v1716 = vadd.f32 0.0, %v1715
        %1717 = vdwg.mxu0
        %1718 = vmatpush.msra.mxu0 0.0
        %1719 = vmatpush.msra.mxu0 0.0
        %1720 = vmatpush.msra.mxu0 0.0
        %1721 = vmatpush.msra.mxu0 0.0
        %1722 = vmatpush.msra.mxu0 0.0
        %1723 = vmatpush.msra.mxu0 0.0
        %1724 = vmatpush.msra.mxu0 0.0
        %1725 = vmatpush.msra.mxu0 0.0
        %1726 = vmatpush.msra.mxu0 0.0
        %1727 = vmatpush.msra.mxu0 0.0
        %1728 = vmatpush.msra.mxu0 0.0
        %1729 = vmatpush.msra.mxu0 0.0
        %1730 = vmatpush.msra.mxu0 %v1589
        %1731 = vmatpush.msra.mxu0 %v1581
        %1732 = vmatpush.msra.mxu0 %v1573
        %1733 = vmatpush.msra.mxu0 %v1565
        %1734 = vmatmul.f32.gmra.mxu0 %v1620
        %v1735 = vpop.f32.mrf.mxu0
        %v1736 = vadd.f32 0.0, %v1735
        %1737 = vmatmul.f32.gmra.mxu0 %v1623
        %v1738 = vpop.f32.mrf.mxu0
        %v1739 = vadd.f32 0.0, %v1738
        %1740 = vmatmul.f32.gmra.mxu0 %v1626
        %v1741 = vpop.f32.mrf.mxu0
        %v1742 = vadd.f32 0.0, %v1741
        %1743 = vmatmul.f32.gmra.mxu0 %v1629
        %v1744 = vpop.f32.mrf.mxu0
        %v1745 = vadd.f32 0.0, %v1744
        %1746 = vdwg.mxu0
        %v1747 = vadd.f32 %v1537, %v1649
        %v1748 = vadd.f32 %v1538, %v1678
        %v1749 = vadd.f32 %v1539, %v1707
        %v1750 = vadd.f32 %v1540, %v1736
        %v1751 = vadd.f32 %v1541, %v1652
        %v1752 = vadd.f32 %v1542, %v1681
        %v1753 = vadd.f32 %v1543, %v1710
        %v1754 = vadd.f32 %v1544, %v1739
        %v1755 = vadd.f32 %v1545, %v1655
        %v1756 = vadd.f32 %v1546, %v1684
        %v1757 = vadd.f32 %v1547, %v1713
        %v1758 = vadd.f32 %v1548, %v1742
        %v1759 = vadd.f32 %v1549, %v1658
        %v1760 = vadd.f32 %v1550, %v1687
        %v1761 = vadd.f32 %v1551, %v1716
        %v1762 = vadd.f32 %v1552, %v1745
        %s1763 = scalar_lea.vmem [#allocation4], 128
        %v1764 = vld [vmem:[%s1763] sm:$0xff]
        %v1765 = vld [vmem:[%s1763 + $0x8] sm:$0xff]
        %v1766 = vld [vmem:[%s1763 + $0x10] sm:$0xff]
        %v1767 = vld [vmem:[%s1763 + $0x18] sm:$0xff]
        %1768 = vrot.lane.b32.xlu0 %v631, 114
        %v1769 = vpop.permute.xlu0 %1768
        %1770 = vrot.lane.b32.xlu0 %v689, 114
        %v1771 = vpop.permute.xlu0 %1770
        %1772 = vrot.lane.b32.xlu0 %v747, 114
        %v1773 = vpop.permute.xlu0 %1772
        %1774 = vrot.lane.b32.xlu0 %v805, 114
        %v1775 = vpop.permute.xlu0 %1774
        %1776 = vrot.lane.b32.xlu0 %v634, 114
        %v1777 = vpop.permute.xlu0 %1776
        %1778 = vrot.lane.b32.xlu0 %v692, 114
        %v1779 = vpop.permute.xlu0 %1778
        %1780 = vrot.lane.b32.xlu0 %v750, 114
        %v1781 = vpop.permute.xlu0 %1780
        %1782 = vrot.lane.b32.xlu0 %v808, 114
        %v1783 = vpop.permute.xlu0 %1782
        %1784 = vrot.lane.b32.xlu0 %v637, 114
        %v1785 = vpop.permute.xlu0 %1784
        %1786 = vrot.lane.b32.xlu0 %v695, 114
        %v1787 = vpop.permute.xlu0 %1786
        %1788 = vrot.lane.b32.xlu0 %v753, 114
        %v1789 = vpop.permute.xlu0 %1788
        %1790 = vrot.lane.b32.xlu0 %v811, 114
        %v1791 = vpop.permute.xlu0 %1790
        %1792 = vrot.lane.b32.xlu0 %v640, 114
        %v1793 = vpop.permute.xlu0 %1792
        %1794 = vrot.lane.b32.xlu0 %v698, 114
        %v1795 = vpop.permute.xlu0 %1794
        %1796 = vrot.lane.b32.xlu0 %v756, 114
        %v1797 = vpop.permute.xlu0 %1796
        %1798 = vrot.lane.b32.xlu0 %v814, 114
        %v1799 = vpop.permute.xlu0 %1798
        %vm1800 = vcmask 932864
        %v1801 = vsel %vm1800, %v1769, %v1771
        %v1802 = vsel %vm1800, %v1771, %v1773
        %v1803 = vsel %vm1800, %v1773, %v1775
        %v1804 = vsel %vm1800, %v1777, %v1779
        %v1805 = vsel %vm1800, %v1779, %v1781
        %v1806 = vsel %vm1800, %v1781, %v1783
        %v1807 = vsel %vm1800, %v1785, %v1787
        %v1808 = vsel %vm1800, %v1787, %v1789
        %v1809 = vsel %vm1800, %v1789, %v1791
        %v1810 = vsel %vm1800, %v1793, %v1795
        %v1811 = vsel %vm1800, %v1795, %v1797
        %v1812 = vsel %vm1800, %v1797, %v1799
        %v1830 = vsel %vm1086, %v1764, 0
        %v1833 = vsel %vm1086, %v1765, 0
        %v1836 = vsel %vm1086, %v1766, 0
        %v1839 = vsel %vm1086, %v1767, 0
        %1841 = vmatpush.msra.mxu0 0.0
        %1842 = vmatpush.msra.mxu0 0.0
        %1843 = vmatpush.msra.mxu0 0.0
        %1844 = vmatpush.msra.mxu0 0.0
        %1845 = vmatpush.msra.mxu0 0.0
        %1846 = vmatpush.msra.mxu0 0.0
        %1847 = vmatpush.msra.mxu0 0.0
        %1848 = vmatpush.msra.mxu0 0.0
        %1849 = vmatpush.msra.mxu0 0.0
        %1850 = vmatpush.msra.mxu0 0.0
        %1851 = vmatpush.msra.mxu0 0.0
        %1852 = vmatpush.msra.mxu0 0.0
        %1853 = vmatpush.msra.mxu0 %v1810
        %1854 = vmatpush.msra.mxu0 %v1807
        %1855 = vmatpush.msra.mxu0 %v1804
        %1856 = vmatpush.msra.mxu0 %v1801
        %1857 = vmatmul.f32.gmra.mxu0 %v1830
        %v1858 = vpop.f32.mrf.mxu0
        %v1859 = vadd.f32 0.0, %v1858
        %1860 = vmatmul.f32.gmra.mxu0 %v1833
        %v1861 = vpop.f32.mrf.mxu0
        %v1862 = vadd.f32 0.0, %v1861
        %1863 = vmatmul.f32.gmra.mxu0 %v1836
        %v1864 = vpop.f32.mrf.mxu0
        %v1865 = vadd.f32 0.0, %v1864
        %1866 = vmatmul.f32.gmra.mxu0 %v1839
        %v1867 = vpop.f32.mrf.mxu0
        %v1868 = vadd.f32 0.0, %v1867
        %1869 = vdwg.mxu0
        %1870 = vmatpush.msra.mxu0 0.0
        %1871 = vmatpush.msra.mxu0 0.0
        %1872 = vmatpush.msra.mxu0 0.0
        %1873 = vmatpush.msra.mxu0 0.0
        %1874 = vmatpush.msra.mxu0 0.0
        %1875 = vmatpush.msra.mxu0 0.0
        %1876 = vmatpush.msra.mxu0 0.0
        %1877 = vmatpush.msra.mxu0 0.0
        %1878 = vmatpush.msra.mxu0 0.0
        %1879 = vmatpush.msra.mxu0 0.0
        %1880 = vmatpush.msra.mxu0 0.0
        %1881 = vmatpush.msra.mxu0 0.0
        %1882 = vmatpush.msra.mxu0 %v1811
        %1883 = vmatpush.msra.mxu0 %v1808
        %1884 = vmatpush.msra.mxu0 %v1805
        %1885 = vmatpush.msra.mxu0 %v1802
        %1886 = vmatmul.f32.gmra.mxu0 %v1830
        %v1887 = vpop.f32.mrf.mxu0
        %v1888 = vadd.f32 0.0, %v1887
        %1889 = vmatmul.f32.gmra.mxu0 %v1833
        %v1890 = vpop.f32.mrf.mxu0
        %v1891 = vadd.f32 0.0, %v1890
        %1892 = vmatmul.f32.gmra.mxu0 %v1836
        %v1893 = vpop.f32.mrf.mxu0
        %v1894 = vadd.f32 0.0, %v1893
        %1895 = vmatmul.f32.gmra.mxu0 %v1839
        %v1896 = vpop.f32.mrf.mxu0
        %v1897 = vadd.f32 0.0, %v1896
        %1898 = vdwg.mxu0
        %1899 = vmatpush.msra.mxu0 0.0
        %1900 = vmatpush.msra.mxu0 0.0
        %1901 = vmatpush.msra.mxu0 0.0
        %1902 = vmatpush.msra.mxu0 0.0
        %1903 = vmatpush.msra.mxu0 0.0
        %1904 = vmatpush.msra.mxu0 0.0
        %1905 = vmatpush.msra.mxu0 0.0
        %1906 = vmatpush.msra.mxu0 0.0
        %1907 = vmatpush.msra.mxu0 0.0
        %1908 = vmatpush.msra.mxu0 0.0
        %1909 = vmatpush.msra.mxu0 0.0
        %1910 = vmatpush.msra.mxu0 0.0
        %1911 = vmatpush.msra.mxu0 %v1812
        %1912 = vmatpush.msra.mxu0 %v1809
        %1913 = vmatpush.msra.mxu0 %v1806
        %1914 = vmatpush.msra.mxu0 %v1803
        %1915 = vmatmul.f32.gmra.mxu0 %v1830
        %v1916 = vpop.f32.mrf.mxu0
        %v1917 = vadd.f32 0.0, %v1916
        %1918 = vmatmul.f32.gmra.mxu0 %v1833
        %v1919 = vpop.f32.mrf.mxu0
        %v1920 = vadd.f32 0.0, %v1919
        %1921 = vmatmul.f32.gmra.mxu0 %v1836
        %v1922 = vpop.f32.mrf.mxu0
        %v1923 = vadd.f32 0.0, %v1922
        %1924 = vmatmul.f32.gmra.mxu0 %v1839
        %v1925 = vpop.f32.mrf.mxu0
        %v1926 = vadd.f32 0.0, %v1925
        %1927 = vdwg.mxu0
        %1928 = vmatpush.msra.mxu0 0.0
        %1929 = vmatpush.msra.mxu0 0.0
        %1930 = vmatpush.msra.mxu0 0.0
        %1931 = vmatpush.msra.mxu0 0.0
        %1932 = vmatpush.msra.mxu0 0.0
        %1933 = vmatpush.msra.mxu0 0.0
        %1934 = vmatpush.msra.mxu0 0.0
        %1935 = vmatpush.msra.mxu0 0.0
        %1936 = vmatpush.msra.mxu0 0.0
        %1937 = vmatpush.msra.mxu0 0.0
        %1938 = vmatpush.msra.mxu0 0.0
        %1939 = vmatpush.msra.mxu0 0.0
        %1940 = vmatpush.msra.mxu0 %v1799
        %1941 = vmatpush.msra.mxu0 %v1791
        %1942 = vmatpush.msra.mxu0 %v1783
        %1943 = vmatpush.msra.mxu0 %v1775
        %1944 = vmatmul.f32.gmra.mxu0 %v1830
        %v1945 = vpop.f32.mrf.mxu0
        %v1946 = vadd.f32 0.0, %v1945
        %1947 = vmatmul.f32.gmra.mxu0 %v1833
        %v1948 = vpop.f32.mrf.mxu0
        %v1949 = vadd.f32 0.0, %v1948
        %1950 = vmatmul.f32.gmra.mxu0 %v1836
        %v1951 = vpop.f32.mrf.mxu0
        %v1952 = vadd.f32 0.0, %v1951
        %1953 = vmatmul.f32.gmra.mxu0 %v1839
        %v1954 = vpop.f32.mrf.mxu0
        %v1955 = vadd.f32 0.0, %v1954
        %1956 = vdwg.mxu0
        %v1957 = vadd.f32 %v1747, %v1859
        %v1958 = vadd.f32 %v1748, %v1888
        %v1959 = vadd.f32 %v1749, %v1917
        %v1960 = vadd.f32 %v1750, %v1946
        %v1961 = vadd.f32 %v1751, %v1862
        %v1962 = vadd.f32 %v1752, %v1891
        %v1963 = vadd.f32 %v1753, %v1920
        %v1964 = vadd.f32 %v1754, %v1949
        %v1965 = vadd.f32 %v1755, %v1865
        %v1966 = vadd.f32 %v1756, %v1894
        %v1967 = vadd.f32 %v1757, %v1923
        %v1968 = vadd.f32 %v1758, %v1952
        %v1969 = vadd.f32 %v1759, %v1868
        %v1970 = vadd.f32 %v1760, %v1897
        %v1971 = vadd.f32 %v1761, %v1926
        %v1972 = vadd.f32 %v1762, %v1955
        %s1973 = scalar_lea.vmem [#allocation4], 160
        %v1974 = vld [vmem:[%s1973] sm:$0xff]
        %v1975 = vld [vmem:[%s1973 + $0x8] sm:$0xff]
        %v1976 = vld [vmem:[%s1973 + $0x10] sm:$0xff]
        %v1977 = vld [vmem:[%s1973 + $0x18] sm:$0xff]
        %1978 = vrot.lane.b32.xlu0 %v631, 113
        %v1979 = vpop.permute.xlu0 %1978
        %1980 = vrot.lane.b32.xlu0 %v689, 113
        %v1981 = vpop.permute.xlu0 %1980
        %1982 = vrot.lane.b32.xlu0 %v747, 113
        %v1983 = vpop.permute.xlu0 %1982
        %1984 = vrot.lane.b32.xlu0 %v805, 113
        %v1985 = vpop.permute.xlu0 %1984
        %1986 = vrot.lane.b32.xlu0 %v634, 113
        %v1987 = vpop.permute.xlu0 %1986
        %1988 = vrot.lane.b32.xlu0 %v692, 113
        %v1989 = vpop.permute.xlu0 %1988
        %1990 = vrot.lane.b32.xlu0 %v750, 113
        %v1991 = vpop.permute.xlu0 %1990
        %1992 = vrot.lane.b32.xlu0 %v808, 113
        %v1993 = vpop.permute.xlu0 %1992
        %1994 = vrot.lane.b32.xlu0 %v637, 113
        %v1995 = vpop.permute.xlu0 %1994
        %1996 = vrot.lane.b32.xlu0 %v695, 113
        %v1997 = vpop.permute.xlu0 %1996
        %1998 = vrot.lane.b32.xlu0 %v753, 113
        %v1999 = vpop.permute.xlu0 %1998
        %2000 = vrot.lane.b32.xlu0 %v811, 113
        %v2001 = vpop.permute.xlu0 %2000
        %2002 = vrot.lane.b32.xlu0 %v640, 113
        %v2003 = vpop.permute.xlu0 %2002
        %2004 = vrot.lane.b32.xlu0 %v698, 113
        %v2005 = vpop.permute.xlu0 %2004
        %2006 = vrot.lane.b32.xlu0 %v756, 113
        %v2007 = vpop.permute.xlu0 %2006
        %2008 = vrot.lane.b32.xlu0 %v814, 113
        %v2009 = vpop.permute.xlu0 %2008
        %vm2010 = vcmask 924672
        %v2011 = vsel %vm2010, %v1979, %v1981
        %v2012 = vsel %vm2010, %v1981, %v1983
        %v2013 = vsel %vm2010, %v1983, %v1985
        %v2014 = vsel %vm2010, %v1987, %v1989
        %v2015 = vsel %vm2010, %v1989, %v1991
        %v2016 = vsel %vm2010, %v1991, %v1993
        %v2017 = vsel %vm2010, %v1995, %v1997
        %v2018 = vsel %vm2010, %v1997, %v1999
        %v2019 = vsel %vm2010, %v1999, %v2001
        %v2020 = vsel %vm2010, %v2003, %v2005
        %v2021 = vsel %vm2010, %v2005, %v2007
        %v2022 = vsel %vm2010, %v2007, %v2009
        %v2040 = vsel %vm1086, %v1974, 0
        %v2043 = vsel %vm1086, %v1975, 0
        %v2046 = vsel %vm1086, %v1976, 0
        %v2049 = vsel %vm1086, %v1977, 0
        %2051 = vmatpush.msra.mxu0 0.0
        %2052 = vmatpush.msra.mxu0 0.0
        %2053 = vmatpush.msra.mxu0 0.0
        %2054 = vmatpush.msra.mxu0 0.0
        %2055 = vmatpush.msra.mxu0 0.0
        %2056 = vmatpush.msra.mxu0 0.0
        %2057 = vmatpush.msra.mxu0 0.0
        %2058 = vmatpush.msra.mxu0 0.0
        %2059 = vmatpush.msra.mxu0 0.0
        %2060 = vmatpush.msra.mxu0 0.0
        %2061 = vmatpush.msra.mxu0 0.0
        %2062 = vmatpush.msra.mxu0 0.0
        %2063 = vmatpush.msra.mxu0 %v2020
        %2064 = vmatpush.msra.mxu0 %v2017
        %2065 = vmatpush.msra.mxu0 %v2014
        %2066 = vmatpush.msra.mxu0 %v2011
        %2067 = vmatmul.f32.gmra.mxu0 %v2040
        %v2068 = vpop.f32.mrf.mxu0
        %v2069 = vadd.f32 0.0, %v2068
        %2070 = vmatmul.f32.gmra.mxu0 %v2043
        %v2071 = vpop.f32.mrf.mxu0
        %v2072 = vadd.f32 0.0, %v2071
        %2073 = vmatmul.f32.gmra.mxu0 %v2046
        %v2074 = vpop.f32.mrf.mxu0
        %v2075 = vadd.f32 0.0, %v2074
        %2076 = vmatmul.f32.gmra.mxu0 %v2049
        %v2077 = vpop.f32.mrf.mxu0
        %v2078 = vadd.f32 0.0, %v2077
        %2079 = vdwg.mxu0
        %2080 = vmatpush.msra.mxu0 0.0
        %2081 = vmatpush.msra.mxu0 0.0
        %2082 = vmatpush.msra.mxu0 0.0
        %2083 = vmatpush.msra.mxu0 0.0
        %2084 = vmatpush.msra.mxu0 0.0
        %2085 = vmatpush.msra.mxu0 0.0
        %2086 = vmatpush.msra.mxu0 0.0
        %2087 = vmatpush.msra.mxu0 0.0
        %2088 = vmatpush.msra.mxu0 0.0
        %2089 = vmatpush.msra.mxu0 0.0
        %2090 = vmatpush.msra.mxu0 0.0
        %2091 = vmatpush.msra.mxu0 0.0
        %2092 = vmatpush.msra.mxu0 %v2021
        %2093 = vmatpush.msra.mxu0 %v2018
        %2094 = vmatpush.msra.mxu0 %v2015
        %2095 = vmatpush.msra.mxu0 %v2012
        %2096 = vmatmul.f32.gmra.mxu0 %v2040
        %v2097 = vpop.f32.mrf.mxu0
        %v2098 = vadd.f32 0.0, %v2097
        %2099 = vmatmul.f32.gmra.mxu0 %v2043
        %v2100 = vpop.f32.mrf.mxu0
        %v2101 = vadd.f32 0.0, %v2100
        %2102 = vmatmul.f32.gmra.mxu0 %v2046
        %v2103 = vpop.f32.mrf.mxu0
        %v2104 = vadd.f32 0.0, %v2103
        %2105 = vmatmul.f32.gmra.mxu0 %v2049
        %v2106 = vpop.f32.mrf.mxu0
        %v2107 = vadd.f32 0.0, %v2106
        %2108 = vdwg.mxu0
        %2109 = vmatpush.msra.mxu0 0.0
        %2110 = vmatpush.msra.mxu0 0.0
        %2111 = vmatpush.msra.mxu0 0.0
        %2112 = vmatpush.msra.mxu0 0.0
        %2113 = vmatpush.msra.mxu0 0.0
        %2114 = vmatpush.msra.mxu0 0.0
        %2115 = vmatpush.msra.mxu0 0.0
        %2116 = vmatpush.msra.mxu0 0.0
        %2117 = vmatpush.msra.mxu0 0.0
        %2118 = vmatpush.msra.mxu0 0.0
        %2119 = vmatpush.msra.mxu0 0.0
        %2120 = vmatpush.msra.mxu0 0.0
        %2121 = vmatpush.msra.mxu0 %v2022
        %2122 = vmatpush.msra.mxu0 %v2019
        %2123 = vmatpush.msra.mxu0 %v2016
        %2124 = vmatpush.msra.mxu0 %v2013
        %2125 = vmatmul.f32.gmra.mxu0 %v2040
        %v2126 = vpop.f32.mrf.mxu0
        %v2127 = vadd.f32 0.0, %v2126
        %2128 = vmatmul.f32.gmra.mxu0 %v2043
        %v2129 = vpop.f32.mrf.mxu0
        %v2130 = vadd.f32 0.0, %v2129
        %2131 = vmatmul.f32.gmra.mxu0 %v2046
        %v2132 = vpop.f32.mrf.mxu0
        %v2133 = vadd.f32 0.0, %v2132
        %2134 = vmatmul.f32.gmra.mxu0 %v2049
        %v2135 = vpop.f32.mrf.mxu0
        %v2136 = vadd.f32 0.0, %v2135
        %2137 = vdwg.mxu0
        %2138 = vmatpush.msra.mxu0 0.0
        %2139 = vmatpush.msra.mxu0 0.0
        %2140 = vmatpush.msra.mxu0 0.0
        %2141 = vmatpush.msra.mxu0 0.0
        %2142 = vmatpush.msra.mxu0 0.0
        %2143 = vmatpush.msra.mxu0 0.0
        %2144 = vmatpush.msra.mxu0 0.0
        %2145 = vmatpush.msra.mxu0 0.0
        %2146 = vmatpush.msra.mxu0 0.0
        %2147 = vmatpush.msra.mxu0 0.0
        %2148 = vmatpush.msra.mxu0 0.0
        %2149 = vmatpush.msra.mxu0 0.0
        %2150 = vmatpush.msra.mxu0 %v2009
        %2151 = vmatpush.msra.mxu0 %v2001
        %2152 = vmatpush.msra.mxu0 %v1993
        %2153 = vmatpush.msra.mxu0 %v1985
        %2154 = vmatmul.f32.gmra.mxu0 %v2040
        %v2155 = vpop.f32.mrf.mxu0
        %v2156 = vadd.f32 0.0, %v2155
        %2157 = vmatmul.f32.gmra.mxu0 %v2043
        %v2158 = vpop.f32.mrf.mxu0
        %v2159 = vadd.f32 0.0, %v2158
        %2160 = vmatmul.f32.gmra.mxu0 %v2046
        %v2161 = vpop.f32.mrf.mxu0
        %v2162 = vadd.f32 0.0, %v2161
        %2163 = vmatmul.f32.gmra.mxu0 %v2049
        %v2164 = vpop.f32.mrf.mxu0
        %v2165 = vadd.f32 0.0, %v2164
        %2166 = vdwg.mxu0
        %v2167 = vadd.f32 %v1957, %v2069
        %v2168 = vadd.f32 %v1958, %v2098
        %v2169 = vadd.f32 %v1959, %v2127
        %v2170 = vadd.f32 %v1960, %v2156
        %v2171 = vadd.f32 %v1961, %v2072
        %v2172 = vadd.f32 %v1962, %v2101
        %v2173 = vadd.f32 %v1963, %v2130
        %v2174 = vadd.f32 %v1964, %v2159
        %v2175 = vadd.f32 %v1965, %v2075
        %v2176 = vadd.f32 %v1966, %v2104
        %v2177 = vadd.f32 %v1967, %v2133
        %v2178 = vadd.f32 %v1968, %v2162
        %v2179 = vadd.f32 %v1969, %v2078
        %v2180 = vadd.f32 %v1970, %v2107
        %v2181 = vadd.f32 %v1971, %v2136
        %v2182 = vadd.f32 %v1972, %v2165
        %s2183 = scalar_lea.vmem [#allocation4], 192
        %v2184 = vld [vmem:[%s2183] sm:$0xff]
        %v2185 = vld [vmem:[%s2183 + $0x8] sm:$0xff]
        %v2186 = vld [vmem:[%s2183 + $0x10] sm:$0xff]
        %v2187 = vld [vmem:[%s2183 + $0x18] sm:$0xff]
        %2188 = vrot.lane.b32.xlu0 %v631, 102
        %v2189 = vpop.permute.xlu0 %2188
        %2190 = vrot.lane.b32.xlu0 %v689, 102
        %v2191 = vpop.permute.xlu0 %2190
        %2192 = vrot.lane.b32.xlu0 %v747, 102
        %v2193 = vpop.permute.xlu0 %2192
        %2194 = vrot.lane.b32.xlu0 %v805, 102
        %v2195 = vpop.permute.xlu0 %2194
        %2196 = vrot.lane.b32.xlu0 %v634, 102
        %v2197 = vpop.permute.xlu0 %2196
        %2198 = vrot.lane.b32.xlu0 %v692, 102
        %v2199 = vpop.permute.xlu0 %2198
        %2200 = vrot.lane.b32.xlu0 %v750, 102
        %v2201 = vpop.permute.xlu0 %2200
        %2202 = vrot.lane.b32.xlu0 %v808, 102
        %v2203 = vpop.permute.xlu0 %2202
        %2204 = vrot.lane.b32.xlu0 %v637, 102
        %v2205 = vpop.permute.xlu0 %2204
        %2206 = vrot.lane.b32.xlu0 %v695, 102
        %v2207 = vpop.permute.xlu0 %2206
        %2208 = vrot.lane.b32.xlu0 %v753, 102
        %v2209 = vpop.permute.xlu0 %2208
        %2210 = vrot.lane.b32.xlu0 %v811, 102
        %v2211 = vpop.permute.xlu0 %2210
        %2212 = vrot.lane.b32.xlu0 %v640, 102
        %v2213 = vpop.permute.xlu0 %2212
        %2214 = vrot.lane.b32.xlu0 %v698, 102
        %v2215 = vpop.permute.xlu0 %2214
        %2216 = vrot.lane.b32.xlu0 %v756, 102
        %v2217 = vpop.permute.xlu0 %2216
        %2218 = vrot.lane.b32.xlu0 %v814, 102
        %v2219 = vpop.permute.xlu0 %2218
        %vm2220 = vcmask 834560
        %v2221 = vsel %vm2220, %v2189, %v2191
        %v2222 = vsel %vm2220, %v2191, %v2193
        %v2223 = vsel %vm2220, %v2193, %v2195
        %v2224 = vsel %vm2220, %v2197, %v2199
        %v2225 = vsel %vm2220, %v2199, %v2201
        %v2226 = vsel %vm2220, %v2201, %v2203
        %v2227 = vsel %vm2220, %v2205, %v2207
        %v2228 = vsel %vm2220, %v2207, %v2209
        %v2229 = vsel %vm2220, %v2209, %v2211
        %v2230 = vsel %vm2220, %v2213, %v2215
        %v2231 = vsel %vm2220, %v2215, %v2217
        %v2232 = vsel %vm2220, %v2217, %v2219
        %v2250 = vsel %vm1086, %v2184, 0
        %v2253 = vsel %vm1086, %v2185, 0
        %v2256 = vsel %vm1086, %v2186, 0
        %v2259 = vsel %vm1086, %v2187, 0
        %2261 = vmatpush.msra.mxu0 0.0
        %2262 = vmatpush.msra.mxu0 0.0
        %2263 = vmatpush.msra.mxu0 0.0
        %2264 = vmatpush.msra.mxu0 0.0
        %2265 = vmatpush.msra.mxu0 0.0
        %2266 = vmatpush.msra.mxu0 0.0
        %2267 = vmatpush.msra.mxu0 0.0
        %2268 = vmatpush.msra.mxu0 0.0
        %2269 = vmatpush.msra.mxu0 0.0
        %2270 = vmatpush.msra.mxu0 0.0
        %2271 = vmatpush.msra.mxu0 0.0
        %2272 = vmatpush.msra.mxu0 0.0
        %2273 = vmatpush.msra.mxu0 %v2230
        %2274 = vmatpush.msra.mxu0 %v2227
        %2275 = vmatpush.msra.mxu0 %v2224
        %2276 = vmatpush.msra.mxu0 %v2221
        %2277 = vmatmul.f32.gmra.mxu0 %v2250
        %v2278 = vpop.f32.mrf.mxu0
        %v2279 = vadd.f32 0.0, %v2278
        %2280 = vmatmul.f32.gmra.mxu0 %v2253
        %v2281 = vpop.f32.mrf.mxu0
        %v2282 = vadd.f32 0.0, %v2281
        %2283 = vmatmul.f32.gmra.mxu0 %v2256
        %v2284 = vpop.f32.mrf.mxu0
        %v2285 = vadd.f32 0.0, %v2284
        %2286 = vmatmul.f32.gmra.mxu0 %v2259
        %v2287 = vpop.f32.mrf.mxu0
        %v2288 = vadd.f32 0.0, %v2287
        %2289 = vdwg.mxu0
        %2290 = vmatpush.msra.mxu0 0.0
        %2291 = vmatpush.msra.mxu0 0.0
        %2292 = vmatpush.msra.mxu0 0.0
        %2293 = vmatpush.msra.mxu0 0.0
        %2294 = vmatpush.msra.mxu0 0.0
        %2295 = vmatpush.msra.mxu0 0.0
        %2296 = vmatpush.msra.mxu0 0.0
        %2297 = vmatpush.msra.mxu0 0.0
        %2298 = vmatpush.msra.mxu0 0.0
        %2299 = vmatpush.msra.mxu0 0.0
        %2300 = vmatpush.msra.mxu0 0.0
        %2301 = vmatpush.msra.mxu0 0.0
        %2302 = vmatpush.msra.mxu0 %v2231
        %2303 = vmatpush.msra.mxu0 %v2228
        %2304 = vmatpush.msra.mxu0 %v2225
        %2305 = vmatpush.msra.mxu0 %v2222
        %2306 = vmatmul.f32.gmra.mxu0 %v2250
        %v2307 = vpop.f32.mrf.mxu0
        %v2308 = vadd.f32 0.0, %v2307
        %2309 = vmatmul.f32.gmra.mxu0 %v2253
        %v2310 = vpop.f32.mrf.mxu0
        %v2311 = vadd.f32 0.0, %v2310
        %2312 = vmatmul.f32.gmra.mxu0 %v2256
        %v2313 = vpop.f32.mrf.mxu0
        %v2314 = vadd.f32 0.0, %v2313
        %2315 = vmatmul.f32.gmra.mxu0 %v2259
        %v2316 = vpop.f32.mrf.mxu0
        %v2317 = vadd.f32 0.0, %v2316
        %2318 = vdwg.mxu0
        %2319 = vmatpush.msra.mxu0 0.0
        %2320 = vmatpush.msra.mxu0 0.0
        %2321 = vmatpush.msra.mxu0 0.0
        %2322 = vmatpush.msra.mxu0 0.0
        %2323 = vmatpush.msra.mxu0 0.0
        %2324 = vmatpush.msra.mxu0 0.0
        %2325 = vmatpush.msra.mxu0 0.0
        %2326 = vmatpush.msra.mxu0 0.0
        %2327 = vmatpush.msra.mxu0 0.0
        %2328 = vmatpush.msra.mxu0 0.0
        %2329 = vmatpush.msra.mxu0 0.0
        %2330 = vmatpush.msra.mxu0 0.0
        %2331 = vmatpush.msra.mxu0 %v2232
        %2332 = vmatpush.msra.mxu0 %v2229
        %2333 = vmatpush.msra.mxu0 %v2226
        %2334 = vmatpush.msra.mxu0 %v2223
        %2335 = vmatmul.f32.gmra.mxu0 %v2250
        %v2336 = vpop.f32.mrf.mxu0
        %v2337 = vadd.f32 0.0, %v2336
        %2338 = vmatmul.f32.gmra.mxu0 %v2253
        %v2339 = vpop.f32.mrf.mxu0
        %v2340 = vadd.f32 0.0, %v2339
        %2341 = vmatmul.f32.gmra.mxu0 %v2256
        %v2342 = vpop.f32.mrf.mxu0
        %v2343 = vadd.f32 0.0, %v2342
        %2344 = vmatmul.f32.gmra.mxu0 %v2259
        %v2345 = vpop.f32.mrf.mxu0
        %v2346 = vadd.f32 0.0, %v2345
        %2347 = vdwg.mxu0
        %2348 = vmatpush.msra.mxu0 0.0
        %2349 = vmatpush.msra.mxu0 0.0
        %2350 = vmatpush.msra.mxu0 0.0
        %2351 = vmatpush.msra.mxu0 0.0
        %2352 = vmatpush.msra.mxu0 0.0
        %2353 = vmatpush.msra.mxu0 0.0
        %2354 = vmatpush.msra.mxu0 0.0
        %2355 = vmatpush.msra.mxu0 0.0
        %2356 = vmatpush.msra.mxu0 0.0
        %2357 = vmatpush.msra.mxu0 0.0
        %2358 = vmatpush.msra.mxu0 0.0
        %2359 = vmatpush.msra.mxu0 0.0
        %2360 = vmatpush.msra.mxu0 %v2219
        %2361 = vmatpush.msra.mxu0 %v2211
        %2362 = vmatpush.msra.mxu0 %v2203
        %2363 = vmatpush.msra.mxu0 %v2195
        %2364 = vmatmul.f32.gmra.mxu0 %v2250
        %v2365 = vpop.f32.mrf.mxu0
        %v2366 = vadd.f32 0.0, %v2365
        %2367 = vmatmul.f32.gmra.mxu0 %v2253
        %v2368 = vpop.f32.mrf.mxu0
        %v2369 = vadd.f32 0.0, %v2368
        %2370 = vmatmul.f32.gmra.mxu0 %v2256
        %v2371 = vpop.f32.mrf.mxu0
        %v2372 = vadd.f32 0.0, %v2371
        %2373 = vmatmul.f32.gmra.mxu0 %v2259
        %v2374 = vpop.f32.mrf.mxu0
        %v2375 = vadd.f32 0.0, %v2374
        %2376 = vdwg.mxu0
        %v2377 = vadd.f32 %v2167, %v2279
        %v2378 = vadd.f32 %v2168, %v2308
        %v2379 = vadd.f32 %v2169, %v2337
        %v2380 = vadd.f32 %v2170, %v2366
        %v2381 = vadd.f32 %v2171, %v2282
        %v2382 = vadd.f32 %v2172, %v2311
        %v2383 = vadd.f32 %v2173, %v2340
        %v2384 = vadd.f32 %v2174, %v2369
        %v2385 = vadd.f32 %v2175, %v2285
        %v2386 = vadd.f32 %v2176, %v2314
        %v2387 = vadd.f32 %v2177, %v2343
        %v2388 = vadd.f32 %v2178, %v2372
        %v2389 = vadd.f32 %v2179, %v2288
        %v2390 = vadd.f32 %v2180, %v2317
        %v2391 = vadd.f32 %v2181, %v2346
        %v2392 = vadd.f32 %v2182, %v2375
        %s2393 = scalar_lea.vmem [#allocation4], 224
        %v2394 = vld [vmem:[%s2393] sm:$0xff]
        %v2395 = vld [vmem:[%s2393 + $0x8] sm:$0xff]
        %v2396 = vld [vmem:[%s2393 + $0x10] sm:$0xff]
        %v2397 = vld [vmem:[%s2393 + $0x18] sm:$0xff]
        %2398 = vrot.lane.b32.xlu0 %v631, 101
        %v2399 = vpop.permute.xlu0 %2398
        %2400 = vrot.lane.b32.xlu0 %v689, 101
        %v2401 = vpop.permute.xlu0 %2400
        %2402 = vrot.lane.b32.xlu0 %v747, 101
        %v2403 = vpop.permute.xlu0 %2402
        %2404 = vrot.lane.b32.xlu0 %v805, 101
        %v2405 = vpop.permute.xlu0 %2404
        %2406 = vrot.lane.b32.xlu0 %v634, 101
        %v2407 = vpop.permute.xlu0 %2406
        %2408 = vrot.lane.b32.xlu0 %v692, 101
        %v2409 = vpop.permute.xlu0 %2408
        %2410 = vrot.lane.b32.xlu0 %v750, 101
        %v2411 = vpop.permute.xlu0 %2410
        %2412 = vrot.lane.b32.xlu0 %v808, 101
        %v2413 = vpop.permute.xlu0 %2412
        %2414 = vrot.lane.b32.xlu0 %v637, 101
        %v2415 = vpop.permute.xlu0 %2414
        %2416 = vrot.lane.b32.xlu0 %v695, 101
        %v2417 = vpop.permute.xlu0 %2416
        %2418 = vrot.lane.b32.xlu0 %v753, 101
        %v2419 = vpop.permute.xlu0 %2418
        %2420 = vrot.lane.b32.xlu0 %v811, 101
        %v2421 = vpop.permute.xlu0 %2420
        %2422 = vrot.lane.b32.xlu0 %v640, 101
        %v2423 = vpop.permute.xlu0 %2422
        %2424 = vrot.lane.b32.xlu0 %v698, 101
        %v2425 = vpop.permute.xlu0 %2424
        %2426 = vrot.lane.b32.xlu0 %v756, 101
        %v2427 = vpop.permute.xlu0 %2426
        %2428 = vrot.lane.b32.xlu0 %v814, 101
        %v2429 = vpop.permute.xlu0 %2428
        %vm2430 = vcmask 826368
        %v2431 = vsel %vm2430, %v2399, %v2401
        %v2432 = vsel %vm2430, %v2401, %v2403
        %v2433 = vsel %vm2430, %v2403, %v2405
        %v2434 = vsel %vm2430, %v2407, %v2409
        %v2435 = vsel %vm2430, %v2409, %v2411
        %v2436 = vsel %vm2430, %v2411, %v2413
        %v2437 = vsel %vm2430, %v2415, %v2417
        %v2438 = vsel %vm2430, %v2417, %v2419
        %v2439 = vsel %vm2430, %v2419, %v2421
        %v2440 = vsel %vm2430, %v2423, %v2425
        %v2441 = vsel %vm2430, %v2425, %v2427
        %v2442 = vsel %vm2430, %v2427, %v2429
        %v2460 = vsel %vm1086, %v2394, 0
        %v2463 = vsel %vm1086, %v2395, 0
        %v2466 = vsel %vm1086, %v2396, 0
        %v2469 = vsel %vm1086, %v2397, 0
        %2471 = vmatpush.msra.mxu0 0.0
        %2472 = vmatpush.msra.mxu0 0.0
        %2473 = vmatpush.msra.mxu0 0.0
        %2474 = vmatpush.msra.mxu0 0.0
        %2475 = vmatpush.msra.mxu0 0.0
        %2476 = vmatpush.msra.mxu0 0.0
        %2477 = vmatpush.msra.mxu0 0.0
        %2478 = vmatpush.msra.mxu0 0.0
        %2479 = vmatpush.msra.mxu0 0.0
        %2480 = vmatpush.msra.mxu0 0.0
        %2481 = vmatpush.msra.mxu0 0.0
        %2482 = vmatpush.msra.mxu0 0.0
        %2483 = vmatpush.msra.mxu0 %v2440
        %2484 = vmatpush.msra.mxu0 %v2437
        %2485 = vmatpush.msra.mxu0 %v2434
        %2486 = vmatpush.msra.mxu0 %v2431
        %2487 = vmatmul.f32.gmra.mxu0 %v2460
        %v2488 = vpop.f32.mrf.mxu0
        %v2489 = vadd.f32 0.0, %v2488
        %2490 = vmatmul.f32.gmra.mxu0 %v2463
        %v2491 = vpop.f32.mrf.mxu0
        %v2492 = vadd.f32 0.0, %v2491
        %2493 = vmatmul.f32.gmra.mxu0 %v2466
        %v2494 = vpop.f32.mrf.mxu0
        %v2495 = vadd.f32 0.0, %v2494
        %2496 = vmatmul.f32.gmra.mxu0 %v2469
        %v2497 = vpop.f32.mrf.mxu0
        %v2498 = vadd.f32 0.0, %v2497
        %2499 = vdwg.mxu0
        %2500 = vmatpush.msra.mxu0 0.0
        %2501 = vmatpush.msra.mxu0 0.0
        %2502 = vmatpush.msra.mxu0 0.0
        %2503 = vmatpush.msra.mxu0 0.0
        %2504 = vmatpush.msra.mxu0 0.0
        %2505 = vmatpush.msra.mxu0 0.0
        %2506 = vmatpush.msra.mxu0 0.0
        %2507 = vmatpush.msra.mxu0 0.0
        %2508 = vmatpush.msra.mxu0 0.0
        %2509 = vmatpush.msra.mxu0 0.0
        %2510 = vmatpush.msra.mxu0 0.0
        %2511 = vmatpush.msra.mxu0 0.0
        %2512 = vmatpush.msra.mxu0 %v2441
        %2513 = vmatpush.msra.mxu0 %v2438
        %2514 = vmatpush.msra.mxu0 %v2435
        %2515 = vmatpush.msra.mxu0 %v2432
        %2516 = vmatmul.f32.gmra.mxu0 %v2460
        %v2517 = vpop.f32.mrf.mxu0
        %v2518 = vadd.f32 0.0, %v2517
        %2519 = vmatmul.f32.gmra.mxu0 %v2463
        %v2520 = vpop.f32.mrf.mxu0
        %v2521 = vadd.f32 0.0, %v2520
        %2522 = vmatmul.f32.gmra.mxu0 %v2466
        %v2523 = vpop.f32.mrf.mxu0
        %v2524 = vadd.f32 0.0, %v2523
        %2525 = vmatmul.f32.gmra.mxu0 %v2469
        %v2526 = vpop.f32.mrf.mxu0
        %v2527 = vadd.f32 0.0, %v2526
        %2528 = vdwg.mxu0
        %2529 = vmatpush.msra.mxu0 0.0
        %2530 = vmatpush.msra.mxu0 0.0
        %2531 = vmatpush.msra.mxu0 0.0
        %2532 = vmatpush.msra.mxu0 0.0
        %2533 = vmatpush.msra.mxu0 0.0
        %2534 = vmatpush.msra.mxu0 0.0
        %2535 = vmatpush.msra.mxu0 0.0
        %2536 = vmatpush.msra.mxu0 0.0
        %2537 = vmatpush.msra.mxu0 0.0
        %2538 = vmatpush.msra.mxu0 0.0
        %2539 = vmatpush.msra.mxu0 0.0
        %2540 = vmatpush.msra.mxu0 0.0
        %2541 = vmatpush.msra.mxu0 %v2442
        %2542 = vmatpush.msra.mxu0 %v2439
        %2543 = vmatpush.msra.mxu0 %v2436
        %2544 = vmatpush.msra.mxu0 %v2433
        %2545 = vmatmul.f32.gmra.mxu0 %v2460
        %v2546 = vpop.f32.mrf.mxu0
        %v2547 = vadd.f32 0.0, %v2546
        %2548 = vmatmul.f32.gmra.mxu0 %v2463
        %v2549 = vpop.f32.mrf.mxu0
        %v2550 = vadd.f32 0.0, %v2549
        %2551 = vmatmul.f32.gmra.mxu0 %v2466
        %v2552 = vpop.f32.mrf.mxu0
        %v2553 = vadd.f32 0.0, %v2552
        %2554 = vmatmul.f32.gmra.mxu0 %v2469
        %v2555 = vpop.f32.mrf.mxu0
        %v2556 = vadd.f32 0.0, %v2555
        %2557 = vdwg.mxu0
        %2558 = vmatpush.msra.mxu0 0.0
        %2559 = vmatpush.msra.mxu0 0.0
        %2560 = vmatpush.msra.mxu0 0.0
        %2561 = vmatpush.msra.mxu0 0.0
        %2562 = vmatpush.msra.mxu0 0.0
        %2563 = vmatpush.msra.mxu0 0.0
        %2564 = vmatpush.msra.mxu0 0.0
        %2565 = vmatpush.msra.mxu0 0.0
        %2566 = vmatpush.msra.mxu0 0.0
        %2567 = vmatpush.msra.mxu0 0.0
        %2568 = vmatpush.msra.mxu0 0.0
        %2569 = vmatpush.msra.mxu0 0.0
        %2570 = vmatpush.msra.mxu0 %v2429
        %2571 = vmatpush.msra.mxu0 %v2421
        %2572 = vmatpush.msra.mxu0 %v2413
        %2573 = vmatpush.msra.mxu0 %v2405
        %2574 = vmatmul.f32.gmra.mxu0 %v2460
        %v2575 = vpop.f32.mrf.mxu0
        %v2576 = vadd.f32 0.0, %v2575
        %2577 = vmatmul.f32.gmra.mxu0 %v2463
        %v2578 = vpop.f32.mrf.mxu0
        %v2579 = vadd.f32 0.0, %v2578
        %2580 = vmatmul.f32.gmra.mxu0 %v2466
        %v2581 = vpop.f32.mrf.mxu0
        %v2582 = vadd.f32 0.0, %v2581
        %2583 = vmatmul.f32.gmra.mxu0 %v2469
        %v2584 = vpop.f32.mrf.mxu0
        %v2585 = vadd.f32 0.0, %v2584
        %2586 = vdwg.mxu0
        %v2587 = vadd.f32 %v2377, %v2489
        %v2588 = vadd.f32 %v2378, %v2518
        %v2589 = vadd.f32 %v2379, %v2547
        %v2590 = vadd.f32 %v2380, %v2576
        %v2591 = vadd.f32 %v2381, %v2492
        %v2592 = vadd.f32 %v2382, %v2521
        %v2593 = vadd.f32 %v2383, %v2550
        %v2594 = vadd.f32 %v2384, %v2579
        %v2595 = vadd.f32 %v2385, %v2495
        %v2596 = vadd.f32 %v2386, %v2524
        %v2597 = vadd.f32 %v2387, %v2553
        %v2598 = vadd.f32 %v2388, %v2582
        %v2599 = vadd.f32 %v2389, %v2498
        %v2600 = vadd.f32 %v2390, %v2527
        %v2601 = vadd.f32 %v2391, %v2556
        %v2602 = vadd.f32 %v2392, %v2585
        %s2603 = scalar_lea.vmem [#allocation4], 256
        %v2604 = vld [vmem:[%s2603] sm:$0xff]
        %v2605 = vld [vmem:[%s2603 + $0x8] sm:$0xff]
        %v2606 = vld [vmem:[%s2603 + $0x10] sm:$0xff]
        %v2607 = vld [vmem:[%s2603 + $0x18] sm:$0xff]
        %2608 = vrot.lane.b32.xlu0 %v631, 100
        %v2609 = vpop.permute.xlu0 %2608
        %2610 = vrot.lane.b32.xlu0 %v689, 100
        %v2611 = vpop.permute.xlu0 %2610
        %2612 = vrot.lane.b32.xlu0 %v747, 100
        %v2613 = vpop.permute.xlu0 %2612
        %2614 = vrot.lane.b32.xlu0 %v805, 100
        %v2615 = vpop.permute.xlu0 %2614
        %2616 = vrot.lane.b32.xlu0 %v634, 100
        %v2617 = vpop.permute.xlu0 %2616
        %2618 = vrot.lane.b32.xlu0 %v692, 100
        %v2619 = vpop.permute.xlu0 %2618
        %2620 = vrot.lane.b32.xlu0 %v750, 100
        %v2621 = vpop.permute.xlu0 %2620
        %2622 = vrot.lane.b32.xlu0 %v808, 100
        %v2623 = vpop.permute.xlu0 %2622
        %2624 = vrot.lane.b32.xlu0 %v637, 100
        %v2625 = vpop.permute.xlu0 %2624
        %2626 = vrot.lane.b32.xlu0 %v695, 100
        %v2627 = vpop.permute.xlu0 %2626
        %2628 = vrot.lane.b32.xlu0 %v753, 100
        %v2629 = vpop.permute.xlu0 %2628
        %2630 = vrot.lane.b32.xlu0 %v811, 100
        %v2631 = vpop.permute.xlu0 %2630
        %2632 = vrot.lane.b32.xlu0 %v640, 100
        %v2633 = vpop.permute.xlu0 %2632
        %2634 = vrot.lane.b32.xlu0 %v698, 100
        %v2635 = vpop.permute.xlu0 %2634
        %2636 = vrot.lane.b32.xlu0 %v756, 100
        %v2637 = vpop.permute.xlu0 %2636
        %2638 = vrot.lane.b32.xlu0 %v814, 100
        %v2639 = vpop.permute.xlu0 %2638
        %vm2640 = vcmask 818176
        %v2641 = vsel %vm2640, %v2609, %v2611
        %v2642 = vsel %vm2640, %v2611, %v2613
        %v2643 = vsel %vm2640, %v2613, %v2615
        %v2644 = vsel %vm2640, %v2617, %v2619
        %v2645 = vsel %vm2640, %v2619, %v2621
        %v2646 = vsel %vm2640, %v2621, %v2623
        %v2647 = vsel %vm2640, %v2625, %v2627
        %v2648 = vsel %vm2640, %v2627, %v2629
        %v2649 = vsel %vm2640, %v2629, %v2631
        %v2650 = vsel %vm2640, %v2633, %v2635
        %v2651 = vsel %vm2640, %v2635, %v2637
        %v2652 = vsel %vm2640, %v2637, %v2639
        %v2670 = vsel %vm1086, %v2604, 0
        %v2673 = vsel %vm1086, %v2605, 0
        %v2676 = vsel %vm1086, %v2606, 0
        %v2679 = vsel %vm1086, %v2607, 0
        %2681 = vmatpush.msra.mxu0 0.0
        %2682 = vmatpush.msra.mxu0 0.0
        %2683 = vmatpush.msra.mxu0 0.0
        %2684 = vmatpush.msra.mxu0 0.0
        %2685 = vmatpush.msra.mxu0 0.0
        %2686 = vmatpush.msra.mxu0 0.0
        %2687 = vmatpush.msra.mxu0 0.0
        %2688 = vmatpush.msra.mxu0 0.0
        %2689 = vmatpush.msra.mxu0 0.0
        %2690 = vmatpush.msra.mxu0 0.0
        %2691 = vmatpush.msra.mxu0 0.0
        %2692 = vmatpush.msra.mxu0 0.0
        %2693 = vmatpush.msra.mxu0 %v2650
        %2694 = vmatpush.msra.mxu0 %v2647
        %2695 = vmatpush.msra.mxu0 %v2644
        %2696 = vmatpush.msra.mxu0 %v2641
        %2697 = vmatmul.f32.gmra.mxu0 %v2670
        %v2698 = vpop.f32.mrf.mxu0
        %v2699 = vadd.f32 0.0, %v2698
        %2700 = vmatmul.f32.gmra.mxu0 %v2673
        %v2701 = vpop.f32.mrf.mxu0
        %v2702 = vadd.f32 0.0, %v2701
        %2703 = vmatmul.f32.gmra.mxu0 %v2676
        %v2704 = vpop.f32.mrf.mxu0
        %v2705 = vadd.f32 0.0, %v2704
        %2706 = vmatmul.f32.gmra.mxu0 %v2679
        %v2707 = vpop.f32.mrf.mxu0
        %v2708 = vadd.f32 0.0, %v2707
        %2709 = vdwg.mxu0
        %2710 = vmatpush.msra.mxu0 0.0
        %2711 = vmatpush.msra.mxu0 0.0
        %2712 = vmatpush.msra.mxu0 0.0
        %2713 = vmatpush.msra.mxu0 0.0
        %2714 = vmatpush.msra.mxu0 0.0
        %2715 = vmatpush.msra.mxu0 0.0
        %2716 = vmatpush.msra.mxu0 0.0
        %2717 = vmatpush.msra.mxu0 0.0
        %2718 = vmatpush.msra.mxu0 0.0
        %2719 = vmatpush.msra.mxu0 0.0
        %2720 = vmatpush.msra.mxu0 0.0
        %2721 = vmatpush.msra.mxu0 0.0
        %2722 = vmatpush.msra.mxu0 %v2651
        %2723 = vmatpush.msra.mxu0 %v2648
        %2724 = vmatpush.msra.mxu0 %v2645
        %2725 = vmatpush.msra.mxu0 %v2642
        %2726 = vmatmul.f32.gmra.mxu0 %v2670
        %v2727 = vpop.f32.mrf.mxu0
        %v2728 = vadd.f32 0.0, %v2727
        %2729 = vmatmul.f32.gmra.mxu0 %v2673
        %v2730 = vpop.f32.mrf.mxu0
        %v2731 = vadd.f32 0.0, %v2730
        %2732 = vmatmul.f32.gmra.mxu0 %v2676
        %v2733 = vpop.f32.mrf.mxu0
        %v2734 = vadd.f32 0.0, %v2733
        %2735 = vmatmul.f32.gmra.mxu0 %v2679
        %v2736 = vpop.f32.mrf.mxu0
        %v2737 = vadd.f32 0.0, %v2736
        %2738 = vdwg.mxu0
        %2739 = vmatpush.msra.mxu0 0.0
        %2740 = vmatpush.msra.mxu0 0.0
        %2741 = vmatpush.msra.mxu0 0.0
        %2742 = vmatpush.msra.mxu0 0.0
        %2743 = vmatpush.msra.mxu0 0.0
        %2744 = vmatpush.msra.mxu0 0.0
        %2745 = vmatpush.msra.mxu0 0.0
        %2746 = vmatpush.msra.mxu0 0.0
        %2747 = vmatpush.msra.mxu0 0.0
        %2748 = vmatpush.msra.mxu0 0.0
        %2749 = vmatpush.msra.mxu0 0.0
        %2750 = vmatpush.msra.mxu0 0.0
        %2751 = vmatpush.msra.mxu0 %v2652
        %2752 = vmatpush.msra.mxu0 %v2649
        %2753 = vmatpush.msra.mxu0 %v2646
        %2754 = vmatpush.msra.mxu0 %v2643
        %2755 = vmatmul.f32.gmra.mxu0 %v2670
        %v2756 = vpop.f32.mrf.mxu0
        %v2757 = vadd.f32 0.0, %v2756
        %2758 = vmatmul.f32.gmra.mxu0 %v2673
        %v2759 = vpop.f32.mrf.mxu0
        %v2760 = vadd.f32 0.0, %v2759
        %2761 = vmatmul.f32.gmra.mxu0 %v2676
        %v2762 = vpop.f32.mrf.mxu0
        %v2763 = vadd.f32 0.0, %v2762
        %2764 = vmatmul.f32.gmra.mxu0 %v2679
        %v2765 = vpop.f32.mrf.mxu0
        %v2766 = vadd.f32 0.0, %v2765
        %2767 = vdwg.mxu0
        %2768 = vmatpush.msra.mxu0 0.0
        %2769 = vmatpush.msra.mxu0 0.0
        %2770 = vmatpush.msra.mxu0 0.0
        %2771 = vmatpush.msra.mxu0 0.0
        %2772 = vmatpush.msra.mxu0 0.0
        %2773 = vmatpush.msra.mxu0 0.0
        %2774 = vmatpush.msra.mxu0 0.0
        %2775 = vmatpush.msra.mxu0 0.0
        %2776 = vmatpush.msra.mxu0 0.0
        %2777 = vmatpush.msra.mxu0 0.0
        %2778 = vmatpush.msra.mxu0 0.0
        %2779 = vmatpush.msra.mxu0 0.0
        %2780 = vmatpush.msra.mxu0 %v2639
        %2781 = vmatpush.msra.mxu0 %v2631
        %2782 = vmatpush.msra.mxu0 %v2623
        %2783 = vmatpush.msra.mxu0 %v2615
        %2784 = vmatmul.f32.gmra.mxu0 %v2670
        %v2785 = vpop.f32.mrf.mxu0
        %v2786 = vadd.f32 0.0, %v2785
        %2787 = vmatmul.f32.gmra.mxu0 %v2673
        %v2788 = vpop.f32.mrf.mxu0
        %v2789 = vadd.f32 0.0, %v2788
        %2790 = vmatmul.f32.gmra.mxu0 %v2676
        %v2791 = vpop.f32.mrf.mxu0
        %v2792 = vadd.f32 0.0, %v2791
        %2793 = vmatmul.f32.gmra.mxu0 %v2679
        %v2794 = vpop.f32.mrf.mxu0
        %v2795 = vadd.f32 0.0, %v2794
        %2796 = vdwg.mxu0
        %v2797 = vadd.f32 %v2587, %v2699
        %v2798 = vadd.f32 %v2588, %v2728
        %v2799 = vadd.f32 %v2589, %v2757
        %v2800 = vadd.f32 %v2590, %v2786
        %v2801 = vadd.f32 %v2591, %v2702
        %v2802 = vadd.f32 %v2592, %v2731
        %v2803 = vadd.f32 %v2593, %v2760
        %v2804 = vadd.f32 %v2594, %v2789
        %v2805 = vadd.f32 %v2595, %v2705
        %v2806 = vadd.f32 %v2596, %v2734
        %v2807 = vadd.f32 %v2597, %v2763
        %v2808 = vadd.f32 %v2598, %v2792
        %v2809 = vadd.f32 %v2599, %v2708
        %v2810 = vadd.f32 %v2600, %v2737
        %v2811 = vadd.f32 %v2601, %v2766
        %v2812 = vadd.f32 %v2602, %v2795
        %2814 = vset.pattern.permute.xlu0 0
        %2815 = vperm.xlu0 %2814, %v996
        %v2816 = vpop.permute.xlu0 %2815
        %2819 = vset.pattern.permute.xlu0 0
        %2820 = vperm.xlu0 %2819, %v997
        %v2821 = vpop.permute.xlu0 %2820
        %2824 = vset.pattern.permute.xlu0 0
        %2825 = vperm.xlu0 %2824, %v998
        %v2826 = vpop.permute.xlu0 %2825
        %2829 = vset.pattern.permute.xlu0 0
        %2830 = vperm.xlu0 %2829, %v999
        %v2831 = vpop.permute.xlu0 %2830
        %v2833 = vadd.f32 %v2797, %v2816
        %v2834 = vadd.f32 %v2798, %v2816
        %v2835 = vadd.f32 %v2799, %v2816
        %v2836 = vadd.f32 %v2800, %v2816
        %v2837 = vadd.f32 %v2801, %v2821
        %v2838 = vadd.f32 %v2802, %v2821
        %v2839 = vadd.f32 %v2803, %v2821
        %v2840 = vadd.f32 %v2804, %v2821
        %v2841 = vadd.f32 %v2805, %v2826
        %v2842 = vadd.f32 %v2806, %v2826
        %v2843 = vadd.f32 %v2807, %v2826
        %v2844 = vadd.f32 %v2808, %v2826
        %v2845 = vadd.f32 %v2809, %v2831
        %v2846 = vadd.f32 %v2810, %v2831
        %v2847 = vadd.f32 %v2811, %v2831
        %v2848 = vadd.f32 %v2812, %v2831
        %2857 = vrot.lane.b32.xlu0 %v927, 127
        %v2858 = vpop.permute.xlu0 %2857
        %2859 = vrot.lane.b32.xlu0 %v985, 127
        %v2860 = vpop.permute.xlu0 %2859
        %2861 = vrot.lane.b32.xlu0 %v930, 127
        %v2862 = vpop.permute.xlu0 %2861
        %2863 = vrot.lane.b32.xlu0 %v988, 127
        %v2864 = vpop.permute.xlu0 %2863
        %2865 = vrot.lane.b32.xlu0 %v933, 127
        %v2866 = vpop.permute.xlu0 %2865
        %2867 = vrot.lane.b32.xlu0 %v991, 127
        %v2868 = vpop.permute.xlu0 %2867
        %2869 = vrot.lane.b32.xlu0 %v936, 127
        %v2870 = vpop.permute.xlu0 %2869
        %2871 = vrot.lane.b32.xlu0 %v994, 127
        %v2872 = vpop.permute.xlu0 %2871
        %v2873 = vsel %vm1057, %v2858, %v2860
        %v2874 = vsel %vm1057, %v2862, %v2864
        %v2875 = vsel %vm1057, %v2866, %v2868
        %v2876 = vsel %vm1057, %v2870, %v2872
        %2885 = vmatpush.msra.mxu0 0.0
        %2886 = vmatpush.msra.mxu0 0.0
        %2887 = vmatpush.msra.mxu0 0.0
        %2888 = vmatpush.msra.mxu0 0.0
        %2889 = vmatpush.msra.mxu0 0.0
        %2890 = vmatpush.msra.mxu0 0.0
        %2891 = vmatpush.msra.mxu0 0.0
        %2892 = vmatpush.msra.mxu0 0.0
        %2893 = vmatpush.msra.mxu0 0.0
        %2894 = vmatpush.msra.mxu0 0.0
        %2895 = vmatpush.msra.mxu0 0.0
        %2896 = vmatpush.msra.mxu0 0.0
        %2897 = vmatpush.msra.mxu0 %v2876
        %2898 = vmatpush.msra.mxu0 %v2875
        %2899 = vmatpush.msra.mxu0 %v2874
        %2900 = vmatpush.msra.mxu0 %v2873
        %2901 = vmatmul.f32.gmra.mxu0 %v1088
        %v2902 = vpop.f32.mrf.mxu0
        %v2903 = vadd.f32 0.0, %v2902
        %2904 = vmatmul.f32.gmra.mxu0 %v1091
        %v2905 = vpop.f32.mrf.mxu0
        %v2906 = vadd.f32 0.0, %v2905
        %2907 = vmatmul.f32.gmra.mxu0 %v1094
        %v2908 = vpop.f32.mrf.mxu0
        %v2909 = vadd.f32 0.0, %v2908
        %2910 = vmatmul.f32.gmra.mxu0 %v1097
        %v2911 = vpop.f32.mrf.mxu0
        %v2912 = vadd.f32 0.0, %v2911
        %2913 = vdwg.mxu0
        %2914 = vmatpush.msra.mxu0 0.0
        %2915 = vmatpush.msra.mxu0 0.0
        %2916 = vmatpush.msra.mxu0 0.0
        %2917 = vmatpush.msra.mxu0 0.0
        %2918 = vmatpush.msra.mxu0 0.0
        %2919 = vmatpush.msra.mxu0 0.0
        %2920 = vmatpush.msra.mxu0 0.0
        %2921 = vmatpush.msra.mxu0 0.0
        %2922 = vmatpush.msra.mxu0 0.0
        %2923 = vmatpush.msra.mxu0 0.0
        %2924 = vmatpush.msra.mxu0 0.0
        %2925 = vmatpush.msra.mxu0 0.0
        %2926 = vmatpush.msra.mxu0 %v2872
        %2927 = vmatpush.msra.mxu0 %v2868
        %2928 = vmatpush.msra.mxu0 %v2864
        %2929 = vmatpush.msra.mxu0 %v2860
        %2930 = vmatmul.f32.gmra.mxu0 %v1088
        %v2931 = vpop.f32.mrf.mxu0
        %v2932 = vadd.f32 0.0, %v2931
        %2933 = vmatmul.f32.gmra.mxu0 %v1091
        %v2934 = vpop.f32.mrf.mxu0
        %v2935 = vadd.f32 0.0, %v2934
        %2936 = vmatmul.f32.gmra.mxu0 %v1094
        %v2937 = vpop.f32.mrf.mxu0
        %v2938 = vadd.f32 0.0, %v2937
        %2939 = vmatmul.f32.gmra.mxu0 %v1097
        %v2940 = vpop.f32.mrf.mxu0
        %v2941 = vadd.f32 0.0, %v2940
        %2942 = vdwg.mxu0
        %2943 = vmatpush.msra.mxu0 0.0
        %2944 = vmatpush.msra.mxu0 0.0
        %2945 = vmatpush.msra.mxu0 0.0
        %2946 = vmatpush.msra.mxu0 0.0
        %2947 = vmatpush.msra.mxu0 0.0
        %2948 = vmatpush.msra.mxu0 0.0
        %2949 = vmatpush.msra.mxu0 0.0
        %2950 = vmatpush.msra.mxu0 0.0
        %2951 = vmatpush.msra.mxu0 0.0
        %2952 = vmatpush.msra.mxu0 0.0
        %2953 = vmatpush.msra.mxu0 0.0
        %2954 = vmatpush.msra.mxu0 0.0
        %2955 = vmatpush.msra.mxu0 %v936
        %2956 = vmatpush.msra.mxu0 %v933
        %2957 = vmatpush.msra.mxu0 %v930
        %2958 = vmatpush.msra.mxu0 %v927
        %2959 = vmatmul.f32.gmra.mxu0 %v1216
        %v2960 = vpop.f32.mrf.mxu0
        %v2961 = vadd.f32 %v2903, %v2960
        %2962 = vmatmul.f32.gmra.mxu0 %v1219
        %v2963 = vpop.f32.mrf.mxu0
        %v2964 = vadd.f32 %v2906, %v2963
        %2965 = vmatmul.f32.gmra.mxu0 %v1222
        %v2966 = vpop.f32.mrf.mxu0
        %v2967 = vadd.f32 %v2909, %v2966
        %2968 = vmatmul.f32.gmra.mxu0 %v1225
        %v2969 = vpop.f32.mrf.mxu0
        %v2970 = vadd.f32 %v2912, %v2969
        %2971 = vdwg.mxu0
        %2972 = vmatpush.msra.mxu0 0.0
        %2973 = vmatpush.msra.mxu0 0.0
        %2974 = vmatpush.msra.mxu0 0.0
        %2975 = vmatpush.msra.mxu0 0.0
        %2976 = vmatpush.msra.mxu0 0.0
        %2977 = vmatpush.msra.mxu0 0.0
        %2978 = vmatpush.msra.mxu0 0.0
        %2979 = vmatpush.msra.mxu0 0.0
        %2980 = vmatpush.msra.mxu0 0.0
        %2981 = vmatpush.msra.mxu0 0.0
        %2982 = vmatpush.msra.mxu0 0.0
        %2983 = vmatpush.msra.mxu0 0.0
        %2984 = vmatpush.msra.mxu0 %v994
        %2985 = vmatpush.msra.mxu0 %v991
        %2986 = vmatpush.msra.mxu0 %v988
        %2987 = vmatpush.msra.mxu0 %v985
        %2988 = vmatmul.f32.gmra.mxu0 %v1216
        %v2989 = vpop.f32.mrf.mxu0
        %v2990 = vadd.f32 %v2932, %v2989
        %2991 = vmatmul.f32.gmra.mxu0 %v1219
        %v2992 = vpop.f32.mrf.mxu0
        %v2993 = vadd.f32 %v2935, %v2992
        %2994 = vmatmul.f32.gmra.mxu0 %v1222
        %v2995 = vpop.f32.mrf.mxu0
        %v2996 = vadd.f32 %v2938, %v2995
        %2997 = vmatmul.f32.gmra.mxu0 %v1225
        %v2998 = vpop.f32.mrf.mxu0
        %v2999 = vadd.f32 %v2941, %v2998
        %3000 = vdwg.mxu0
        %3001 = vrot.lane.b32.xlu0 %v927, 126
        %v3002 = vpop.permute.xlu0 %3001
        %3003 = vrot.lane.b32.xlu0 %v985, 126
        %v3004 = vpop.permute.xlu0 %3003
        %3005 = vrot.lane.b32.xlu0 %v930, 126
        %v3006 = vpop.permute.xlu0 %3005
        %3007 = vrot.lane.b32.xlu0 %v988, 126
        %v3008 = vpop.permute.xlu0 %3007
        %3009 = vrot.lane.b32.xlu0 %v933, 126
        %v3010 = vpop.permute.xlu0 %3009
        %3011 = vrot.lane.b32.xlu0 %v991, 126
        %v3012 = vpop.permute.xlu0 %3011
        %3013 = vrot.lane.b32.xlu0 %v936, 126
        %v3014 = vpop.permute.xlu0 %3013
        %3015 = vrot.lane.b32.xlu0 %v994, 126
        %v3016 = vpop.permute.xlu0 %3015
        %v3017 = vsel %vm1380, %v3002, %v3004
        %v3018 = vsel %vm1380, %v3006, %v3008
        %v3019 = vsel %vm1380, %v3010, %v3012
        %v3020 = vsel %vm1380, %v3014, %v3016
        %3029 = vmatpush.msra.mxu0 0.0
        %3030 = vmatpush.msra.mxu0 0.0
        %3031 = vmatpush.msra.mxu0 0.0
        %3032 = vmatpush.msra.mxu0 0.0
        %3033 = vmatpush.msra.mxu0 0.0
        %3034 = vmatpush.msra.mxu0 0.0
        %3035 = vmatpush.msra.mxu0 0.0
        %3036 = vmatpush.msra.mxu0 0.0
        %3037 = vmatpush.msra.mxu0 0.0
        %3038 = vmatpush.msra.mxu0 0.0
        %3039 = vmatpush.msra.mxu0 0.0
        %3040 = vmatpush.msra.mxu0 0.0
        %3041 = vmatpush.msra.mxu0 %v3020
        %3042 = vmatpush.msra.mxu0 %v3019
        %3043 = vmatpush.msra.mxu0 %v3018
        %3044 = vmatpush.msra.mxu0 %v3017
        %3045 = vmatmul.f32.gmra.mxu0 %v1410
        %v3046 = vpop.f32.mrf.mxu0
        %v3047 = vadd.f32 0.0, %v3046
        %3048 = vmatmul.f32.gmra.mxu0 %v1413
        %v3049 = vpop.f32.mrf.mxu0
        %v3050 = vadd.f32 0.0, %v3049
        %3051 = vmatmul.f32.gmra.mxu0 %v1416
        %v3052 = vpop.f32.mrf.mxu0
        %v3053 = vadd.f32 0.0, %v3052
        %3054 = vmatmul.f32.gmra.mxu0 %v1419
        %v3055 = vpop.f32.mrf.mxu0
        %v3056 = vadd.f32 0.0, %v3055
        %3057 = vdwg.mxu0
        %3058 = vmatpush.msra.mxu0 0.0
        %3059 = vmatpush.msra.mxu0 0.0
        %3060 = vmatpush.msra.mxu0 0.0
        %3061 = vmatpush.msra.mxu0 0.0
        %3062 = vmatpush.msra.mxu0 0.0
        %3063 = vmatpush.msra.mxu0 0.0
        %3064 = vmatpush.msra.mxu0 0.0
        %3065 = vmatpush.msra.mxu0 0.0
        %3066 = vmatpush.msra.mxu0 0.0
        %3067 = vmatpush.msra.mxu0 0.0
        %3068 = vmatpush.msra.mxu0 0.0
        %3069 = vmatpush.msra.mxu0 0.0
        %3070 = vmatpush.msra.mxu0 %v3016
        %3071 = vmatpush.msra.mxu0 %v3012
        %3072 = vmatpush.msra.mxu0 %v3008
        %3073 = vmatpush.msra.mxu0 %v3004
        %3074 = vmatmul.f32.gmra.mxu0 %v1410
        %v3075 = vpop.f32.mrf.mxu0
        %v3076 = vadd.f32 0.0, %v3075
        %3077 = vmatmul.f32.gmra.mxu0 %v1413
        %v3078 = vpop.f32.mrf.mxu0
        %v3079 = vadd.f32 0.0, %v3078
        %3080 = vmatmul.f32.gmra.mxu0 %v1416
        %v3081 = vpop.f32.mrf.mxu0
        %v3082 = vadd.f32 0.0, %v3081
        %3083 = vmatmul.f32.gmra.mxu0 %v1419
        %v3084 = vpop.f32.mrf.mxu0
        %v3085 = vadd.f32 0.0, %v3084
        %3086 = vdwg.mxu0
        %v3087 = vadd.f32 %v2961, %v3047
        %v3088 = vadd.f32 %v2990, %v3076
        %v3089 = vadd.f32 %v2964, %v3050
        %v3090 = vadd.f32 %v2993, %v3079
        %v3091 = vadd.f32 %v2967, %v3053
        %v3092 = vadd.f32 %v2996, %v3082
        %v3093 = vadd.f32 %v2970, %v3056
        %v3094 = vadd.f32 %v2999, %v3085
        %3095 = vrot.lane.b32.xlu0 %v927, 119
        %v3096 = vpop.permute.xlu0 %3095
        %3097 = vrot.lane.b32.xlu0 %v985, 119
        %v3098 = vpop.permute.xlu0 %3097
        %3099 = vrot.lane.b32.xlu0 %v930, 119
        %v3100 = vpop.permute.xlu0 %3099
        %3101 = vrot.lane.b32.xlu0 %v988, 119
        %v3102 = vpop.permute.xlu0 %3101
        %3103 = vrot.lane.b32.xlu0 %v933, 119
        %v3104 = vpop.permute.xlu0 %3103
        %3105 = vrot.lane.b32.xlu0 %v991, 119
        %v3106 = vpop.permute.xlu0 %3105
        %3107 = vrot.lane.b32.xlu0 %v936, 119
        %v3108 = vpop.permute.xlu0 %3107
        %3109 = vrot.lane.b32.xlu0 %v994, 119
        %v3110 = vpop.permute.xlu0 %3109
        %vm3111 = vcmask 973824
        %v3112 = vsel %vm3111, %v3096, %v3098
        %v3113 = vsel %vm3111, %v3100, %v3102
        %v3114 = vsel %vm3111, %v3104, %v3106
        %v3115 = vsel %vm3111, %v3108, %v3110
        %3124 = vmatpush.msra.mxu0 0.0
        %3125 = vmatpush.msra.mxu0 0.0
        %3126 = vmatpush.msra.mxu0 0.0
        %3127 = vmatpush.msra.mxu0 0.0
        %3128 = vmatpush.msra.mxu0 0.0
        %3129 = vmatpush.msra.mxu0 0.0
        %3130 = vmatpush.msra.mxu0 0.0
        %3131 = vmatpush.msra.mxu0 0.0
        %3132 = vmatpush.msra.mxu0 0.0
        %3133 = vmatpush.msra.mxu0 0.0
        %3134 = vmatpush.msra.mxu0 0.0
        %3135 = vmatpush.msra.mxu0 0.0
        %3136 = vmatpush.msra.mxu0 %v3115
        %3137 = vmatpush.msra.mxu0 %v3114
        %3138 = vmatpush.msra.mxu0 %v3113
        %3139 = vmatpush.msra.mxu0 %v3112
        %3140 = vmatmul.f32.gmra.mxu0 %v1620
        %v3141 = vpop.f32.mrf.mxu0
        %v3142 = vadd.f32 0.0, %v3141
        %3143 = vmatmul.f32.gmra.mxu0 %v1623
        %v3144 = vpop.f32.mrf.mxu0
        %v3145 = vadd.f32 0.0, %v3144
        %3146 = vmatmul.f32.gmra.mxu0 %v1626
        %v3147 = vpop.f32.mrf.mxu0
        %v3148 = vadd.f32 0.0, %v3147
        %3149 = vmatmul.f32.gmra.mxu0 %v1629
        %v3150 = vpop.f32.mrf.mxu0
        %v3151 = vadd.f32 0.0, %v3150
        %3152 = vdwg.mxu0
        %3153 = vmatpush.msra.mxu0 0.0
        %3154 = vmatpush.msra.mxu0 0.0
        %3155 = vmatpush.msra.mxu0 0.0
        %3156 = vmatpush.msra.mxu0 0.0
        %3157 = vmatpush.msra.mxu0 0.0
        %3158 = vmatpush.msra.mxu0 0.0
        %3159 = vmatpush.msra.mxu0 0.0
        %3160 = vmatpush.msra.mxu0 0.0
        %3161 = vmatpush.msra.mxu0 0.0
        %3162 = vmatpush.msra.mxu0 0.0
        %3163 = vmatpush.msra.mxu0 0.0
        %3164 = vmatpush.msra.mxu0 0.0
        %3165 = vmatpush.msra.mxu0 %v3110
        %3166 = vmatpush.msra.mxu0 %v3106
        %3167 = vmatpush.msra.mxu0 %v3102
        %3168 = vmatpush.msra.mxu0 %v3098
        %3169 = vmatmul.f32.gmra.mxu0 %v1620
        %v3170 = vpop.f32.mrf.mxu0
        %v3171 = vadd.f32 0.0, %v3170
        %3172 = vmatmul.f32.gmra.mxu0 %v1623
        %v3173 = vpop.f32.mrf.mxu0
        %v3174 = vadd.f32 0.0, %v3173
        %3175 = vmatmul.f32.gmra.mxu0 %v1626
        %v3176 = vpop.f32.mrf.mxu0
        %v3177 = vadd.f32 0.0, %v3176
        %3178 = vmatmul.f32.gmra.mxu0 %v1629
        %v3179 = vpop.f32.mrf.mxu0
        %v3180 = vadd.f32 0.0, %v3179
        %3181 = vdwg.mxu0
        %v3182 = vadd.f32 %v3087, %v3142
        %v3183 = vadd.f32 %v3088, %v3171
        %v3184 = vadd.f32 %v3089, %v3145
        %v3185 = vadd.f32 %v3090, %v3174
        %v3186 = vadd.f32 %v3091, %v3148
        %v3187 = vadd.f32 %v3092, %v3177
        %v3188 = vadd.f32 %v3093, %v3151
        %v3189 = vadd.f32 %v3094, %v3180
        %3190 = vrot.lane.b32.xlu0 %v927, 118
        %v3191 = vpop.permute.xlu0 %3190
        %3192 = vrot.lane.b32.xlu0 %v985, 118
        %v3193 = vpop.permute.xlu0 %3192
        %3194 = vrot.lane.b32.xlu0 %v930, 118
        %v3195 = vpop.permute.xlu0 %3194
        %3196 = vrot.lane.b32.xlu0 %v988, 118
        %v3197 = vpop.permute.xlu0 %3196
        %3198 = vrot.lane.b32.xlu0 %v933, 118
        %v3199 = vpop.permute.xlu0 %3198
        %3200 = vrot.lane.b32.xlu0 %v991, 118
        %v3201 = vpop.permute.xlu0 %3200
        %3202 = vrot.lane.b32.xlu0 %v936, 118
        %v3203 = vpop.permute.xlu0 %3202
        %3204 = vrot.lane.b32.xlu0 %v994, 118
        %v3205 = vpop.permute.xlu0 %3204
        %vm3206 = vcmask 965632
        %v3207 = vsel %vm3206, %v3191, %v3193
        %v3208 = vsel %vm3206, %v3195, %v3197
        %v3209 = vsel %vm3206, %v3199, %v3201
        %v3210 = vsel %vm3206, %v3203, %v3205
        %3219 = vmatpush.msra.mxu0 0.0
        %3220 = vmatpush.msra.mxu0 0.0
        %3221 = vmatpush.msra.mxu0 0.0
        %3222 = vmatpush.msra.mxu0 0.0
        %3223 = vmatpush.msra.mxu0 0.0
        %3224 = vmatpush.msra.mxu0 0.0
        %3225 = vmatpush.msra.mxu0 0.0
        %3226 = vmatpush.msra.mxu0 0.0
        %3227 = vmatpush.msra.mxu0 0.0
        %3228 = vmatpush.msra.mxu0 0.0
        %3229 = vmatpush.msra.mxu0 0.0
        %3230 = vmatpush.msra.mxu0 0.0
        %3231 = vmatpush.msra.mxu0 %v3210
        %3232 = vmatpush.msra.mxu0 %v3209
        %3233 = vmatpush.msra.mxu0 %v3208
        %3234 = vmatpush.msra.mxu0 %v3207
        %3235 = vmatmul.f32.gmra.mxu0 %v1830
        %v3236 = vpop.f32.mrf.mxu0
        %v3237 = vadd.f32 0.0, %v3236
        %3238 = vmatmul.f32.gmra.mxu0 %v1833
        %v3239 = vpop.f32.mrf.mxu0
        %v3240 = vadd.f32 0.0, %v3239
        %3241 = vmatmul.f32.gmra.mxu0 %v1836
        %v3242 = vpop.f32.mrf.mxu0
        %v3243 = vadd.f32 0.0, %v3242
        %3244 = vmatmul.f32.gmra.mxu0 %v1839
        %v3245 = vpop.f32.mrf.mxu0
        %v3246 = vadd.f32 0.0, %v3245
        %3247 = vdwg.mxu0
        %3248 = vmatpush.msra.mxu0 0.0
        %3249 = vmatpush.msra.mxu0 0.0
        %3250 = vmatpush.msra.mxu0 0.0
        %3251 = vmatpush.msra.mxu0 0.0
        %3252 = vmatpush.msra.mxu0 0.0
        %3253 = vmatpush.msra.mxu0 0.0
        %3254 = vmatpush.msra.mxu0 0.0
        %3255 = vmatpush.msra.mxu0 0.0
        %3256 = vmatpush.msra.mxu0 0.0
        %3257 = vmatpush.msra.mxu0 0.0
        %3258 = vmatpush.msra.mxu0 0.0
        %3259 = vmatpush.msra.mxu0 0.0
        %3260 = vmatpush.msra.mxu0 %v3205
        %3261 = vmatpush.msra.mxu0 %v3201
        %3262 = vmatpush.msra.mxu0 %v3197
        %3263 = vmatpush.msra.mxu0 %v3193
        %3264 = vmatmul.f32.gmra.mxu0 %v1830
        %v3265 = vpop.f32.mrf.mxu0
        %v3266 = vadd.f32 0.0, %v3265
        %3267 = vmatmul.f32.gmra.mxu0 %v1833
        %v3268 = vpop.f32.mrf.mxu0
        %v3269 = vadd.f32 0.0, %v3268
        %3270 = vmatmul.f32.gmra.mxu0 %v1836
        %v3271 = vpop.f32.mrf.mxu0
        %v3272 = vadd.f32 0.0, %v3271
        %3273 = vmatmul.f32.gmra.mxu0 %v1839
        %v3274 = vpop.f32.mrf.mxu0
        %v3275 = vadd.f32 0.0, %v3274
        %3276 = vdwg.mxu0
        %v3277 = vadd.f32 %v3182, %v3237
        %v3278 = vadd.f32 %v3183, %v3266
        %v3279 = vadd.f32 %v3184, %v3240
        %v3280 = vadd.f32 %v3185, %v3269
        %v3281 = vadd.f32 %v3186, %v3243
        %v3282 = vadd.f32 %v3187, %v3272
        %v3283 = vadd.f32 %v3188, %v3246
        %v3284 = vadd.f32 %v3189, %v3275
        %3285 = vrot.lane.b32.xlu0 %v927, 117
        %v3286 = vpop.permute.xlu0 %3285
        %3287 = vrot.lane.b32.xlu0 %v985, 117
        %v3288 = vpop.permute.xlu0 %3287
        %3289 = vrot.lane.b32.xlu0 %v930, 117
        %v3290 = vpop.permute.xlu0 %3289
        %3291 = vrot.lane.b32.xlu0 %v988, 117
        %v3292 = vpop.permute.xlu0 %3291
        %3293 = vrot.lane.b32.xlu0 %v933, 117
        %v3294 = vpop.permute.xlu0 %3293
        %3295 = vrot.lane.b32.xlu0 %v991, 117
        %v3296 = vpop.permute.xlu0 %3295
        %3297 = vrot.lane.b32.xlu0 %v936, 117
        %v3298 = vpop.permute.xlu0 %3297
        %3299 = vrot.lane.b32.xlu0 %v994, 117
        %v3300 = vpop.permute.xlu0 %3299
        %vm3301 = vcmask 957440
        %v3302 = vsel %vm3301, %v3286, %v3288
        %v3303 = vsel %vm3301, %v3290, %v3292
        %v3304 = vsel %vm3301, %v3294, %v3296
        %v3305 = vsel %vm3301, %v3298, %v3300
        %3314 = vmatpush.msra.mxu0 0.0
        %3315 = vmatpush.msra.mxu0 0.0
        %3316 = vmatpush.msra.mxu0 0.0
        %3317 = vmatpush.msra.mxu0 0.0
        %3318 = vmatpush.msra.mxu0 0.0
        %3319 = vmatpush.msra.mxu0 0.0
        %3320 = vmatpush.msra.mxu0 0.0
        %3321 = vmatpush.msra.mxu0 0.0
        %3322 = vmatpush.msra.mxu0 0.0
        %3323 = vmatpush.msra.mxu0 0.0
        %3324 = vmatpush.msra.mxu0 0.0
        %3325 = vmatpush.msra.mxu0 0.0
        %3326 = vmatpush.msra.mxu0 %v3305
        %3327 = vmatpush.msra.mxu0 %v3304
        %3328 = vmatpush.msra.mxu0 %v3303
        %3329 = vmatpush.msra.mxu0 %v3302
        %3330 = vmatmul.f32.gmra.mxu0 %v2040
        %v3331 = vpop.f32.mrf.mxu0
        %v3332 = vadd.f32 0.0, %v3331
        %3333 = vmatmul.f32.gmra.mxu0 %v2043
        %v3334 = vpop.f32.mrf.mxu0
        %v3335 = vadd.f32 0.0, %v3334
        %3336 = vmatmul.f32.gmra.mxu0 %v2046
        %v3337 = vpop.f32.mrf.mxu0
        %v3338 = vadd.f32 0.0, %v3337
        %3339 = vmatmul.f32.gmra.mxu0 %v2049
        %v3340 = vpop.f32.mrf.mxu0
        %v3341 = vadd.f32 0.0, %v3340
        %3342 = vdwg.mxu0
        %3343 = vmatpush.msra.mxu0 0.0
        %3344 = vmatpush.msra.mxu0 0.0
        %3345 = vmatpush.msra.mxu0 0.0
        %3346 = vmatpush.msra.mxu0 0.0
        %3347 = vmatpush.msra.mxu0 0.0
        %3348 = vmatpush.msra.mxu0 0.0
        %3349 = vmatpush.msra.mxu0 0.0
        %3350 = vmatpush.msra.mxu0 0.0
        %3351 = vmatpush.msra.mxu0 0.0
        %3352 = vmatpush.msra.mxu0 0.0
        %3353 = vmatpush.msra.mxu0 0.0
        %3354 = vmatpush.msra.mxu0 0.0
        %3355 = vmatpush.msra.mxu0 %v3300
        %3356 = vmatpush.msra.mxu0 %v3296
        %3357 = vmatpush.msra.mxu0 %v3292
        %3358 = vmatpush.msra.mxu0 %v3288
        %3359 = vmatmul.f32.gmra.mxu0 %v2040
        %v3360 = vpop.f32.mrf.mxu0
        %v3361 = vadd.f32 0.0, %v3360
        %3362 = vmatmul.f32.gmra.mxu0 %v2043
        %v3363 = vpop.f32.mrf.mxu0
        %v3364 = vadd.f32 0.0, %v3363
        %3365 = vmatmul.f32.gmra.mxu0 %v2046
        %v3366 = vpop.f32.mrf.mxu0
        %v3367 = vadd.f32 0.0, %v3366
        %3368 = vmatmul.f32.gmra.mxu0 %v2049
        %v3369 = vpop.f32.mrf.mxu0
        %v3370 = vadd.f32 0.0, %v3369
        %3371 = vdwg.mxu0
        %v3372 = vadd.f32 %v3277, %v3332
        %v3373 = vadd.f32 %v3278, %v3361
        %v3374 = vadd.f32 %v3279, %v3335
        %v3375 = vadd.f32 %v3280, %v3364
        %v3376 = vadd.f32 %v3281, %v3338
        %v3377 = vadd.f32 %v3282, %v3367
        %v3378 = vadd.f32 %v3283, %v3341
        %v3379 = vadd.f32 %v3284, %v3370
        %3380 = vrot.lane.b32.xlu0 %v927, 110
        %v3381 = vpop.permute.xlu0 %3380
        %3382 = vrot.lane.b32.xlu0 %v985, 110
        %v3383 = vpop.permute.xlu0 %3382
        %3384 = vrot.lane.b32.xlu0 %v930, 110
        %v3385 = vpop.permute.xlu0 %3384
        %3386 = vrot.lane.b32.xlu0 %v988, 110
        %v3387 = vpop.permute.xlu0 %3386
        %3388 = vrot.lane.b32.xlu0 %v933, 110
        %v3389 = vpop.permute.xlu0 %3388
        %3390 = vrot.lane.b32.xlu0 %v991, 110
        %v3391 = vpop.permute.xlu0 %3390
        %3392 = vrot.lane.b32.xlu0 %v936, 110
        %v3393 = vpop.permute.xlu0 %3392
        %3394 = vrot.lane.b32.xlu0 %v994, 110
        %v3395 = vpop.permute.xlu0 %3394
        %vm3396 = vcmask 900096
        %v3397 = vsel %vm3396, %v3381, %v3383
        %v3398 = vsel %vm3396, %v3385, %v3387
        %v3399 = vsel %vm3396, %v3389, %v3391
        %v3400 = vsel %vm3396, %v3393, %v3395
        %3409 = vmatpush.msra.mxu0 0.0
        %3410 = vmatpush.msra.mxu0 0.0
        %3411 = vmatpush.msra.mxu0 0.0
        %3412 = vmatpush.msra.mxu0 0.0
        %3413 = vmatpush.msra.mxu0 0.0
        %3414 = vmatpush.msra.mxu0 0.0
        %3415 = vmatpush.msra.mxu0 0.0
        %3416 = vmatpush.msra.mxu0 0.0
        %3417 = vmatpush.msra.mxu0 0.0
        %3418 = vmatpush.msra.mxu0 0.0
        %3419 = vmatpush.msra.mxu0 0.0
        %3420 = vmatpush.msra.mxu0 0.0
        %3421 = vmatpush.msra.mxu0 %v3400
        %3422 = vmatpush.msra.mxu0 %v3399
        %3423 = vmatpush.msra.mxu0 %v3398
        %3424 = vmatpush.msra.mxu0 %v3397
        %3425 = vmatmul.f32.gmra.mxu0 %v2250
        %v3426 = vpop.f32.mrf.mxu0
        %v3427 = vadd.f32 0.0, %v3426
        %3428 = vmatmul.f32.gmra.mxu0 %v2253
        %v3429 = vpop.f32.mrf.mxu0
        %v3430 = vadd.f32 0.0, %v3429
        %3431 = vmatmul.f32.gmra.mxu0 %v2256
        %v3432 = vpop.f32.mrf.mxu0
        %v3433 = vadd.f32 0.0, %v3432
        %3434 = vmatmul.f32.gmra.mxu0 %v2259
        %v3435 = vpop.f32.mrf.mxu0
        %v3436 = vadd.f32 0.0, %v3435
        %3437 = vdwg.mxu0
        %3438 = vmatpush.msra.mxu0 0.0
        %3439 = vmatpush.msra.mxu0 0.0
        %3440 = vmatpush.msra.mxu0 0.0
        %3441 = vmatpush.msra.mxu0 0.0
        %3442 = vmatpush.msra.mxu0 0.0
        %3443 = vmatpush.msra.mxu0 0.0
        %3444 = vmatpush.msra.mxu0 0.0
        %3445 = vmatpush.msra.mxu0 0.0
        %3446 = vmatpush.msra.mxu0 0.0
        %3447 = vmatpush.msra.mxu0 0.0
        %3448 = vmatpush.msra.mxu0 0.0
        %3449 = vmatpush.msra.mxu0 0.0
        %3450 = vmatpush.msra.mxu0 %v3395
        %3451 = vmatpush.msra.mxu0 %v3391
        %3452 = vmatpush.msra.mxu0 %v3387
        %3453 = vmatpush.msra.mxu0 %v3383
        %3454 = vmatmul.f32.gmra.mxu0 %v2250
        %v3455 = vpop.f32.mrf.mxu0
        %v3456 = vadd.f32 0.0, %v3455
        %3457 = vmatmul.f32.gmra.mxu0 %v2253
        %v3458 = vpop.f32.mrf.mxu0
        %v3459 = vadd.f32 0.0, %v3458
        %3460 = vmatmul.f32.gmra.mxu0 %v2256
        %v3461 = vpop.f32.mrf.mxu0
        %v3462 = vadd.f32 0.0, %v3461
        %3463 = vmatmul.f32.gmra.mxu0 %v2259
        %v3464 = vpop.f32.mrf.mxu0
        %v3465 = vadd.f32 0.0, %v3464
        %3466 = vdwg.mxu0
        %v3467 = vadd.f32 %v3372, %v3427
        %v3468 = vadd.f32 %v3373, %v3456
        %v3469 = vadd.f32 %v3374, %v3430
        %v3470 = vadd.f32 %v3375, %v3459
        %v3471 = vadd.f32 %v3376, %v3433
        %v3472 = vadd.f32 %v3377, %v3462
        %v3473 = vadd.f32 %v3378, %v3436
        %v3474 = vadd.f32 %v3379, %v3465
        %3475 = vrot.lane.b32.xlu0 %v927, 109
        %v3476 = vpop.permute.xlu0 %3475
        %3477 = vrot.lane.b32.xlu0 %v985, 109
        %v3478 = vpop.permute.xlu0 %3477
        %3479 = vrot.lane.b32.xlu0 %v930, 109
        %v3480 = vpop.permute.xlu0 %3479
        %3481 = vrot.lane.b32.xlu0 %v988, 109
        %v3482 = vpop.permute.xlu0 %3481
        %3483 = vrot.lane.b32.xlu0 %v933, 109
        %v3484 = vpop.permute.xlu0 %3483
        %3485 = vrot.lane.b32.xlu0 %v991, 109
        %v3486 = vpop.permute.xlu0 %3485
        %3487 = vrot.lane.b32.xlu0 %v936, 109
        %v3488 = vpop.permute.xlu0 %3487
        %3489 = vrot.lane.b32.xlu0 %v994, 109
        %v3490 = vpop.permute.xlu0 %3489
        %vm3491 = vcmask 891904
        %v3492 = vsel %vm3491, %v3476, %v3478
        %v3493 = vsel %vm3491, %v3480, %v3482
        %v3494 = vsel %vm3491, %v3484, %v3486
        %v3495 = vsel %vm3491, %v3488, %v3490
        %3504 = vmatpush.msra.mxu0 0.0
        %3505 = vmatpush.msra.mxu0 0.0
        %3506 = vmatpush.msra.mxu0 0.0
        %3507 = vmatpush.msra.mxu0 0.0
        %3508 = vmatpush.msra.mxu0 0.0
        %3509 = vmatpush.msra.mxu0 0.0
        %3510 = vmatpush.msra.mxu0 0.0
        %3511 = vmatpush.msra.mxu0 0.0
        %3512 = vmatpush.msra.mxu0 0.0
        %3513 = vmatpush.msra.mxu0 0.0
        %3514 = vmatpush.msra.mxu0 0.0
        %3515 = vmatpush.msra.mxu0 0.0
        %3516 = vmatpush.msra.mxu0 %v3495
        %3517 = vmatpush.msra.mxu0 %v3494
        %3518 = vmatpush.msra.mxu0 %v3493
        %3519 = vmatpush.msra.mxu0 %v3492
        %3520 = vmatmul.f32.gmra.mxu0 %v2460
        %v3521 = vpop.f32.mrf.mxu0
        %v3522 = vadd.f32 0.0, %v3521
        %3523 = vmatmul.f32.gmra.mxu0 %v2463
        %v3524 = vpop.f32.mrf.mxu0
        %v3525 = vadd.f32 0.0, %v3524
        %3526 = vmatmul.f32.gmra.mxu0 %v2466
        %v3527 = vpop.f32.mrf.mxu0
        %v3528 = vadd.f32 0.0, %v3527
        %3529 = vmatmul.f32.gmra.mxu0 %v2469
        %v3530 = vpop.f32.mrf.mxu0
        %v3531 = vadd.f32 0.0, %v3530
        %3532 = vdwg.mxu0
        %3533 = vmatpush.msra.mxu0 0.0
        %3534 = vmatpush.msra.mxu0 0.0
        %3535 = vmatpush.msra.mxu0 0.0
        %3536 = vmatpush.msra.mxu0 0.0
        %3537 = vmatpush.msra.mxu0 0.0
        %3538 = vmatpush.msra.mxu0 0.0
        %3539 = vmatpush.msra.mxu0 0.0
        %3540 = vmatpush.msra.mxu0 0.0
        %3541 = vmatpush.msra.mxu0 0.0
        %3542 = vmatpush.msra.mxu0 0.0
        %3543 = vmatpush.msra.mxu0 0.0
        %3544 = vmatpush.msra.mxu0 0.0
        %3545 = vmatpush.msra.mxu0 %v3490
        %3546 = vmatpush.msra.mxu0 %v3486
        %3547 = vmatpush.msra.mxu0 %v3482
        %3548 = vmatpush.msra.mxu0 %v3478
        %3549 = vmatmul.f32.gmra.mxu0 %v2460
        %v3550 = vpop.f32.mrf.mxu0
        %v3551 = vadd.f32 0.0, %v3550
        %3552 = vmatmul.f32.gmra.mxu0 %v2463
        %v3553 = vpop.f32.mrf.mxu0
        %v3554 = vadd.f32 0.0, %v3553
        %3555 = vmatmul.f32.gmra.mxu0 %v2466
        %v3556 = vpop.f32.mrf.mxu0
        %v3557 = vadd.f32 0.0, %v3556
        %3558 = vmatmul.f32.gmra.mxu0 %v2469
        %v3559 = vpop.f32.mrf.mxu0
        %v3560 = vadd.f32 0.0, %v3559
        %3561 = vdwg.mxu0
        %v3562 = vadd.f32 %v3467, %v3522
        %v3563 = vadd.f32 %v3468, %v3551
        %v3564 = vadd.f32 %v3469, %v3525
        %v3565 = vadd.f32 %v3470, %v3554
        %v3566 = vadd.f32 %v3471, %v3528
        %v3567 = vadd.f32 %v3472, %v3557
        %v3568 = vadd.f32 %v3473, %v3531
        %v3569 = vadd.f32 %v3474, %v3560
        %3570 = vrot.lane.b32.xlu0 %v927, 108
        %v3571 = vpop.permute.xlu0 %3570
        %3572 = vrot.lane.b32.xlu0 %v985, 108
        %v3573 = vpop.permute.xlu0 %3572
        %3574 = vrot.lane.b32.xlu0 %v930, 108
        %v3575 = vpop.permute.xlu0 %3574
        %3576 = vrot.lane.b32.xlu0 %v988, 108
        %v3577 = vpop.permute.xlu0 %3576
        %3578 = vrot.lane.b32.xlu0 %v933, 108
        %v3579 = vpop.permute.xlu0 %3578
        %3580 = vrot.lane.b32.xlu0 %v991, 108
        %v3581 = vpop.permute.xlu0 %3580
        %3582 = vrot.lane.b32.xlu0 %v936, 108
        %v3583 = vpop.permute.xlu0 %3582
        %3584 = vrot.lane.b32.xlu0 %v994, 108
        %v3585 = vpop.permute.xlu0 %3584
        %vm3586 = vcmask 883712
        %v3587 = vsel %vm3586, %v3571, %v3573
        %v3588 = vsel %vm3586, %v3575, %v3577
        %v3589 = vsel %vm3586, %v3579, %v3581
        %v3590 = vsel %vm3586, %v3583, %v3585
        %3599 = vmatpush.msra.mxu0 0.0
        %3600 = vmatpush.msra.mxu0 0.0
        %3601 = vmatpush.msra.mxu0 0.0
        %3602 = vmatpush.msra.mxu0 0.0
        %3603 = vmatpush.msra.mxu0 0.0
        %3604 = vmatpush.msra.mxu0 0.0
        %3605 = vmatpush.msra.mxu0 0.0
        %3606 = vmatpush.msra.mxu0 0.0
        %3607 = vmatpush.msra.mxu0 0.0
        %3608 = vmatpush.msra.mxu0 0.0
        %3609 = vmatpush.msra.mxu0 0.0
        %3610 = vmatpush.msra.mxu0 0.0
        %3611 = vmatpush.msra.mxu0 %v3590
        %3612 = vmatpush.msra.mxu0 %v3589
        %3613 = vmatpush.msra.mxu0 %v3588
        %3614 = vmatpush.msra.mxu0 %v3587
        %3615 = vmatmul.f32.gmra.mxu0 %v2670
        %v3616 = vpop.f32.mrf.mxu0
        %v3617 = vadd.f32 0.0, %v3616
        %3618 = vmatmul.f32.gmra.mxu0 %v2673
        %v3619 = vpop.f32.mrf.mxu0
        %v3620 = vadd.f32 0.0, %v3619
        %3621 = vmatmul.f32.gmra.mxu0 %v2676
        %v3622 = vpop.f32.mrf.mxu0
        %v3623 = vadd.f32 0.0, %v3622
        %3624 = vmatmul.f32.gmra.mxu0 %v2679
        %v3625 = vpop.f32.mrf.mxu0
        %v3626 = vadd.f32 0.0, %v3625
        %3627 = vdwg.mxu0
        %3628 = vmatpush.msra.mxu0 0.0
        %3629 = vmatpush.msra.mxu0 0.0
        %3630 = vmatpush.msra.mxu0 0.0
        %3631 = vmatpush.msra.mxu0 0.0
        %3632 = vmatpush.msra.mxu0 0.0
        %3633 = vmatpush.msra.mxu0 0.0
        %3634 = vmatpush.msra.mxu0 0.0
        %3635 = vmatpush.msra.mxu0 0.0
        %3636 = vmatpush.msra.mxu0 0.0
        %3637 = vmatpush.msra.mxu0 0.0
        %3638 = vmatpush.msra.mxu0 0.0
        %3639 = vmatpush.msra.mxu0 0.0
        %3640 = vmatpush.msra.mxu0 %v3585
        %3641 = vmatpush.msra.mxu0 %v3581
        %3642 = vmatpush.msra.mxu0 %v3577
        %3643 = vmatpush.msra.mxu0 %v3573
        %3644 = vmatmul.f32.gmra.mxu0 %v2670
        %v3645 = vpop.f32.mrf.mxu0
        %v3646 = vadd.f32 0.0, %v3645
        %3647 = vmatmul.f32.gmra.mxu0 %v2673
        %v3648 = vpop.f32.mrf.mxu0
        %v3649 = vadd.f32 0.0, %v3648
        %3650 = vmatmul.f32.gmra.mxu0 %v2676
        %v3651 = vpop.f32.mrf.mxu0
        %v3652 = vadd.f32 0.0, %v3651
        %3653 = vmatmul.f32.gmra.mxu0 %v2679
        %v3654 = vpop.f32.mrf.mxu0
        %v3655 = vadd.f32 0.0, %v3654
        %3656 = vdwg.mxu0
        %v3657 = vadd.f32 %v3562, %v3617
        %v3658 = vadd.f32 %v3563, %v3646
        %v3659 = vadd.f32 %v3564, %v3620
        %v3660 = vadd.f32 %v3565, %v3649
        %v3661 = vadd.f32 %v3566, %v3623
        %v3662 = vadd.f32 %v3567, %v3652
        %v3663 = vadd.f32 %v3568, %v3626
        %v3664 = vadd.f32 %v3569, %v3655
        %v3665 = vadd.f32 %v3657, %v2816
        %v3666 = vadd.f32 %v3658, %v2816
        %v3667 = vadd.f32 %v3659, %v2821
        %v3668 = vadd.f32 %v3660, %v2821
        %v3669 = vadd.f32 %v3661, %v2826
        %v3670 = vadd.f32 %v3662, %v2826
        %v3671 = vadd.f32 %v3663, %v2831
        %v3672 = vadd.f32 %v3664, %v2831
        %v3673 = vld [vmem:[%s9] ss:$2 sm:$0x3]
        %s3674 = scalar_lea.vmem %s9, 1
        %v3675 = vld [vmem:[%s3674] ss:$2 sm:$0x3]
        %v3676 = vld [vmem:[%s10] ss:$2 sm:$0xf]
        %s3677 = scalar_lea.vmem %s10, 1
        %v3678 = vld [vmem:[%s3677] ss:$2 sm:$0xf]
        %v3679 = vld [vmem:[%s11] ss:$2 sm:$0x3]
        %s3680 = scalar_lea.vmem %s11, 1
        %v3681 = vld [vmem:[%s3680] ss:$2 sm:$0x3]
        %v3682 = vlaneseq
        %v3683 = vshrl.u32 %v3682, 7
        %v3684 = vadd.s32 %v3683, 8
        %v3685 = vadd.s32 %v3683, 16
        %v3686 = vadd.s32 %v3683, 24
        %v3687 = vadd.s32 %v3683, 32
        %v3688 = vadd.s32 %v3683, 40
        %v3689 = vadd.s32 %v3683, 48
        %v3690 = vadd.s32 %v3683, 56
        %v3691 = vadd.s32 %v3683, 64
        %v3692 = vadd.s32 %v3683, 72
        %v3693 = vadd.s32 %v3683, 80
        %v3694 = vadd.s32 %v3683, 88
        %v3695 = vadd.s32 %v3683, 96
        %v3696 = vadd.s32 %v3683, 104
        %v3697 = vadd.s32 %v3683, 112
        %v3698 = vadd.s32 %v3683, 120
        %v3699 = vadd.s32 %v3683, 128
        %v3700 = vadd.s32 %v3683, 136
        %v3701 = vadd.s32 %v3683, 144
        %v3702 = vadd.s32 %v3683, 152
        %v3703 = vadd.s32 %v3683, 160
        %v3704 = vadd.s32 %v3683, 168
        %v3705 = vadd.s32 %v3683, 176
        %v3706 = vadd.s32 %v3683, 184
        %v3707 = vadd.s32 %v3683, 192
        %v3708 = vadd.s32 %v3683, 200
        %v3709 = vadd.s32 %v3683, 208
        %v3710 = vadd.s32 %v3683, 216
        %v3711 = vadd.s32 %v3683, 224
        %v3712 = vadd.s32 %v3683, 232
        %v3713 = vadd.s32 %v3683, 240
        %v3714 = vadd.s32 %v3683, 248
        %v3715 = vadd.s32 %v3683, 256
        %v3716 = vadd.s32 %v3683, 264
        %v3717 = vadd.s32 %v3683, 272
        %v3718 = vadd.s32 %v3683, 280
        %v3719 = vadd.s32 %v3683, 288
        %v3720 = vadd.s32 %v3683, 296
        %v3721 = vadd.s32 %v3683, 304
        %v3722 = vadd.s32 %v3683, 312
        %v3723 = vadd.s32 %v3683, 320
        %v3724 = vadd.s32 %v3683, 328
        %v3725 = vadd.s32 %v3683, 336
        %v3726 = vadd.s32 %v3683, 344
        %v3727 = vadd.s32 %v3683, 352
        %v3728 = vadd.s32 %v3683, 360
        %v3729 = vadd.s32 %v3683, 368
        %v3730 = vadd.s32 %v3683, 376
        %v3731 = vadd.s32 %v3683, 384
        %v3732 = vadd.s32 %v3683, 392
        %v3733 = vadd.s32 %v3683, 400
        %v3734 = vadd.s32 %v3683, 408
        %v3735 = vadd.s32 %v3683, 416
        %v3736 = vadd.s32 %v3683, 424
        %v3737 = vadd.s32 %v3683, 432
        %v3738 = vadd.s32 %v3683, 440
        %v3739 = vadd.s32 %v3683, 448
        %v3740 = vperm.slane %v3673, 0
        %v3741 = vperm.slane %v3673, 1
        %vm3742 = vcmp.eq.s32.totalorder %v3683, %v3740
        %vm3743 = vcmp.eq.s32.totalorder %v3683, %v3741
        %vm3744 = vcmp.eq.s32.totalorder %v3684, %v3740
        %vm3745 = vcmp.eq.s32.totalorder %v3684, %v3741
        %vm3746 = vcmp.eq.s32.totalorder %v3685, %v3740
        %vm3747 = vcmp.eq.s32.totalorder %v3685, %v3741
        %vm3748 = vcmp.eq.s32.totalorder %v3686, %v3740
        %vm3749 = vcmp.eq.s32.totalorder %v3686, %v3741
        %vm3750 = vcmp.eq.s32.totalorder %v3687, %v3740
        %vm3751 = vcmp.eq.s32.totalorder %v3687, %v3741
        %vm3752 = vcmp.eq.s32.totalorder %v3688, %v3740
        %vm3753 = vcmp.eq.s32.totalorder %v3688, %v3741
        %vm3754 = vcmp.eq.s32.totalorder %v3689, %v3740
        %vm3755 = vcmp.eq.s32.totalorder %v3689, %v3741
        %vm3756 = vcmp.eq.s32.totalorder %v3690, %v3740
        %vm3757 = vcmp.eq.s32.totalorder %v3690, %v3741
        %vm3758 = vcmp.eq.s32.totalorder %v3691, %v3740
        %vm3759 = vcmp.eq.s32.totalorder %v3691, %v3741
        %vm3760 = vcmp.eq.s32.totalorder %v3692, %v3740
        %vm3761 = vcmp.eq.s32.totalorder %v3692, %v3741
        %vm3762 = vcmp.eq.s32.totalorder %v3693, %v3740
        %vm3763 = vcmp.eq.s32.totalorder %v3693, %v3741
        %vm3764 = vcmp.eq.s32.totalorder %v3694, %v3740
        %vm3765 = vcmp.eq.s32.totalorder %v3694, %v3741
        %vm3766 = vcmp.eq.s32.totalorder %v3695, %v3740
        %vm3767 = vcmp.eq.s32.totalorder %v3695, %v3741
        %vm3768 = vcmp.eq.s32.totalorder %v3696, %v3740
        %vm3769 = vcmp.eq.s32.totalorder %v3696, %v3741
        %vm3770 = vcmp.eq.s32.totalorder %v3697, %v3740
        %vm3771 = vcmp.eq.s32.totalorder %v3697, %v3741
        %vm3772 = vcmp.eq.s32.totalorder %v3698, %v3740
        %vm3773 = vcmp.eq.s32.totalorder %v3698, %v3741
        %vm3774 = vcmp.eq.s32.totalorder %v3699, %v3740
        %vm3775 = vcmp.eq.s32.totalorder %v3699, %v3741
        %vm3776 = vcmp.eq.s32.totalorder %v3700, %v3740
        %vm3777 = vcmp.eq.s32.totalorder %v3700, %v3741
        %vm3778 = vcmp.eq.s32.totalorder %v3701, %v3740
        %vm3779 = vcmp.eq.s32.totalorder %v3701, %v3741
        %vm3780 = vcmp.eq.s32.totalorder %v3702, %v3740
        %vm3781 = vcmp.eq.s32.totalorder %v3702, %v3741
        %vm3782 = vcmp.eq.s32.totalorder %v3703, %v3740
        %vm3783 = vcmp.eq.s32.totalorder %v3703, %v3741
        %vm3784 = vcmp.eq.s32.totalorder %v3704, %v3740
        %vm3785 = vcmp.eq.s32.totalorder %v3704, %v3741
        %vm3786 = vcmp.eq.s32.totalorder %v3705, %v3740
        %vm3787 = vcmp.eq.s32.totalorder %v3705, %v3741
        %vm3788 = vcmp.eq.s32.totalorder %v3706, %v3740
        %vm3789 = vcmp.eq.s32.totalorder %v3706, %v3741
        %vm3790 = vcmp.eq.s32.totalorder %v3707, %v3740
        %vm3791 = vcmp.eq.s32.totalorder %v3707, %v3741
        %vm3792 = vcmp.eq.s32.totalorder %v3708, %v3740
        %vm3793 = vcmp.eq.s32.totalorder %v3708, %v3741
        %vm3794 = vcmp.eq.s32.totalorder %v3709, %v3740
        %vm3795 = vcmp.eq.s32.totalorder %v3709, %v3741
        %vm3796 = vcmp.eq.s32.totalorder %v3710, %v3740
        %vm3797 = vcmp.eq.s32.totalorder %v3710, %v3741
        %vm3798 = vcmp.eq.s32.totalorder %v3711, %v3740
        %vm3799 = vcmp.eq.s32.totalorder %v3711, %v3741
        %vm3800 = vcmp.eq.s32.totalorder %v3712, %v3740
        %vm3801 = vcmp.eq.s32.totalorder %v3712, %v3741
        %vm3802 = vcmp.eq.s32.totalorder %v3713, %v3740
        %vm3803 = vcmp.eq.s32.totalorder %v3713, %v3741
        %vm3804 = vcmp.eq.s32.totalorder %v3714, %v3740
        %vm3805 = vcmp.eq.s32.totalorder %v3714, %v3741
        %vm3806 = vcmp.eq.s32.totalorder %v3715, %v3740
        %vm3807 = vcmp.eq.s32.totalorder %v3715, %v3741
        %vm3808 = vcmp.eq.s32.totalorder %v3716, %v3740
        %vm3809 = vcmp.eq.s32.totalorder %v3716, %v3741
        %vm3810 = vcmp.eq.s32.totalorder %v3717, %v3740
        %vm3811 = vcmp.eq.s32.totalorder %v3717, %v3741
        %vm3812 = vcmp.eq.s32.totalorder %v3718, %v3740
        %vm3813 = vcmp.eq.s32.totalorder %v3718, %v3741
        %vm3814 = vcmp.eq.s32.totalorder %v3719, %v3740
        %vm3815 = vcmp.eq.s32.totalorder %v3719, %v3741
        %vm3816 = vcmp.eq.s32.totalorder %v3720, %v3740
        %vm3817 = vcmp.eq.s32.totalorder %v3720, %v3741
        %vm3818 = vcmp.eq.s32.totalorder %v3721, %v3740
        %vm3819 = vcmp.eq.s32.totalorder %v3721, %v3741
        %vm3820 = vcmp.eq.s32.totalorder %v3722, %v3740
        %vm3821 = vcmp.eq.s32.totalorder %v3722, %v3741
        %vm3822 = vcmp.eq.s32.totalorder %v3723, %v3740
        %vm3823 = vcmp.eq.s32.totalorder %v3723, %v3741
        %vm3824 = vcmp.eq.s32.totalorder %v3724, %v3740
        %vm3825 = vcmp.eq.s32.totalorder %v3724, %v3741
        %vm3826 = vcmp.eq.s32.totalorder %v3725, %v3740
        %vm3827 = vcmp.eq.s32.totalorder %v3725, %v3741
        %vm3828 = vcmp.eq.s32.totalorder %v3726, %v3740
        %vm3829 = vcmp.eq.s32.totalorder %v3726, %v3741
        %vm3830 = vcmp.eq.s32.totalorder %v3727, %v3740
        %vm3831 = vcmp.eq.s32.totalorder %v3727, %v3741
        %vm3832 = vcmp.eq.s32.totalorder %v3728, %v3740
        %vm3833 = vcmp.eq.s32.totalorder %v3728, %v3741
        %vm3834 = vcmp.eq.s32.totalorder %v3729, %v3740
        %vm3835 = vcmp.eq.s32.totalorder %v3729, %v3741
        %vm3836 = vcmp.eq.s32.totalorder %v3730, %v3740
        %vm3837 = vcmp.eq.s32.totalorder %v3730, %v3741
        %vm3838 = vcmp.eq.s32.totalorder %v3731, %v3740
        %vm3839 = vcmp.eq.s32.totalorder %v3731, %v3741
        %vm3840 = vcmp.eq.s32.totalorder %v3732, %v3740
        %vm3841 = vcmp.eq.s32.totalorder %v3732, %v3741
        %vm3842 = vcmp.eq.s32.totalorder %v3733, %v3740
        %vm3843 = vcmp.eq.s32.totalorder %v3733, %v3741
        %vm3844 = vcmp.eq.s32.totalorder %v3734, %v3740
        %vm3845 = vcmp.eq.s32.totalorder %v3734, %v3741
        %vm3846 = vcmp.eq.s32.totalorder %v3735, %v3740
        %vm3847 = vcmp.eq.s32.totalorder %v3735, %v3741
        %vm3848 = vcmp.eq.s32.totalorder %v3736, %v3740
        %vm3849 = vcmp.eq.s32.totalorder %v3736, %v3741
        %vm3850 = vcmp.eq.s32.totalorder %v3737, %v3740
        %vm3851 = vcmp.eq.s32.totalorder %v3737, %v3741
        %vm3852 = vcmp.eq.s32.totalorder %v3738, %v3740
        %vm3853 = vcmp.eq.s32.totalorder %v3738, %v3741
        %vm3854 = vcmp.eq.s32.totalorder %v3739, %v3740
        %vm3855 = vcmp.eq.s32.totalorder %v3739, %v3741
        %v3856 = vsel %vm3742, 1, 0
        %v3857 = vsel %vm3743, 1, 0
        %v3858 = vsel %vm3744, 1, 0
        %v3859 = vsel %vm3745, 1, 0
        %v3860 = vsel %vm3746, 1, 0
        %v3861 = vsel %vm3747, 1, 0
        %v3862 = vsel %vm3748, 1, 0
        %v3863 = vsel %vm3749, 1, 0
        %v3864 = vsel %vm3750, 1, 0
        %v3865 = vsel %vm3751, 1, 0
        %v3866 = vsel %vm3752, 1, 0
        %v3867 = vsel %vm3753, 1, 0
        %v3868 = vsel %vm3754, 1, 0
        %v3869 = vsel %vm3755, 1, 0
        %v3870 = vsel %vm3756, 1, 0
        %v3871 = vsel %vm3757, 1, 0
        %v3872 = vsel %vm3758, 1, 0
        %v3873 = vsel %vm3759, 1, 0
        %v3874 = vsel %vm3760, 1, 0
        %v3875 = vsel %vm3761, 1, 0
        %v3876 = vsel %vm3762, 1, 0
        %v3877 = vsel %vm3763, 1, 0
        %v3878 = vsel %vm3764, 1, 0
        %v3879 = vsel %vm3765, 1, 0
        %v3880 = vsel %vm3766, 1, 0
        %v3881 = vsel %vm3767, 1, 0
        %v3882 = vsel %vm3768, 1, 0
        %v3883 = vsel %vm3769, 1, 0
        %v3884 = vsel %vm3770, 1, 0
        %v3885 = vsel %vm3771, 1, 0
        %v3886 = vsel %vm3772, 1, 0
        %v3887 = vsel %vm3773, 1, 0
        %v3888 = vsel %vm3774, 1, 0
        %v3889 = vsel %vm3775, 1, 0
        %v3890 = vsel %vm3776, 1, 0
        %v3891 = vsel %vm3777, 1, 0
        %v3892 = vsel %vm3778, 1, 0
        %v3893 = vsel %vm3779, 1, 0
        %v3894 = vsel %vm3780, 1, 0
        %v3895 = vsel %vm3781, 1, 0
        %v3896 = vsel %vm3782, 1, 0
        %v3897 = vsel %vm3783, 1, 0
        %v3898 = vsel %vm3784, 1, 0
        %v3899 = vsel %vm3785, 1, 0
        %v3900 = vsel %vm3786, 1, 0
        %v3901 = vsel %vm3787, 1, 0
        %v3902 = vsel %vm3788, 1, 0
        %v3903 = vsel %vm3789, 1, 0
        %v3904 = vsel %vm3790, 1, 0
        %v3905 = vsel %vm3791, 1, 0
        %v3906 = vsel %vm3792, 1, 0
        %v3907 = vsel %vm3793, 1, 0
        %v3908 = vsel %vm3794, 1, 0
        %v3909 = vsel %vm3795, 1, 0
        %v3910 = vsel %vm3796, 1, 0
        %v3911 = vsel %vm3797, 1, 0
        %v3912 = vsel %vm3798, 1, 0
        %v3913 = vsel %vm3799, 1, 0
        %v3914 = vsel %vm3800, 1, 0
        %v3915 = vsel %vm3801, 1, 0
        %v3916 = vsel %vm3802, 1, 0
        %v3917 = vsel %vm3803, 1, 0
        %v3918 = vsel %vm3804, 1, 0
        %v3919 = vsel %vm3805, 1, 0
        %v3920 = vsel %vm3806, 1, 0
        %v3921 = vsel %vm3807, 1, 0
        %v3922 = vsel %vm3808, 1, 0
        %v3923 = vsel %vm3809, 1, 0
        %v3924 = vsel %vm3810, 1, 0
        %v3925 = vsel %vm3811, 1, 0
        %v3926 = vsel %vm3812, 1, 0
        %v3927 = vsel %vm3813, 1, 0
        %v3928 = vsel %vm3814, 1, 0
        %v3929 = vsel %vm3815, 1, 0
        %v3930 = vsel %vm3816, 1, 0
        %v3931 = vsel %vm3817, 1, 0
        %v3932 = vsel %vm3818, 1, 0
        %v3933 = vsel %vm3819, 1, 0
        %v3934 = vsel %vm3820, 1, 0
        %v3935 = vsel %vm3821, 1, 0
        %v3936 = vsel %vm3822, 1, 0
        %v3937 = vsel %vm3823, 1, 0
        %v3938 = vsel %vm3824, 1, 0
        %v3939 = vsel %vm3825, 1, 0
        %v3940 = vsel %vm3826, 1, 0
        %v3941 = vsel %vm3827, 1, 0
        %v3942 = vsel %vm3828, 1, 0
        %v3943 = vsel %vm3829, 1, 0
        %v3944 = vsel %vm3830, 1, 0
        %v3945 = vsel %vm3831, 1, 0
        %v3946 = vsel %vm3832, 1, 0
        %v3947 = vsel %vm3833, 1, 0
        %v3948 = vsel %vm3834, 1, 0
        %v3949 = vsel %vm3835, 1, 0
        %v3950 = vsel %vm3836, 1, 0
        %v3951 = vsel %vm3837, 1, 0
        %v3952 = vsel %vm3838, 1, 0
        %v3953 = vsel %vm3839, 1, 0
        %v3954 = vsel %vm3840, 1, 0
        %v3955 = vsel %vm3841, 1, 0
        %v3956 = vsel %vm3842, 1, 0
        %v3957 = vsel %vm3843, 1, 0
        %v3958 = vsel %vm3844, 1, 0
        %v3959 = vsel %vm3845, 1, 0
        %v3960 = vsel %vm3846, 1, 0
        %v3961 = vsel %vm3847, 1, 0
        %v3962 = vsel %vm3848, 1, 0
        %v3963 = vsel %vm3849, 1, 0
        %v3964 = vsel %vm3850, 1, 0
        %v3965 = vsel %vm3851, 1, 0
        %v3966 = vsel %vm3852, 1, 0
        %v3967 = vsel %vm3853, 1, 0
        %v3968 = vsel %vm3854, 1, 0
        %v3969 = vsel %vm3855, 1, 0
        %v3970 = vcvt.s32.f32 %v3856
        %v3971 = vcvt.s32.f32 %v3857
        %v3972 = vcvt.s32.f32 %v3858
        %v3973 = vcvt.s32.f32 %v3859
        %v3974 = vcvt.s32.f32 %v3860
        %v3975 = vcvt.s32.f32 %v3861
        %v3976 = vcvt.s32.f32 %v3862
        %v3977 = vcvt.s32.f32 %v3863
        %v3978 = vcvt.s32.f32 %v3864
        %v3979 = vcvt.s32.f32 %v3865
        %v3980 = vcvt.s32.f32 %v3866
        %v3981 = vcvt.s32.f32 %v3867
        %v3982 = vcvt.s32.f32 %v3868
        %v3983 = vcvt.s32.f32 %v3869
        %v3984 = vcvt.s32.f32 %v3870
        %v3985 = vcvt.s32.f32 %v3871
        %v3986 = vcvt.s32.f32 %v3872
        %v3987 = vcvt.s32.f32 %v3873
        %v3988 = vcvt.s32.f32 %v3874
        %v3989 = vcvt.s32.f32 %v3875
        %v3990 = vcvt.s32.f32 %v3876
        %v3991 = vcvt.s32.f32 %v3877
        %v3992 = vcvt.s32.f32 %v3878
        %v3993 = vcvt.s32.f32 %v3879
        %v3994 = vcvt.s32.f32 %v3880
        %v3995 = vcvt.s32.f32 %v3881
        %v3996 = vcvt.s32.f32 %v3882
        %v3997 = vcvt.s32.f32 %v3883
        %v3998 = vcvt.s32.f32 %v3884
        %v3999 = vcvt.s32.f32 %v3885
        %v4000 = vcvt.s32.f32 %v3886
        %v4001 = vcvt.s32.f32 %v3887
        %v4002 = vcvt.s32.f32 %v3888
        %v4003 = vcvt.s32.f32 %v3889
        %v4004 = vcvt.s32.f32 %v3890
        %v4005 = vcvt.s32.f32 %v3891
        %v4006 = vcvt.s32.f32 %v3892
        %v4007 = vcvt.s32.f32 %v3893
        %v4008 = vcvt.s32.f32 %v3894
        %v4009 = vcvt.s32.f32 %v3895
        %v4010 = vcvt.s32.f32 %v3896
        %v4011 = vcvt.s32.f32 %v3897
        %v4012 = vcvt.s32.f32 %v3898
        %v4013 = vcvt.s32.f32 %v3899
        %v4014 = vcvt.s32.f32 %v3900
        %v4015 = vcvt.s32.f32 %v3901
        %v4016 = vcvt.s32.f32 %v3902
        %v4017 = vcvt.s32.f32 %v3903
        %v4018 = vcvt.s32.f32 %v3904
        %v4019 = vcvt.s32.f32 %v3905
        %v4020 = vcvt.s32.f32 %v3906
        %v4021 = vcvt.s32.f32 %v3907
        %v4022 = vcvt.s32.f32 %v3908
        %v4023 = vcvt.s32.f32 %v3909
        %v4024 = vcvt.s32.f32 %v3910
        %v4025 = vcvt.s32.f32 %v3911
        %v4026 = vcvt.s32.f32 %v3912
        %v4027 = vcvt.s32.f32 %v3913
        %v4028 = vcvt.s32.f32 %v3914
        %v4029 = vcvt.s32.f32 %v3915
        %v4030 = vcvt.s32.f32 %v3916
        %v4031 = vcvt.s32.f32 %v3917
        %v4032 = vcvt.s32.f32 %v3918
        %v4033 = vcvt.s32.f32 %v3919
        %v4034 = vcvt.s32.f32 %v3920
        %v4035 = vcvt.s32.f32 %v3921
        %v4036 = vcvt.s32.f32 %v3922
        %v4037 = vcvt.s32.f32 %v3923
        %v4038 = vcvt.s32.f32 %v3924
        %v4039 = vcvt.s32.f32 %v3925
        %v4040 = vcvt.s32.f32 %v3926
        %v4041 = vcvt.s32.f32 %v3927
        %v4042 = vcvt.s32.f32 %v3928
        %v4043 = vcvt.s32.f32 %v3929
        %v4044 = vcvt.s32.f32 %v3930
        %v4045 = vcvt.s32.f32 %v3931
        %v4046 = vcvt.s32.f32 %v3932
        %v4047 = vcvt.s32.f32 %v3933
        %v4048 = vcvt.s32.f32 %v3934
        %v4049 = vcvt.s32.f32 %v3935
        %v4050 = vcvt.s32.f32 %v3936
        %v4051 = vcvt.s32.f32 %v3937
        %v4052 = vcvt.s32.f32 %v3938
        %v4053 = vcvt.s32.f32 %v3939
        %v4054 = vcvt.s32.f32 %v3940
        %v4055 = vcvt.s32.f32 %v3941
        %v4056 = vcvt.s32.f32 %v3942
        %v4057 = vcvt.s32.f32 %v3943
        %v4058 = vcvt.s32.f32 %v3944
        %v4059 = vcvt.s32.f32 %v3945
        %v4060 = vcvt.s32.f32 %v3946
        %v4061 = vcvt.s32.f32 %v3947
        %v4062 = vcvt.s32.f32 %v3948
        %v4063 = vcvt.s32.f32 %v3949
        %v4064 = vcvt.s32.f32 %v3950
        %v4065 = vcvt.s32.f32 %v3951
        %v4066 = vcvt.s32.f32 %v3952
        %v4067 = vcvt.s32.f32 %v3953
        %v4068 = vcvt.s32.f32 %v3954
        %v4069 = vcvt.s32.f32 %v3955
        %v4070 = vcvt.s32.f32 %v3956
        %v4071 = vcvt.s32.f32 %v3957
        %v4072 = vcvt.s32.f32 %v3958
        %v4073 = vcvt.s32.f32 %v3959
        %v4074 = vcvt.s32.f32 %v3960
        %v4075 = vcvt.s32.f32 %v3961
        %v4076 = vcvt.s32.f32 %v3962
        %v4077 = vcvt.s32.f32 %v3963
        %v4078 = vcvt.s32.f32 %v3964
        %v4079 = vcvt.s32.f32 %v3965
        %v4080 = vcvt.s32.f32 %v3966
        %v4081 = vcvt.s32.f32 %v3967
        %v4082 = vcvt.s32.f32 %v3968
        %v4083 = vcvt.s32.f32 %v3969
        %vm4084 = vcmask 564224
        %v4086 = vsel %vm4084, %v2836, 0
        %v4089 = vsel %vm4084, %v2840, 0
        %v4092 = vsel %vm4084, %v2844, 0
        %v4095 = vsel %vm4084, %v2848, 0
        %vm4097 = vcmask 1044480
        %v4099 = vsel %vm4097, %v4082, 0
        %v4102 = vsel %vm4097, %v4083, 0
        %4104 = vmatpush.msra.mxu0 %v4000
        %4105 = vmatpush.msra.mxu0 %v3998
        %4106 = vmatpush.msra.mxu0 %v3996
        %4107 = vmatpush.msra.mxu0 %v3994
        %4108 = vmatpush.msra.mxu0 %v3992
        %4109 = vmatpush.msra.mxu0 %v3990
        %4110 = vmatpush.msra.mxu0 %v3988
        %4111 = vmatpush.msra.mxu0 %v3986
        %4112 = vmatpush.msra.mxu0 %v3984
        %4113 = vmatpush.msra.mxu0 %v3982
        %4114 = vmatpush.msra.mxu0 %v3980
        %4115 = vmatpush.msra.mxu0 %v3978
        %4116 = vmatpush.msra.mxu0 %v3976
        %4117 = vmatpush.msra.mxu0 %v3974
        %4118 = vmatpush.msra.mxu0 %v3972
        %4119 = vmatpush.msra.mxu0 %v3970
        %4120 = vmatmul.f32.gmra.mxu0 %v2833
        %v4121 = vpop.f32.mrf.mxu0
        %v4122 = vadd.f32 0.0, %v4121
        %4123 = vmatmul.f32.gmra.mxu0 %v2837
        %v4124 = vpop.f32.mrf.mxu0
        %v4125 = vadd.f32 0.0, %v4124
        %4126 = vmatmul.f32.gmra.mxu0 %v2841
        %v4127 = vpop.f32.mrf.mxu0
        %v4128 = vadd.f32 0.0, %v4127
        %4129 = vmatmul.f32.gmra.mxu0 %v2845
        %v4130 = vpop.f32.mrf.mxu0
        %v4131 = vadd.f32 0.0, %v4130
        %4132 = vdwg.mxu0
        %4133 = vmatpush.msra.mxu0 %v4032
        %4134 = vmatpush.msra.mxu0 %v4030
        %4135 = vmatpush.msra.mxu0 %v4028
        %4136 = vmatpush.msra.mxu0 %v4026
        %4137 = vmatpush.msra.mxu0 %v4024
        %4138 = vmatpush.msra.mxu0 %v4022
        %4139 = vmatpush.msra.mxu0 %v4020
        %4140 = vmatpush.msra.mxu0 %v4018
        %4141 = vmatpush.msra.mxu0 %v4016
        %4142 = vmatpush.msra.mxu0 %v4014
        %4143 = vmatpush.msra.mxu0 %v4012
        %4144 = vmatpush.msra.mxu0 %v4010
        %4145 = vmatpush.msra.mxu0 %v4008
        %4146 = vmatpush.msra.mxu0 %v4006
        %4147 = vmatpush.msra.mxu0 %v4004
        %4148 = vmatpush.msra.mxu0 %v4002
        %4149 = vmatmul.f32.gmra.mxu0 %v2834
        %v4150 = vpop.f32.mrf.mxu0
        %v4151 = vadd.f32 %v4122, %v4150
        %4152 = vmatmul.f32.gmra.mxu0 %v2838
        %v4153 = vpop.f32.mrf.mxu0
        %v4154 = vadd.f32 %v4125, %v4153
        %4155 = vmatmul.f32.gmra.mxu0 %v2842
        %v4156 = vpop.f32.mrf.mxu0
        %v4157 = vadd.f32 %v4128, %v4156
        %4158 = vmatmul.f32.gmra.mxu0 %v2846
        %v4159 = vpop.f32.mrf.mxu0
        %v4160 = vadd.f32 %v4131, %v4159
        %4161 = vdwg.mxu0
        %4162 = vmatpush.msra.mxu0 %v4064
        %4163 = vmatpush.msra.mxu0 %v4062
        %4164 = vmatpush.msra.mxu0 %v4060
        %4165 = vmatpush.msra.mxu0 %v4058
        %4166 = vmatpush.msra.mxu0 %v4056
        %4167 = vmatpush.msra.mxu0 %v4054
        %4168 = vmatpush.msra.mxu0 %v4052
        %4169 = vmatpush.msra.mxu0 %v4050
        %4170 = vmatpush.msra.mxu0 %v4048
        %4171 = vmatpush.msra.mxu0 %v4046
        %4172 = vmatpush.msra.mxu0 %v4044
        %4173 = vmatpush.msra.mxu0 %v4042
        %4174 = vmatpush.msra.mxu0 %v4040
        %4175 = vmatpush.msra.mxu0 %v4038
        %4176 = vmatpush.msra.mxu0 %v4036
        %4177 = vmatpush.msra.mxu0 %v4034
        %4178 = vmatmul.f32.gmra.mxu0 %v2835
        %v4179 = vpop.f32.mrf.mxu0
        %v4180 = vadd.f32 %v4151, %v4179
        %4181 = vmatmul.f32.gmra.mxu0 %v2839
        %v4182 = vpop.f32.mrf.mxu0
        %v4183 = vadd.f32 %v4154, %v4182
        %4184 = vmatmul.f32.gmra.mxu0 %v2843
        %v4185 = vpop.f32.mrf.mxu0
        %v4186 = vadd.f32 %v4157, %v4185
        %4187 = vmatmul.f32.gmra.mxu0 %v2847
        %v4188 = vpop.f32.mrf.mxu0
        %v4189 = vadd.f32 %v4160, %v4188
        %4190 = vdwg.mxu0
        %4191 = vmatpush.msra.mxu0 0.0
        %4192 = vmatpush.msra.mxu0 0.0
        %4193 = vmatpush.msra.mxu0 0.0
        %4194 = vmatpush.msra.mxu0 0.0
        %4195 = vmatpush.msra.mxu0 0.0
        %4196 = vmatpush.msra.mxu0 0.0
        %4197 = vmatpush.msra.mxu0 0.0
        %4198 = vmatpush.msra.mxu0 %v4099
        %4199 = vmatpush.msra.mxu0 %v4080
        %4200 = vmatpush.msra.mxu0 %v4078
        %4201 = vmatpush.msra.mxu0 %v4076
        %4202 = vmatpush.msra.mxu0 %v4074
        %4203 = vmatpush.msra.mxu0 %v4072
        %4204 = vmatpush.msra.mxu0 %v4070
        %4205 = vmatpush.msra.mxu0 %v4068
        %4206 = vmatpush.msra.mxu0 %v4066
        %4207 = vmatmul.f32.gmra.mxu0 %v4086
        %v4208 = vpop.f32.mrf.mxu0
        %v4209 = vadd.f32 %v4180, %v4208
        %4210 = vmatmul.f32.gmra.mxu0 %v4089
        %v4211 = vpop.f32.mrf.mxu0
        %v4212 = vadd.f32 %v4183, %v4211
        %4213 = vmatmul.f32.gmra.mxu0 %v4092
        %v4214 = vpop.f32.mrf.mxu0
        %v4215 = vadd.f32 %v4186, %v4214
        %4216 = vmatmul.f32.gmra.mxu0 %v4095
        %v4217 = vpop.f32.mrf.mxu0
        %v4218 = vadd.f32 %v4189, %v4217
        %4219 = vdwg.mxu0
        %4220 = vmatpush.msra.mxu0 %v4001
        %4221 = vmatpush.msra.mxu0 %v3999
        %4222 = vmatpush.msra.mxu0 %v3997
        %4223 = vmatpush.msra.mxu0 %v3995
        %4224 = vmatpush.msra.mxu0 %v3993
        %4225 = vmatpush.msra.mxu0 %v3991
        %4226 = vmatpush.msra.mxu0 %v3989
        %4227 = vmatpush.msra.mxu0 %v3987
        %4228 = vmatpush.msra.mxu0 %v3985
        %4229 = vmatpush.msra.mxu0 %v3983
        %4230 = vmatpush.msra.mxu0 %v3981
        %4231 = vmatpush.msra.mxu0 %v3979
        %4232 = vmatpush.msra.mxu0 %v3977
        %4233 = vmatpush.msra.mxu0 %v3975
        %4234 = vmatpush.msra.mxu0 %v3973
        %4235 = vmatpush.msra.mxu0 %v3971
        %4236 = vmatmul.f32.gmra.mxu0 %v2833
        %v4237 = vpop.f32.mrf.mxu0
        %v4238 = vadd.f32 0.0, %v4237
        %4239 = vmatmul.f32.gmra.mxu0 %v2837
        %v4240 = vpop.f32.mrf.mxu0
        %v4241 = vadd.f32 0.0, %v4240
        %4242 = vmatmul.f32.gmra.mxu0 %v2841
        %v4243 = vpop.f32.mrf.mxu0
        %v4244 = vadd.f32 0.0, %v4243
        %4245 = vmatmul.f32.gmra.mxu0 %v2845
        %v4246 = vpop.f32.mrf.mxu0
        %v4247 = vadd.f32 0.0, %v4246
        %4248 = vdwg.mxu0
        %4249 = vmatpush.msra.mxu0 %v4033
        %4250 = vmatpush.msra.mxu0 %v4031
        %4251 = vmatpush.msra.mxu0 %v4029
        %4252 = vmatpush.msra.mxu0 %v4027
        %4253 = vmatpush.msra.mxu0 %v4025
        %4254 = vmatpush.msra.mxu0 %v4023
        %4255 = vmatpush.msra.mxu0 %v4021
        %4256 = vmatpush.msra.mxu0 %v4019
        %4257 = vmatpush.msra.mxu0 %v4017
        %4258 = vmatpush.msra.mxu0 %v4015
        %4259 = vmatpush.msra.mxu0 %v4013
        %4260 = vmatpush.msra.mxu0 %v4011
        %4261 = vmatpush.msra.mxu0 %v4009
        %4262 = vmatpush.msra.mxu0 %v4007
        %4263 = vmatpush.msra.mxu0 %v4005
        %4264 = vmatpush.msra.mxu0 %v4003
        %4265 = vmatmul.f32.gmra.mxu0 %v2834
        %v4266 = vpop.f32.mrf.mxu0
        %v4267 = vadd.f32 %v4238, %v4266
        %4268 = vmatmul.f32.gmra.mxu0 %v2838
        %v4269 = vpop.f32.mrf.mxu0
        %v4270 = vadd.f32 %v4241, %v4269
        %4271 = vmatmul.f32.gmra.mxu0 %v2842
        %v4272 = vpop.f32.mrf.mxu0
        %v4273 = vadd.f32 %v4244, %v4272
        %4274 = vmatmul.f32.gmra.mxu0 %v2846
        %v4275 = vpop.f32.mrf.mxu0
        %v4276 = vadd.f32 %v4247, %v4275
        %4277 = vdwg.mxu0
        %4278 = vmatpush.msra.mxu0 %v4065
        %4279 = vmatpush.msra.mxu0 %v4063
        %4280 = vmatpush.msra.mxu0 %v4061
        %4281 = vmatpush.msra.mxu0 %v4059
        %4282 = vmatpush.msra.mxu0 %v4057
        %4283 = vmatpush.msra.mxu0 %v4055
        %4284 = vmatpush.msra.mxu0 %v4053
        %4285 = vmatpush.msra.mxu0 %v4051
        %4286 = vmatpush.msra.mxu0 %v4049
        %4287 = vmatpush.msra.mxu0 %v4047
        %4288 = vmatpush.msra.mxu0 %v4045
        %4289 = vmatpush.msra.mxu0 %v4043
        %4290 = vmatpush.msra.mxu0 %v4041
        %4291 = vmatpush.msra.mxu0 %v4039
        %4292 = vmatpush.msra.mxu0 %v4037
        %4293 = vmatpush.msra.mxu0 %v4035
        %4294 = vmatmul.f32.gmra.mxu0 %v2835
        %v4295 = vpop.f32.mrf.mxu0
        %v4296 = vadd.f32 %v4267, %v4295
        %4297 = vmatmul.f32.gmra.mxu0 %v2839
        %v4298 = vpop.f32.mrf.mxu0
        %v4299 = vadd.f32 %v4270, %v4298
        %4300 = vmatmul.f32.gmra.mxu0 %v2843
        %v4301 = vpop.f32.mrf.mxu0
        %v4302 = vadd.f32 %v4273, %v4301
        %4303 = vmatmul.f32.gmra.mxu0 %v2847
        %v4304 = vpop.f32.mrf.mxu0
        %v4305 = vadd.f32 %v4276, %v4304
        %4306 = vdwg.mxu0
        %4307 = vmatpush.msra.mxu0 0.0
        %4308 = vmatpush.msra.mxu0 0.0
        %4309 = vmatpush.msra.mxu0 0.0
        %4310 = vmatpush.msra.mxu0 0.0
        %4311 = vmatpush.msra.mxu0 0.0
        %4312 = vmatpush.msra.mxu0 0.0
        %4313 = vmatpush.msra.mxu0 0.0
        %4314 = vmatpush.msra.mxu0 %v4102
        %4315 = vmatpush.msra.mxu0 %v4081
        %4316 = vmatpush.msra.mxu0 %v4079
        %4317 = vmatpush.msra.mxu0 %v4077
        %4318 = vmatpush.msra.mxu0 %v4075
        %4319 = vmatpush.msra.mxu0 %v4073
        %4320 = vmatpush.msra.mxu0 %v4071
        %4321 = vmatpush.msra.mxu0 %v4069
        %4322 = vmatpush.msra.mxu0 %v4067
        %4323 = vmatmul.f32.gmra.mxu0 %v4086
        %v4324 = vpop.f32.mrf.mxu0
        %v4325 = vadd.f32 %v4296, %v4324
        %4326 = vmatmul.f32.gmra.mxu0 %v4089
        %v4327 = vpop.f32.mrf.mxu0
        %v4328 = vadd.f32 %v4299, %v4327
        %4329 = vmatmul.f32.gmra.mxu0 %v4092
        %v4330 = vpop.f32.mrf.mxu0
        %v4331 = vadd.f32 %v4302, %v4330
        %4332 = vmatmul.f32.gmra.mxu0 %v4095
        %v4333 = vpop.f32.mrf.mxu0
        %v4334 = vadd.f32 %v4305, %v4333
        %4335 = vdwg.mxu0
        %v4336 = vperm.slane %v3675, 0
        %v4337 = vperm.slane %v3675, 1
        %vm4338 = vcmp.eq.s32.totalorder %v3683, %v4336
        %vm4339 = vcmp.eq.s32.totalorder %v3683, %v4337
        %vm4340 = vcmp.eq.s32.totalorder %v3684, %v4336
        %vm4341 = vcmp.eq.s32.totalorder %v3684, %v4337
        %vm4342 = vcmp.eq.s32.totalorder %v3685, %v4336
        %vm4343 = vcmp.eq.s32.totalorder %v3685, %v4337
        %vm4344 = vcmp.eq.s32.totalorder %v3686, %v4336
        %vm4345 = vcmp.eq.s32.totalorder %v3686, %v4337
        %vm4346 = vcmp.eq.s32.totalorder %v3687, %v4336
        %vm4347 = vcmp.eq.s32.totalorder %v3687, %v4337
        %vm4348 = vcmp.eq.s32.totalorder %v3688, %v4336
        %vm4349 = vcmp.eq.s32.totalorder %v3688, %v4337
        %vm4350 = vcmp.eq.s32.totalorder %v3689, %v4336
        %vm4351 = vcmp.eq.s32.totalorder %v3689, %v4337
        %vm4352 = vcmp.eq.s32.totalorder %v3690, %v4336
        %vm4353 = vcmp.eq.s32.totalorder %v3690, %v4337
        %vm4354 = vcmp.eq.s32.totalorder %v3691, %v4336
        %vm4355 = vcmp.eq.s32.totalorder %v3691, %v4337
        %vm4356 = vcmp.eq.s32.totalorder %v3692, %v4336
        %vm4357 = vcmp.eq.s32.totalorder %v3692, %v4337
        %vm4358 = vcmp.eq.s32.totalorder %v3693, %v4336
        %vm4359 = vcmp.eq.s32.totalorder %v3693, %v4337
        %vm4360 = vcmp.eq.s32.totalorder %v3694, %v4336
        %vm4361 = vcmp.eq.s32.totalorder %v3694, %v4337
        %vm4362 = vcmp.eq.s32.totalorder %v3695, %v4336
        %vm4363 = vcmp.eq.s32.totalorder %v3695, %v4337
        %vm4364 = vcmp.eq.s32.totalorder %v3696, %v4336
        %vm4365 = vcmp.eq.s32.totalorder %v3696, %v4337
        %vm4366 = vcmp.eq.s32.totalorder %v3697, %v4336
        %vm4367 = vcmp.eq.s32.totalorder %v3697, %v4337
        %vm4368 = vcmp.eq.s32.totalorder %v3698, %v4336
        %vm4369 = vcmp.eq.s32.totalorder %v3698, %v4337
        %vm4370 = vcmp.eq.s32.totalorder %v3699, %v4336
        %vm4371 = vcmp.eq.s32.totalorder %v3699, %v4337
        %vm4372 = vcmp.eq.s32.totalorder %v3700, %v4336
        %vm4373 = vcmp.eq.s32.totalorder %v3700, %v4337
        %vm4374 = vcmp.eq.s32.totalorder %v3701, %v4336
        %vm4375 = vcmp.eq.s32.totalorder %v3701, %v4337
        %vm4376 = vcmp.eq.s32.totalorder %v3702, %v4336
        %vm4377 = vcmp.eq.s32.totalorder %v3702, %v4337
        %v4378 = vsel %vm4338, 1, 0
        %v4379 = vsel %vm4339, 1, 0
        %v4380 = vsel %vm4340, 1, 0
        %v4381 = vsel %vm4341, 1, 0
        %v4382 = vsel %vm4342, 1, 0
        %v4383 = vsel %vm4343, 1, 0
        %v4384 = vsel %vm4344, 1, 0
        %v4385 = vsel %vm4345, 1, 0
        %v4386 = vsel %vm4346, 1, 0
        %v4387 = vsel %vm4347, 1, 0
        %v4388 = vsel %vm4348, 1, 0
        %v4389 = vsel %vm4349, 1, 0
        %v4390 = vsel %vm4350, 1, 0
        %v4391 = vsel %vm4351, 1, 0
        %v4392 = vsel %vm4352, 1, 0
        %v4393 = vsel %vm4353, 1, 0
        %v4394 = vsel %vm4354, 1, 0
        %v4395 = vsel %vm4355, 1, 0
        %v4396 = vsel %vm4356, 1, 0
        %v4397 = vsel %vm4357, 1, 0
        %v4398 = vsel %vm4358, 1, 0
        %v4399 = vsel %vm4359, 1, 0
        %v4400 = vsel %vm4360, 1, 0
        %v4401 = vsel %vm4361, 1, 0
        %v4402 = vsel %vm4362, 1, 0
        %v4403 = vsel %vm4363, 1, 0
        %v4404 = vsel %vm4364, 1, 0
        %v4405 = vsel %vm4365, 1, 0
        %v4406 = vsel %vm4366, 1, 0
        %v4407 = vsel %vm4367, 1, 0
        %v4408 = vsel %vm4368, 1, 0
        %v4409 = vsel %vm4369, 1, 0
        %v4410 = vsel %vm4370, 1, 0
        %v4411 = vsel %vm4371, 1, 0
        %v4412 = vsel %vm4372, 1, 0
        %v4413 = vsel %vm4373, 1, 0
        %v4414 = vsel %vm4374, 1, 0
        %v4415 = vsel %vm4375, 1, 0
        %v4416 = vsel %vm4376, 1, 0
        %v4417 = vsel %vm4377, 1, 0
        %v4418 = vcvt.s32.f32 %v4378
        %v4419 = vcvt.s32.f32 %v4379
        %v4420 = vcvt.s32.f32 %v4380
        %v4421 = vcvt.s32.f32 %v4381
        %v4422 = vcvt.s32.f32 %v4382
        %v4423 = vcvt.s32.f32 %v4383
        %v4424 = vcvt.s32.f32 %v4384
        %v4425 = vcvt.s32.f32 %v4385
        %v4426 = vcvt.s32.f32 %v4386
        %v4427 = vcvt.s32.f32 %v4387
        %v4428 = vcvt.s32.f32 %v4388
        %v4429 = vcvt.s32.f32 %v4389
        %v4430 = vcvt.s32.f32 %v4390
        %v4431 = vcvt.s32.f32 %v4391
        %v4432 = vcvt.s32.f32 %v4392
        %v4433 = vcvt.s32.f32 %v4393
        %v4434 = vcvt.s32.f32 %v4394
        %v4435 = vcvt.s32.f32 %v4395
        %v4436 = vcvt.s32.f32 %v4396
        %v4437 = vcvt.s32.f32 %v4397
        %v4438 = vcvt.s32.f32 %v4398
        %v4439 = vcvt.s32.f32 %v4399
        %v4440 = vcvt.s32.f32 %v4400
        %v4441 = vcvt.s32.f32 %v4401
        %v4442 = vcvt.s32.f32 %v4402
        %v4443 = vcvt.s32.f32 %v4403
        %v4444 = vcvt.s32.f32 %v4404
        %v4445 = vcvt.s32.f32 %v4405
        %v4446 = vcvt.s32.f32 %v4406
        %v4447 = vcvt.s32.f32 %v4407
        %v4448 = vcvt.s32.f32 %v4408
        %v4449 = vcvt.s32.f32 %v4409
        %v4450 = vcvt.s32.f32 %v4410
        %v4451 = vcvt.s32.f32 %v4411
        %v4452 = vcvt.s32.f32 %v4412
        %v4453 = vcvt.s32.f32 %v4413
        %v4454 = vcvt.s32.f32 %v4414
        %v4455 = vcvt.s32.f32 %v4415
        %v4456 = vcvt.s32.f32 %v4416
        %v4457 = vcvt.s32.f32 %v4417
        %v4459 = vsel %vm1086, %v3666, 0
        %v4462 = vsel %vm1086, %v3668, 0
        %v4465 = vsel %vm1086, %v3670, 0
        %v4468 = vsel %vm1086, %v3672, 0
        %4470 = vmatpush.msra.mxu0 %v4448
        %4471 = vmatpush.msra.mxu0 %v4446
        %4472 = vmatpush.msra.mxu0 %v4444
        %4473 = vmatpush.msra.mxu0 %v4442
        %4474 = vmatpush.msra.mxu0 %v4440
        %4475 = vmatpush.msra.mxu0 %v4438
        %4476 = vmatpush.msra.mxu0 %v4436
        %4477 = vmatpush.msra.mxu0 %v4434
        %4478 = vmatpush.msra.mxu0 %v4432
        %4479 = vmatpush.msra.mxu0 %v4430
        %4480 = vmatpush.msra.mxu0 %v4428
        %4481 = vmatpush.msra.mxu0 %v4426
        %4482 = vmatpush.msra.mxu0 %v4424
        %4483 = vmatpush.msra.mxu0 %v4422
        %4484 = vmatpush.msra.mxu0 %v4420
        %4485 = vmatpush.msra.mxu0 %v4418
        %4486 = vmatmul.f32.gmra.mxu0 %v3665
        %v4487 = vpop.f32.mrf.mxu0
        %v4488 = vadd.f32 0.0, %v4487
        %4489 = vmatmul.f32.gmra.mxu0 %v3667
        %v4490 = vpop.f32.mrf.mxu0
        %v4491 = vadd.f32 0.0, %v4490
        %4492 = vmatmul.f32.gmra.mxu0 %v3669
        %v4493 = vpop.f32.mrf.mxu0
        %v4494 = vadd.f32 0.0, %v4493
        %4495 = vmatmul.f32.gmra.mxu0 %v3671
        %v4496 = vpop.f32.mrf.mxu0
        %v4497 = vadd.f32 0.0, %v4496
        %4498 = vdwg.mxu0
        %4499 = vmatpush.msra.mxu0 0.0
        %4500 = vmatpush.msra.mxu0 0.0
        %4501 = vmatpush.msra.mxu0 0.0
        %4502 = vmatpush.msra.mxu0 0.0
        %4503 = vmatpush.msra.mxu0 0.0
        %4504 = vmatpush.msra.mxu0 0.0
        %4505 = vmatpush.msra.mxu0 0.0
        %4506 = vmatpush.msra.mxu0 0.0
        %4507 = vmatpush.msra.mxu0 0.0
        %4508 = vmatpush.msra.mxu0 0.0
        %4509 = vmatpush.msra.mxu0 0.0
        %4510 = vmatpush.msra.mxu0 0.0
        %4511 = vmatpush.msra.mxu0 %v4456
        %4512 = vmatpush.msra.mxu0 %v4454
        %4513 = vmatpush.msra.mxu0 %v4452
        %4514 = vmatpush.msra.mxu0 %v4450
        %4515 = vmatmul.f32.gmra.mxu0 %v4459
        %v4516 = vpop.f32.mrf.mxu0
        %v4517 = vadd.f32 %v4488, %v4516
        %4518 = vmatmul.f32.gmra.mxu0 %v4462
        %v4519 = vpop.f32.mrf.mxu0
        %v4520 = vadd.f32 %v4491, %v4519
        %4521 = vmatmul.f32.gmra.mxu0 %v4465
        %v4522 = vpop.f32.mrf.mxu0
        %v4523 = vadd.f32 %v4494, %v4522
        %4524 = vmatmul.f32.gmra.mxu0 %v4468
        %v4525 = vpop.f32.mrf.mxu0
        %v4526 = vadd.f32 %v4497, %v4525
        %4527 = vdwg.mxu0
        %4528 = vmatpush.msra.mxu0 %v4449
        %4529 = vmatpush.msra.mxu0 %v4447
        %4530 = vmatpush.msra.mxu0 %v4445
        %4531 = vmatpush.msra.mxu0 %v4443
        %4532 = vmatpush.msra.mxu0 %v4441
        %4533 = vmatpush.msra.mxu0 %v4439
        %4534 = vmatpush.msra.mxu0 %v4437
        %4535 = vmatpush.msra.mxu0 %v4435
        %4536 = vmatpush.msra.mxu0 %v4433
        %4537 = vmatpush.msra.mxu0 %v4431
        %4538 = vmatpush.msra.mxu0 %v4429
        %4539 = vmatpush.msra.mxu0 %v4427
        %4540 = vmatpush.msra.mxu0 %v4425
        %4541 = vmatpush.msra.mxu0 %v4423
        %4542 = vmatpush.msra.mxu0 %v4421
        %4543 = vmatpush.msra.mxu0 %v4419
        %4544 = vmatmul.f32.gmra.mxu0 %v3665
        %v4545 = vpop.f32.mrf.mxu0
        %v4546 = vadd.f32 0.0, %v4545
        %4547 = vmatmul.f32.gmra.mxu0 %v3667
        %v4548 = vpop.f32.mrf.mxu0
        %v4549 = vadd.f32 0.0, %v4548
        %4550 = vmatmul.f32.gmra.mxu0 %v3669
        %v4551 = vpop.f32.mrf.mxu0
        %v4552 = vadd.f32 0.0, %v4551
        %4553 = vmatmul.f32.gmra.mxu0 %v3671
        %v4554 = vpop.f32.mrf.mxu0
        %v4555 = vadd.f32 0.0, %v4554
        %4556 = vdwg.mxu0
        %4557 = vmatpush.msra.mxu0 0.0
        %4558 = vmatpush.msra.mxu0 0.0
        %4559 = vmatpush.msra.mxu0 0.0
        %4560 = vmatpush.msra.mxu0 0.0
        %4561 = vmatpush.msra.mxu0 0.0
        %4562 = vmatpush.msra.mxu0 0.0
        %4563 = vmatpush.msra.mxu0 0.0
        %4564 = vmatpush.msra.mxu0 0.0
        %4565 = vmatpush.msra.mxu0 0.0
        %4566 = vmatpush.msra.mxu0 0.0
        %4567 = vmatpush.msra.mxu0 0.0
        %4568 = vmatpush.msra.mxu0 0.0
        %4569 = vmatpush.msra.mxu0 %v4457
        %4570 = vmatpush.msra.mxu0 %v4455
        %4571 = vmatpush.msra.mxu0 %v4453
        %4572 = vmatpush.msra.mxu0 %v4451
        %4573 = vmatmul.f32.gmra.mxu0 %v4459
        %v4574 = vpop.f32.mrf.mxu0
        %v4575 = vadd.f32 %v4546, %v4574
        %4576 = vmatmul.f32.gmra.mxu0 %v4462
        %v4577 = vpop.f32.mrf.mxu0
        %v4578 = vadd.f32 %v4549, %v4577
        %4579 = vmatmul.f32.gmra.mxu0 %v4465
        %v4580 = vpop.f32.mrf.mxu0
        %v4581 = vadd.f32 %v4552, %v4580
        %4582 = vmatmul.f32.gmra.mxu0 %v4468
        %v4583 = vpop.f32.mrf.mxu0
        %v4584 = vadd.f32 %v4555, %v4583
        %4585 = vdwg.mxu0
        %v4586 = vperm.slane %v3676, 0
        %v4587 = vperm.slane %v3676, 1
        %v4588 = vperm.slane %v3676, 2
        %v4589 = vperm.slane %v3676, 3
        %vm4590 = vcmp.eq.s32.totalorder %v3683, %v4586
        %vm4591 = vcmp.eq.s32.totalorder %v3683, %v4587
        %vm4592 = vcmp.eq.s32.totalorder %v3683, %v4588
        %vm4593 = vcmp.eq.s32.totalorder %v3683, %v4589
        %vm4594 = vcmp.eq.s32.totalorder %v3684, %v4586
        %vm4595 = vcmp.eq.s32.totalorder %v3684, %v4587
        %vm4596 = vcmp.eq.s32.totalorder %v3684, %v4588
        %vm4597 = vcmp.eq.s32.totalorder %v3684, %v4589
        %vm4598 = vcmp.eq.s32.totalorder %v3685, %v4586
        %vm4599 = vcmp.eq.s32.totalorder %v3685, %v4587
        %vm4600 = vcmp.eq.s32.totalorder %v3685, %v4588
        %vm4601 = vcmp.eq.s32.totalorder %v3685, %v4589
        %vm4602 = vcmp.eq.s32.totalorder %v3686, %v4586
        %vm4603 = vcmp.eq.s32.totalorder %v3686, %v4587
        %vm4604 = vcmp.eq.s32.totalorder %v3686, %v4588
        %vm4605 = vcmp.eq.s32.totalorder %v3686, %v4589
        %vm4606 = vcmp.eq.s32.totalorder %v3687, %v4586
        %vm4607 = vcmp.eq.s32.totalorder %v3687, %v4587
        %vm4608 = vcmp.eq.s32.totalorder %v3687, %v4588
        %vm4609 = vcmp.eq.s32.totalorder %v3687, %v4589
        %vm4610 = vcmp.eq.s32.totalorder %v3688, %v4586
        %vm4611 = vcmp.eq.s32.totalorder %v3688, %v4587
        %vm4612 = vcmp.eq.s32.totalorder %v3688, %v4588
        %vm4613 = vcmp.eq.s32.totalorder %v3688, %v4589
        %vm4614 = vcmp.eq.s32.totalorder %v3689, %v4586
        %vm4615 = vcmp.eq.s32.totalorder %v3689, %v4587
        %vm4616 = vcmp.eq.s32.totalorder %v3689, %v4588
        %vm4617 = vcmp.eq.s32.totalorder %v3689, %v4589
        %vm4618 = vcmp.eq.s32.totalorder %v3690, %v4586
        %vm4619 = vcmp.eq.s32.totalorder %v3690, %v4587
        %vm4620 = vcmp.eq.s32.totalorder %v3690, %v4588
        %vm4621 = vcmp.eq.s32.totalorder %v3690, %v4589
        %vm4622 = vcmp.eq.s32.totalorder %v3691, %v4586
        %vm4623 = vcmp.eq.s32.totalorder %v3691, %v4587
        %vm4624 = vcmp.eq.s32.totalorder %v3691, %v4588
        %vm4625 = vcmp.eq.s32.totalorder %v3691, %v4589
        %vm4626 = vcmp.eq.s32.totalorder %v3692, %v4586
        %vm4627 = vcmp.eq.s32.totalorder %v3692, %v4587
        %vm4628 = vcmp.eq.s32.totalorder %v3692, %v4588
        %vm4629 = vcmp.eq.s32.totalorder %v3692, %v4589
        %vm4630 = vcmp.eq.s32.totalorder %v3693, %v4586
        %vm4631 = vcmp.eq.s32.totalorder %v3693, %v4587
        %vm4632 = vcmp.eq.s32.totalorder %v3693, %v4588
        %vm4633 = vcmp.eq.s32.totalorder %v3693, %v4589
        %vm4634 = vcmp.eq.s32.totalorder %v3694, %v4586
        %vm4635 = vcmp.eq.s32.totalorder %v3694, %v4587
        %vm4636 = vcmp.eq.s32.totalorder %v3694, %v4588
        %vm4637 = vcmp.eq.s32.totalorder %v3694, %v4589
        %vm4638 = vcmp.eq.s32.totalorder %v3695, %v4586
        %vm4639 = vcmp.eq.s32.totalorder %v3695, %v4587
        %vm4640 = vcmp.eq.s32.totalorder %v3695, %v4588
        %vm4641 = vcmp.eq.s32.totalorder %v3695, %v4589
        %vm4642 = vcmp.eq.s32.totalorder %v3696, %v4586
        %vm4643 = vcmp.eq.s32.totalorder %v3696, %v4587
        %vm4644 = vcmp.eq.s32.totalorder %v3696, %v4588
        %vm4645 = vcmp.eq.s32.totalorder %v3696, %v4589
        %vm4646 = vcmp.eq.s32.totalorder %v3697, %v4586
        %vm4647 = vcmp.eq.s32.totalorder %v3697, %v4587
        %vm4648 = vcmp.eq.s32.totalorder %v3697, %v4588
        %vm4649 = vcmp.eq.s32.totalorder %v3697, %v4589
        %vm4650 = vcmp.eq.s32.totalorder %v3698, %v4586
        %vm4651 = vcmp.eq.s32.totalorder %v3698, %v4587
        %vm4652 = vcmp.eq.s32.totalorder %v3698, %v4588
        %vm4653 = vcmp.eq.s32.totalorder %v3698, %v4589
        %vm4654 = vcmp.eq.s32.totalorder %v3699, %v4586
        %vm4655 = vcmp.eq.s32.totalorder %v3699, %v4587
        %vm4656 = vcmp.eq.s32.totalorder %v3699, %v4588
        %vm4657 = vcmp.eq.s32.totalorder %v3699, %v4589
        %vm4658 = vcmp.eq.s32.totalorder %v3700, %v4586
        %vm4659 = vcmp.eq.s32.totalorder %v3700, %v4587
        %vm4660 = vcmp.eq.s32.totalorder %v3700, %v4588
        %vm4661 = vcmp.eq.s32.totalorder %v3700, %v4589
        %vm4662 = vcmp.eq.s32.totalorder %v3701, %v4586
        %vm4663 = vcmp.eq.s32.totalorder %v3701, %v4587
        %vm4664 = vcmp.eq.s32.totalorder %v3701, %v4588
        %vm4665 = vcmp.eq.s32.totalorder %v3701, %v4589
        %vm4666 = vcmp.eq.s32.totalorder %v3702, %v4586
        %vm4667 = vcmp.eq.s32.totalorder %v3702, %v4587
        %vm4668 = vcmp.eq.s32.totalorder %v3702, %v4588
        %vm4669 = vcmp.eq.s32.totalorder %v3702, %v4589
        %vm4670 = vcmp.eq.s32.totalorder %v3703, %v4586
        %vm4671 = vcmp.eq.s32.totalorder %v3703, %v4587
        %vm4672 = vcmp.eq.s32.totalorder %v3703, %v4588
        %vm4673 = vcmp.eq.s32.totalorder %v3703, %v4589
        %vm4674 = vcmp.eq.s32.totalorder %v3704, %v4586
        %vm4675 = vcmp.eq.s32.totalorder %v3704, %v4587
        %vm4676 = vcmp.eq.s32.totalorder %v3704, %v4588
        %vm4677 = vcmp.eq.s32.totalorder %v3704, %v4589
        %vm4678 = vcmp.eq.s32.totalorder %v3705, %v4586
        %vm4679 = vcmp.eq.s32.totalorder %v3705, %v4587
        %vm4680 = vcmp.eq.s32.totalorder %v3705, %v4588
        %vm4681 = vcmp.eq.s32.totalorder %v3705, %v4589
        %vm4682 = vcmp.eq.s32.totalorder %v3706, %v4586
        %vm4683 = vcmp.eq.s32.totalorder %v3706, %v4587
        %vm4684 = vcmp.eq.s32.totalorder %v3706, %v4588
        %vm4685 = vcmp.eq.s32.totalorder %v3706, %v4589
        %vm4686 = vcmp.eq.s32.totalorder %v3707, %v4586
        %vm4687 = vcmp.eq.s32.totalorder %v3707, %v4587
        %vm4688 = vcmp.eq.s32.totalorder %v3707, %v4588
        %vm4689 = vcmp.eq.s32.totalorder %v3707, %v4589
        %vm4690 = vcmp.eq.s32.totalorder %v3708, %v4586
        %vm4691 = vcmp.eq.s32.totalorder %v3708, %v4587
        %vm4692 = vcmp.eq.s32.totalorder %v3708, %v4588
        %vm4693 = vcmp.eq.s32.totalorder %v3708, %v4589
        %vm4694 = vcmp.eq.s32.totalorder %v3709, %v4586
        %vm4695 = vcmp.eq.s32.totalorder %v3709, %v4587
        %vm4696 = vcmp.eq.s32.totalorder %v3709, %v4588
        %vm4697 = vcmp.eq.s32.totalorder %v3709, %v4589
        %vm4698 = vcmp.eq.s32.totalorder %v3710, %v4586
        %vm4699 = vcmp.eq.s32.totalorder %v3710, %v4587
        %vm4700 = vcmp.eq.s32.totalorder %v3710, %v4588
        %vm4701 = vcmp.eq.s32.totalorder %v3710, %v4589
        %vm4702 = vcmp.eq.s32.totalorder %v3711, %v4586
        %vm4703 = vcmp.eq.s32.totalorder %v3711, %v4587
        %vm4704 = vcmp.eq.s32.totalorder %v3711, %v4588
        %vm4705 = vcmp.eq.s32.totalorder %v3711, %v4589
        %vm4706 = vcmp.eq.s32.totalorder %v3712, %v4586
        %vm4707 = vcmp.eq.s32.totalorder %v3712, %v4587
        %vm4708 = vcmp.eq.s32.totalorder %v3712, %v4588
        %vm4709 = vcmp.eq.s32.totalorder %v3712, %v4589
        %vm4710 = vcmp.eq.s32.totalorder %v3713, %v4586
        %vm4711 = vcmp.eq.s32.totalorder %v3713, %v4587
        %vm4712 = vcmp.eq.s32.totalorder %v3713, %v4588
        %vm4713 = vcmp.eq.s32.totalorder %v3713, %v4589
        %vm4714 = vcmp.eq.s32.totalorder %v3714, %v4586
        %vm4715 = vcmp.eq.s32.totalorder %v3714, %v4587
        %vm4716 = vcmp.eq.s32.totalorder %v3714, %v4588
        %vm4717 = vcmp.eq.s32.totalorder %v3714, %v4589
        %v4718 = vsel %vm4590, 1, 0
        %v4719 = vsel %vm4591, 1, 0
        %v4720 = vsel %vm4592, 1, 0
        %v4721 = vsel %vm4593, 1, 0
        %v4722 = vsel %vm4594, 1, 0
        %v4723 = vsel %vm4595, 1, 0
        %v4724 = vsel %vm4596, 1, 0
        %v4725 = vsel %vm4597, 1, 0
        %v4726 = vsel %vm4598, 1, 0
        %v4727 = vsel %vm4599, 1, 0
        %v4728 = vsel %vm4600, 1, 0
        %v4729 = vsel %vm4601, 1, 0
        %v4730 = vsel %vm4602, 1, 0
        %v4731 = vsel %vm4603, 1, 0
        %v4732 = vsel %vm4604, 1, 0
        %v4733 = vsel %vm4605, 1, 0
        %v4734 = vsel %vm4606, 1, 0
        %v4735 = vsel %vm4607, 1, 0
        %v4736 = vsel %vm4608, 1, 0
        %v4737 = vsel %vm4609, 1, 0
        %v4738 = vsel %vm4610, 1, 0
        %v4739 = vsel %vm4611, 1, 0
        %v4740 = vsel %vm4612, 1, 0
        %v4741 = vsel %vm4613, 1, 0
        %v4742 = vsel %vm4614, 1, 0
        %v4743 = vsel %vm4615, 1, 0
        %v4744 = vsel %vm4616, 1, 0
        %v4745 = vsel %vm4617, 1, 0
        %v4746 = vsel %vm4618, 1, 0
        %v4747 = vsel %vm4619, 1, 0
        %v4748 = vsel %vm4620, 1, 0
        %v4749 = vsel %vm4621, 1, 0
        %v4750 = vsel %vm4622, 1, 0
        %v4751 = vsel %vm4623, 1, 0
        %v4752 = vsel %vm4624, 1, 0
        %v4753 = vsel %vm4625, 1, 0
        %v4754 = vsel %vm4626, 1, 0
        %v4755 = vsel %vm4627, 1, 0
        %v4756 = vsel %vm4628, 1, 0
        %v4757 = vsel %vm4629, 1, 0
        %v4758 = vsel %vm4630, 1, 0
        %v4759 = vsel %vm4631, 1, 0
        %v4760 = vsel %vm4632, 1, 0
        %v4761 = vsel %vm4633, 1, 0
        %v4762 = vsel %vm4634, 1, 0
        %v4763 = vsel %vm4635, 1, 0
        %v4764 = vsel %vm4636, 1, 0
        %v4765 = vsel %vm4637, 1, 0
        %v4766 = vsel %vm4638, 1, 0
        %v4767 = vsel %vm4639, 1, 0
        %v4768 = vsel %vm4640, 1, 0
        %v4769 = vsel %vm4641, 1, 0
        %v4770 = vsel %vm4642, 1, 0
        %v4771 = vsel %vm4643, 1, 0
        %v4772 = vsel %vm4644, 1, 0
        %v4773 = vsel %vm4645, 1, 0
        %v4774 = vsel %vm4646, 1, 0
        %v4775 = vsel %vm4647, 1, 0
        %v4776 = vsel %vm4648, 1, 0
        %v4777 = vsel %vm4649, 1, 0
        %v4778 = vsel %vm4650, 1, 0
        %v4779 = vsel %vm4651, 1, 0
        %v4780 = vsel %vm4652, 1, 0
        %v4781 = vsel %vm4653, 1, 0
        %v4782 = vsel %vm4654, 1, 0
        %v4783 = vsel %vm4655, 1, 0
        %v4784 = vsel %vm4656, 1, 0
        %v4785 = vsel %vm4657, 1, 0
        %v4786 = vsel %vm4658, 1, 0
        %v4787 = vsel %vm4659, 1, 0
        %v4788 = vsel %vm4660, 1, 0
        %v4789 = vsel %vm4661, 1, 0
        %v4790 = vsel %vm4662, 1, 0
        %v4791 = vsel %vm4663, 1, 0
        %v4792 = vsel %vm4664, 1, 0
        %v4793 = vsel %vm4665, 1, 0
        %v4794 = vsel %vm4666, 1, 0
        %v4795 = vsel %vm4667, 1, 0
        %v4796 = vsel %vm4668, 1, 0
        %v4797 = vsel %vm4669, 1, 0
        %v4798 = vsel %vm4670, 1, 0
        %v4799 = vsel %vm4671, 1, 0
        %v4800 = vsel %vm4672, 1, 0
        %v4801 = vsel %vm4673, 1, 0
        %v4802 = vsel %vm4674, 1, 0
        %v4803 = vsel %vm4675, 1, 0
        %v4804 = vsel %vm4676, 1, 0
        %v4805 = vsel %vm4677, 1, 0
        %v4806 = vsel %vm4678, 1, 0
        %v4807 = vsel %vm4679, 1, 0
        %v4808 = vsel %vm4680, 1, 0
        %v4809 = vsel %vm4681, 1, 0
        %v4810 = vsel %vm4682, 1, 0
        %v4811 = vsel %vm4683, 1, 0
        %v4812 = vsel %vm4684, 1, 0
        %v4813 = vsel %vm4685, 1, 0
        %v4814 = vsel %vm4686, 1, 0
        %v4815 = vsel %vm4687, 1, 0
        %v4816 = vsel %vm4688, 1, 0
        %v4817 = vsel %vm4689, 1, 0
        %v4818 = vsel %vm4690, 1, 0
        %v4819 = vsel %vm4691, 1, 0
        %v4820 = vsel %vm4692, 1, 0
        %v4821 = vsel %vm4693, 1, 0
        %v4822 = vsel %vm4694, 1, 0
        %v4823 = vsel %vm4695, 1, 0
        %v4824 = vsel %vm4696, 1, 0
        %v4825 = vsel %vm4697, 1, 0
        %v4826 = vsel %vm4698, 1, 0
        %v4827 = vsel %vm4699, 1, 0
        %v4828 = vsel %vm4700, 1, 0
        %v4829 = vsel %vm4701, 1, 0
        %v4830 = vsel %vm4702, 1, 0
        %v4831 = vsel %vm4703, 1, 0
        %v4832 = vsel %vm4704, 1, 0
        %v4833 = vsel %vm4705, 1, 0
        %v4834 = vsel %vm4706, 1, 0
        %v4835 = vsel %vm4707, 1, 0
        %v4836 = vsel %vm4708, 1, 0
        %v4837 = vsel %vm4709, 1, 0
        %v4838 = vsel %vm4710, 1, 0
        %v4839 = vsel %vm4711, 1, 0
        %v4840 = vsel %vm4712, 1, 0
        %v4841 = vsel %vm4713, 1, 0
        %v4842 = vsel %vm4714, 1, 0
        %v4843 = vsel %vm4715, 1, 0
        %v4844 = vsel %vm4716, 1, 0
        %v4845 = vsel %vm4717, 1, 0
        %v4846 = vcvt.s32.f32 %v4718
        %v4847 = vcvt.s32.f32 %v4719
        %v4848 = vcvt.s32.f32 %v4720
        %v4849 = vcvt.s32.f32 %v4721
        %v4850 = vcvt.s32.f32 %v4722
        %v4851 = vcvt.s32.f32 %v4723
        %v4852 = vcvt.s32.f32 %v4724
        %v4853 = vcvt.s32.f32 %v4725
        %v4854 = vcvt.s32.f32 %v4726
        %v4855 = vcvt.s32.f32 %v4727
        %v4856 = vcvt.s32.f32 %v4728
        %v4857 = vcvt.s32.f32 %v4729
        %v4858 = vcvt.s32.f32 %v4730
        %v4859 = vcvt.s32.f32 %v4731
        %v4860 = vcvt.s32.f32 %v4732
        %v4861 = vcvt.s32.f32 %v4733
        %v4862 = vcvt.s32.f32 %v4734
        %v4863 = vcvt.s32.f32 %v4735
        %v4864 = vcvt.s32.f32 %v4736
        %v4865 = vcvt.s32.f32 %v4737
        %v4866 = vcvt.s32.f32 %v4738
        %v4867 = vcvt.s32.f32 %v4739
        %v4868 = vcvt.s32.f32 %v4740
        %v4869 = vcvt.s32.f32 %v4741
        %v4870 = vcvt.s32.f32 %v4742
        %v4871 = vcvt.s32.f32 %v4743
        %v4872 = vcvt.s32.f32 %v4744
        %v4873 = vcvt.s32.f32 %v4745
        %v4874 = vcvt.s32.f32 %v4746
        %v4875 = vcvt.s32.f32 %v4747
        %v4876 = vcvt.s32.f32 %v4748
        %v4877 = vcvt.s32.f32 %v4749
        %v4878 = vcvt.s32.f32 %v4750
        %v4879 = vcvt.s32.f32 %v4751
        %v4880 = vcvt.s32.f32 %v4752
        %v4881 = vcvt.s32.f32 %v4753
        %v4882 = vcvt.s32.f32 %v4754
        %v4883 = vcvt.s32.f32 %v4755
        %v4884 = vcvt.s32.f32 %v4756
        %v4885 = vcvt.s32.f32 %v4757
        %v4886 = vcvt.s32.f32 %v4758
        %v4887 = vcvt.s32.f32 %v4759
        %v4888 = vcvt.s32.f32 %v4760
        %v4889 = vcvt.s32.f32 %v4761
        %v4890 = vcvt.s32.f32 %v4762
        %v4891 = vcvt.s32.f32 %v4763
        %v4892 = vcvt.s32.f32 %v4764
        %v4893 = vcvt.s32.f32 %v4765
        %v4894 = vcvt.s32.f32 %v4766
        %v4895 = vcvt.s32.f32 %v4767
        %v4896 = vcvt.s32.f32 %v4768
        %v4897 = vcvt.s32.f32 %v4769
        %v4898 = vcvt.s32.f32 %v4770
        %v4899 = vcvt.s32.f32 %v4771
        %v4900 = vcvt.s32.f32 %v4772
        %v4901 = vcvt.s32.f32 %v4773
        %v4902 = vcvt.s32.f32 %v4774
        %v4903 = vcvt.s32.f32 %v4775
        %v4904 = vcvt.s32.f32 %v4776
        %v4905 = vcvt.s32.f32 %v4777
        %v4906 = vcvt.s32.f32 %v4778
        %v4907 = vcvt.s32.f32 %v4779
        %v4908 = vcvt.s32.f32 %v4780
        %v4909 = vcvt.s32.f32 %v4781
        %v4910 = vcvt.s32.f32 %v4782
        %v4911 = vcvt.s32.f32 %v4783
        %v4912 = vcvt.s32.f32 %v4784
        %v4913 = vcvt.s32.f32 %v4785
        %v4914 = vcvt.s32.f32 %v4786
        %v4915 = vcvt.s32.f32 %v4787
        %v4916 = vcvt.s32.f32 %v4788
        %v4917 = vcvt.s32.f32 %v4789
        %v4918 = vcvt.s32.f32 %v4790
        %v4919 = vcvt.s32.f32 %v4791
        %v4920 = vcvt.s32.f32 %v4792
        %v4921 = vcvt.s32.f32 %v4793
        %v4922 = vcvt.s32.f32 %v4794
        %v4923 = vcvt.s32.f32 %v4795
        %v4924 = vcvt.s32.f32 %v4796
        %v4925 = vcvt.s32.f32 %v4797
        %v4926 = vcvt.s32.f32 %v4798
        %v4927 = vcvt.s32.f32 %v4799
        %v4928 = vcvt.s32.f32 %v4800
        %v4929 = vcvt.s32.f32 %v4801
        %v4930 = vcvt.s32.f32 %v4802
        %v4931 = vcvt.s32.f32 %v4803
        %v4932 = vcvt.s32.f32 %v4804
        %v4933 = vcvt.s32.f32 %v4805
        %v4934 = vcvt.s32.f32 %v4806
        %v4935 = vcvt.s32.f32 %v4807
        %v4936 = vcvt.s32.f32 %v4808
        %v4937 = vcvt.s32.f32 %v4809
        %v4938 = vcvt.s32.f32 %v4810
        %v4939 = vcvt.s32.f32 %v4811
        %v4940 = vcvt.s32.f32 %v4812
        %v4941 = vcvt.s32.f32 %v4813
        %v4942 = vcvt.s32.f32 %v4814
        %v4943 = vcvt.s32.f32 %v4815
        %v4944 = vcvt.s32.f32 %v4816
        %v4945 = vcvt.s32.f32 %v4817
        %v4946 = vcvt.s32.f32 %v4818
        %v4947 = vcvt.s32.f32 %v4819
        %v4948 = vcvt.s32.f32 %v4820
        %v4949 = vcvt.s32.f32 %v4821
        %v4950 = vcvt.s32.f32 %v4822
        %v4951 = vcvt.s32.f32 %v4823
        %v4952 = vcvt.s32.f32 %v4824
        %v4953 = vcvt.s32.f32 %v4825
        %v4954 = vcvt.s32.f32 %v4826
        %v4955 = vcvt.s32.f32 %v4827
        %v4956 = vcvt.s32.f32 %v4828
        %v4957 = vcvt.s32.f32 %v4829
        %v4958 = vcvt.s32.f32 %v4830
        %v4959 = vcvt.s32.f32 %v4831
        %v4960 = vcvt.s32.f32 %v4832
        %v4961 = vcvt.s32.f32 %v4833
        %v4962 = vcvt.s32.f32 %v4834
        %v4963 = vcvt.s32.f32 %v4835
        %v4964 = vcvt.s32.f32 %v4836
        %v4965 = vcvt.s32.f32 %v4837
        %v4966 = vcvt.s32.f32 %v4838
        %v4967 = vcvt.s32.f32 %v4839
        %v4968 = vcvt.s32.f32 %v4840
        %v4969 = vcvt.s32.f32 %v4841
        %v4970 = vcvt.s32.f32 %v4842
        %v4971 = vcvt.s32.f32 %v4843
        %v4972 = vcvt.s32.f32 %v4844
        %v4973 = vcvt.s32.f32 %v4845
        %4974 = vmatpush.msra.mxu0 %v4906
        %4975 = vmatpush.msra.mxu0 %v4902
        %4976 = vmatpush.msra.mxu0 %v4898
        %4977 = vmatpush.msra.mxu0 %v4894
        %4978 = vmatpush.msra.mxu0 %v4890
        %4979 = vmatpush.msra.mxu0 %v4886
        %4980 = vmatpush.msra.mxu0 %v4882
        %4981 = vmatpush.msra.mxu0 %v4878
        %4982 = vmatpush.msra.mxu0 %v4874
        %4983 = vmatpush.msra.mxu0 %v4870
        %4984 = vmatpush.msra.mxu0 %v4866
        %4985 = vmatpush.msra.mxu0 %v4862
        %4986 = vmatpush.msra.mxu0 %v4858
        %4987 = vmatpush.msra.mxu0 %v4854
        %4988 = vmatpush.msra.mxu0 %v4850
        %4989 = vmatpush.msra.mxu0 %v4846
        %4990 = vmatmul.f32.gmra.mxu0 %v448
        %v4991 = vpop.f32.mrf.mxu0
        %v4992 = vadd.f32 0.0, %v4991
        %4993 = vmatmul.f32.gmra.mxu0 %v450
        %v4994 = vpop.f32.mrf.mxu0
        %v4995 = vadd.f32 0.0, %v4994
        %4996 = vmatmul.f32.gmra.mxu0 %v452
        %v4997 = vpop.f32.mrf.mxu0
        %v4998 = vadd.f32 0.0, %v4997
        %4999 = vmatmul.f32.gmra.mxu0 %v454
        %v5000 = vpop.f32.mrf.mxu0
        %v5001 = vadd.f32 0.0, %v5000
        %5002 = vdwg.mxu0
        %5003 = vmatpush.msra.mxu0 %v4970
        %5004 = vmatpush.msra.mxu0 %v4966
        %5005 = vmatpush.msra.mxu0 %v4962
        %5006 = vmatpush.msra.mxu0 %v4958
        %5007 = vmatpush.msra.mxu0 %v4954
        %5008 = vmatpush.msra.mxu0 %v4950
        %5009 = vmatpush.msra.mxu0 %v4946
        %5010 = vmatpush.msra.mxu0 %v4942
        %5011 = vmatpush.msra.mxu0 %v4938
        %5012 = vmatpush.msra.mxu0 %v4934
        %5013 = vmatpush.msra.mxu0 %v4930
        %5014 = vmatpush.msra.mxu0 %v4926
        %5015 = vmatpush.msra.mxu0 %v4922
        %5016 = vmatpush.msra.mxu0 %v4918
        %5017 = vmatpush.msra.mxu0 %v4914
        %5018 = vmatpush.msra.mxu0 %v4910
        %5019 = vmatmul.f32.gmra.mxu0 %v449
        %v5020 = vpop.f32.mrf.mxu0
        %v5021 = vadd.f32 %v4992, %v5020
        %5022 = vmatmul.f32.gmra.mxu0 %v451
        %v5023 = vpop.f32.mrf.mxu0
        %v5024 = vadd.f32 %v4995, %v5023
        %5025 = vmatmul.f32.gmra.mxu0 %v453
        %v5026 = vpop.f32.mrf.mxu0
        %v5027 = vadd.f32 %v4998, %v5026
        %5028 = vmatmul.f32.gmra.mxu0 %v455
        %v5029 = vpop.f32.mrf.mxu0
        %v5030 = vadd.f32 %v5001, %v5029
        %5031 = vdwg.mxu0
        %5032 = vmatpush.msra.mxu0 %v4907
        %5033 = vmatpush.msra.mxu0 %v4903
        %5034 = vmatpush.msra.mxu0 %v4899
        %5035 = vmatpush.msra.mxu0 %v4895
        %5036 = vmatpush.msra.mxu0 %v4891
        %5037 = vmatpush.msra.mxu0 %v4887
        %5038 = vmatpush.msra.mxu0 %v4883
        %5039 = vmatpush.msra.mxu0 %v4879
        %5040 = vmatpush.msra.mxu0 %v4875
        %5041 = vmatpush.msra.mxu0 %v4871
        %5042 = vmatpush.msra.mxu0 %v4867
        %5043 = vmatpush.msra.mxu0 %v4863
        %5044 = vmatpush.msra.mxu0 %v4859
        %5045 = vmatpush.msra.mxu0 %v4855
        %5046 = vmatpush.msra.mxu0 %v4851
        %5047 = vmatpush.msra.mxu0 %v4847
        %5048 = vmatmul.f32.gmra.mxu0 %v448
        %v5049 = vpop.f32.mrf.mxu0
        %v5050 = vadd.f32 0.0, %v5049
        %5051 = vmatmul.f32.gmra.mxu0 %v450
        %v5052 = vpop.f32.mrf.mxu0
        %v5053 = vadd.f32 0.0, %v5052
        %5054 = vmatmul.f32.gmra.mxu0 %v452
        %v5055 = vpop.f32.mrf.mxu0
        %v5056 = vadd.f32 0.0, %v5055
        %5057 = vmatmul.f32.gmra.mxu0 %v454
        %v5058 = vpop.f32.mrf.mxu0
        %v5059 = vadd.f32 0.0, %v5058
        %5060 = vdwg.mxu0
        %5061 = vmatpush.msra.mxu0 %v4971
        %5062 = vmatpush.msra.mxu0 %v4967
        %5063 = vmatpush.msra.mxu0 %v4963
        %5064 = vmatpush.msra.mxu0 %v4959
        %5065 = vmatpush.msra.mxu0 %v4955
        %5066 = vmatpush.msra.mxu0 %v4951
        %5067 = vmatpush.msra.mxu0 %v4947
        %5068 = vmatpush.msra.mxu0 %v4943
        %5069 = vmatpush.msra.mxu0 %v4939
        %5070 = vmatpush.msra.mxu0 %v4935
        %5071 = vmatpush.msra.mxu0 %v4931
        %5072 = vmatpush.msra.mxu0 %v4927
        %5073 = vmatpush.msra.mxu0 %v4923
        %5074 = vmatpush.msra.mxu0 %v4919
        %5075 = vmatpush.msra.mxu0 %v4915
        %5076 = vmatpush.msra.mxu0 %v4911
        %5077 = vmatmul.f32.gmra.mxu0 %v449
        %v5078 = vpop.f32.mrf.mxu0
        %v5079 = vadd.f32 %v5050, %v5078
        %5080 = vmatmul.f32.gmra.mxu0 %v451
        %v5081 = vpop.f32.mrf.mxu0
        %v5082 = vadd.f32 %v5053, %v5081
        %5083 = vmatmul.f32.gmra.mxu0 %v453
        %v5084 = vpop.f32.mrf.mxu0
        %v5085 = vadd.f32 %v5056, %v5084
        %5086 = vmatmul.f32.gmra.mxu0 %v455
        %v5087 = vpop.f32.mrf.mxu0
        %v5088 = vadd.f32 %v5059, %v5087
        %5089 = vdwg.mxu0
        %5090 = vmatpush.msra.mxu0 %v4908
        %5091 = vmatpush.msra.mxu0 %v4904
        %5092 = vmatpush.msra.mxu0 %v4900
        %5093 = vmatpush.msra.mxu0 %v4896
        %5094 = vmatpush.msra.mxu0 %v4892
        %5095 = vmatpush.msra.mxu0 %v4888
        %5096 = vmatpush.msra.mxu0 %v4884
        %5097 = vmatpush.msra.mxu0 %v4880
        %5098 = vmatpush.msra.mxu0 %v4876
        %5099 = vmatpush.msra.mxu0 %v4872
        %5100 = vmatpush.msra.mxu0 %v4868
        %5101 = vmatpush.msra.mxu0 %v4864
        %5102 = vmatpush.msra.mxu0 %v4860
        %5103 = vmatpush.msra.mxu0 %v4856
        %5104 = vmatpush.msra.mxu0 %v4852
        %5105 = vmatpush.msra.mxu0 %v4848
        %5106 = vmatmul.f32.gmra.mxu0 %v448
        %v5107 = vpop.f32.mrf.mxu0
        %v5108 = vadd.f32 0.0, %v5107
        %5109 = vmatmul.f32.gmra.mxu0 %v450
        %v5110 = vpop.f32.mrf.mxu0
        %v5111 = vadd.f32 0.0, %v5110
        %5112 = vmatmul.f32.gmra.mxu0 %v452
        %v5113 = vpop.f32.mrf.mxu0
        %v5114 = vadd.f32 0.0, %v5113
        %5115 = vmatmul.f32.gmra.mxu0 %v454
        %v5116 = vpop.f32.mrf.mxu0
        %v5117 = vadd.f32 0.0, %v5116
        %5118 = vdwg.mxu0
        %5119 = vmatpush.msra.mxu0 %v4972
        %5120 = vmatpush.msra.mxu0 %v4968
        %5121 = vmatpush.msra.mxu0 %v4964
        %5122 = vmatpush.msra.mxu0 %v4960
        %5123 = vmatpush.msra.mxu0 %v4956
        %5124 = vmatpush.msra.mxu0 %v4952
        %5125 = vmatpush.msra.mxu0 %v4948
        %5126 = vmatpush.msra.mxu0 %v4944
        %5127 = vmatpush.msra.mxu0 %v4940
        %5128 = vmatpush.msra.mxu0 %v4936
        %5129 = vmatpush.msra.mxu0 %v4932
        %5130 = vmatpush.msra.mxu0 %v4928
        %5131 = vmatpush.msra.mxu0 %v4924
        %5132 = vmatpush.msra.mxu0 %v4920
        %5133 = vmatpush.msra.mxu0 %v4916
        %5134 = vmatpush.msra.mxu0 %v4912
        %5135 = vmatmul.f32.gmra.mxu0 %v449
        %v5136 = vpop.f32.mrf.mxu0
        %v5137 = vadd.f32 %v5108, %v5136
        %5138 = vmatmul.f32.gmra.mxu0 %v451
        %v5139 = vpop.f32.mrf.mxu0
        %v5140 = vadd.f32 %v5111, %v5139
        %5141 = vmatmul.f32.gmra.mxu0 %v453
        %v5142 = vpop.f32.mrf.mxu0
        %v5143 = vadd.f32 %v5114, %v5142
        %5144 = vmatmul.f32.gmra.mxu0 %v455
        %v5145 = vpop.f32.mrf.mxu0
        %v5146 = vadd.f32 %v5117, %v5145
        %5147 = vdwg.mxu0
        %5148 = vmatpush.msra.mxu0 %v4909
        %5149 = vmatpush.msra.mxu0 %v4905
        %5150 = vmatpush.msra.mxu0 %v4901
        %5151 = vmatpush.msra.mxu0 %v4897
        %5152 = vmatpush.msra.mxu0 %v4893
        %5153 = vmatpush.msra.mxu0 %v4889
        %5154 = vmatpush.msra.mxu0 %v4885
        %5155 = vmatpush.msra.mxu0 %v4881
        %5156 = vmatpush.msra.mxu0 %v4877
        %5157 = vmatpush.msra.mxu0 %v4873
        %5158 = vmatpush.msra.mxu0 %v4869
        %5159 = vmatpush.msra.mxu0 %v4865
        %5160 = vmatpush.msra.mxu0 %v4861
        %5161 = vmatpush.msra.mxu0 %v4857
        %5162 = vmatpush.msra.mxu0 %v4853
        %5163 = vmatpush.msra.mxu0 %v4849
        %5164 = vmatmul.f32.gmra.mxu0 %v448
        %v5165 = vpop.f32.mrf.mxu0
        %v5166 = vadd.f32 0.0, %v5165
        %5167 = vmatmul.f32.gmra.mxu0 %v450
        %v5168 = vpop.f32.mrf.mxu0
        %v5169 = vadd.f32 0.0, %v5168
        %5170 = vmatmul.f32.gmra.mxu0 %v452
        %v5171 = vpop.f32.mrf.mxu0
        %v5172 = vadd.f32 0.0, %v5171
        %5173 = vmatmul.f32.gmra.mxu0 %v454
        %v5174 = vpop.f32.mrf.mxu0
        %v5175 = vadd.f32 0.0, %v5174
        %5176 = vdwg.mxu0
        %5177 = vmatpush.msra.mxu0 %v4973
        %5178 = vmatpush.msra.mxu0 %v4969
        %5179 = vmatpush.msra.mxu0 %v4965
        %5180 = vmatpush.msra.mxu0 %v4961
        %5181 = vmatpush.msra.mxu0 %v4957
        %5182 = vmatpush.msra.mxu0 %v4953
        %5183 = vmatpush.msra.mxu0 %v4949
        %5184 = vmatpush.msra.mxu0 %v4945
        %5185 = vmatpush.msra.mxu0 %v4941
        %5186 = vmatpush.msra.mxu0 %v4937
        %5187 = vmatpush.msra.mxu0 %v4933
        %5188 = vmatpush.msra.mxu0 %v4929
        %5189 = vmatpush.msra.mxu0 %v4925
        %5190 = vmatpush.msra.mxu0 %v4921
        %5191 = vmatpush.msra.mxu0 %v4917
        %5192 = vmatpush.msra.mxu0 %v4913
        %5193 = vmatmul.f32.gmra.mxu0 %v449
        %v5194 = vpop.f32.mrf.mxu0
        %v5195 = vadd.f32 %v5166, %v5194
        %5196 = vmatmul.f32.gmra.mxu0 %v451
        %v5197 = vpop.f32.mrf.mxu0
        %v5198 = vadd.f32 %v5169, %v5197
        %5199 = vmatmul.f32.gmra.mxu0 %v453
        %v5200 = vpop.f32.mrf.mxu0
        %v5201 = vadd.f32 %v5172, %v5200
        %5202 = vmatmul.f32.gmra.mxu0 %v455
        %v5203 = vpop.f32.mrf.mxu0
        %v5204 = vadd.f32 %v5175, %v5203
        %5205 = vdwg.mxu0
        %v5206 = vperm.slane %v3678, 0
        %v5207 = vperm.slane %v3678, 1
        %v5208 = vperm.slane %v3678, 2
        %v5209 = vperm.slane %v3678, 3
        %vm5210 = vcmp.eq.s32.totalorder %v3683, %v5206
        %vm5211 = vcmp.eq.s32.totalorder %v3683, %v5207
        %vm5212 = vcmp.eq.s32.totalorder %v3683, %v5208
        %vm5213 = vcmp.eq.s32.totalorder %v3683, %v5209
        %vm5214 = vcmp.eq.s32.totalorder %v3684, %v5206
        %vm5215 = vcmp.eq.s32.totalorder %v3684, %v5207
        %vm5216 = vcmp.eq.s32.totalorder %v3684, %v5208
        %vm5217 = vcmp.eq.s32.totalorder %v3684, %v5209
        %vm5218 = vcmp.eq.s32.totalorder %v3685, %v5206
        %vm5219 = vcmp.eq.s32.totalorder %v3685, %v5207
        %vm5220 = vcmp.eq.s32.totalorder %v3685, %v5208
        %vm5221 = vcmp.eq.s32.totalorder %v3685, %v5209
        %vm5222 = vcmp.eq.s32.totalorder %v3686, %v5206
        %vm5223 = vcmp.eq.s32.totalorder %v3686, %v5207
        %vm5224 = vcmp.eq.s32.totalorder %v3686, %v5208
        %vm5225 = vcmp.eq.s32.totalorder %v3686, %v5209
        %vm5226 = vcmp.eq.s32.totalorder %v3687, %v5206
        %vm5227 = vcmp.eq.s32.totalorder %v3687, %v5207
        %vm5228 = vcmp.eq.s32.totalorder %v3687, %v5208
        %vm5229 = vcmp.eq.s32.totalorder %v3687, %v5209
        %vm5230 = vcmp.eq.s32.totalorder %v3688, %v5206
        %vm5231 = vcmp.eq.s32.totalorder %v3688, %v5207
        %vm5232 = vcmp.eq.s32.totalorder %v3688, %v5208
        %vm5233 = vcmp.eq.s32.totalorder %v3688, %v5209
        %vm5234 = vcmp.eq.s32.totalorder %v3689, %v5206
        %vm5235 = vcmp.eq.s32.totalorder %v3689, %v5207
        %vm5236 = vcmp.eq.s32.totalorder %v3689, %v5208
        %vm5237 = vcmp.eq.s32.totalorder %v3689, %v5209
        %vm5238 = vcmp.eq.s32.totalorder %v3690, %v5206
        %vm5239 = vcmp.eq.s32.totalorder %v3690, %v5207
        %vm5240 = vcmp.eq.s32.totalorder %v3690, %v5208
        %vm5241 = vcmp.eq.s32.totalorder %v3690, %v5209
        %vm5242 = vcmp.eq.s32.totalorder %v3691, %v5206
        %vm5243 = vcmp.eq.s32.totalorder %v3691, %v5207
        %vm5244 = vcmp.eq.s32.totalorder %v3691, %v5208
        %vm5245 = vcmp.eq.s32.totalorder %v3691, %v5209
        %vm5246 = vcmp.eq.s32.totalorder %v3692, %v5206
        %vm5247 = vcmp.eq.s32.totalorder %v3692, %v5207
        %vm5248 = vcmp.eq.s32.totalorder %v3692, %v5208
        %vm5249 = vcmp.eq.s32.totalorder %v3692, %v5209
        %vm5250 = vcmp.eq.s32.totalorder %v3693, %v5206
        %vm5251 = vcmp.eq.s32.totalorder %v3693, %v5207
        %vm5252 = vcmp.eq.s32.totalorder %v3693, %v5208
        %vm5253 = vcmp.eq.s32.totalorder %v3693, %v5209
        %vm5254 = vcmp.eq.s32.totalorder %v3694, %v5206
        %vm5255 = vcmp.eq.s32.totalorder %v3694, %v5207
        %vm5256 = vcmp.eq.s32.totalorder %v3694, %v5208
        %vm5257 = vcmp.eq.s32.totalorder %v3694, %v5209
        %vm5258 = vcmp.eq.s32.totalorder %v3695, %v5206
        %vm5259 = vcmp.eq.s32.totalorder %v3695, %v5207
        %vm5260 = vcmp.eq.s32.totalorder %v3695, %v5208
        %vm5261 = vcmp.eq.s32.totalorder %v3695, %v5209
        %vm5262 = vcmp.eq.s32.totalorder %v3696, %v5206
        %vm5263 = vcmp.eq.s32.totalorder %v3696, %v5207
        %vm5264 = vcmp.eq.s32.totalorder %v3696, %v5208
        %vm5265 = vcmp.eq.s32.totalorder %v3696, %v5209
        %vm5266 = vcmp.eq.s32.totalorder %v3697, %v5206
        %vm5267 = vcmp.eq.s32.totalorder %v3697, %v5207
        %vm5268 = vcmp.eq.s32.totalorder %v3697, %v5208
        %vm5269 = vcmp.eq.s32.totalorder %v3697, %v5209
        %vm5270 = vcmp.eq.s32.totalorder %v3698, %v5206
        %vm5271 = vcmp.eq.s32.totalorder %v3698, %v5207
        %vm5272 = vcmp.eq.s32.totalorder %v3698, %v5208
        %vm5273 = vcmp.eq.s32.totalorder %v3698, %v5209
        %vm5274 = vcmp.eq.s32.totalorder %v3699, %v5206
        %vm5275 = vcmp.eq.s32.totalorder %v3699, %v5207
        %vm5276 = vcmp.eq.s32.totalorder %v3699, %v5208
        %vm5277 = vcmp.eq.s32.totalorder %v3699, %v5209
        %vm5278 = vcmp.eq.s32.totalorder %v3700, %v5206
        %vm5279 = vcmp.eq.s32.totalorder %v3700, %v5207
        %vm5280 = vcmp.eq.s32.totalorder %v3700, %v5208
        %vm5281 = vcmp.eq.s32.totalorder %v3700, %v5209
        %vm5282 = vcmp.eq.s32.totalorder %v3701, %v5206
        %vm5283 = vcmp.eq.s32.totalorder %v3701, %v5207
        %vm5284 = vcmp.eq.s32.totalorder %v3701, %v5208
        %vm5285 = vcmp.eq.s32.totalorder %v3701, %v5209
        %vm5286 = vcmp.eq.s32.totalorder %v3702, %v5206
        %vm5287 = vcmp.eq.s32.totalorder %v3702, %v5207
        %vm5288 = vcmp.eq.s32.totalorder %v3702, %v5208
        %vm5289 = vcmp.eq.s32.totalorder %v3702, %v5209
        %v5290 = vsel %vm5210, 1, 0
        %v5291 = vsel %vm5211, 1, 0
        %v5292 = vsel %vm5212, 1, 0
        %v5293 = vsel %vm5213, 1, 0
        %v5294 = vsel %vm5214, 1, 0
        %v5295 = vsel %vm5215, 1, 0
        %v5296 = vsel %vm5216, 1, 0
        %v5297 = vsel %vm5217, 1, 0
        %v5298 = vsel %vm5218, 1, 0
        %v5299 = vsel %vm5219, 1, 0
        %v5300 = vsel %vm5220, 1, 0
        %v5301 = vsel %vm5221, 1, 0
        %v5302 = vsel %vm5222, 1, 0
        %v5303 = vsel %vm5223, 1, 0
        %v5304 = vsel %vm5224, 1, 0
        %v5305 = vsel %vm5225, 1, 0
        %v5306 = vsel %vm5226, 1, 0
        %v5307 = vsel %vm5227, 1, 0
        %v5308 = vsel %vm5228, 1, 0
        %v5309 = vsel %vm5229, 1, 0
        %v5310 = vsel %vm5230, 1, 0
        %v5311 = vsel %vm5231, 1, 0
        %v5312 = vsel %vm5232, 1, 0
        %v5313 = vsel %vm5233, 1, 0
        %v5314 = vsel %vm5234, 1, 0
        %v5315 = vsel %vm5235, 1, 0
        %v5316 = vsel %vm5236, 1, 0
        %v5317 = vsel %vm5237, 1, 0
        %v5318 = vsel %vm5238, 1, 0
        %v5319 = vsel %vm5239, 1, 0
        %v5320 = vsel %vm5240, 1, 0
        %v5321 = vsel %vm5241, 1, 0
        %v5322 = vsel %vm5242, 1, 0
        %v5323 = vsel %vm5243, 1, 0
        %v5324 = vsel %vm5244, 1, 0
        %v5325 = vsel %vm5245, 1, 0
        %v5326 = vsel %vm5246, 1, 0
        %v5327 = vsel %vm5247, 1, 0
        %v5328 = vsel %vm5248, 1, 0
        %v5329 = vsel %vm5249, 1, 0
        %v5330 = vsel %vm5250, 1, 0
        %v5331 = vsel %vm5251, 1, 0
        %v5332 = vsel %vm5252, 1, 0
        %v5333 = vsel %vm5253, 1, 0
        %v5334 = vsel %vm5254, 1, 0
        %v5335 = vsel %vm5255, 1, 0
        %v5336 = vsel %vm5256, 1, 0
        %v5337 = vsel %vm5257, 1, 0
        %v5338 = vsel %vm5258, 1, 0
        %v5339 = vsel %vm5259, 1, 0
        %v5340 = vsel %vm5260, 1, 0
        %v5341 = vsel %vm5261, 1, 0
        %v5342 = vsel %vm5262, 1, 0
        %v5343 = vsel %vm5263, 1, 0
        %v5344 = vsel %vm5264, 1, 0
        %v5345 = vsel %vm5265, 1, 0
        %v5346 = vsel %vm5266, 1, 0
        %v5347 = vsel %vm5267, 1, 0
        %v5348 = vsel %vm5268, 1, 0
        %v5349 = vsel %vm5269, 1, 0
        %v5350 = vsel %vm5270, 1, 0
        %v5351 = vsel %vm5271, 1, 0
        %v5352 = vsel %vm5272, 1, 0
        %v5353 = vsel %vm5273, 1, 0
        %v5354 = vsel %vm5274, 1, 0
        %v5355 = vsel %vm5275, 1, 0
        %v5356 = vsel %vm5276, 1, 0
        %v5357 = vsel %vm5277, 1, 0
        %v5358 = vsel %vm5278, 1, 0
        %v5359 = vsel %vm5279, 1, 0
        %v5360 = vsel %vm5280, 1, 0
        %v5361 = vsel %vm5281, 1, 0
        %v5362 = vsel %vm5282, 1, 0
        %v5363 = vsel %vm5283, 1, 0
        %v5364 = vsel %vm5284, 1, 0
        %v5365 = vsel %vm5285, 1, 0
        %v5366 = vsel %vm5286, 1, 0
        %v5367 = vsel %vm5287, 1, 0
        %v5368 = vsel %vm5288, 1, 0
        %v5369 = vsel %vm5289, 1, 0
        %v5370 = vcvt.s32.f32 %v5290
        %v5371 = vcvt.s32.f32 %v5291
        %v5372 = vcvt.s32.f32 %v5292
        %v5373 = vcvt.s32.f32 %v5293
        %v5374 = vcvt.s32.f32 %v5294
        %v5375 = vcvt.s32.f32 %v5295
        %v5376 = vcvt.s32.f32 %v5296
        %v5377 = vcvt.s32.f32 %v5297
        %v5378 = vcvt.s32.f32 %v5298
        %v5379 = vcvt.s32.f32 %v5299
        %v5380 = vcvt.s32.f32 %v5300
        %v5381 = vcvt.s32.f32 %v5301
        %v5382 = vcvt.s32.f32 %v5302
        %v5383 = vcvt.s32.f32 %v5303
        %v5384 = vcvt.s32.f32 %v5304
        %v5385 = vcvt.s32.f32 %v5305
        %v5386 = vcvt.s32.f32 %v5306
        %v5387 = vcvt.s32.f32 %v5307
        %v5388 = vcvt.s32.f32 %v5308
        %v5389 = vcvt.s32.f32 %v5309
        %v5390 = vcvt.s32.f32 %v5310
        %v5391 = vcvt.s32.f32 %v5311
        %v5392 = vcvt.s32.f32 %v5312
        %v5393 = vcvt.s32.f32 %v5313
        %v5394 = vcvt.s32.f32 %v5314
        %v5395 = vcvt.s32.f32 %v5315
        %v5396 = vcvt.s32.f32 %v5316
        %v5397 = vcvt.s32.f32 %v5317
        %v5398 = vcvt.s32.f32 %v5318
        %v5399 = vcvt.s32.f32 %v5319
        %v5400 = vcvt.s32.f32 %v5320
        %v5401 = vcvt.s32.f32 %v5321
        %v5402 = vcvt.s32.f32 %v5322
        %v5403 = vcvt.s32.f32 %v5323
        %v5404 = vcvt.s32.f32 %v5324
        %v5405 = vcvt.s32.f32 %v5325
        %v5406 = vcvt.s32.f32 %v5326
        %v5407 = vcvt.s32.f32 %v5327
        %v5408 = vcvt.s32.f32 %v5328
        %v5409 = vcvt.s32.f32 %v5329
        %v5410 = vcvt.s32.f32 %v5330
        %v5411 = vcvt.s32.f32 %v5331
        %v5412 = vcvt.s32.f32 %v5332
        %v5413 = vcvt.s32.f32 %v5333
        %v5414 = vcvt.s32.f32 %v5334
        %v5415 = vcvt.s32.f32 %v5335
        %v5416 = vcvt.s32.f32 %v5336
        %v5417 = vcvt.s32.f32 %v5337
        %v5418 = vcvt.s32.f32 %v5338
        %v5419 = vcvt.s32.f32 %v5339
        %v5420 = vcvt.s32.f32 %v5340
        %v5421 = vcvt.s32.f32 %v5341
        %v5422 = vcvt.s32.f32 %v5342
        %v5423 = vcvt.s32.f32 %v5343
        %v5424 = vcvt.s32.f32 %v5344
        %v5425 = vcvt.s32.f32 %v5345
        %v5426 = vcvt.s32.f32 %v5346
        %v5427 = vcvt.s32.f32 %v5347
        %v5428 = vcvt.s32.f32 %v5348
        %v5429 = vcvt.s32.f32 %v5349
        %v5430 = vcvt.s32.f32 %v5350
        %v5431 = vcvt.s32.f32 %v5351
        %v5432 = vcvt.s32.f32 %v5352
        %v5433 = vcvt.s32.f32 %v5353
        %v5434 = vcvt.s32.f32 %v5354
        %v5435 = vcvt.s32.f32 %v5355
        %v5436 = vcvt.s32.f32 %v5356
        %v5437 = vcvt.s32.f32 %v5357
        %v5438 = vcvt.s32.f32 %v5358
        %v5439 = vcvt.s32.f32 %v5359
        %v5440 = vcvt.s32.f32 %v5360
        %v5441 = vcvt.s32.f32 %v5361
        %v5442 = vcvt.s32.f32 %v5362
        %v5443 = vcvt.s32.f32 %v5363
        %v5444 = vcvt.s32.f32 %v5364
        %v5445 = vcvt.s32.f32 %v5365
        %v5446 = vcvt.s32.f32 %v5366
        %v5447 = vcvt.s32.f32 %v5367
        %v5448 = vcvt.s32.f32 %v5368
        %v5449 = vcvt.s32.f32 %v5369
        %5450 = vmatpush.msra.mxu0 %v5430
        %5451 = vmatpush.msra.mxu0 %v5426
        %5452 = vmatpush.msra.mxu0 %v5422
        %5453 = vmatpush.msra.mxu0 %v5418
        %5454 = vmatpush.msra.mxu0 %v5414
        %5455 = vmatpush.msra.mxu0 %v5410
        %5456 = vmatpush.msra.mxu0 %v5406
        %5457 = vmatpush.msra.mxu0 %v5402
        %5458 = vmatpush.msra.mxu0 %v5398
        %5459 = vmatpush.msra.mxu0 %v5394
        %5460 = vmatpush.msra.mxu0 %v5390
        %5461 = vmatpush.msra.mxu0 %v5386
        %5462 = vmatpush.msra.mxu0 %v5382
        %5463 = vmatpush.msra.mxu0 %v5378
        %5464 = vmatpush.msra.mxu0 %v5374
        %5465 = vmatpush.msra.mxu0 %v5370
        %5466 = vmatmul.f32.gmra.mxu0 %v3665
        %v5467 = vpop.f32.mrf.mxu0
        %v5468 = vadd.f32 0.0, %v5467
        %5469 = vmatmul.f32.gmra.mxu0 %v3667
        %v5470 = vpop.f32.mrf.mxu0
        %v5471 = vadd.f32 0.0, %v5470
        %5472 = vmatmul.f32.gmra.mxu0 %v3669
        %v5473 = vpop.f32.mrf.mxu0
        %v5474 = vadd.f32 0.0, %v5473
        %5475 = vmatmul.f32.gmra.mxu0 %v3671
        %v5476 = vpop.f32.mrf.mxu0
        %v5477 = vadd.f32 0.0, %v5476
        %5478 = vdwg.mxu0
        %5479 = vmatpush.msra.mxu0 0.0
        %5480 = vmatpush.msra.mxu0 0.0
        %5481 = vmatpush.msra.mxu0 0.0
        %5482 = vmatpush.msra.mxu0 0.0
        %5483 = vmatpush.msra.mxu0 0.0
        %5484 = vmatpush.msra.mxu0 0.0
        %5485 = vmatpush.msra.mxu0 0.0
        %5486 = vmatpush.msra.mxu0 0.0
        %5487 = vmatpush.msra.mxu0 0.0
        %5488 = vmatpush.msra.mxu0 0.0
        %5489 = vmatpush.msra.mxu0 0.0
        %5490 = vmatpush.msra.mxu0 0.0
        %5491 = vmatpush.msra.mxu0 %v5446
        %5492 = vmatpush.msra.mxu0 %v5442
        %5493 = vmatpush.msra.mxu0 %v5438
        %5494 = vmatpush.msra.mxu0 %v5434
        %5495 = vmatmul.f32.gmra.mxu0 %v4459
        %v5496 = vpop.f32.mrf.mxu0
        %v5497 = vadd.f32 %v5468, %v5496
        %5498 = vmatmul.f32.gmra.mxu0 %v4462
        %v5499 = vpop.f32.mrf.mxu0
        %v5500 = vadd.f32 %v5471, %v5499
        %5501 = vmatmul.f32.gmra.mxu0 %v4465
        %v5502 = vpop.f32.mrf.mxu0
        %v5503 = vadd.f32 %v5474, %v5502
        %5504 = vmatmul.f32.gmra.mxu0 %v4468
        %v5505 = vpop.f32.mrf.mxu0
        %v5506 = vadd.f32 %v5477, %v5505
        %5507 = vdwg.mxu0
        %5508 = vmatpush.msra.mxu0 %v5431
        %5509 = vmatpush.msra.mxu0 %v5427
        %5510 = vmatpush.msra.mxu0 %v5423
        %5511 = vmatpush.msra.mxu0 %v5419
        %5512 = vmatpush.msra.mxu0 %v5415
        %5513 = vmatpush.msra.mxu0 %v5411
        %5514 = vmatpush.msra.mxu0 %v5407
        %5515 = vmatpush.msra.mxu0 %v5403
        %5516 = vmatpush.msra.mxu0 %v5399
        %5517 = vmatpush.msra.mxu0 %v5395
        %5518 = vmatpush.msra.mxu0 %v5391
        %5519 = vmatpush.msra.mxu0 %v5387
        %5520 = vmatpush.msra.mxu0 %v5383
        %5521 = vmatpush.msra.mxu0 %v5379
        %5522 = vmatpush.msra.mxu0 %v5375
        %5523 = vmatpush.msra.mxu0 %v5371
        %5524 = vmatmul.f32.gmra.mxu0 %v3665
        %v5525 = vpop.f32.mrf.mxu0
        %v5526 = vadd.f32 0.0, %v5525
        %5527 = vmatmul.f32.gmra.mxu0 %v3667
        %v5528 = vpop.f32.mrf.mxu0
        %v5529 = vadd.f32 0.0, %v5528
        %5530 = vmatmul.f32.gmra.mxu0 %v3669
        %v5531 = vpop.f32.mrf.mxu0
        %v5532 = vadd.f32 0.0, %v5531
        %5533 = vmatmul.f32.gmra.mxu0 %v3671
        %v5534 = vpop.f32.mrf.mxu0
        %v5535 = vadd.f32 0.0, %v5534
        %5536 = vdwg.mxu0
        %5537 = vmatpush.msra.mxu0 0.0
        %5538 = vmatpush.msra.mxu0 0.0
        %5539 = vmatpush.msra.mxu0 0.0
        %5540 = vmatpush.msra.mxu0 0.0
        %5541 = vmatpush.msra.mxu0 0.0
        %5542 = vmatpush.msra.mxu0 0.0
        %5543 = vmatpush.msra.mxu0 0.0
        %5544 = vmatpush.msra.mxu0 0.0
        %5545 = vmatpush.msra.mxu0 0.0
        %5546 = vmatpush.msra.mxu0 0.0
        %5547 = vmatpush.msra.mxu0 0.0
        %5548 = vmatpush.msra.mxu0 0.0
        %5549 = vmatpush.msra.mxu0 %v5447
        %5550 = vmatpush.msra.mxu0 %v5443
        %5551 = vmatpush.msra.mxu0 %v5439
        %5552 = vmatpush.msra.mxu0 %v5435
        %5553 = vmatmul.f32.gmra.mxu0 %v4459
        %v5554 = vpop.f32.mrf.mxu0
        %v5555 = vadd.f32 %v5526, %v5554
        %5556 = vmatmul.f32.gmra.mxu0 %v4462
        %v5557 = vpop.f32.mrf.mxu0
        %v5558 = vadd.f32 %v5529, %v5557
        %5559 = vmatmul.f32.gmra.mxu0 %v4465
        %v5560 = vpop.f32.mrf.mxu0
        %v5561 = vadd.f32 %v5532, %v5560
        %5562 = vmatmul.f32.gmra.mxu0 %v4468
        %v5563 = vpop.f32.mrf.mxu0
        %v5564 = vadd.f32 %v5535, %v5563
        %5565 = vdwg.mxu0
        %5566 = vmatpush.msra.mxu0 %v5432
        %5567 = vmatpush.msra.mxu0 %v5428
        %5568 = vmatpush.msra.mxu0 %v5424
        %5569 = vmatpush.msra.mxu0 %v5420
        %5570 = vmatpush.msra.mxu0 %v5416
        %5571 = vmatpush.msra.mxu0 %v5412
        %5572 = vmatpush.msra.mxu0 %v5408
        %5573 = vmatpush.msra.mxu0 %v5404
        %5574 = vmatpush.msra.mxu0 %v5400
        %5575 = vmatpush.msra.mxu0 %v5396
        %5576 = vmatpush.msra.mxu0 %v5392
        %5577 = vmatpush.msra.mxu0 %v5388
        %5578 = vmatpush.msra.mxu0 %v5384
        %5579 = vmatpush.msra.mxu0 %v5380
        %5580 = vmatpush.msra.mxu0 %v5376
        %5581 = vmatpush.msra.mxu0 %v5372
        %5582 = vmatmul.f32.gmra.mxu0 %v3665
        %v5583 = vpop.f32.mrf.mxu0
        %v5584 = vadd.f32 0.0, %v5583
        %5585 = vmatmul.f32.gmra.mxu0 %v3667
        %v5586 = vpop.f32.mrf.mxu0
        %v5587 = vadd.f32 0.0, %v5586
        %5588 = vmatmul.f32.gmra.mxu0 %v3669
        %v5589 = vpop.f32.mrf.mxu0
        %v5590 = vadd.f32 0.0, %v5589
        %5591 = vmatmul.f32.gmra.mxu0 %v3671
        %v5592 = vpop.f32.mrf.mxu0
        %v5593 = vadd.f32 0.0, %v5592
        %5594 = vdwg.mxu0
        %5595 = vmatpush.msra.mxu0 0.0
        %5596 = vmatpush.msra.mxu0 0.0
        %5597 = vmatpush.msra.mxu0 0.0
        %5598 = vmatpush.msra.mxu0 0.0
        %5599 = vmatpush.msra.mxu0 0.0
        %5600 = vmatpush.msra.mxu0 0.0
        %5601 = vmatpush.msra.mxu0 0.0
        %5602 = vmatpush.msra.mxu0 0.0
        %5603 = vmatpush.msra.mxu0 0.0
        %5604 = vmatpush.msra.mxu0 0.0
        %5605 = vmatpush.msra.mxu0 0.0
        %5606 = vmatpush.msra.mxu0 0.0
        %5607 = vmatpush.msra.mxu0 %v5448
        %5608 = vmatpush.msra.mxu0 %v5444
        %5609 = vmatpush.msra.mxu0 %v5440
        %5610 = vmatpush.msra.mxu0 %v5436
        %5611 = vmatmul.f32.gmra.mxu0 %v4459
        %v5612 = vpop.f32.mrf.mxu0
        %v5613 = vadd.f32 %v5584, %v5612
        %5614 = vmatmul.f32.gmra.mxu0 %v4462
        %v5615 = vpop.f32.mrf.mxu0
        %v5616 = vadd.f32 %v5587, %v5615
        %5617 = vmatmul.f32.gmra.mxu0 %v4465
        %v5618 = vpop.f32.mrf.mxu0
        %v5619 = vadd.f32 %v5590, %v5618
        %5620 = vmatmul.f32.gmra.mxu0 %v4468
        %v5621 = vpop.f32.mrf.mxu0
        %v5622 = vadd.f32 %v5593, %v5621
        %5623 = vdwg.mxu0
        %5624 = vmatpush.msra.mxu0 %v5433
        %5625 = vmatpush.msra.mxu0 %v5429
        %5626 = vmatpush.msra.mxu0 %v5425
        %5627 = vmatpush.msra.mxu0 %v5421
        %5628 = vmatpush.msra.mxu0 %v5417
        %5629 = vmatpush.msra.mxu0 %v5413
        %5630 = vmatpush.msra.mxu0 %v5409
        %5631 = vmatpush.msra.mxu0 %v5405
        %5632 = vmatpush.msra.mxu0 %v5401
        %5633 = vmatpush.msra.mxu0 %v5397
        %5634 = vmatpush.msra.mxu0 %v5393
        %5635 = vmatpush.msra.mxu0 %v5389
        %5636 = vmatpush.msra.mxu0 %v5385
        %5637 = vmatpush.msra.mxu0 %v5381
        %5638 = vmatpush.msra.mxu0 %v5377
        %5639 = vmatpush.msra.mxu0 %v5373
        %5640 = vmatmul.f32.gmra.mxu0 %v3665
        %v5641 = vpop.f32.mrf.mxu0
        %v5642 = vadd.f32 0.0, %v5641
        %5643 = vmatmul.f32.gmra.mxu0 %v3667
        %v5644 = vpop.f32.mrf.mxu0
        %v5645 = vadd.f32 0.0, %v5644
        %5646 = vmatmul.f32.gmra.mxu0 %v3669
        %v5647 = vpop.f32.mrf.mxu0
        %v5648 = vadd.f32 0.0, %v5647
        %5649 = vmatmul.f32.gmra.mxu0 %v3671
        %v5650 = vpop.f32.mrf.mxu0
        %v5651 = vadd.f32 0.0, %v5650
        %5652 = vdwg.mxu0
        %5653 = vmatpush.msra.mxu0 0.0
        %5654 = vmatpush.msra.mxu0 0.0
        %5655 = vmatpush.msra.mxu0 0.0
        %5656 = vmatpush.msra.mxu0 0.0
        %5657 = vmatpush.msra.mxu0 0.0
        %5658 = vmatpush.msra.mxu0 0.0
        %5659 = vmatpush.msra.mxu0 0.0
        %5660 = vmatpush.msra.mxu0 0.0
        %5661 = vmatpush.msra.mxu0 0.0
        %5662 = vmatpush.msra.mxu0 0.0
        %5663 = vmatpush.msra.mxu0 0.0
        %5664 = vmatpush.msra.mxu0 0.0
        %5665 = vmatpush.msra.mxu0 %v5449
        %5666 = vmatpush.msra.mxu0 %v5445
        %5667 = vmatpush.msra.mxu0 %v5441
        %5668 = vmatpush.msra.mxu0 %v5437
        %5669 = vmatmul.f32.gmra.mxu0 %v4459
        %v5670 = vpop.f32.mrf.mxu0
        %v5671 = vadd.f32 %v5642, %v5670
        %5672 = vmatmul.f32.gmra.mxu0 %v4462
        %v5673 = vpop.f32.mrf.mxu0
        %v5674 = vadd.f32 %v5645, %v5673
        %5675 = vmatmul.f32.gmra.mxu0 %v4465
        %v5676 = vpop.f32.mrf.mxu0
        %v5677 = vadd.f32 %v5648, %v5676
        %5678 = vmatmul.f32.gmra.mxu0 %v4468
        %v5679 = vpop.f32.mrf.mxu0
        %v5680 = vadd.f32 %v5651, %v5679
        %5681 = vdwg.mxu0
        %v5682 = vperm.slane %v3679, 0
        %v5683 = vperm.slane %v3679, 1
        %vm5684 = vcmp.eq.s32.totalorder %v3683, %v5682
        %vm5685 = vcmp.eq.s32.totalorder %v3683, %v5683
        %vm5686 = vcmp.eq.s32.totalorder %v3684, %v5682
        %vm5687 = vcmp.eq.s32.totalorder %v3684, %v5683
        %vm5688 = vcmp.eq.s32.totalorder %v3685, %v5682
        %vm5689 = vcmp.eq.s32.totalorder %v3685, %v5683
        %vm5690 = vcmp.eq.s32.totalorder %v3686, %v5682
        %vm5691 = vcmp.eq.s32.totalorder %v3686, %v5683
        %vm5692 = vcmp.eq.s32.totalorder %v3687, %v5682
        %vm5693 = vcmp.eq.s32.totalorder %v3687, %v5683
        %vm5694 = vcmp.eq.s32.totalorder %v3688, %v5682
        %vm5695 = vcmp.eq.s32.totalorder %v3688, %v5683
        %vm5696 = vcmp.eq.s32.totalorder %v3689, %v5682
        %vm5697 = vcmp.eq.s32.totalorder %v3689, %v5683
        %vm5698 = vcmp.eq.s32.totalorder %v3690, %v5682
        %vm5699 = vcmp.eq.s32.totalorder %v3690, %v5683
        %vm5700 = vcmp.eq.s32.totalorder %v3691, %v5682
        %vm5701 = vcmp.eq.s32.totalorder %v3691, %v5683
        %vm5702 = vcmp.eq.s32.totalorder %v3692, %v5682
        %vm5703 = vcmp.eq.s32.totalorder %v3692, %v5683
        %vm5704 = vcmp.eq.s32.totalorder %v3693, %v5682
        %vm5705 = vcmp.eq.s32.totalorder %v3693, %v5683
        %vm5706 = vcmp.eq.s32.totalorder %v3694, %v5682
        %vm5707 = vcmp.eq.s32.totalorder %v3694, %v5683
        %vm5708 = vcmp.eq.s32.totalorder %v3695, %v5682
        %vm5709 = vcmp.eq.s32.totalorder %v3695, %v5683
        %vm5710 = vcmp.eq.s32.totalorder %v3696, %v5682
        %vm5711 = vcmp.eq.s32.totalorder %v3696, %v5683
        %vm5712 = vcmp.eq.s32.totalorder %v3697, %v5682
        %vm5713 = vcmp.eq.s32.totalorder %v3697, %v5683
        %vm5714 = vcmp.eq.s32.totalorder %v3698, %v5682
        %vm5715 = vcmp.eq.s32.totalorder %v3698, %v5683
        %vm5716 = vcmp.eq.s32.totalorder %v3699, %v5682
        %vm5717 = vcmp.eq.s32.totalorder %v3699, %v5683
        %vm5718 = vcmp.eq.s32.totalorder %v3700, %v5682
        %vm5719 = vcmp.eq.s32.totalorder %v3700, %v5683
        %vm5720 = vcmp.eq.s32.totalorder %v3701, %v5682
        %vm5721 = vcmp.eq.s32.totalorder %v3701, %v5683
        %vm5722 = vcmp.eq.s32.totalorder %v3702, %v5682
        %vm5723 = vcmp.eq.s32.totalorder %v3702, %v5683
        %vm5724 = vcmp.eq.s32.totalorder %v3703, %v5682
        %vm5725 = vcmp.eq.s32.totalorder %v3703, %v5683
        %vm5726 = vcmp.eq.s32.totalorder %v3704, %v5682
        %vm5727 = vcmp.eq.s32.totalorder %v3704, %v5683
        %vm5728 = vcmp.eq.s32.totalorder %v3705, %v5682
        %vm5729 = vcmp.eq.s32.totalorder %v3705, %v5683
        %vm5730 = vcmp.eq.s32.totalorder %v3706, %v5682
        %vm5731 = vcmp.eq.s32.totalorder %v3706, %v5683
        %vm5732 = vcmp.eq.s32.totalorder %v3707, %v5682
        %vm5733 = vcmp.eq.s32.totalorder %v3707, %v5683
        %vm5734 = vcmp.eq.s32.totalorder %v3708, %v5682
        %vm5735 = vcmp.eq.s32.totalorder %v3708, %v5683
        %vm5736 = vcmp.eq.s32.totalorder %v3709, %v5682
        %vm5737 = vcmp.eq.s32.totalorder %v3709, %v5683
        %vm5738 = vcmp.eq.s32.totalorder %v3710, %v5682
        %vm5739 = vcmp.eq.s32.totalorder %v3710, %v5683
        %vm5740 = vcmp.eq.s32.totalorder %v3711, %v5682
        %vm5741 = vcmp.eq.s32.totalorder %v3711, %v5683
        %vm5742 = vcmp.eq.s32.totalorder %v3712, %v5682
        %vm5743 = vcmp.eq.s32.totalorder %v3712, %v5683
        %vm5744 = vcmp.eq.s32.totalorder %v3713, %v5682
        %vm5745 = vcmp.eq.s32.totalorder %v3713, %v5683
        %vm5746 = vcmp.eq.s32.totalorder %v3714, %v5682
        %vm5747 = vcmp.eq.s32.totalorder %v3714, %v5683
        %v5748 = vsel %vm5684, 1, 0
        %v5749 = vsel %vm5685, 1, 0
        %v5750 = vsel %vm5686, 1, 0
        %v5751 = vsel %vm5687, 1, 0
        %v5752 = vsel %vm5688, 1, 0
        %v5753 = vsel %vm5689, 1, 0
        %v5754 = vsel %vm5690, 1, 0
        %v5755 = vsel %vm5691, 1, 0
        %v5756 = vsel %vm5692, 1, 0
        %v5757 = vsel %vm5693, 1, 0
        %v5758 = vsel %vm5694, 1, 0
        %v5759 = vsel %vm5695, 1, 0
        %v5760 = vsel %vm5696, 1, 0
        %v5761 = vsel %vm5697, 1, 0
        %v5762 = vsel %vm5698, 1, 0
        %v5763 = vsel %vm5699, 1, 0
        %v5764 = vsel %vm5700, 1, 0
        %v5765 = vsel %vm5701, 1, 0
        %v5766 = vsel %vm5702, 1, 0
        %v5767 = vsel %vm5703, 1, 0
        %v5768 = vsel %vm5704, 1, 0
        %v5769 = vsel %vm5705, 1, 0
        %v5770 = vsel %vm5706, 1, 0
        %v5771 = vsel %vm5707, 1, 0
        %v5772 = vsel %vm5708, 1, 0
        %v5773 = vsel %vm5709, 1, 0
        %v5774 = vsel %vm5710, 1, 0
        %v5775 = vsel %vm5711, 1, 0
        %v5776 = vsel %vm5712, 1, 0
        %v5777 = vsel %vm5713, 1, 0
        %v5778 = vsel %vm5714, 1, 0
        %v5779 = vsel %vm5715, 1, 0
        %v5780 = vsel %vm5716, 1, 0
        %v5781 = vsel %vm5717, 1, 0
        %v5782 = vsel %vm5718, 1, 0
        %v5783 = vsel %vm5719, 1, 0
        %v5784 = vsel %vm5720, 1, 0
        %v5785 = vsel %vm5721, 1, 0
        %v5786 = vsel %vm5722, 1, 0
        %v5787 = vsel %vm5723, 1, 0
        %v5788 = vsel %vm5724, 1, 0
        %v5789 = vsel %vm5725, 1, 0
        %v5790 = vsel %vm5726, 1, 0
        %v5791 = vsel %vm5727, 1, 0
        %v5792 = vsel %vm5728, 1, 0
        %v5793 = vsel %vm5729, 1, 0
        %v5794 = vsel %vm5730, 1, 0
        %v5795 = vsel %vm5731, 1, 0
        %v5796 = vsel %vm5732, 1, 0
        %v5797 = vsel %vm5733, 1, 0
        %v5798 = vsel %vm5734, 1, 0
        %v5799 = vsel %vm5735, 1, 0
        %v5800 = vsel %vm5736, 1, 0
        %v5801 = vsel %vm5737, 1, 0
        %v5802 = vsel %vm5738, 1, 0
        %v5803 = vsel %vm5739, 1, 0
        %v5804 = vsel %vm5740, 1, 0
        %v5805 = vsel %vm5741, 1, 0
        %v5806 = vsel %vm5742, 1, 0
        %v5807 = vsel %vm5743, 1, 0
        %v5808 = vsel %vm5744, 1, 0
        %v5809 = vsel %vm5745, 1, 0
        %v5810 = vsel %vm5746, 1, 0
        %v5811 = vsel %vm5747, 1, 0
        %v5812 = vcvt.s32.f32 %v5748
        %v5813 = vcvt.s32.f32 %v5749
        %v5814 = vcvt.s32.f32 %v5750
        %v5815 = vcvt.s32.f32 %v5751
        %v5816 = vcvt.s32.f32 %v5752
        %v5817 = vcvt.s32.f32 %v5753
        %v5818 = vcvt.s32.f32 %v5754
        %v5819 = vcvt.s32.f32 %v5755
        %v5820 = vcvt.s32.f32 %v5756
        %v5821 = vcvt.s32.f32 %v5757
        %v5822 = vcvt.s32.f32 %v5758
        %v5823 = vcvt.s32.f32 %v5759
        %v5824 = vcvt.s32.f32 %v5760
        %v5825 = vcvt.s32.f32 %v5761
        %v5826 = vcvt.s32.f32 %v5762
        %v5827 = vcvt.s32.f32 %v5763
        %v5828 = vcvt.s32.f32 %v5764
        %v5829 = vcvt.s32.f32 %v5765
        %v5830 = vcvt.s32.f32 %v5766
        %v5831 = vcvt.s32.f32 %v5767
        %v5832 = vcvt.s32.f32 %v5768
        %v5833 = vcvt.s32.f32 %v5769
        %v5834 = vcvt.s32.f32 %v5770
        %v5835 = vcvt.s32.f32 %v5771
        %v5836 = vcvt.s32.f32 %v5772
        %v5837 = vcvt.s32.f32 %v5773
        %v5838 = vcvt.s32.f32 %v5774
        %v5839 = vcvt.s32.f32 %v5775
        %v5840 = vcvt.s32.f32 %v5776
        %v5841 = vcvt.s32.f32 %v5777
        %v5842 = vcvt.s32.f32 %v5778
        %v5843 = vcvt.s32.f32 %v5779
        %v5844 = vcvt.s32.f32 %v5780
        %v5845 = vcvt.s32.f32 %v5781
        %v5846 = vcvt.s32.f32 %v5782
        %v5847 = vcvt.s32.f32 %v5783
        %v5848 = vcvt.s32.f32 %v5784
        %v5849 = vcvt.s32.f32 %v5785
        %v5850 = vcvt.s32.f32 %v5786
        %v5851 = vcvt.s32.f32 %v5787
        %v5852 = vcvt.s32.f32 %v5788
        %v5853 = vcvt.s32.f32 %v5789
        %v5854 = vcvt.s32.f32 %v5790
        %v5855 = vcvt.s32.f32 %v5791
        %v5856 = vcvt.s32.f32 %v5792
        %v5857 = vcvt.s32.f32 %v5793
        %v5858 = vcvt.s32.f32 %v5794
        %v5859 = vcvt.s32.f32 %v5795
        %v5860 = vcvt.s32.f32 %v5796
        %v5861 = vcvt.s32.f32 %v5797
        %v5862 = vcvt.s32.f32 %v5798
        %v5863 = vcvt.s32.f32 %v5799
        %v5864 = vcvt.s32.f32 %v5800
        %v5865 = vcvt.s32.f32 %v5801
        %v5866 = vcvt.s32.f32 %v5802
        %v5867 = vcvt.s32.f32 %v5803
        %v5868 = vcvt.s32.f32 %v5804
        %v5869 = vcvt.s32.f32 %v5805
        %v5870 = vcvt.s32.f32 %v5806
        %v5871 = vcvt.s32.f32 %v5807
        %v5872 = vcvt.s32.f32 %v5808
        %v5873 = vcvt.s32.f32 %v5809
        %v5874 = vcvt.s32.f32 %v5810
        %v5875 = vcvt.s32.f32 %v5811
        %5876 = vmatpush.msra.mxu0 %v5842
        %5877 = vmatpush.msra.mxu0 %v5840
        %5878 = vmatpush.msra.mxu0 %v5838
        %5879 = vmatpush.msra.mxu0 %v5836
        %5880 = vmatpush.msra.mxu0 %v5834
        %5881 = vmatpush.msra.mxu0 %v5832
        %5882 = vmatpush.msra.mxu0 %v5830
        %5883 = vmatpush.msra.mxu0 %v5828
        %5884 = vmatpush.msra.mxu0 %v5826
        %5885 = vmatpush.msra.mxu0 %v5824
        %5886 = vmatpush.msra.mxu0 %v5822
        %5887 = vmatpush.msra.mxu0 %v5820
        %5888 = vmatpush.msra.mxu0 %v5818
        %5889 = vmatpush.msra.mxu0 %v5816
        %5890 = vmatpush.msra.mxu0 %v5814
        %5891 = vmatpush.msra.mxu0 %v5812
        %5892 = vmatmul.f32.gmra.mxu0 %v448
        %v5893 = vpop.f32.mrf.mxu0
        %v5894 = vadd.f32 0.0, %v5893
        %5895 = vmatmul.f32.gmra.mxu0 %v450
        %v5896 = vpop.f32.mrf.mxu0
        %v5897 = vadd.f32 0.0, %v5896
        %5898 = vmatmul.f32.gmra.mxu0 %v452
        %v5899 = vpop.f32.mrf.mxu0
        %v5900 = vadd.f32 0.0, %v5899
        %5901 = vmatmul.f32.gmra.mxu0 %v454
        %v5902 = vpop.f32.mrf.mxu0
        %v5903 = vadd.f32 0.0, %v5902
        %5904 = vdwg.mxu0
        %5905 = vmatpush.msra.mxu0 %v5874
        %5906 = vmatpush.msra.mxu0 %v5872
        %5907 = vmatpush.msra.mxu0 %v5870
        %5908 = vmatpush.msra.mxu0 %v5868
        %5909 = vmatpush.msra.mxu0 %v5866
        %5910 = vmatpush.msra.mxu0 %v5864
        %5911 = vmatpush.msra.mxu0 %v5862
        %5912 = vmatpush.msra.mxu0 %v5860
        %5913 = vmatpush.msra.mxu0 %v5858
        %5914 = vmatpush.msra.mxu0 %v5856
        %5915 = vmatpush.msra.mxu0 %v5854
        %5916 = vmatpush.msra.mxu0 %v5852
        %5917 = vmatpush.msra.mxu0 %v5850
        %5918 = vmatpush.msra.mxu0 %v5848
        %5919 = vmatpush.msra.mxu0 %v5846
        %5920 = vmatpush.msra.mxu0 %v5844
        %5921 = vmatmul.f32.gmra.mxu0 %v449
        %v5922 = vpop.f32.mrf.mxu0
        %v5923 = vadd.f32 %v5894, %v5922
        %5924 = vmatmul.f32.gmra.mxu0 %v451
        %v5925 = vpop.f32.mrf.mxu0
        %v5926 = vadd.f32 %v5897, %v5925
        %5927 = vmatmul.f32.gmra.mxu0 %v453
        %v5928 = vpop.f32.mrf.mxu0
        %v5929 = vadd.f32 %v5900, %v5928
        %5930 = vmatmul.f32.gmra.mxu0 %v455
        %v5931 = vpop.f32.mrf.mxu0
        %v5932 = vadd.f32 %v5903, %v5931
        %5933 = vdwg.mxu0
        %5934 = vmatpush.msra.mxu0 %v5843
        %5935 = vmatpush.msra.mxu0 %v5841
        %5936 = vmatpush.msra.mxu0 %v5839
        %5937 = vmatpush.msra.mxu0 %v5837
        %5938 = vmatpush.msra.mxu0 %v5835
        %5939 = vmatpush.msra.mxu0 %v5833
        %5940 = vmatpush.msra.mxu0 %v5831
        %5941 = vmatpush.msra.mxu0 %v5829
        %5942 = vmatpush.msra.mxu0 %v5827
        %5943 = vmatpush.msra.mxu0 %v5825
        %5944 = vmatpush.msra.mxu0 %v5823
        %5945 = vmatpush.msra.mxu0 %v5821
        %5946 = vmatpush.msra.mxu0 %v5819
        %5947 = vmatpush.msra.mxu0 %v5817
        %5948 = vmatpush.msra.mxu0 %v5815
        %5949 = vmatpush.msra.mxu0 %v5813
        %5950 = vmatmul.f32.gmra.mxu0 %v448
        %v5951 = vpop.f32.mrf.mxu0
        %v5952 = vadd.f32 0.0, %v5951
        %5953 = vmatmul.f32.gmra.mxu0 %v450
        %v5954 = vpop.f32.mrf.mxu0
        %v5955 = vadd.f32 0.0, %v5954
        %5956 = vmatmul.f32.gmra.mxu0 %v452
        %v5957 = vpop.f32.mrf.mxu0
        %v5958 = vadd.f32 0.0, %v5957
        %5959 = vmatmul.f32.gmra.mxu0 %v454
        %v5960 = vpop.f32.mrf.mxu0
        %v5961 = vadd.f32 0.0, %v5960
        %5962 = vdwg.mxu0
        %5963 = vmatpush.msra.mxu0 %v5875
        %5964 = vmatpush.msra.mxu0 %v5873
        %5965 = vmatpush.msra.mxu0 %v5871
        %5966 = vmatpush.msra.mxu0 %v5869
        %5967 = vmatpush.msra.mxu0 %v5867
        %5968 = vmatpush.msra.mxu0 %v5865
        %5969 = vmatpush.msra.mxu0 %v5863
        %5970 = vmatpush.msra.mxu0 %v5861
        %5971 = vmatpush.msra.mxu0 %v5859
        %5972 = vmatpush.msra.mxu0 %v5857
        %5973 = vmatpush.msra.mxu0 %v5855
        %5974 = vmatpush.msra.mxu0 %v5853
        %5975 = vmatpush.msra.mxu0 %v5851
        %5976 = vmatpush.msra.mxu0 %v5849
        %5977 = vmatpush.msra.mxu0 %v5847
        %5978 = vmatpush.msra.mxu0 %v5845
        %5979 = vmatmul.f32.gmra.mxu0 %v449
        %v5980 = vpop.f32.mrf.mxu0
        %v5981 = vadd.f32 %v5952, %v5980
        %5982 = vmatmul.f32.gmra.mxu0 %v451
        %v5983 = vpop.f32.mrf.mxu0
        %v5984 = vadd.f32 %v5955, %v5983
        %5985 = vmatmul.f32.gmra.mxu0 %v453
        %v5986 = vpop.f32.mrf.mxu0
        %v5987 = vadd.f32 %v5958, %v5986
        %5988 = vmatmul.f32.gmra.mxu0 %v455
        %v5989 = vpop.f32.mrf.mxu0
        %v5990 = vadd.f32 %v5961, %v5989
        %5991 = vdwg.mxu0
        %v5992 = vperm.slane %v3681, 0
        %v5993 = vperm.slane %v3681, 1
        %vm5994 = vcmp.eq.s32.totalorder %v3683, %v5992
        %vm5995 = vcmp.eq.s32.totalorder %v3683, %v5993
        %vm5996 = vcmp.eq.s32.totalorder %v3684, %v5992
        %vm5997 = vcmp.eq.s32.totalorder %v3684, %v5993
        %vm5998 = vcmp.eq.s32.totalorder %v3685, %v5992
        %vm5999 = vcmp.eq.s32.totalorder %v3685, %v5993
        %vm6000 = vcmp.eq.s32.totalorder %v3686, %v5992
        %vm6001 = vcmp.eq.s32.totalorder %v3686, %v5993
        %vm6002 = vcmp.eq.s32.totalorder %v3687, %v5992
        %vm6003 = vcmp.eq.s32.totalorder %v3687, %v5993
        %vm6004 = vcmp.eq.s32.totalorder %v3688, %v5992
        %vm6005 = vcmp.eq.s32.totalorder %v3688, %v5993
        %vm6006 = vcmp.eq.s32.totalorder %v3689, %v5992
        %vm6007 = vcmp.eq.s32.totalorder %v3689, %v5993
        %vm6008 = vcmp.eq.s32.totalorder %v3690, %v5992
        %vm6009 = vcmp.eq.s32.totalorder %v3690, %v5993
        %vm6010 = vcmp.eq.s32.totalorder %v3691, %v5992
        %vm6011 = vcmp.eq.s32.totalorder %v3691, %v5993
        %vm6012 = vcmp.eq.s32.totalorder %v3692, %v5992
        %vm6013 = vcmp.eq.s32.totalorder %v3692, %v5993
        %vm6014 = vcmp.eq.s32.totalorder %v3693, %v5992
        %vm6015 = vcmp.eq.s32.totalorder %v3693, %v5993
        %vm6016 = vcmp.eq.s32.totalorder %v3694, %v5992
        %vm6017 = vcmp.eq.s32.totalorder %v3694, %v5993
        %vm6018 = vcmp.eq.s32.totalorder %v3695, %v5992
        %vm6019 = vcmp.eq.s32.totalorder %v3695, %v5993
        %vm6020 = vcmp.eq.s32.totalorder %v3696, %v5992
        %vm6021 = vcmp.eq.s32.totalorder %v3696, %v5993
        %vm6022 = vcmp.eq.s32.totalorder %v3697, %v5992
        %vm6023 = vcmp.eq.s32.totalorder %v3697, %v5993
        %vm6024 = vcmp.eq.s32.totalorder %v3698, %v5992
        %vm6025 = vcmp.eq.s32.totalorder %v3698, %v5993
        %vm6026 = vcmp.eq.s32.totalorder %v3699, %v5992
        %vm6027 = vcmp.eq.s32.totalorder %v3699, %v5993
        %vm6028 = vcmp.eq.s32.totalorder %v3700, %v5992
        %vm6029 = vcmp.eq.s32.totalorder %v3700, %v5993
        %vm6030 = vcmp.eq.s32.totalorder %v3701, %v5992
        %vm6031 = vcmp.eq.s32.totalorder %v3701, %v5993
        %vm6032 = vcmp.eq.s32.totalorder %v3702, %v5992
        %vm6033 = vcmp.eq.s32.totalorder %v3702, %v5993
        %vm6034 = vcmp.eq.s32.totalorder %v3703, %v5992
        %vm6035 = vcmp.eq.s32.totalorder %v3703, %v5993
        %vm6036 = vcmp.eq.s32.totalorder %v3704, %v5992
        %vm6037 = vcmp.eq.s32.totalorder %v3704, %v5993
        %vm6038 = vcmp.eq.s32.totalorder %v3705, %v5992
        %vm6039 = vcmp.eq.s32.totalorder %v3705, %v5993
        %vm6040 = vcmp.eq.s32.totalorder %v3706, %v5992
        %vm6041 = vcmp.eq.s32.totalorder %v3706, %v5993
        %vm6042 = vcmp.eq.s32.totalorder %v3707, %v5992
        %vm6043 = vcmp.eq.s32.totalorder %v3707, %v5993
        %vm6044 = vcmp.eq.s32.totalorder %v3708, %v5992
        %vm6045 = vcmp.eq.s32.totalorder %v3708, %v5993
        %vm6046 = vcmp.eq.s32.totalorder %v3709, %v5992
        %vm6047 = vcmp.eq.s32.totalorder %v3709, %v5993
        %vm6048 = vcmp.eq.s32.totalorder %v3710, %v5992
        %vm6049 = vcmp.eq.s32.totalorder %v3710, %v5993
        %vm6050 = vcmp.eq.s32.totalorder %v3711, %v5992
        %vm6051 = vcmp.eq.s32.totalorder %v3711, %v5993
        %vm6052 = vcmp.eq.s32.totalorder %v3712, %v5992
        %vm6053 = vcmp.eq.s32.totalorder %v3712, %v5993
        %vm6054 = vcmp.eq.s32.totalorder %v3713, %v5992
        %vm6055 = vcmp.eq.s32.totalorder %v3713, %v5993
        %vm6056 = vcmp.eq.s32.totalorder %v3714, %v5992
        %vm6057 = vcmp.eq.s32.totalorder %v3714, %v5993
        %vm6058 = vcmp.eq.s32.totalorder %v3715, %v5992
        %vm6059 = vcmp.eq.s32.totalorder %v3715, %v5993
        %vm6060 = vcmp.eq.s32.totalorder %v3716, %v5992
        %vm6061 = vcmp.eq.s32.totalorder %v3716, %v5993
        %vm6062 = vcmp.eq.s32.totalorder %v3717, %v5992
        %vm6063 = vcmp.eq.s32.totalorder %v3717, %v5993
        %vm6064 = vcmp.eq.s32.totalorder %v3718, %v5992
        %vm6065 = vcmp.eq.s32.totalorder %v3718, %v5993
        %vm6066 = vcmp.eq.s32.totalorder %v3719, %v5992
        %vm6067 = vcmp.eq.s32.totalorder %v3719, %v5993
        %vm6068 = vcmp.eq.s32.totalorder %v3720, %v5992
        %vm6069 = vcmp.eq.s32.totalorder %v3720, %v5993
        %vm6070 = vcmp.eq.s32.totalorder %v3721, %v5992
        %vm6071 = vcmp.eq.s32.totalorder %v3721, %v5993
        %vm6072 = vcmp.eq.s32.totalorder %v3722, %v5992
        %vm6073 = vcmp.eq.s32.totalorder %v3722, %v5993
        %vm6074 = vcmp.eq.s32.totalorder %v3723, %v5992
        %vm6075 = vcmp.eq.s32.totalorder %v3723, %v5993
        %vm6076 = vcmp.eq.s32.totalorder %v3724, %v5992
        %vm6077 = vcmp.eq.s32.totalorder %v3724, %v5993
        %vm6078 = vcmp.eq.s32.totalorder %v3725, %v5992
        %vm6079 = vcmp.eq.s32.totalorder %v3725, %v5993
        %vm6080 = vcmp.eq.s32.totalorder %v3726, %v5992
        %vm6081 = vcmp.eq.s32.totalorder %v3726, %v5993
        %vm6082 = vcmp.eq.s32.totalorder %v3727, %v5992
        %vm6083 = vcmp.eq.s32.totalorder %v3727, %v5993
        %vm6084 = vcmp.eq.s32.totalorder %v3728, %v5992
        %vm6085 = vcmp.eq.s32.totalorder %v3728, %v5993
        %vm6086 = vcmp.eq.s32.totalorder %v3729, %v5992
        %vm6087 = vcmp.eq.s32.totalorder %v3729, %v5993
        %vm6088 = vcmp.eq.s32.totalorder %v3730, %v5992
        %vm6089 = vcmp.eq.s32.totalorder %v3730, %v5993
        %vm6090 = vcmp.eq.s32.totalorder %v3731, %v5992
        %vm6091 = vcmp.eq.s32.totalorder %v3731, %v5993
        %vm6092 = vcmp.eq.s32.totalorder %v3732, %v5992
        %vm6093 = vcmp.eq.s32.totalorder %v3732, %v5993
        %vm6094 = vcmp.eq.s32.totalorder %v3733, %v5992
        %vm6095 = vcmp.eq.s32.totalorder %v3733, %v5993
        %vm6096 = vcmp.eq.s32.totalorder %v3734, %v5992
        %vm6097 = vcmp.eq.s32.totalorder %v3734, %v5993
        %vm6098 = vcmp.eq.s32.totalorder %v3735, %v5992
        %vm6099 = vcmp.eq.s32.totalorder %v3735, %v5993
        %vm6100 = vcmp.eq.s32.totalorder %v3736, %v5992
        %vm6101 = vcmp.eq.s32.totalorder %v3736, %v5993
        %vm6102 = vcmp.eq.s32.totalorder %v3737, %v5992
        %vm6103 = vcmp.eq.s32.totalorder %v3737, %v5993
        %vm6104 = vcmp.eq.s32.totalorder %v3738, %v5992
        %vm6105 = vcmp.eq.s32.totalorder %v3738, %v5993
        %vm6106 = vcmp.eq.s32.totalorder %v3739, %v5992
        %vm6107 = vcmp.eq.s32.totalorder %v3739, %v5993
        %v6108 = vsel %vm5994, 1, 0
        %v6109 = vsel %vm5995, 1, 0
        %v6110 = vsel %vm5996, 1, 0
        %v6111 = vsel %vm5997, 1, 0
        %v6112 = vsel %vm5998, 1, 0
        %v6113 = vsel %vm5999, 1, 0
        %v6114 = vsel %vm6000, 1, 0
        %v6115 = vsel %vm6001, 1, 0
        %v6116 = vsel %vm6002, 1, 0
        %v6117 = vsel %vm6003, 1, 0
        %v6118 = vsel %vm6004, 1, 0
        %v6119 = vsel %vm6005, 1, 0
        %v6120 = vsel %vm6006, 1, 0
        %v6121 = vsel %vm6007, 1, 0
        %v6122 = vsel %vm6008, 1, 0
        %v6123 = vsel %vm6009, 1, 0
        %v6124 = vsel %vm6010, 1, 0
        %v6125 = vsel %vm6011, 1, 0
        %v6126 = vsel %vm6012, 1, 0
        %v6127 = vsel %vm6013, 1, 0
        %v6128 = vsel %vm6014, 1, 0
        %v6129 = vsel %vm6015, 1, 0
        %v6130 = vsel %vm6016, 1, 0
        %v6131 = vsel %vm6017, 1, 0
        %v6132 = vsel %vm6018, 1, 0
        %v6133 = vsel %vm6019, 1, 0
        %v6134 = vsel %vm6020, 1, 0
        %v6135 = vsel %vm6021, 1, 0
        %v6136 = vsel %vm6022, 1, 0
        %v6137 = vsel %vm6023, 1, 0
        %v6138 = vsel %vm6024, 1, 0
        %v6139 = vsel %vm6025, 1, 0
        %v6140 = vsel %vm6026, 1, 0
        %v6141 = vsel %vm6027, 1, 0
        %v6142 = vsel %vm6028, 1, 0
        %v6143 = vsel %vm6029, 1, 0
        %v6144 = vsel %vm6030, 1, 0
        %v6145 = vsel %vm6031, 1, 0
        %v6146 = vsel %vm6032, 1, 0
        %v6147 = vsel %vm6033, 1, 0
        %v6148 = vsel %vm6034, 1, 0
        %v6149 = vsel %vm6035, 1, 0
        %v6150 = vsel %vm6036, 1, 0
        %v6151 = vsel %vm6037, 1, 0
        %v6152 = vsel %vm6038, 1, 0
        %v6153 = vsel %vm6039, 1, 0
        %v6154 = vsel %vm6040, 1, 0
        %v6155 = vsel %vm6041, 1, 0
        %v6156 = vsel %vm6042, 1, 0
        %v6157 = vsel %vm6043, 1, 0
        %v6158 = vsel %vm6044, 1, 0
        %v6159 = vsel %vm6045, 1, 0
        %v6160 = vsel %vm6046, 1, 0
        %v6161 = vsel %vm6047, 1, 0
        %v6162 = vsel %vm6048, 1, 0
        %v6163 = vsel %vm6049, 1, 0
        %v6164 = vsel %vm6050, 1, 0
        %v6165 = vsel %vm6051, 1, 0
        %v6166 = vsel %vm6052, 1, 0
        %v6167 = vsel %vm6053, 1, 0
        %v6168 = vsel %vm6054, 1, 0
        %v6169 = vsel %vm6055, 1, 0
        %v6170 = vsel %vm6056, 1, 0
        %v6171 = vsel %vm6057, 1, 0
        %v6172 = vsel %vm6058, 1, 0
        %v6173 = vsel %vm6059, 1, 0
        %v6174 = vsel %vm6060, 1, 0
        %v6175 = vsel %vm6061, 1, 0
        %v6176 = vsel %vm6062, 1, 0
        %v6177 = vsel %vm6063, 1, 0
        %v6178 = vsel %vm6064, 1, 0
        %v6179 = vsel %vm6065, 1, 0
        %v6180 = vsel %vm6066, 1, 0
        %v6181 = vsel %vm6067, 1, 0
        %v6182 = vsel %vm6068, 1, 0
        %v6183 = vsel %vm6069, 1, 0
        %v6184 = vsel %vm6070, 1, 0
        %v6185 = vsel %vm6071, 1, 0
        %v6186 = vsel %vm6072, 1, 0
        %v6187 = vsel %vm6073, 1, 0
        %v6188 = vsel %vm6074, 1, 0
        %v6189 = vsel %vm6075, 1, 0
        %v6190 = vsel %vm6076, 1, 0
        %v6191 = vsel %vm6077, 1, 0
        %v6192 = vsel %vm6078, 1, 0
        %v6193 = vsel %vm6079, 1, 0
        %v6194 = vsel %vm6080, 1, 0
        %v6195 = vsel %vm6081, 1, 0
        %v6196 = vsel %vm6082, 1, 0
        %v6197 = vsel %vm6083, 1, 0
        %v6198 = vsel %vm6084, 1, 0
        %v6199 = vsel %vm6085, 1, 0
        %v6200 = vsel %vm6086, 1, 0
        %v6201 = vsel %vm6087, 1, 0
        %v6202 = vsel %vm6088, 1, 0
        %v6203 = vsel %vm6089, 1, 0
        %v6204 = vsel %vm6090, 1, 0
        %v6205 = vsel %vm6091, 1, 0
        %v6206 = vsel %vm6092, 1, 0
        %v6207 = vsel %vm6093, 1, 0
        %v6208 = vsel %vm6094, 1, 0
        %v6209 = vsel %vm6095, 1, 0
        %v6210 = vsel %vm6096, 1, 0
        %v6211 = vsel %vm6097, 1, 0
        %v6212 = vsel %vm6098, 1, 0
        %v6213 = vsel %vm6099, 1, 0
        %v6214 = vsel %vm6100, 1, 0
        %v6215 = vsel %vm6101, 1, 0
        %v6216 = vsel %vm6102, 1, 0
        %v6217 = vsel %vm6103, 1, 0
        %v6218 = vsel %vm6104, 1, 0
        %v6219 = vsel %vm6105, 1, 0
        %v6220 = vsel %vm6106, 1, 0
        %v6221 = vsel %vm6107, 1, 0
        %v6222 = vcvt.s32.f32 %v6108
        %v6223 = vcvt.s32.f32 %v6109
        %v6224 = vcvt.s32.f32 %v6110
        %v6225 = vcvt.s32.f32 %v6111
        %v6226 = vcvt.s32.f32 %v6112
        %v6227 = vcvt.s32.f32 %v6113
        %v6228 = vcvt.s32.f32 %v6114
        %v6229 = vcvt.s32.f32 %v6115
        %v6230 = vcvt.s32.f32 %v6116
        %v6231 = vcvt.s32.f32 %v6117
        %v6232 = vcvt.s32.f32 %v6118
        %v6233 = vcvt.s32.f32 %v6119
        %v6234 = vcvt.s32.f32 %v6120
        %v6235 = vcvt.s32.f32 %v6121
        %v6236 = vcvt.s32.f32 %v6122
        %v6237 = vcvt.s32.f32 %v6123
        %v6238 = vcvt.s32.f32 %v6124
        %v6239 = vcvt.s32.f32 %v6125
        %v6240 = vcvt.s32.f32 %v6126
        %v6241 = vcvt.s32.f32 %v6127
        %v6242 = vcvt.s32.f32 %v6128
        %v6243 = vcvt.s32.f32 %v6129
        %v6244 = vcvt.s32.f32 %v6130
        %v6245 = vcvt.s32.f32 %v6131
        %v6246 = vcvt.s32.f32 %v6132
        %v6247 = vcvt.s32.f32 %v6133
        %v6248 = vcvt.s32.f32 %v6134
        %v6249 = vcvt.s32.f32 %v6135
        %v6250 = vcvt.s32.f32 %v6136
        %v6251 = vcvt.s32.f32 %v6137
        %v6252 = vcvt.s32.f32 %v6138
        %v6253 = vcvt.s32.f32 %v6139
        %v6254 = vcvt.s32.f32 %v6140
        %v6255 = vcvt.s32.f32 %v6141
        %v6256 = vcvt.s32.f32 %v6142
        %v6257 = vcvt.s32.f32 %v6143
        %v6258 = vcvt.s32.f32 %v6144
        %v6259 = vcvt.s32.f32 %v6145
        %v6260 = vcvt.s32.f32 %v6146
        %v6261 = vcvt.s32.f32 %v6147
        %v6262 = vcvt.s32.f32 %v6148
        %v6263 = vcvt.s32.f32 %v6149
        %v6264 = vcvt.s32.f32 %v6150
        %v6265 = vcvt.s32.f32 %v6151
        %v6266 = vcvt.s32.f32 %v6152
        %v6267 = vcvt.s32.f32 %v6153
        %v6268 = vcvt.s32.f32 %v6154
        %v6269 = vcvt.s32.f32 %v6155
        %v6270 = vcvt.s32.f32 %v6156
        %v6271 = vcvt.s32.f32 %v6157
        %v6272 = vcvt.s32.f32 %v6158
        %v6273 = vcvt.s32.f32 %v6159
        %v6274 = vcvt.s32.f32 %v6160
        %v6275 = vcvt.s32.f32 %v6161
        %v6276 = vcvt.s32.f32 %v6162
        %v6277 = vcvt.s32.f32 %v6163
        %v6278 = vcvt.s32.f32 %v6164
        %v6279 = vcvt.s32.f32 %v6165
        %v6280 = vcvt.s32.f32 %v6166
        %v6281 = vcvt.s32.f32 %v6167
        %v6282 = vcvt.s32.f32 %v6168
        %v6283 = vcvt.s32.f32 %v6169
        %v6284 = vcvt.s32.f32 %v6170
        %v6285 = vcvt.s32.f32 %v6171
        %v6286 = vcvt.s32.f32 %v6172
        %v6287 = vcvt.s32.f32 %v6173
        %v6288 = vcvt.s32.f32 %v6174
        %v6289 = vcvt.s32.f32 %v6175
        %v6290 = vcvt.s32.f32 %v6176
        %v6291 = vcvt.s32.f32 %v6177
        %v6292 = vcvt.s32.f32 %v6178
        %v6293 = vcvt.s32.f32 %v6179
        %v6294 = vcvt.s32.f32 %v6180
        %v6295 = vcvt.s32.f32 %v6181
        %v6296 = vcvt.s32.f32 %v6182
        %v6297 = vcvt.s32.f32 %v6183
        %v6298 = vcvt.s32.f32 %v6184
        %v6299 = vcvt.s32.f32 %v6185
        %v6300 = vcvt.s32.f32 %v6186
        %v6301 = vcvt.s32.f32 %v6187
        %v6302 = vcvt.s32.f32 %v6188
        %v6303 = vcvt.s32.f32 %v6189
        %v6304 = vcvt.s32.f32 %v6190
        %v6305 = vcvt.s32.f32 %v6191
        %v6306 = vcvt.s32.f32 %v6192
        %v6307 = vcvt.s32.f32 %v6193
        %v6308 = vcvt.s32.f32 %v6194
        %v6309 = vcvt.s32.f32 %v6195
        %v6310 = vcvt.s32.f32 %v6196
        %v6311 = vcvt.s32.f32 %v6197
        %v6312 = vcvt.s32.f32 %v6198
        %v6313 = vcvt.s32.f32 %v6199
        %v6314 = vcvt.s32.f32 %v6200
        %v6315 = vcvt.s32.f32 %v6201
        %v6316 = vcvt.s32.f32 %v6202
        %v6317 = vcvt.s32.f32 %v6203
        %v6318 = vcvt.s32.f32 %v6204
        %v6319 = vcvt.s32.f32 %v6205
        %v6320 = vcvt.s32.f32 %v6206
        %v6321 = vcvt.s32.f32 %v6207
        %v6322 = vcvt.s32.f32 %v6208
        %v6323 = vcvt.s32.f32 %v6209
        %v6324 = vcvt.s32.f32 %v6210
        %v6325 = vcvt.s32.f32 %v6211
        %v6326 = vcvt.s32.f32 %v6212
        %v6327 = vcvt.s32.f32 %v6213
        %v6328 = vcvt.s32.f32 %v6214
        %v6329 = vcvt.s32.f32 %v6215
        %v6330 = vcvt.s32.f32 %v6216
        %v6331 = vcvt.s32.f32 %v6217
        %v6332 = vcvt.s32.f32 %v6218
        %v6333 = vcvt.s32.f32 %v6219
        %v6334 = vcvt.s32.f32 %v6220
        %v6335 = vcvt.s32.f32 %v6221
        %v6337 = vsel %vm4097, %v6334, 0
        %v6340 = vsel %vm4097, %v6335, 0
        %6342 = vmatpush.msra.mxu0 %v6252
        %6343 = vmatpush.msra.mxu0 %v6250
        %6344 = vmatpush.msra.mxu0 %v6248
        %6345 = vmatpush.msra.mxu0 %v6246
        %6346 = vmatpush.msra.mxu0 %v6244
        %6347 = vmatpush.msra.mxu0 %v6242
        %6348 = vmatpush.msra.mxu0 %v6240
        %6349 = vmatpush.msra.mxu0 %v6238
        %6350 = vmatpush.msra.mxu0 %v6236
        %6351 = vmatpush.msra.mxu0 %v6234
        %6352 = vmatpush.msra.mxu0 %v6232
        %6353 = vmatpush.msra.mxu0 %v6230
        %6354 = vmatpush.msra.mxu0 %v6228
        %6355 = vmatpush.msra.mxu0 %v6226
        %6356 = vmatpush.msra.mxu0 %v6224
        %6357 = vmatpush.msra.mxu0 %v6222
        %6358 = vmatmul.f32.gmra.mxu0 %v2833
        %v6359 = vpop.f32.mrf.mxu0
        %v6360 = vadd.f32 0.0, %v6359
        %6361 = vmatmul.f32.gmra.mxu0 %v2837
        %v6362 = vpop.f32.mrf.mxu0
        %v6363 = vadd.f32 0.0, %v6362
        %6364 = vmatmul.f32.gmra.mxu0 %v2841
        %v6365 = vpop.f32.mrf.mxu0
        %v6366 = vadd.f32 0.0, %v6365
        %6367 = vmatmul.f32.gmra.mxu0 %v2845
        %v6368 = vpop.f32.mrf.mxu0
        %v6369 = vadd.f32 0.0, %v6368
        %6370 = vdwg.mxu0
        %6371 = vmatpush.msra.mxu0 %v6284
        %6372 = vmatpush.msra.mxu0 %v6282
        %6373 = vmatpush.msra.mxu0 %v6280
        %6374 = vmatpush.msra.mxu0 %v6278
        %6375 = vmatpush.msra.mxu0 %v6276
        %6376 = vmatpush.msra.mxu0 %v6274
        %6377 = vmatpush.msra.mxu0 %v6272
        %6378 = vmatpush.msra.mxu0 %v6270
        %6379 = vmatpush.msra.mxu0 %v6268
        %6380 = vmatpush.msra.mxu0 %v6266
        %6381 = vmatpush.msra.mxu0 %v6264
        %6382 = vmatpush.msra.mxu0 %v6262
        %6383 = vmatpush.msra.mxu0 %v6260
        %6384 = vmatpush.msra.mxu0 %v6258
        %6385 = vmatpush.msra.mxu0 %v6256
        %6386 = vmatpush.msra.mxu0 %v6254
        %6387 = vmatmul.f32.gmra.mxu0 %v2834
        %v6388 = vpop.f32.mrf.mxu0
        %v6389 = vadd.f32 %v6360, %v6388
        %6390 = vmatmul.f32.gmra.mxu0 %v2838
        %v6391 = vpop.f32.mrf.mxu0
        %v6392 = vadd.f32 %v6363, %v6391
        %6393 = vmatmul.f32.gmra.mxu0 %v2842
        %v6394 = vpop.f32.mrf.mxu0
        %v6395 = vadd.f32 %v6366, %v6394
        %6396 = vmatmul.f32.gmra.mxu0 %v2846
        %v6397 = vpop.f32.mrf.mxu0
        %v6398 = vadd.f32 %v6369, %v6397
        %6399 = vdwg.mxu0
        %6400 = vmatpush.msra.mxu0 %v6316
        %6401 = vmatpush.msra.mxu0 %v6314
        %6402 = vmatpush.msra.mxu0 %v6312
        %6403 = vmatpush.msra.mxu0 %v6310
        %6404 = vmatpush.msra.mxu0 %v6308
        %6405 = vmatpush.msra.mxu0 %v6306
        %6406 = vmatpush.msra.mxu0 %v6304
        %6407 = vmatpush.msra.mxu0 %v6302
        %6408 = vmatpush.msra.mxu0 %v6300
        %6409 = vmatpush.msra.mxu0 %v6298
        %6410 = vmatpush.msra.mxu0 %v6296
        %6411 = vmatpush.msra.mxu0 %v6294
        %6412 = vmatpush.msra.mxu0 %v6292
        %6413 = vmatpush.msra.mxu0 %v6290
        %6414 = vmatpush.msra.mxu0 %v6288
        %6415 = vmatpush.msra.mxu0 %v6286
        %6416 = vmatmul.f32.gmra.mxu0 %v2835
        %v6417 = vpop.f32.mrf.mxu0
        %v6418 = vadd.f32 %v6389, %v6417
        %6419 = vmatmul.f32.gmra.mxu0 %v2839
        %v6420 = vpop.f32.mrf.mxu0
        %v6421 = vadd.f32 %v6392, %v6420
        %6422 = vmatmul.f32.gmra.mxu0 %v2843
        %v6423 = vpop.f32.mrf.mxu0
        %v6424 = vadd.f32 %v6395, %v6423
        %6425 = vmatmul.f32.gmra.mxu0 %v2847
        %v6426 = vpop.f32.mrf.mxu0
        %v6427 = vadd.f32 %v6398, %v6426
        %6428 = vdwg.mxu0
        %6429 = vmatpush.msra.mxu0 0.0
        %6430 = vmatpush.msra.mxu0 0.0
        %6431 = vmatpush.msra.mxu0 0.0
        %6432 = vmatpush.msra.mxu0 0.0
        %6433 = vmatpush.msra.mxu0 0.0
        %6434 = vmatpush.msra.mxu0 0.0
        %6435 = vmatpush.msra.mxu0 0.0
        %6436 = vmatpush.msra.mxu0 %v6337
        %6437 = vmatpush.msra.mxu0 %v6332
        %6438 = vmatpush.msra.mxu0 %v6330
        %6439 = vmatpush.msra.mxu0 %v6328
        %6440 = vmatpush.msra.mxu0 %v6326
        %6441 = vmatpush.msra.mxu0 %v6324
        %6442 = vmatpush.msra.mxu0 %v6322
        %6443 = vmatpush.msra.mxu0 %v6320
        %6444 = vmatpush.msra.mxu0 %v6318
        %6445 = vmatmul.f32.gmra.mxu0 %v4086
        %v6446 = vpop.f32.mrf.mxu0
        %v6447 = vadd.f32 %v6418, %v6446
        %6448 = vmatmul.f32.gmra.mxu0 %v4089
        %v6449 = vpop.f32.mrf.mxu0
        %v6450 = vadd.f32 %v6421, %v6449
        %6451 = vmatmul.f32.gmra.mxu0 %v4092
        %v6452 = vpop.f32.mrf.mxu0
        %v6453 = vadd.f32 %v6424, %v6452
        %6454 = vmatmul.f32.gmra.mxu0 %v4095
        %v6455 = vpop.f32.mrf.mxu0
        %v6456 = vadd.f32 %v6427, %v6455
        %6457 = vdwg.mxu0
        %6458 = vmatpush.msra.mxu0 %v6253
        %6459 = vmatpush.msra.mxu0 %v6251
        %6460 = vmatpush.msra.mxu0 %v6249
        %6461 = vmatpush.msra.mxu0 %v6247
        %6462 = vmatpush.msra.mxu0 %v6245
        %6463 = vmatpush.msra.mxu0 %v6243
        %6464 = vmatpush.msra.mxu0 %v6241
        %6465 = vmatpush.msra.mxu0 %v6239
        %6466 = vmatpush.msra.mxu0 %v6237
        %6467 = vmatpush.msra.mxu0 %v6235
        %6468 = vmatpush.msra.mxu0 %v6233
        %6469 = vmatpush.msra.mxu0 %v6231
        %6470 = vmatpush.msra.mxu0 %v6229
        %6471 = vmatpush.msra.mxu0 %v6227
        %6472 = vmatpush.msra.mxu0 %v6225
        %6473 = vmatpush.msra.mxu0 %v6223
        %6474 = vmatmul.f32.gmra.mxu0 %v2833
        %v6475 = vpop.f32.mrf.mxu0
        %v6476 = vadd.f32 0.0, %v6475
        %6477 = vmatmul.f32.gmra.mxu0 %v2837
        %v6478 = vpop.f32.mrf.mxu0
        %v6479 = vadd.f32 0.0, %v6478
        %6480 = vmatmul.f32.gmra.mxu0 %v2841
        %v6481 = vpop.f32.mrf.mxu0
        %v6482 = vadd.f32 0.0, %v6481
        %6483 = vmatmul.f32.gmra.mxu0 %v2845
        %v6484 = vpop.f32.mrf.mxu0
        %v6485 = vadd.f32 0.0, %v6484
        %6486 = vdwg.mxu0
        %6487 = vmatpush.msra.mxu0 %v6285
        %6488 = vmatpush.msra.mxu0 %v6283
        %6489 = vmatpush.msra.mxu0 %v6281
        %6490 = vmatpush.msra.mxu0 %v6279
        %6491 = vmatpush.msra.mxu0 %v6277
        %6492 = vmatpush.msra.mxu0 %v6275
        %6493 = vmatpush.msra.mxu0 %v6273
        %6494 = vmatpush.msra.mxu0 %v6271
        %6495 = vmatpush.msra.mxu0 %v6269
        %6496 = vmatpush.msra.mxu0 %v6267
        %6497 = vmatpush.msra.mxu0 %v6265
        %6498 = vmatpush.msra.mxu0 %v6263
        %6499 = vmatpush.msra.mxu0 %v6261
        %6500 = vmatpush.msra.mxu0 %v6259
        %6501 = vmatpush.msra.mxu0 %v6257
        %6502 = vmatpush.msra.mxu0 %v6255
        %6503 = vmatmul.f32.gmra.mxu0 %v2834
        %v6504 = vpop.f32.mrf.mxu0
        %v6505 = vadd.f32 %v6476, %v6504
        %6506 = vmatmul.f32.gmra.mxu0 %v2838
        %v6507 = vpop.f32.mrf.mxu0
        %v6508 = vadd.f32 %v6479, %v6507
        %6509 = vmatmul.f32.gmra.mxu0 %v2842
        %v6510 = vpop.f32.mrf.mxu0
        %v6511 = vadd.f32 %v6482, %v6510
        %6512 = vmatmul.f32.gmra.mxu0 %v2846
        %v6513 = vpop.f32.mrf.mxu0
        %v6514 = vadd.f32 %v6485, %v6513
        %6515 = vdwg.mxu0
        %6516 = vmatpush.msra.mxu0 %v6317
        %6517 = vmatpush.msra.mxu0 %v6315
        %6518 = vmatpush.msra.mxu0 %v6313
        %6519 = vmatpush.msra.mxu0 %v6311
        %6520 = vmatpush.msra.mxu0 %v6309
        %6521 = vmatpush.msra.mxu0 %v6307
        %6522 = vmatpush.msra.mxu0 %v6305
        %6523 = vmatpush.msra.mxu0 %v6303
        %6524 = vmatpush.msra.mxu0 %v6301
        %6525 = vmatpush.msra.mxu0 %v6299
        %6526 = vmatpush.msra.mxu0 %v6297
        %6527 = vmatpush.msra.mxu0 %v6295
        %6528 = vmatpush.msra.mxu0 %v6293
        %6529 = vmatpush.msra.mxu0 %v6291
        %6530 = vmatpush.msra.mxu0 %v6289
        %6531 = vmatpush.msra.mxu0 %v6287
        %6532 = vmatmul.f32.gmra.mxu0 %v2835
        %v6533 = vpop.f32.mrf.mxu0
        %v6534 = vadd.f32 %v6505, %v6533
        %6535 = vmatmul.f32.gmra.mxu0 %v2839
        %v6536 = vpop.f32.mrf.mxu0
        %v6537 = vadd.f32 %v6508, %v6536
        %6538 = vmatmul.f32.gmra.mxu0 %v2843
        %v6539 = vpop.f32.mrf.mxu0
        %v6540 = vadd.f32 %v6511, %v6539
        %6541 = vmatmul.f32.gmra.mxu0 %v2847
        %v6542 = vpop.f32.mrf.mxu0
        %v6543 = vadd.f32 %v6514, %v6542
        %6544 = vdwg.mxu0
        %6545 = vmatpush.msra.mxu0 0.0
        %6546 = vmatpush.msra.mxu0 0.0
        %6547 = vmatpush.msra.mxu0 0.0
        %6548 = vmatpush.msra.mxu0 0.0
        %6549 = vmatpush.msra.mxu0 0.0
        %6550 = vmatpush.msra.mxu0 0.0
        %6551 = vmatpush.msra.mxu0 0.0
        %6552 = vmatpush.msra.mxu0 %v6340
        %6553 = vmatpush.msra.mxu0 %v6333
        %6554 = vmatpush.msra.mxu0 %v6331
        %6555 = vmatpush.msra.mxu0 %v6329
        %6556 = vmatpush.msra.mxu0 %v6327
        %6557 = vmatpush.msra.mxu0 %v6325
        %6558 = vmatpush.msra.mxu0 %v6323
        %6559 = vmatpush.msra.mxu0 %v6321
        %6560 = vmatpush.msra.mxu0 %v6319
        %6561 = vmatmul.f32.gmra.mxu0 %v4086
        %v6562 = vpop.f32.mrf.mxu0
        %v6563 = vadd.f32 %v6534, %v6562
        %6564 = vmatmul.f32.gmra.mxu0 %v4089
        %v6565 = vpop.f32.mrf.mxu0
        %v6566 = vadd.f32 %v6537, %v6565
        %6567 = vmatmul.f32.gmra.mxu0 %v4092
        %v6568 = vpop.f32.mrf.mxu0
        %v6569 = vadd.f32 %v6540, %v6568
        %6570 = vmatmul.f32.gmra.mxu0 %v4095
        %v6571 = vpop.f32.mrf.mxu0
        %v6572 = vadd.f32 %v6543, %v6571
        %6573 = vdwg.mxu0
        %v6574 = vld [vmem:[%s5] sm:$0xff]
        %v6575 = vld [vmem:[%s5 + $0x8] sm:$0xff]
        %v6576 = vld [vmem:[%s5 + $0x10] sm:$0xff]
        %v6577 = vld [vmem:[%s5 + $0x18] sm:$0xff]
        %v6578 = vld [vmem:[%s6] sm:$0xff]
        %v6579 = vld [vmem:[%s6 + $0x8] sm:$0xff]
        %v6580 = vld [vmem:[%s6 + $0x10] sm:$0xff]
        %v6581 = vld [vmem:[%s6 + $0x18] sm:$0xff]
        %6583 = vset.pattern.permute.xlu0 0
        %6584 = vperm.xlu0 %6583, %v6578
        %v6585 = vpop.permute.xlu0 %6584
        %6588 = vset.pattern.permute.xlu0 0
        %6589 = vperm.xlu0 %6588, %v6579
        %v6590 = vpop.permute.xlu0 %6589
        %6593 = vset.pattern.permute.xlu0 0
        %6594 = vperm.xlu0 %6593, %v6580
        %v6595 = vpop.permute.xlu0 %6594
        %6598 = vset.pattern.permute.xlu0 0
        %6599 = vperm.xlu0 %6598, %v6581
        %v6600 = vpop.permute.xlu0 %6599
        %vm6602 = vcmask 785408
        %v6604 = vsel %vm6602, %v6574, 0
        %v6607 = vsel %vm6602, %v6575, 0
        %v6610 = vsel %vm6602, %v6576, 0
        %v6613 = vsel %vm6602, %v6577, 0
        %6615 = vmatpush.msra.mxu0 0.0
        %6616 = vmatpush.msra.mxu0 0.0
        %6617 = vmatpush.msra.mxu0 0.0
        %6618 = vmatpush.msra.mxu0 0.0
        %6619 = vmatpush.msra.mxu0 %v4526
        %6620 = vmatpush.msra.mxu0 %v4523
        %6621 = vmatpush.msra.mxu0 %v4520
        %6622 = vmatpush.msra.mxu0 %v4517
        %6623 = vmatpush.msra.mxu0 %v4218
        %6624 = vmatpush.msra.mxu0 %v4215
        %6625 = vmatpush.msra.mxu0 %v4212
        %6626 = vmatpush.msra.mxu0 %v4209
        %6627 = vmatpush.msra.mxu0 %v454
        %6628 = vmatpush.msra.mxu0 %v452
        %6629 = vmatpush.msra.mxu0 %v450
        %6630 = vmatpush.msra.mxu0 %v448
        %6631 = vmatmul.f32.gmra.mxu0 %v6604
        %v6632 = vpop.f32.mrf.mxu0
        %v6633 = vadd.f32 %v6585, %v6632
        %6634 = vmatmul.f32.gmra.mxu0 %v6607
        %v6635 = vpop.f32.mrf.mxu0
        %v6636 = vadd.f32 %v6590, %v6635
        %6637 = vmatmul.f32.gmra.mxu0 %v6610
        %v6638 = vpop.f32.mrf.mxu0
        %v6639 = vadd.f32 %v6595, %v6638
        %6640 = vmatmul.f32.gmra.mxu0 %v6613
        %v6641 = vpop.f32.mrf.mxu0
        %v6642 = vadd.f32 %v6600, %v6641
        %6643 = vdwg.mxu0
        %6644 = vmatpush.msra.mxu0 0.0
        %6645 = vmatpush.msra.mxu0 0.0
        %6646 = vmatpush.msra.mxu0 0.0
        %6647 = vmatpush.msra.mxu0 0.0
        %6648 = vmatpush.msra.mxu0 %v4584
        %6649 = vmatpush.msra.mxu0 %v4581
        %6650 = vmatpush.msra.mxu0 %v4578
        %6651 = vmatpush.msra.mxu0 %v4575
        %6652 = vmatpush.msra.mxu0 %v4334
        %6653 = vmatpush.msra.mxu0 %v4331
        %6654 = vmatpush.msra.mxu0 %v4328
        %6655 = vmatpush.msra.mxu0 %v4325
        %6656 = vmatpush.msra.mxu0 %v455
        %6657 = vmatpush.msra.mxu0 %v453
        %6658 = vmatpush.msra.mxu0 %v451
        %6659 = vmatpush.msra.mxu0 %v449
        %6660 = vmatmul.f32.gmra.mxu0 %v6604
        %v6661 = vpop.f32.mrf.mxu0
        %v6662 = vadd.f32 %v6585, %v6661
        %6663 = vmatmul.f32.gmra.mxu0 %v6607
        %v6664 = vpop.f32.mrf.mxu0
        %v6665 = vadd.f32 %v6590, %v6664
        %6666 = vmatmul.f32.gmra.mxu0 %v6610
        %v6667 = vpop.f32.mrf.mxu0
        %v6668 = vadd.f32 %v6595, %v6667
        %6669 = vmatmul.f32.gmra.mxu0 %v6613
        %v6670 = vpop.f32.mrf.mxu0
        %v6671 = vadd.f32 %v6600, %v6670
        %6672 = vdwg.mxu0
        %6673 = vmatpush.msra.mxu0 0.0
        %6674 = vmatpush.msra.mxu0 0.0
        %6675 = vmatpush.msra.mxu0 0.0
        %6676 = vmatpush.msra.mxu0 0.0
        %6677 = vmatpush.msra.mxu0 %v5506
        %6678 = vmatpush.msra.mxu0 %v5503
        %6679 = vmatpush.msra.mxu0 %v5500
        %6680 = vmatpush.msra.mxu0 %v5497
        %6681 = vmatpush.msra.mxu0 %v5030
        %6682 = vmatpush.msra.mxu0 %v5027
        %6683 = vmatpush.msra.mxu0 %v5024
        %6684 = vmatpush.msra.mxu0 %v5021
        %6685 = vmatpush.msra.mxu0 %v2845
        %6686 = vmatpush.msra.mxu0 %v2841
        %6687 = vmatpush.msra.mxu0 %v2837
        %6688 = vmatpush.msra.mxu0 %v2833
        %6689 = vmatmul.f32.gmra.mxu0 %v6604
        %v6690 = vpop.f32.mrf.mxu0
        %v6691 = vadd.f32 %v6585, %v6690
        %6692 = vmatmul.f32.gmra.mxu0 %v6607
        %v6693 = vpop.f32.mrf.mxu0
        %v6694 = vadd.f32 %v6590, %v6693
        %6695 = vmatmul.f32.gmra.mxu0 %v6610
        %v6696 = vpop.f32.mrf.mxu0
        %v6697 = vadd.f32 %v6595, %v6696
        %6698 = vmatmul.f32.gmra.mxu0 %v6613
        %v6699 = vpop.f32.mrf.mxu0
        %v6700 = vadd.f32 %v6600, %v6699
        %6701 = vdwg.mxu0
        %6702 = vmatpush.msra.mxu0 0.0
        %6703 = vmatpush.msra.mxu0 0.0
        %6704 = vmatpush.msra.mxu0 0.0
        %6705 = vmatpush.msra.mxu0 0.0
        %6706 = vmatpush.msra.mxu0 %v5564
        %6707 = vmatpush.msra.mxu0 %v5561
        %6708 = vmatpush.msra.mxu0 %v5558
        %6709 = vmatpush.msra.mxu0 %v5555
        %6710 = vmatpush.msra.mxu0 %v5088
        %6711 = vmatpush.msra.mxu0 %v5085
        %6712 = vmatpush.msra.mxu0 %v5082
        %6713 = vmatpush.msra.mxu0 %v5079
        %6714 = vmatpush.msra.mxu0 %v2846
        %6715 = vmatpush.msra.mxu0 %v2842
        %6716 = vmatpush.msra.mxu0 %v2838
        %6717 = vmatpush.msra.mxu0 %v2834
        %6718 = vmatmul.f32.gmra.mxu0 %v6604
        %v6719 = vpop.f32.mrf.mxu0
        %v6720 = vadd.f32 %v6585, %v6719
        %6721 = vmatmul.f32.gmra.mxu0 %v6607
        %v6722 = vpop.f32.mrf.mxu0
        %v6723 = vadd.f32 %v6590, %v6722
        %6724 = vmatmul.f32.gmra.mxu0 %v6610
        %v6725 = vpop.f32.mrf.mxu0
        %v6726 = vadd.f32 %v6595, %v6725
        %6727 = vmatmul.f32.gmra.mxu0 %v6613
        %v6728 = vpop.f32.mrf.mxu0
        %v6729 = vadd.f32 %v6600, %v6728
        %6730 = vdwg.mxu0
        %6731 = vmatpush.msra.mxu0 0.0
        %6732 = vmatpush.msra.mxu0 0.0
        %6733 = vmatpush.msra.mxu0 0.0
        %6734 = vmatpush.msra.mxu0 0.0
        %6735 = vmatpush.msra.mxu0 %v5622
        %6736 = vmatpush.msra.mxu0 %v5619
        %6737 = vmatpush.msra.mxu0 %v5616
        %6738 = vmatpush.msra.mxu0 %v5613
        %6739 = vmatpush.msra.mxu0 %v5146
        %6740 = vmatpush.msra.mxu0 %v5143
        %6741 = vmatpush.msra.mxu0 %v5140
        %6742 = vmatpush.msra.mxu0 %v5137
        %6743 = vmatpush.msra.mxu0 %v2847
        %6744 = vmatpush.msra.mxu0 %v2843
        %6745 = vmatpush.msra.mxu0 %v2839
        %6746 = vmatpush.msra.mxu0 %v2835
        %6747 = vmatmul.f32.gmra.mxu0 %v6604
        %v6748 = vpop.f32.mrf.mxu0
        %v6749 = vadd.f32 %v6585, %v6748
        %6750 = vmatmul.f32.gmra.mxu0 %v6607
        %v6751 = vpop.f32.mrf.mxu0
        %v6752 = vadd.f32 %v6590, %v6751
        %6753 = vmatmul.f32.gmra.mxu0 %v6610
        %v6754 = vpop.f32.mrf.mxu0
        %v6755 = vadd.f32 %v6595, %v6754
        %6756 = vmatmul.f32.gmra.mxu0 %v6613
        %v6757 = vpop.f32.mrf.mxu0
        %v6758 = vadd.f32 %v6600, %v6757
        %6759 = vdwg.mxu0
        %6760 = vmatpush.msra.mxu0 0.0
        %6761 = vmatpush.msra.mxu0 0.0
        %6762 = vmatpush.msra.mxu0 0.0
        %6763 = vmatpush.msra.mxu0 0.0
        %6764 = vmatpush.msra.mxu0 %v5680
        %6765 = vmatpush.msra.mxu0 %v5677
        %6766 = vmatpush.msra.mxu0 %v5674
        %6767 = vmatpush.msra.mxu0 %v5671
        %6768 = vmatpush.msra.mxu0 %v5204
        %6769 = vmatpush.msra.mxu0 %v5201
        %6770 = vmatpush.msra.mxu0 %v5198
        %6771 = vmatpush.msra.mxu0 %v5195
        %6772 = vmatpush.msra.mxu0 %v2848
        %6773 = vmatpush.msra.mxu0 %v2844
        %6774 = vmatpush.msra.mxu0 %v2840
        %6775 = vmatpush.msra.mxu0 %v2836
        %6776 = vmatmul.f32.gmra.mxu0 %v6604
        %v6777 = vpop.f32.mrf.mxu0
        %v6778 = vadd.f32 %v6585, %v6777
        %6779 = vmatmul.f32.gmra.mxu0 %v6607
        %v6780 = vpop.f32.mrf.mxu0
        %v6781 = vadd.f32 %v6590, %v6780
        %6782 = vmatmul.f32.gmra.mxu0 %v6610
        %v6783 = vpop.f32.mrf.mxu0
        %v6784 = vadd.f32 %v6595, %v6783
        %6785 = vmatmul.f32.gmra.mxu0 %v6613
        %v6786 = vpop.f32.mrf.mxu0
        %v6787 = vadd.f32 %v6600, %v6786
        %6788 = vdwg.mxu0
        %6789 = vmatpush.msra.mxu0 0.0
        %6790 = vmatpush.msra.mxu0 0.0
        %6791 = vmatpush.msra.mxu0 0.0
        %6792 = vmatpush.msra.mxu0 0.0
        %6793 = vmatpush.msra.mxu0 %v5932
        %6794 = vmatpush.msra.mxu0 %v5929
        %6795 = vmatpush.msra.mxu0 %v5926
        %6796 = vmatpush.msra.mxu0 %v5923
        %6797 = vmatpush.msra.mxu0 %v6456
        %6798 = vmatpush.msra.mxu0 %v6453
        %6799 = vmatpush.msra.mxu0 %v6450
        %6800 = vmatpush.msra.mxu0 %v6447
        %6801 = vmatpush.msra.mxu0 %v3671
        %6802 = vmatpush.msra.mxu0 %v3669
        %6803 = vmatpush.msra.mxu0 %v3667
        %6804 = vmatpush.msra.mxu0 %v3665
        %6805 = vmatmul.f32.gmra.mxu0 %v6604
        %v6806 = vpop.f32.mrf.mxu0
        %v6807 = vadd.f32 %v6585, %v6806
        %6808 = vmatmul.f32.gmra.mxu0 %v6607
        %v6809 = vpop.f32.mrf.mxu0
        %v6810 = vadd.f32 %v6590, %v6809
        %6811 = vmatmul.f32.gmra.mxu0 %v6610
        %v6812 = vpop.f32.mrf.mxu0
        %v6813 = vadd.f32 %v6595, %v6812
        %6814 = vmatmul.f32.gmra.mxu0 %v6613
        %v6815 = vpop.f32.mrf.mxu0
        %v6816 = vadd.f32 %v6600, %v6815
        %6817 = vdwg.mxu0
        %6818 = vmatpush.msra.mxu0 0.0
        %6819 = vmatpush.msra.mxu0 0.0
        %6820 = vmatpush.msra.mxu0 0.0
        %6821 = vmatpush.msra.mxu0 0.0
        %6822 = vmatpush.msra.mxu0 %v5990
        %6823 = vmatpush.msra.mxu0 %v5987
        %6824 = vmatpush.msra.mxu0 %v5984
        %6825 = vmatpush.msra.mxu0 %v5981
        %6826 = vmatpush.msra.mxu0 %v6572
        %6827 = vmatpush.msra.mxu0 %v6569
        %6828 = vmatpush.msra.mxu0 %v6566
        %6829 = vmatpush.msra.mxu0 %v6563
        %6830 = vmatpush.msra.mxu0 %v3672
        %6831 = vmatpush.msra.mxu0 %v3670
        %6832 = vmatpush.msra.mxu0 %v3668
        %6833 = vmatpush.msra.mxu0 %v3666
        %6834 = vmatmul.f32.gmra.mxu0 %v6604
        %v6835 = vpop.f32.mrf.mxu0
        %v6836 = vadd.f32 %v6585, %v6835
        %6837 = vmatmul.f32.gmra.mxu0 %v6607
        %v6838 = vpop.f32.mrf.mxu0
        %v6839 = vadd.f32 %v6590, %v6838
        %6840 = vmatmul.f32.gmra.mxu0 %v6610
        %v6841 = vpop.f32.mrf.mxu0
        %v6842 = vadd.f32 %v6595, %v6841
        %6843 = vmatmul.f32.gmra.mxu0 %v6613
        %v6844 = vpop.f32.mrf.mxu0
        %v6845 = vadd.f32 %v6600, %v6844
        %6846 = vdwg.mxu0
        %v6848 = vsel %vm4084, %v6778, 0
        %v6851 = vsel %vm4084, %v6781, 0
        %v6854 = vsel %vm4084, %v6784, 0
        %v6857 = vsel %vm4084, %v6787, 0
        %6859 = vmatpush.msra.mxu0 %v4000
        %6860 = vmatpush.msra.mxu0 %v3998
        %6861 = vmatpush.msra.mxu0 %v3996
        %6862 = vmatpush.msra.mxu0 %v3994
        %6863 = vmatpush.msra.mxu0 %v3992
        %6864 = vmatpush.msra.mxu0 %v3990
        %6865 = vmatpush.msra.mxu0 %v3988
        %6866 = vmatpush.msra.mxu0 %v3986
        %6867 = vmatpush.msra.mxu0 %v3984
        %6868 = vmatpush.msra.mxu0 %v3982
        %6869 = vmatpush.msra.mxu0 %v3980
        %6870 = vmatpush.msra.mxu0 %v3978
        %6871 = vmatpush.msra.mxu0 %v3976
        %6872 = vmatpush.msra.mxu0 %v3974
        %6873 = vmatpush.msra.mxu0 %v3972
        %6874 = vmatpush.msra.mxu0 %v3970
        %6875 = vmatmul.f32.gmra.mxu0 %v6691
        %v6876 = vpop.f32.mrf.mxu0
        %v6877 = vadd.f32 0.0, %v6876
        %6878 = vmatmul.f32.gmra.mxu0 %v6694
        %v6879 = vpop.f32.mrf.mxu0
        %v6880 = vadd.f32 0.0, %v6879
        %6881 = vmatmul.f32.gmra.mxu0 %v6697
        %v6882 = vpop.f32.mrf.mxu0
        %v6883 = vadd.f32 0.0, %v6882
        %6884 = vmatmul.f32.gmra.mxu0 %v6700
        %v6885 = vpop.f32.mrf.mxu0
        %v6886 = vadd.f32 0.0, %v6885
        %6887 = vdwg.mxu0
        %6888 = vmatpush.msra.mxu0 %v4032
        %6889 = vmatpush.msra.mxu0 %v4030
        %6890 = vmatpush.msra.mxu0 %v4028
        %6891 = vmatpush.msra.mxu0 %v4026
        %6892 = vmatpush.msra.mxu0 %v4024
        %6893 = vmatpush.msra.mxu0 %v4022
        %6894 = vmatpush.msra.mxu0 %v4020
        %6895 = vmatpush.msra.mxu0 %v4018
        %6896 = vmatpush.msra.mxu0 %v4016
        %6897 = vmatpush.msra.mxu0 %v4014
        %6898 = vmatpush.msra.mxu0 %v4012
        %6899 = vmatpush.msra.mxu0 %v4010
        %6900 = vmatpush.msra.mxu0 %v4008
        %6901 = vmatpush.msra.mxu0 %v4006
        %6902 = vmatpush.msra.mxu0 %v4004
        %6903 = vmatpush.msra.mxu0 %v4002
        %6904 = vmatmul.f32.gmra.mxu0 %v6720
        %v6905 = vpop.f32.mrf.mxu0
        %v6906 = vadd.f32 %v6877, %v6905
        %6907 = vmatmul.f32.gmra.mxu0 %v6723
        %v6908 = vpop.f32.mrf.mxu0
        %v6909 = vadd.f32 %v6880, %v6908
        %6910 = vmatmul.f32.gmra.mxu0 %v6726
        %v6911 = vpop.f32.mrf.mxu0
        %v6912 = vadd.f32 %v6883, %v6911
        %6913 = vmatmul.f32.gmra.mxu0 %v6729
        %v6914 = vpop.f32.mrf.mxu0
        %v6915 = vadd.f32 %v6886, %v6914
        %6916 = vdwg.mxu0
        %6917 = vmatpush.msra.mxu0 %v4064
        %6918 = vmatpush.msra.mxu0 %v4062
        %6919 = vmatpush.msra.mxu0 %v4060
        %6920 = vmatpush.msra.mxu0 %v4058
        %6921 = vmatpush.msra.mxu0 %v4056
        %6922 = vmatpush.msra.mxu0 %v4054
        %6923 = vmatpush.msra.mxu0 %v4052
        %6924 = vmatpush.msra.mxu0 %v4050
        %6925 = vmatpush.msra.mxu0 %v4048
        %6926 = vmatpush.msra.mxu0 %v4046
        %6927 = vmatpush.msra.mxu0 %v4044
        %6928 = vmatpush.msra.mxu0 %v4042
        %6929 = vmatpush.msra.mxu0 %v4040
        %6930 = vmatpush.msra.mxu0 %v4038
        %6931 = vmatpush.msra.mxu0 %v4036
        %6932 = vmatpush.msra.mxu0 %v4034
        %6933 = vmatmul.f32.gmra.mxu0 %v6749
        %v6934 = vpop.f32.mrf.mxu0
        %v6935 = vadd.f32 %v6906, %v6934
        %6936 = vmatmul.f32.gmra.mxu0 %v6752
        %v6937 = vpop.f32.mrf.mxu0
        %v6938 = vadd.f32 %v6909, %v6937
        %6939 = vmatmul.f32.gmra.mxu0 %v6755
        %v6940 = vpop.f32.mrf.mxu0
        %v6941 = vadd.f32 %v6912, %v6940
        %6942 = vmatmul.f32.gmra.mxu0 %v6758
        %v6943 = vpop.f32.mrf.mxu0
        %v6944 = vadd.f32 %v6915, %v6943
        %6945 = vdwg.mxu0
        %6946 = vmatpush.msra.mxu0 0.0
        %6947 = vmatpush.msra.mxu0 0.0
        %6948 = vmatpush.msra.mxu0 0.0
        %6949 = vmatpush.msra.mxu0 0.0
        %6950 = vmatpush.msra.mxu0 0.0
        %6951 = vmatpush.msra.mxu0 0.0
        %6952 = vmatpush.msra.mxu0 0.0
        %6953 = vmatpush.msra.mxu0 %v4099
        %6954 = vmatpush.msra.mxu0 %v4080
        %6955 = vmatpush.msra.mxu0 %v4078
        %6956 = vmatpush.msra.mxu0 %v4076
        %6957 = vmatpush.msra.mxu0 %v4074
        %6958 = vmatpush.msra.mxu0 %v4072
        %6959 = vmatpush.msra.mxu0 %v4070
        %6960 = vmatpush.msra.mxu0 %v4068
        %6961 = vmatpush.msra.mxu0 %v4066
        %6962 = vmatmul.f32.gmra.mxu0 %v6848
        %v6963 = vpop.f32.mrf.mxu0
        %v6964 = vadd.f32 %v6935, %v6963
        %6965 = vmatmul.f32.gmra.mxu0 %v6851
        %v6966 = vpop.f32.mrf.mxu0
        %v6967 = vadd.f32 %v6938, %v6966
        %6968 = vmatmul.f32.gmra.mxu0 %v6854
        %v6969 = vpop.f32.mrf.mxu0
        %v6970 = vadd.f32 %v6941, %v6969
        %6971 = vmatmul.f32.gmra.mxu0 %v6857
        %v6972 = vpop.f32.mrf.mxu0
        %v6973 = vadd.f32 %v6944, %v6972
        %6974 = vdwg.mxu0
        %6975 = vmatpush.msra.mxu0 %v4001
        %6976 = vmatpush.msra.mxu0 %v3999
        %6977 = vmatpush.msra.mxu0 %v3997
        %6978 = vmatpush.msra.mxu0 %v3995
        %6979 = vmatpush.msra.mxu0 %v3993
        %6980 = vmatpush.msra.mxu0 %v3991
        %6981 = vmatpush.msra.mxu0 %v3989
        %6982 = vmatpush.msra.mxu0 %v3987
        %6983 = vmatpush.msra.mxu0 %v3985
        %6984 = vmatpush.msra.mxu0 %v3983
        %6985 = vmatpush.msra.mxu0 %v3981
        %6986 = vmatpush.msra.mxu0 %v3979
        %6987 = vmatpush.msra.mxu0 %v3977
        %6988 = vmatpush.msra.mxu0 %v3975
        %6989 = vmatpush.msra.mxu0 %v3973
        %6990 = vmatpush.msra.mxu0 %v3971
        %6991 = vmatmul.f32.gmra.mxu0 %v6691
        %v6992 = vpop.f32.mrf.mxu0
        %v6993 = vadd.f32 0.0, %v6992
        %6994 = vmatmul.f32.gmra.mxu0 %v6694
        %v6995 = vpop.f32.mrf.mxu0
        %v6996 = vadd.f32 0.0, %v6995
        %6997 = vmatmul.f32.gmra.mxu0 %v6697
        %v6998 = vpop.f32.mrf.mxu0
        %v6999 = vadd.f32 0.0, %v6998
        %7000 = vmatmul.f32.gmra.mxu0 %v6700
        %v7001 = vpop.f32.mrf.mxu0
        %v7002 = vadd.f32 0.0, %v7001
        %7003 = vdwg.mxu0
        %7004 = vmatpush.msra.mxu0 %v4033
        %7005 = vmatpush.msra.mxu0 %v4031
        %7006 = vmatpush.msra.mxu0 %v4029
        %7007 = vmatpush.msra.mxu0 %v4027
        %7008 = vmatpush.msra.mxu0 %v4025
        %7009 = vmatpush.msra.mxu0 %v4023
        %7010 = vmatpush.msra.mxu0 %v4021
        %7011 = vmatpush.msra.mxu0 %v4019
        %7012 = vmatpush.msra.mxu0 %v4017
        %7013 = vmatpush.msra.mxu0 %v4015
        %7014 = vmatpush.msra.mxu0 %v4013
        %7015 = vmatpush.msra.mxu0 %v4011
        %7016 = vmatpush.msra.mxu0 %v4009
        %7017 = vmatpush.msra.mxu0 %v4007
        %7018 = vmatpush.msra.mxu0 %v4005
        %7019 = vmatpush.msra.mxu0 %v4003
        %7020 = vmatmul.f32.gmra.mxu0 %v6720
        %v7021 = vpop.f32.mrf.mxu0
        %v7022 = vadd.f32 %v6993, %v7021
        %7023 = vmatmul.f32.gmra.mxu0 %v6723
        %v7024 = vpop.f32.mrf.mxu0
        %v7025 = vadd.f32 %v6996, %v7024
        %7026 = vmatmul.f32.gmra.mxu0 %v6726
        %v7027 = vpop.f32.mrf.mxu0
        %v7028 = vadd.f32 %v6999, %v7027
        %7029 = vmatmul.f32.gmra.mxu0 %v6729
        %v7030 = vpop.f32.mrf.mxu0
        %v7031 = vadd.f32 %v7002, %v7030
        %7032 = vdwg.mxu0
        %7033 = vmatpush.msra.mxu0 %v4065
        %7034 = vmatpush.msra.mxu0 %v4063
        %7035 = vmatpush.msra.mxu0 %v4061
        %7036 = vmatpush.msra.mxu0 %v4059
        %7037 = vmatpush.msra.mxu0 %v4057
        %7038 = vmatpush.msra.mxu0 %v4055
        %7039 = vmatpush.msra.mxu0 %v4053
        %7040 = vmatpush.msra.mxu0 %v4051
        %7041 = vmatpush.msra.mxu0 %v4049
        %7042 = vmatpush.msra.mxu0 %v4047
        %7043 = vmatpush.msra.mxu0 %v4045
        %7044 = vmatpush.msra.mxu0 %v4043
        %7045 = vmatpush.msra.mxu0 %v4041
        %7046 = vmatpush.msra.mxu0 %v4039
        %7047 = vmatpush.msra.mxu0 %v4037
        %7048 = vmatpush.msra.mxu0 %v4035
        %7049 = vmatmul.f32.gmra.mxu0 %v6749
        %v7050 = vpop.f32.mrf.mxu0
        %v7051 = vadd.f32 %v7022, %v7050
        %7052 = vmatmul.f32.gmra.mxu0 %v6752
        %v7053 = vpop.f32.mrf.mxu0
        %v7054 = vadd.f32 %v7025, %v7053
        %7055 = vmatmul.f32.gmra.mxu0 %v6755
        %v7056 = vpop.f32.mrf.mxu0
        %v7057 = vadd.f32 %v7028, %v7056
        %7058 = vmatmul.f32.gmra.mxu0 %v6758
        %v7059 = vpop.f32.mrf.mxu0
        %v7060 = vadd.f32 %v7031, %v7059
        %7061 = vdwg.mxu0
        %7062 = vmatpush.msra.mxu0 0.0
        %7063 = vmatpush.msra.mxu0 0.0
        %7064 = vmatpush.msra.mxu0 0.0
        %7065 = vmatpush.msra.mxu0 0.0
        %7066 = vmatpush.msra.mxu0 0.0
        %7067 = vmatpush.msra.mxu0 0.0
        %7068 = vmatpush.msra.mxu0 0.0
        %7069 = vmatpush.msra.mxu0 %v4102
        %7070 = vmatpush.msra.mxu0 %v4081
        %7071 = vmatpush.msra.mxu0 %v4079
        %7072 = vmatpush.msra.mxu0 %v4077
        %7073 = vmatpush.msra.mxu0 %v4075
        %7074 = vmatpush.msra.mxu0 %v4073
        %7075 = vmatpush.msra.mxu0 %v4071
        %7076 = vmatpush.msra.mxu0 %v4069
        %7077 = vmatpush.msra.mxu0 %v4067
        %7078 = vmatmul.f32.gmra.mxu0 %v6848
        %v7079 = vpop.f32.mrf.mxu0
        %v7080 = vadd.f32 %v7051, %v7079
        %7081 = vmatmul.f32.gmra.mxu0 %v6851
        %v7082 = vpop.f32.mrf.mxu0
        %v7083 = vadd.f32 %v7054, %v7082
        %7084 = vmatmul.f32.gmra.mxu0 %v6854
        %v7085 = vpop.f32.mrf.mxu0
        %v7086 = vadd.f32 %v7057, %v7085
        %7087 = vmatmul.f32.gmra.mxu0 %v6857
        %v7088 = vpop.f32.mrf.mxu0
        %v7089 = vadd.f32 %v7060, %v7088
        %7090 = vdwg.mxu0
        %v7092 = vsel %vm1086, %v6836, 0
        %v7095 = vsel %vm1086, %v6839, 0
        %v7098 = vsel %vm1086, %v6842, 0
        %v7101 = vsel %vm1086, %v6845, 0
        %7103 = vmatpush.msra.mxu0 %v4448
        %7104 = vmatpush.msra.mxu0 %v4446
        %7105 = vmatpush.msra.mxu0 %v4444
        %7106 = vmatpush.msra.mxu0 %v4442
        %7107 = vmatpush.msra.mxu0 %v4440
        %7108 = vmatpush.msra.mxu0 %v4438
        %7109 = vmatpush.msra.mxu0 %v4436
        %7110 = vmatpush.msra.mxu0 %v4434
        %7111 = vmatpush.msra.mxu0 %v4432
        %7112 = vmatpush.msra.mxu0 %v4430
        %7113 = vmatpush.msra.mxu0 %v4428
        %7114 = vmatpush.msra.mxu0 %v4426
        %7115 = vmatpush.msra.mxu0 %v4424
        %7116 = vmatpush.msra.mxu0 %v4422
        %7117 = vmatpush.msra.mxu0 %v4420
        %7118 = vmatpush.msra.mxu0 %v4418
        %7119 = vmatmul.f32.gmra.mxu0 %v6807
        %v7120 = vpop.f32.mrf.mxu0
        %v7121 = vadd.f32 0.0, %v7120
        %7122 = vmatmul.f32.gmra.mxu0 %v6810
        %v7123 = vpop.f32.mrf.mxu0
        %v7124 = vadd.f32 0.0, %v7123
        %7125 = vmatmul.f32.gmra.mxu0 %v6813
        %v7126 = vpop.f32.mrf.mxu0
        %v7127 = vadd.f32 0.0, %v7126
        %7128 = vmatmul.f32.gmra.mxu0 %v6816
        %v7129 = vpop.f32.mrf.mxu0
        %v7130 = vadd.f32 0.0, %v7129
        %7131 = vdwg.mxu0
        %7132 = vmatpush.msra.mxu0 0.0
        %7133 = vmatpush.msra.mxu0 0.0
        %7134 = vmatpush.msra.mxu0 0.0
        %7135 = vmatpush.msra.mxu0 0.0
        %7136 = vmatpush.msra.mxu0 0.0
        %7137 = vmatpush.msra.mxu0 0.0
        %7138 = vmatpush.msra.mxu0 0.0
        %7139 = vmatpush.msra.mxu0 0.0
        %7140 = vmatpush.msra.mxu0 0.0
        %7141 = vmatpush.msra.mxu0 0.0
        %7142 = vmatpush.msra.mxu0 0.0
        %7143 = vmatpush.msra.mxu0 0.0
        %7144 = vmatpush.msra.mxu0 %v4456
        %7145 = vmatpush.msra.mxu0 %v4454
        %7146 = vmatpush.msra.mxu0 %v4452
        %7147 = vmatpush.msra.mxu0 %v4450
        %7148 = vmatmul.f32.gmra.mxu0 %v7092
        %v7149 = vpop.f32.mrf.mxu0
        %v7150 = vadd.f32 %v7121, %v7149
        %7151 = vmatmul.f32.gmra.mxu0 %v7095
        %v7152 = vpop.f32.mrf.mxu0
        %v7153 = vadd.f32 %v7124, %v7152
        %7154 = vmatmul.f32.gmra.mxu0 %v7098
        %v7155 = vpop.f32.mrf.mxu0
        %v7156 = vadd.f32 %v7127, %v7155
        %7157 = vmatmul.f32.gmra.mxu0 %v7101
        %v7158 = vpop.f32.mrf.mxu0
        %v7159 = vadd.f32 %v7130, %v7158
        %7160 = vdwg.mxu0
        %7161 = vmatpush.msra.mxu0 %v4449
        %7162 = vmatpush.msra.mxu0 %v4447
        %7163 = vmatpush.msra.mxu0 %v4445
        %7164 = vmatpush.msra.mxu0 %v4443
        %7165 = vmatpush.msra.mxu0 %v4441
        %7166 = vmatpush.msra.mxu0 %v4439
        %7167 = vmatpush.msra.mxu0 %v4437
        %7168 = vmatpush.msra.mxu0 %v4435
        %7169 = vmatpush.msra.mxu0 %v4433
        %7170 = vmatpush.msra.mxu0 %v4431
        %7171 = vmatpush.msra.mxu0 %v4429
        %7172 = vmatpush.msra.mxu0 %v4427
        %7173 = vmatpush.msra.mxu0 %v4425
        %7174 = vmatpush.msra.mxu0 %v4423
        %7175 = vmatpush.msra.mxu0 %v4421
        %7176 = vmatpush.msra.mxu0 %v4419
        %7177 = vmatmul.f32.gmra.mxu0 %v6807
        %v7178 = vpop.f32.mrf.mxu0
        %v7179 = vadd.f32 0.0, %v7178
        %7180 = vmatmul.f32.gmra.mxu0 %v6810
        %v7181 = vpop.f32.mrf.mxu0
        %v7182 = vadd.f32 0.0, %v7181
        %7183 = vmatmul.f32.gmra.mxu0 %v6813
        %v7184 = vpop.f32.mrf.mxu0
        %v7185 = vadd.f32 0.0, %v7184
        %7186 = vmatmul.f32.gmra.mxu0 %v6816
        %v7187 = vpop.f32.mrf.mxu0
        %v7188 = vadd.f32 0.0, %v7187
        %7189 = vdwg.mxu0
        %7190 = vmatpush.msra.mxu0 0.0
        %7191 = vmatpush.msra.mxu0 0.0
        %7192 = vmatpush.msra.mxu0 0.0
        %7193 = vmatpush.msra.mxu0 0.0
        %7194 = vmatpush.msra.mxu0 0.0
        %7195 = vmatpush.msra.mxu0 0.0
        %7196 = vmatpush.msra.mxu0 0.0
        %7197 = vmatpush.msra.mxu0 0.0
        %7198 = vmatpush.msra.mxu0 0.0
        %7199 = vmatpush.msra.mxu0 0.0
        %7200 = vmatpush.msra.mxu0 0.0
        %7201 = vmatpush.msra.mxu0 0.0
        %7202 = vmatpush.msra.mxu0 %v4457
        %7203 = vmatpush.msra.mxu0 %v4455
        %7204 = vmatpush.msra.mxu0 %v4453
        %7205 = vmatpush.msra.mxu0 %v4451
        %7206 = vmatmul.f32.gmra.mxu0 %v7092
        %v7207 = vpop.f32.mrf.mxu0
        %v7208 = vadd.f32 %v7179, %v7207
        %7209 = vmatmul.f32.gmra.mxu0 %v7095
        %v7210 = vpop.f32.mrf.mxu0
        %v7211 = vadd.f32 %v7182, %v7210
        %7212 = vmatmul.f32.gmra.mxu0 %v7098
        %v7213 = vpop.f32.mrf.mxu0
        %v7214 = vadd.f32 %v7185, %v7213
        %7215 = vmatmul.f32.gmra.mxu0 %v7101
        %v7216 = vpop.f32.mrf.mxu0
        %v7217 = vadd.f32 %v7188, %v7216
        %7218 = vdwg.mxu0
        %v7219 = vld [vmem:[%s7] sm:$0xff]
        %v7220 = vld [vmem:[%s7 + $0x8] sm:$0xff]
        %v7221 = vld [vmem:[%s7 + $0x10] sm:$0xff]
        %v7222 = vld [vmem:[%s7 + $0x18] sm:$0xff]
        %v7223 = vld [vmem:[%s7 + $0x20] sm:$0xff]
        %v7224 = vld [vmem:[%s8] sm:$0xff]
        %v7225 = vld [vmem:[%s8 + $0x8] sm:$0xff]
        %v7226 = vld [vmem:[%s8 + $0x10] sm:$0xff]
        %v7227 = vld [vmem:[%s8 + $0x18] sm:$0xff]
        %v7228 = vld [vmem:[%s8 + $0x20] sm:$0xff]
        %7230 = vset.pattern.permute.xlu0 0
        %7231 = vperm.xlu0 %7230, %v7224
        %v7232 = vpop.permute.xlu0 %7231
        %7235 = vset.pattern.permute.xlu0 0
        %7236 = vperm.xlu0 %7235, %v7225
        %v7237 = vpop.permute.xlu0 %7236
        %7240 = vset.pattern.permute.xlu0 0
        %7241 = vperm.xlu0 %7240, %v7226
        %v7242 = vpop.permute.xlu0 %7241
        %7245 = vset.pattern.permute.xlu0 0
        %7246 = vperm.xlu0 %7245, %v7227
        %v7247 = vpop.permute.xlu0 %7246
        %7250 = vset.pattern.permute.xlu0 0
        %7251 = vperm.xlu0 %7250, %v7228
        %v7252 = vpop.permute.xlu0 %7251
        %v7255 = vsel %vm6602, %v7219, 0
        %v7258 = vsel %vm6602, %v7220, 0
        %v7261 = vsel %vm6602, %v7221, 0
        %v7264 = vsel %vm6602, %v7222, 0
        %v7267 = vsel %vm6602, %v7223, 0
        %7269 = vmatpush.msra.mxu0 0.0
        %7270 = vmatpush.msra.mxu0 0.0
        %7271 = vmatpush.msra.mxu0 0.0
        %7272 = vmatpush.msra.mxu0 0.0
        %7273 = vmatpush.msra.mxu0 %v7159
        %7274 = vmatpush.msra.mxu0 %v7156
        %7275 = vmatpush.msra.mxu0 %v7153
        %7276 = vmatpush.msra.mxu0 %v7150
        %7277 = vmatpush.msra.mxu0 %v6973
        %7278 = vmatpush.msra.mxu0 %v6970
        %7279 = vmatpush.msra.mxu0 %v6967
        %7280 = vmatpush.msra.mxu0 %v6964
        %7281 = vmatpush.msra.mxu0 %v6642
        %7282 = vmatpush.msra.mxu0 %v6639
        %7283 = vmatpush.msra.mxu0 %v6636
        %7284 = vmatpush.msra.mxu0 %v6633
        %7285 = vmatmul.f32.gmra.mxu0 %v7255
        %v7286 = vpop.f32.mrf.mxu0
        %v7287 = vadd.f32 %v7232, %v7286
        %7288 = vmatmul.f32.gmra.mxu0 %v7258
        %v7289 = vpop.f32.mrf.mxu0
        %v7290 = vadd.f32 %v7237, %v7289
        %7291 = vmatmul.f32.gmra.mxu0 %v7261
        %v7292 = vpop.f32.mrf.mxu0
        %v7293 = vadd.f32 %v7242, %v7292
        %7294 = vmatmul.f32.gmra.mxu0 %v7264
        %v7295 = vpop.f32.mrf.mxu0
        %v7296 = vadd.f32 %v7247, %v7295
        %7297 = vmatmul.f32.gmra.mxu0 %v7267
        %v7298 = vpop.f32.mrf.mxu0
        %v7299 = vadd.f32 %v7252, %v7298
        %7300 = vdwg.mxu0
        %7301 = vmatpush.msra.mxu0 0.0
        %7302 = vmatpush.msra.mxu0 0.0
        %7303 = vmatpush.msra.mxu0 0.0
        %7304 = vmatpush.msra.mxu0 0.0
        %7305 = vmatpush.msra.mxu0 %v7217
        %7306 = vmatpush.msra.mxu0 %v7214
        %7307 = vmatpush.msra.mxu0 %v7211
        %7308 = vmatpush.msra.mxu0 %v7208
        %7309 = vmatpush.msra.mxu0 %v7089
        %7310 = vmatpush.msra.mxu0 %v7086
        %7311 = vmatpush.msra.mxu0 %v7083
        %7312 = vmatpush.msra.mxu0 %v7080
        %7313 = vmatpush.msra.mxu0 %v6671
        %7314 = vmatpush.msra.mxu0 %v6668
        %7315 = vmatpush.msra.mxu0 %v6665
        %7316 = vmatpush.msra.mxu0 %v6662
        %7317 = vmatmul.f32.gmra.mxu0 %v7255
        %v7318 = vpop.f32.mrf.mxu0
        %v7319 = vadd.f32 %v7232, %v7318
        %7320 = vmatmul.f32.gmra.mxu0 %v7258
        %v7321 = vpop.f32.mrf.mxu0
        %v7322 = vadd.f32 %v7237, %v7321
        %7323 = vmatmul.f32.gmra.mxu0 %v7261
        %v7324 = vpop.f32.mrf.mxu0
        %v7325 = vadd.f32 %v7242, %v7324
        %7326 = vmatmul.f32.gmra.mxu0 %v7264
        %v7327 = vpop.f32.mrf.mxu0
        %v7328 = vadd.f32 %v7247, %v7327
        %7329 = vmatmul.f32.gmra.mxu0 %v7267
        %v7330 = vpop.f32.mrf.mxu0
        %v7331 = vadd.f32 %v7252, %v7330
        %7332 = vdwg.mxu0
        %7333 = vst [vmem:[%s447] sm:$0xff] %v7287
        %7334 = vst [vmem:[%s447 + $0x8] sm:$0xff] %v7319
        %7335 = vst [vmem:[%s447 + $0x10] sm:$0xff] %v7290
        %7336 = vst [vmem:[%s447 + $0x18] sm:$0xff] %v7322
        %7337 = vst [vmem:[%s447 + $0x20] sm:$0xff] %v7293
        %7338 = vst [vmem:[%s447 + $0x28] sm:$0xff] %v7325
        %7339 = vst [vmem:[%s447 + $0x30] sm:$0xff] %v7296
        %7340 = vst [vmem:[%s447 + $0x38] sm:$0xff] %v7328
        %7341 = vst [vmem:[%s447 + $0x40] sm:$0xff] %v7299
        %7342 = vst [vmem:[%s447 + $0x48] sm:$0xff] %v7331
        %p7343 = scmp.lt.s32.totalorder %s25, 1
        %s7344 = scalar_select %p7343, %s25, 1
        %s7345 = smul.addr %s7344, 10
        %s7346 = smul.addr %s7345, 8
        %s7347 = scalar_lea.vmem %s12, %s7346
        // Predicated region
        $region77: #{mff_forward.1} parent=67 // pred_check
          %p7348 = pneg %p300
        $region78: #{mff_forward.1} parent=67 // pred_check_branch
          %7350 = sbr.rel (%p7348) target = $region80
        $region79: #{mff_forward.1} parent=67 // pred_region
          _
        $region80: #{mff_forward.1} parent=67 // pred_fallthru
          _
      $region68: #{mff_forward.1} parent=5 // pred_fallthru
        _
      %p7351 = scmp.le.s32.totalorder 2, %s20
      // Predicated region
      $region81: #{mff_forward.1} parent=5 // pred_check
        %p7352 = pneg %p7351
      $region82: #{mff_forward.1} parent=5 // pred_check_branch
        %7354 = sbr.rel (%p7352) target = $region84
      $region83: #{mff_forward.1} parent=5 // pred_region
        %s7355 = ssub.s32 %s20, 2
        // Predicated region
        $region85: #{mff_forward.1} parent=83 // pred_check
          %p7356 = pneg %p306
        $region86: #{mff_forward.1} parent=83 // pred_check_branch
          %7358 = sbr.rel (%p7356) target = $region88
        $region87: #{mff_forward.1} parent=83 // pred_region
          %p7359 = scmp.lt.s32.totalorder %s26, 1
          %s7360 = scalar_select %p7359, %s26, 1
          %s7361 = smul.addr %s7360, 10
          %s7362 = smul.addr %s7361, 8
          %s7363 = scalar_lea.vmem %s12, %s7362
        $region88: #{mff_forward.1} parent=83 // pred_fallthru
          _
      $region84: #{mff_forward.1} parent=5 // pred_fallthru
        _
    $region6: #{mff_forward.1} parent=1 // loop_footer
      %s24 = sadd.s32 1, %s20
    $region7: #{mff_forward.1} parent=1 // loop_footer_branch
      %19 = sbr.rel target = $region3
    $region8: #{mff_forward.1} parent=1 // loop_exit
      _
    %7364 = vsyncpa [#allocation3], 1
    %s7365 = scalar_lea.sflag [#allocation3], 1
    %7366 = vsyncpa %s7365, 1
    %7367 = vsyncpa [#allocation5], 1

</llo_original>
